<compile_context>
chip_gen: v7x
topology: tpu7x:2x2x1
jax: 0.10.0
libtpu: 0.0.40
codegen_flags: <defaults>
</compile_context>

<pallas_src>
import jax
import jax.numpy as jnp
from jax.experimental import pallas as pl
from jax.experimental.pallas import tpu as pltpu

# ----------------------------- configuration --------------------------------
BATCH = 2
VOCAB = 50
VPAD = 128          # vocab padded to a full lane group
EMB = 32            # embedding_size == rnn_in_size
HIDDEN = 32         # hidden_size
RH = 32             # rnn_hidden_size
GW = 4 * RH         # gate-concatenated width (128) == 4 * HIDDEN here
N_FEATS = 16        # v_pool feature dim
N_TAGS = 16         # s_pool feature dim
N_POS = 16          # pos_emb feature dim
IN_SEQ = 8          # attention time steps
OUT_SEQ = 4         # decoding steps
FEAT_DIM = 64       # v_feats per-frame dim (6144 in the original model)
ENC_LAYERS = 1
ENC_DIRS = 1

_F32 = jnp.float32


def _vmem():
    return pl.BlockSpec(memory_space=pltpu.MemorySpace.VMEM)


# ----------------------- fused decode-loop kernel ----------------------------
def _fused_decode_kernel(
        vfeats_ref, h0_ref, c0_ref, rnnh0_ref,
        wa_all_ref, ua_ref, wc_ref, uc_ref,
        t2_ref, t5_ref, vpart_ref,
        vwv0_ref, vwv1_ref, vwv2_ref,
        wh_ref, wvec_ref,
        w12h_ref, w12a_ref, b12_ref,
        wout_ref, bout_ref, emb_ref,
        logits_ref):
    vfeats = vfeats_ref[...]                      # (B, T, F)

    # recurrent state (carried as values across the unrolled decode loop)
    h0 = h0_ref[...]
    c0 = c0_ref[...]
    hs = [h0, h0, h0]                             # v_sem / v_syn / se_sy hidden
    cs = [c0, c0, c0]
    rnn_h = rnnh0_ref[...]                        # merged hidden (B, H)
    dec_in = jnp.zeros((BATCH, EMB), _F32)        # initial decoder input = 0

    # load all weights / precomputed loop-invariants once (VMEM resident)
    wa_all = wa_all_ref[...]                      # (EMB, 3*GW)
    ua = [ua_ref[k] for k in range(3)]            # (H, GW)
    wc = [wc_ref[k] for k in range(3)]            # (GW, GW) block-diag
    uc = [uc_ref[k] for k in range(3)]            # (GW, GW) block-diag
    t2 = [t2_ref[k] for k in range(3)]            # (B, GW)  s @ Wb
    t5 = [t5_ref[k] for k in range(3)]            # (B, GW)  s @ Ub
    vpart = [vpart_ref[k] for k in range(3)]      # (B, GW)  ((v@Ca)*(s@Cb))@Cc + b
    vwv = [vwv0_ref[...], vwv1_ref[...], vwv2_ref[...]]   # (B, T, H) v_feats @ Wv
    wh = [wh_ref[k] for k in range(3)]            # (H, H)
    wvec = [wvec_ref[k] for k in range(3)]        # (1, H)
    w12h = w12h_ref[...]                          # (H, 2H)
    w12a = w12a_ref[...]                          # (F, 2H)
    b12 = b12_ref[...]                            # (1, 2H)
    wout = wout_ref[...]                          # (H, VPAD)
    bout = bout_ref[...]                          # (1, VPAD), pad cols = -1e30
    emb = emb_ref[...]                            # (VPAD, EMB), pad rows = 0

    col_f = jax.lax.broadcasted_iota(jnp.int32, (BATCH, VPAD), 1).astype(_F32)

    for t in range(OUT_SEQ):
        # --- three VNCL cells; shared lead matmul, block-diag gate matmuls ---
        t1_all = jnp.dot(dec_in, wa_all, preferred_element_type=_F32)  # (B, 3*GW)
        for k in range(3):
            t1 = t1_all[:, k * GW:(k + 1) * GW]                        # (B, GW)
            t6 = jnp.dot(hs[k], ua[k], preferred_element_type=_F32)    # (B, GW)
            gl = (jnp.dot(t1 * t2[k], wc[k], preferred_element_type=_F32)
                  + jnp.dot(t5[k] * t6, uc[k], preferred_element_type=_F32)
                  + vpart[k])                                          # (B, GW)
            i_g = jax.nn.sigmoid(gl[:, 0 * HIDDEN:1 * HIDDEN])
            f_g = jax.nn.sigmoid(gl[:, 1 * HIDDEN:2 * HIDDEN])
            o_g = jax.nn.sigmoid(gl[:, 2 * HIDDEN:3 * HIDDEN])
            c_g = jnp.tanh(gl[:, 3 * HIDDEN:4 * HIDDEN])
            c_new = f_g * cs[k] + i_g * c_g
            cs[k] = c_new
            hs[k] = o_g * jnp.tanh(c_new)

        # --- three soft-attention heads (v_feats@Wv hoisted to the wrapper) ---
        # TODO(synk): Attention module source not provided; standard additive
        # soft attention over the IN_SEQ frames is used as a stand-in.
        v_attn = jnp.zeros((BATCH, FEAT_DIM), _F32)
        for k in range(3):
            hwh = jnp.dot(hs[k], wh[k], preferred_element_type=_F32)   # (B, H)
            e = jnp.tanh(vwv[k] + hwh[:, None, :])                     # (B, T, H)
            scores = jnp.sum(e * wvec[k], axis=-1)                     # (B, T)
            m = jnp.max(scores, axis=-1, keepdims=True)
            p = jnp.exp(scores - m)
            alpha = p / jnp.sum(p, axis=-1, keepdims=True)             # (B, T)
            v_attn = v_attn + jnp.sum(alpha[:, :, None] * vfeats, axis=1)
        v_attn = v_attn * (1.0 / 3.0)

        # --- adaptive merge (merge1 & merge2 fused) + vocab projection -------
        beta12 = jax.nn.sigmoid(
            jnp.dot(rnn_h, w12h, preferred_element_type=_F32)
            + jnp.dot(v_attn, w12a, preferred_element_type=_F32) + b12)   # (B, 2H)
        beta1 = beta12[:, :HIDDEN]
        beta2 = beta12[:, HIDDEN:2 * HIDDEN]
        aa1 = beta1 * hs[0] + (1.0 - beta1) * hs[1]
        rnn_h = beta2 * aa1 + (1.0 - beta2) * hs[2]

        logits = jnp.dot(rnn_h, wout, preferred_element_type=_F32) + bout  # (B, VPAD)
        logits_ref[t] = logits

        # --- argmax (first max, test_sample_max=True) + embedding lookup -----
        row_max = jnp.max(logits, axis=-1, keepdims=True)
        masked = jnp.where(logits == row_max, col_f, float(VPAD))
        word_idx = jnp.min(masked, axis=-1, keepdims=True)                 # (B, 1)
        one_hot = (col_f == word_idx).astype(_F32)                         # (B, VPAD)
        dec_in = jnp.dot(one_hot, emb, preferred_element_type=_F32)        # (B, EMB)


# ------------------------------- forward wrapper -----------------------------
def decoder_forward(params, v_feats, enc_h, enc_c, s_pool, v_pool, pos_emb):
    """Inference path of SemSynANDecoder.forward_fn (captions=None, argmax)."""
    rnn_h0 = enc_h.reshape(ENC_LAYERS, ENC_DIRS, BATCH, HIDDEN)[-1, 0]
    rnn_c0 = enc_c.reshape(ENC_LAYERS, ENC_DIRS, BATCH, HIDDEN)[-1, 0]

    # once-per-sequence precompute (identical to VNCLCell.precompute_mats plus
    # the loop-invariant s@Ub and ((v@Ca)*(s@Cb))@Cc + b terms — all hoisted).
    cells = params["cells"]
    vs_pairs = [(v_pool, s_pool), (v_pool, pos_emb), (s_pool, pos_emb)]
    t2_l, t5_l, vp_l = [], [], []
    for c, (v, s) in zip(cells, vs_pairs):
        t2_l.append((s @ c["Wb"]).astype(_F32))
        t5_l.append((s @ c["Ub"]).astype(_F32))
        vp_l.append((((v @ c["Ca"]) * (s @ c["Cb"])) @ c["Cc_bd"] + c["b"]).astype(_F32))
    t2_stack = jnp.stack(t2_l)         # (3, B, GW)
    t5_stack = jnp.stack(t5_l)         # (3, B, GW)
    vpart_stack = jnp.stack(vp_l)      # (3, B, GW)

    # loop-invariant half of each attention head (v_feats @ Wv), hoisted.
    vwv = [jnp.einsum("btf,fh->bth", v_feats, wv).astype(_F32)
           for wv in params["attn_Wv"]]

    logits_pad = pl.pallas_call(
        _fused_decode_kernel,
        out_shape=jax.ShapeDtypeStruct((OUT_SEQ, BATCH, VPAD), _F32),
        in_specs=[_vmem()] * 22,
        out_specs=_vmem(),
    )(v_feats, rnn_h0, rnn_c0, rnn_h0,
      params["wa_all"], params["ua_stack"], params["wc_stack"], params["uc_stack"],
      t2_stack, t5_stack, vpart_stack,
      vwv[0], vwv[1], vwv[2],
      params["wh_stack"], params["wvec_stack"],
      params["w12h"], params["w12a"], params["b12"],
      params["wout_pad"], params["bout_pad"], params["emb_pad"])

    logits = jnp.transpose(logits_pad, (1, 0, 2))[:, :, :VOCAB]   # (B, OUT_SEQ, VOCAB)
    words = jnp.argmax(logits, axis=-1)                            # (B, OUT_SEQ)
    return logits, words


# ------------------------------ parameter init -------------------------------
def init_params(key):
    keys = iter(jax.random.split(key, 128))

    def w(shape, scale=0.1):
        return (scale * jax.random.normal(next(keys), shape)).astype(_F32)

    def bd_gates():
        # block-diagonal gate matrix: gate g's (RH, HIDDEN) block on the diagonal
        m = jnp.zeros((4 * RH, 4 * HIDDEN), _F32)
        for g in range(4):
            m = m.at[g * RH:(g + 1) * RH, g * HIDDEN:(g + 1) * HIDDEN].set(
                w((RH, HIDDEN)))
        return m

    def make_cell(d_in, n_s, n_v):
        # gate-concatenated weights in order [i, f, o, c]
        return {
            "Wa": w((d_in, GW)), "Ua": w((HIDDEN, GW)),
            "Ub": w((n_s, GW)), "Wb": w((n_s, GW)),
            "Ca": w((n_v, GW)), "Cb": w((n_s, GW)),
            "Wc_bd": bd_gates(), "Cc_bd": bd_gates(), "Uc_bd": bd_gates(),
            "b": jnp.zeros((1, 4 * HIDDEN), _F32),
        }

    def make_attn():
        return {"Wv": w((FEAT_DIM, HIDDEN)), "Wh": w((HIDDEN, HIDDEN)),
                "w": w((HIDDEN,))}

    cells = [make_cell(EMB, N_TAGS, N_FEATS),   # v_sem: (v=v_pool, s=s_pool)
             make_cell(EMB, N_POS, N_FEATS),    # v_syn: (v=v_pool, s=pos_emb)
             make_cell(EMB, N_POS, N_TAGS)]     # se_sy: (v=s_pool, s=pos_emb)
    attn = [make_attn(), make_attn(), make_attn()]

    W1h, W1a = w((HIDDEN, HIDDEN)), w((FEAT_DIM, HIDDEN))
    W2h, W2a = w((HIDDEN, HIDDEN)), w((FEAT_DIM, HIDDEN))
    Wout = w((HIDDEN, VOCAB))
    embedding = w((VOCAB, EMB), scale=1.0)

    params = {
        "cells": cells,
        # pre-stacked / pre-fused weight forms (built once at init)
        "wa_all": jnp.concatenate([c["Wa"] for c in cells], axis=1),   # (EMB, 3*GW)
        "ua_stack": jnp.stack([c["Ua"] for c in cells]),               # (3, H, GW)
        "wc_stack": jnp.stack([c["Wc_bd"] for c in cells]),            # (3, GW, GW)
        "uc_stack": jnp.stack([c["Uc_bd"] for c in cells]),            # (3, GW, GW)
        "attn_Wv": [a["Wv"] for a in attn],
        "wh_stack": jnp.stack([a["Wh"] for a in attn]),                # (3, H, H)
        "wvec_stack": jnp.stack([a["w"][None, :] for a in attn]),      # (3, 1, H)
        "w12h": jnp.concatenate([W1h, W2h], axis=1),                   # (H, 2H)
        "w12a": jnp.concatenate([W1a, W2a], axis=1),                   # (F, 2H)
        "b12": jnp.zeros((1, 2 * HIDDEN), _F32),
        # lane-dense padded vocab projection (pad bias = -1e30 so argmax never
        # lands in padding) and zero-padded embedding table.
        "wout_pad": jnp.zeros((HIDDEN, VPAD), _F32).at[:, :VOCAB].set(Wout),
        "bout_pad": jnp.full((1, VPAD), -1e30, _F32).at[:, :VOCAB].set(0.0),
        "emb_pad": jnp.zeros((VPAD, EMB), _F32).at[:VOCAB, :].set(embedding),
    }
    return params


# ----------------------------------- main ------------------------------------
if __name__ == "__main__":
    root = jax.random.PRNGKey(0)
    k_par, k_vf, k_h, k_c, k_sp, k_vp, k_pe = jax.random.split(root, 7)

    params = init_params(k_par)

    # videos_encodes = [v_feats, enc_hidden=(h,c), s_pool, v_pool, pos_emb]
    v_feats = jax.random.normal(k_vf, (BATCH, IN_SEQ, FEAT_DIM), _F32)
    enc_h = jax.random.normal(k_h, (ENC_LAYERS * ENC_DIRS, BATCH, HIDDEN), _F32)
    enc_c = jax.random.normal(k_c, (ENC_LAYERS * ENC_DIRS, BATCH, HIDDEN), _F32)
    s_pool = jax.random.normal(k_sp, (BATCH, N_TAGS), _F32)
    v_pool = jax.random.normal(k_vp, (BATCH, N_FEATS), _F32)
    pos_emb = jax.random.normal(k_pe, (BATCH, N_POS), _F32)

    fwd = jax.jit(decoder_forward)
    logits, words = fwd(params, v_feats, enc_h, enc_c, s_pool, v_pool, pos_emb)
    jax.block_until_ready((logits, words))

    assert logits.shape == (BATCH, OUT_SEQ, VOCAB)
    assert words.shape == (BATCH, OUT_SEQ)
    print("KERNEL_OK")
</pallas_src>

<mosaic_0001>
module attributes {stable_mosaic.version = 11 : i64} {
  func.func @_fused_decode_kernel(%arg0: memref<2x8x64xf32, #tpu.memory_space<vmem>>, %arg1: memref<2x32xf32, #tpu.memory_space<vmem>>, %arg2: memref<2x32xf32, #tpu.memory_space<vmem>>, %arg3: memref<2x32xf32, #tpu.memory_space<vmem>>, %arg4: memref<32x384xf32, #tpu.memory_space<vmem>>, %arg5: memref<3x32x128xf32, #tpu.memory_space<vmem>>, %arg6: memref<3x128x128xf32, #tpu.memory_space<vmem>>, %arg7: memref<3x128x128xf32, #tpu.memory_space<vmem>>, %arg8: memref<3x2x128xf32, #tpu.memory_space<vmem>>, %arg9: memref<3x2x128xf32, #tpu.memory_space<vmem>>, %arg10: memref<3x2x128xf32, #tpu.memory_space<vmem>>, %arg11: memref<2x8x32xf32, #tpu.memory_space<vmem>>, %arg12: memref<2x8x32xf32, #tpu.memory_space<vmem>>, %arg13: memref<2x8x32xf32, #tpu.memory_space<vmem>>, %arg14: memref<3x32x32xf32, #tpu.memory_space<vmem>>, %arg15: memref<3x1x32xf32, #tpu.memory_space<vmem>>, %arg16: memref<32x64xf32, #tpu.memory_space<vmem>>, %arg17: memref<64x64xf32, #tpu.memory_space<vmem>>, %arg18: memref<1x64xf32, #tpu.memory_space<vmem>>, %arg19: memref<32x128xf32, #tpu.memory_space<vmem>>, %arg20: memref<1x128xf32, #tpu.memory_space<vmem>>, %arg21: memref<128x32xf32, #tpu.memory_space<vmem>>, %arg22: memref<4x2x128xf32, #tpu.memory_space<vmem>>) attributes {dimension_semantics = [], scalar_prefetch = 0 : i64, scratch_operands = 0 : i64, tpu.core_type = #tpu.core_type<tc>} {
    %c0 = arith.constant 0 : index
    %c0_0 = arith.constant 0 : index
    %c0_1 = arith.constant 0 : index
    %0 = vector.load %arg0[%c0, %c0_0, %c0_1] : memref<2x8x64xf32, #tpu.memory_space<vmem>>, vector<2x8x64xf32>
    %c0_2 = arith.constant 0 : index
    %c0_3 = arith.constant 0 : index
    %1 = vector.load %arg1[%c0_2, %c0_3] : memref<2x32xf32, #tpu.memory_space<vmem>>, vector<2x32xf32>
    %c0_4 = arith.constant 0 : index
    %c0_5 = arith.constant 0 : index
    %2 = vector.load %arg2[%c0_4, %c0_5] : memref<2x32xf32, #tpu.memory_space<vmem>>, vector<2x32xf32>
    %c0_6 = arith.constant 0 : index
    %c0_7 = arith.constant 0 : index
    %3 = vector.load %arg3[%c0_6, %c0_7] : memref<2x32xf32, #tpu.memory_space<vmem>>, vector<2x32xf32>
    %cst = arith.constant 0.000000e+00 : f32
    %4 = vector.broadcast %cst : f32 to vector<2x32xf32>
    %c0_8 = arith.constant 0 : index
    %c0_9 = arith.constant 0 : index
    %5 = vector.load %arg4[%c0_8, %c0_9] : memref<32x384xf32, #tpu.memory_space<vmem>>, vector<32x384xf32>
    %c0_10 = arith.constant 0 : index
    %c0_11 = arith.constant 0 : index
    %c0_12 = arith.constant 0 : index
    %6 = vector.load %arg5[%c0_10, %c0_11, %c0_12] : memref<3x32x128xf32, #tpu.memory_space<vmem>>, vector<1x32x128xf32>
    %7 = vector.shape_cast %6 : vector<1x32x128xf32> to vector<32x128xf32>
    %c1 = arith.constant 1 : index
    %c0_13 = arith.constant 0 : index
    %c0_14 = arith.constant 0 : index
    %8 = vector.load %arg5[%c1, %c0_13, %c0_14] : memref<3x32x128xf32, #tpu.memory_space<vmem>>, vector<1x32x128xf32>
    %9 = vector.shape_cast %8 : vector<1x32x128xf32> to vector<32x128xf32>
    %c2 = arith.constant 2 : index
    %c0_15 = arith.constant 0 : index
    %c0_16 = arith.constant 0 : index
    %10 = vector.load %arg5[%c2, %c0_15, %c0_16] : memref<3x32x128xf32, #tpu.memory_space<vmem>>, vector<1x32x128xf32>
    %11 = vector.shape_cast %10 : vector<1x32x128xf32> to vector<32x128xf32>
    %c0_17 = arith.constant 0 : index
    %c0_18 = arith.constant 0 : index
    %c0_19 = arith.constant 0 : index
    %12 = vector.load %arg6[%c0_17, %c0_18, %c0_19] : memref<3x128x128xf32, #tpu.memory_space<vmem>>, vector<1x128x128xf32>
    %13 = vector.shape_cast %12 : vector<1x128x128xf32> to vector<128x128xf32>
    %c1_20 = arith.constant 1 : index
    %c0_21 = arith.constant 0 : index
    %c0_22 = arith.constant 0 : index
    %14 = vector.load %arg6[%c1_20, %c0_21, %c0_22] : memref<3x128x128xf32, #tpu.memory_space<vmem>>, vector<1x128x128xf32>
    %15 = vector.shape_cast %14 : vector<1x128x128xf32> to vector<128x128xf32>
    %c2_23 = arith.constant 2 : index
    %c0_24 = arith.constant 0 : index
    %c0_25 = arith.constant 0 : index
    %16 = vector.load %arg6[%c2_23, %c0_24, %c0_25] : memref<3x128x128xf32, #tpu.memory_space<vmem>>, vector<1x128x128xf32>
    %17 = vector.shape_cast %16 : vector<1x128x128xf32> to vector<128x128xf32>
    %c0_26 = arith.constant 0 : index
    %c0_27 = arith.constant 0 : index
    %c0_28 = arith.constant 0 : index
    %18 = vector.load %arg7[%c0_26, %c0_27, %c0_28] : memref<3x128x128xf32, #tpu.memory_space<vmem>>, vector<1x128x128xf32>
    %19 = vector.shape_cast %18 : vector<1x128x128xf32> to vector<128x128xf32>
    %c1_29 = arith.constant 1 : index
    %c0_30 = arith.constant 0 : index
    %c0_31 = arith.constant 0 : index
    %20 = vector.load %arg7[%c1_29, %c0_30, %c0_31] : memref<3x128x128xf32, #tpu.memory_space<vmem>>, vector<1x128x128xf32>
    %21 = vector.shape_cast %20 : vector<1x128x128xf32> to vector<128x128xf32>
    %c2_32 = arith.constant 2 : index
    %c0_33 = arith.constant 0 : index
    %c0_34 = arith.constant 0 : index
    %22 = vector.load %arg7[%c2_32, %c0_33, %c0_34] : memref<3x128x128xf32, #tpu.memory_space<vmem>>, vector<1x128x128xf32>
    %23 = vector.shape_cast %22 : vector<1x128x128xf32> to vector<128x128xf32>
    %c0_35 = arith.constant 0 : index
    %c0_36 = arith.constant 0 : index
    %c0_37 = arith.constant 0 : index
    %24 = vector.load %arg8[%c0_35, %c0_36, %c0_37] : memref<3x2x128xf32, #tpu.memory_space<vmem>>, vector<1x2x128xf32>
    %25 = vector.shape_cast %24 : vector<1x2x128xf32> to vector<2x128xf32>
    %c1_38 = arith.constant 1 : index
    %c0_39 = arith.constant 0 : index
    %c0_40 = arith.constant 0 : index
    %26 = vector.load %arg8[%c1_38, %c0_39, %c0_40] : memref<3x2x128xf32, #tpu.memory_space<vmem>>, vector<1x2x128xf32>
    %27 = vector.shape_cast %26 : vector<1x2x128xf32> to vector<2x128xf32>
    %c2_41 = arith.constant 2 : index
    %c0_42 = arith.constant 0 : index
    %c0_43 = arith.constant 0 : index
    %28 = vector.load %arg8[%c2_41, %c0_42, %c0_43] : memref<3x2x128xf32, #tpu.memory_space<vmem>>, vector<1x2x128xf32>
    %29 = vector.shape_cast %28 : vector<1x2x128xf32> to vector<2x128xf32>
    %c0_44 = arith.constant 0 : index
    %c0_45 = arith.constant 0 : index
    %c0_46 = arith.constant 0 : index
    %30 = vector.load %arg9[%c0_44, %c0_45, %c0_46] : memref<3x2x128xf32, #tpu.memory_space<vmem>>, vector<1x2x128xf32>
    %31 = vector.shape_cast %30 : vector<1x2x128xf32> to vector<2x128xf32>
    %c1_47 = arith.constant 1 : index
    %c0_48 = arith.constant 0 : index
    %c0_49 = arith.constant 0 : index
    %32 = vector.load %arg9[%c1_47, %c0_48, %c0_49] : memref<3x2x128xf32, #tpu.memory_space<vmem>>, vector<1x2x128xf32>
    %33 = vector.shape_cast %32 : vector<1x2x128xf32> to vector<2x128xf32>
    %c2_50 = arith.constant 2 : index
    %c0_51 = arith.constant 0 : index
    %c0_52 = arith.constant 0 : index
    %34 = vector.load %arg9[%c2_50, %c0_51, %c0_52] : memref<3x2x128xf32, #tpu.memory_space<vmem>>, vector<1x2x128xf32>
    %35 = vector.shape_cast %34 : vector<1x2x128xf32> to vector<2x128xf32>
    %c0_53 = arith.constant 0 : index
    %c0_54 = arith.constant 0 : index
    %c0_55 = arith.constant 0 : index
    %36 = vector.load %arg10[%c0_53, %c0_54, %c0_55] : memref<3x2x128xf32, #tpu.memory_space<vmem>>, vector<1x2x128xf32>
    %37 = vector.shape_cast %36 : vector<1x2x128xf32> to vector<2x128xf32>
    %c1_56 = arith.constant 1 : index
    %c0_57 = arith.constant 0 : index
    %c0_58 = arith.constant 0 : index
    %38 = vector.load %arg10[%c1_56, %c0_57, %c0_58] : memref<3x2x128xf32, #tpu.memory_space<vmem>>, vector<1x2x128xf32>
    %39 = vector.shape_cast %38 : vector<1x2x128xf32> to vector<2x128xf32>
    %c2_59 = arith.constant 2 : index
    %c0_60 = arith.constant 0 : index
    %c0_61 = arith.constant 0 : index
    %40 = vector.load %arg10[%c2_59, %c0_60, %c0_61] : memref<3x2x128xf32, #tpu.memory_space<vmem>>, vector<1x2x128xf32>
    %41 = vector.shape_cast %40 : vector<1x2x128xf32> to vector<2x128xf32>
    %c0_62 = arith.constant 0 : index
    %c0_63 = arith.constant 0 : index
    %c0_64 = arith.constant 0 : index
    %42 = vector.load %arg11[%c0_62, %c0_63, %c0_64] : memref<2x8x32xf32, #tpu.memory_space<vmem>>, vector<2x8x32xf32>
    %c0_65 = arith.constant 0 : index
    %c0_66 = arith.constant 0 : index
    %c0_67 = arith.constant 0 : index
    %43 = vector.load %arg12[%c0_65, %c0_66, %c0_67] : memref<2x8x32xf32, #tpu.memory_space<vmem>>, vector<2x8x32xf32>
    %c0_68 = arith.constant 0 : index
    %c0_69 = arith.constant 0 : index
    %c0_70 = arith.constant 0 : index
    %44 = vector.load %arg13[%c0_68, %c0_69, %c0_70] : memref<2x8x32xf32, #tpu.memory_space<vmem>>, vector<2x8x32xf32>
    %c0_71 = arith.constant 0 : index
    %c0_72 = arith.constant 0 : index
    %c0_73 = arith.constant 0 : index
    %45 = vector.load %arg14[%c0_71, %c0_72, %c0_73] : memref<3x32x32xf32, #tpu.memory_space<vmem>>, vector<1x32x32xf32>
    %46 = vector.shape_cast %45 : vector<1x32x32xf32> to vector<32x32xf32>
    %c1_74 = arith.constant 1 : index
    %c0_75 = arith.constant 0 : index
    %c0_76 = arith.constant 0 : index
    %47 = vector.load %arg14[%c1_74, %c0_75, %c0_76] : memref<3x32x32xf32, #tpu.memory_space<vmem>>, vector<1x32x32xf32>
    %48 = vector.shape_cast %47 : vector<1x32x32xf32> to vector<32x32xf32>
    %c2_77 = arith.constant 2 : index
    %c0_78 = arith.constant 0 : index
    %c0_79 = arith.constant 0 : index
    %49 = vector.load %arg14[%c2_77, %c0_78, %c0_79] : memref<3x32x32xf32, #tpu.memory_space<vmem>>, vector<1x32x32xf32>
    %50 = vector.shape_cast %49 : vector<1x32x32xf32> to vector<32x32xf32>
    %c0_80 = arith.constant 0 : index
    %c0_81 = arith.constant 0 : index
    %c0_82 = arith.constant 0 : index
    %51 = vector.load %arg15[%c0_80, %c0_81, %c0_82] : memref<3x1x32xf32, #tpu.memory_space<vmem>>, vector<1x1x32xf32>
    %52 = vector.shape_cast %51 : vector<1x1x32xf32> to vector<1x32xf32>
    %c1_83 = arith.constant 1 : index
    %c0_84 = arith.constant 0 : index
    %c0_85 = arith.constant 0 : index
    %53 = vector.load %arg15[%c1_83, %c0_84, %c0_85] : memref<3x1x32xf32, #tpu.memory_space<vmem>>, vector<1x1x32xf32>
    %54 = vector.shape_cast %53 : vector<1x1x32xf32> to vector<1x32xf32>
    %c2_86 = arith.constant 2 : index
    %c0_87 = arith.constant 0 : index
    %c0_88 = arith.constant 0 : index
    %55 = vector.load %arg15[%c2_86, %c0_87, %c0_88] : memref<3x1x32xf32, #tpu.memory_space<vmem>>, vector<1x1x32xf32>
    %56 = vector.shape_cast %55 : vector<1x1x32xf32> to vector<1x32xf32>
    %c0_89 = arith.constant 0 : index
    %c0_90 = arith.constant 0 : index
    %57 = vector.load %arg16[%c0_89, %c0_90] : memref<32x64xf32, #tpu.memory_space<vmem>>, vector<32x64xf32>
    %c0_91 = arith.constant 0 : index
    %c0_92 = arith.constant 0 : index
    %58 = vector.load %arg17[%c0_91, %c0_92] : memref<64x64xf32, #tpu.memory_space<vmem>>, vector<64x64xf32>
    %c0_93 = arith.constant 0 : index
    %c0_94 = arith.constant 0 : index
    %59 = vector.load %arg18[%c0_93, %c0_94] : memref<1x64xf32, #tpu.memory_space<vmem>>, vector<1x64xf32>
    %c0_95 = arith.constant 0 : index
    %c0_96 = arith.constant 0 : index
    %60 = vector.load %arg19[%c0_95, %c0_96] : memref<32x128xf32, #tpu.memory_space<vmem>>, vector<32x128xf32>
    %c0_97 = arith.constant 0 : index
    %c0_98 = arith.constant 0 : index
    %61 = vector.load %arg20[%c0_97, %c0_98] : memref<1x128xf32, #tpu.memory_space<vmem>>, vector<1x128xf32>
    %c0_99 = arith.constant 0 : index
    %c0_100 = arith.constant 0 : index
    %62 = vector.load %arg21[%c0_99, %c0_100] : memref<128x32xf32, #tpu.memory_space<vmem>>, vector<128x32xf32>
    %63 = tpu.iota {dimensions = array<i32: 1>} : vector<2x128xi32>
    %64 = arith.sitofp %63 : vector<2x128xi32> to vector<2x128xf32>
    %cst_101 = arith.constant dense<0.000000e+00> : vector<2x384xf32>
    %65 = tpu.matmul %4, %5, %cst_101 {dimension_numbers = #tpu.dot_dimension_numbers<[1], [0], [0], [1], [0, 0, 1, 1], [], []>} : vector<2x32xf32>, vector<32x384xf32>, vector<2x384xf32> -> vector<2x384xf32>
    %66 = vector.extract_strided_slice %65 {offsets = [0, 0], sizes = [2, 128], strides = [1, 1]} : vector<2x384xf32> to vector<2x128xf32>
    %cst_102 = arith.constant dense<0.000000e+00> : vector<2x128xf32>
    %67 = tpu.matmul %1, %7, %cst_102 {dimension_numbers = #tpu.dot_dimension_numbers<[1], [0], [0], [1], [0, 0, 1, 1], [], []>} : vector<2x32xf32>, vector<32x128xf32>, vector<2x128xf32> -> vector<2x128xf32>
    %68 = arith.mulf %66, %25 : vector<2x128xf32>
    %cst_103 = arith.constant dense<0.000000e+00> : vector<2x128xf32>
    %69 = tpu.matmul %68, %13, %cst_103 {dimension_numbers = #tpu.dot_dimension_numbers<[1], [0], [0], [1], [0, 0, 1, 1], [], []>} : vector<2x128xf32>, vector<128x128xf32>, vector<2x128xf32> -> vector<2x128xf32>
    %70 = arith.mulf %31, %67 : vector<2x128xf32>
    %cst_104 = arith.constant dense<0.000000e+00> : vector<2x128xf32>
    %71 = tpu.matmul %70, %19, %cst_104 {dimension_numbers = #tpu.dot_dimension_numbers<[1], [0], [0], [1], [0, 0, 1, 1], [], []>} : vector<2x128xf32>, vector<128x128xf32>, vector<2x128xf32> -> vector<2x128xf32>
    %72 = arith.addf %69, %71 : vector<2x128xf32>
    %73 = arith.addf %72, %37 : vector<2x128xf32>
    %74 = vector.extract_strided_slice %73 {offsets = [0, 0], sizes = [2, 32], strides = [1, 1]} : vector<2x128xf32> to vector<2x32xf32>
    %75 = arith.negf %74 : vector<2x32xf32>
    %76 = math.exp %75 : vector<2x32xf32>
    %cst_105 = arith.constant 1.000000e+00 : f32
    %77 = vector.broadcast %cst_105 : f32 to vector<2x32xf32>
    %78 = arith.addf %77, %76 : vector<2x32xf32>
    %79 = arith.divf %77, %78 : vector<2x32xf32>
    %80 = vector.extract_strided_slice %73 {offsets = [0, 32], sizes = [2, 32], strides = [1, 1]} : vector<2x128xf32> to vector<2x32xf32>
    %81 = arith.negf %80 : vector<2x32xf32>
    %82 = math.exp %81 : vector<2x32xf32>
    %cst_106 = arith.constant 1.000000e+00 : f32
    %83 = vector.broadcast %cst_106 : f32 to vector<2x32xf32>
    %84 = arith.addf %83, %82 : vector<2x32xf32>
    %85 = arith.divf %83, %84 : vector<2x32xf32>
    %86 = vector.extract_strided_slice %73 {offsets = [0, 64], sizes = [2, 32], strides = [1, 1]} : vector<2x128xf32> to vector<2x32xf32>
    %87 = arith.negf %86 : vector<2x32xf32>
    %88 = math.exp %87 : vector<2x32xf32>
    %cst_107 = arith.constant 1.000000e+00 : f32
    %89 = vector.broadcast %cst_107 : f32 to vector<2x32xf32>
    %90 = arith.addf %89, %88 : vector<2x32xf32>
    %91 = arith.divf %89, %90 : vector<2x32xf32>
    %92 = vector.extract_strided_slice %73 {offsets = [0, 96], sizes = [2, 32], strides = [1, 1]} : vector<2x128xf32> to vector<2x32xf32>
    %93 = math.tanh %92 : vector<2x32xf32>
    %94 = arith.mulf %85, %2 : vector<2x32xf32>
    %95 = arith.mulf %79, %93 : vector<2x32xf32>
    %96 = arith.addf %94, %95 : vector<2x32xf32>
    %97 = math.tanh %96 : vector<2x32xf32>
    %98 = arith.mulf %91, %97 : vector<2x32xf32>
    %99 = vector.extract_strided_slice %65 {offsets = [0, 128], sizes = [2, 128], strides = [1, 1]} : vector<2x384xf32> to vector<2x128xf32>
    %cst_108 = arith.constant dense<0.000000e+00> : vector<2x128xf32>
    %100 = tpu.matmul %1, %9, %cst_108 {dimension_numbers = #tpu.dot_dimension_numbers<[1], [0], [0], [1], [0, 0, 1, 1], [], []>} : vector<2x32xf32>, vector<32x128xf32>, vector<2x128xf32> -> vector<2x128xf32>
    %101 = arith.mulf %99, %27 : vector<2x128xf32>
    %cst_109 = arith.constant dense<0.000000e+00> : vector<2x128xf32>
    %102 = tpu.matmul %101, %15, %cst_109 {dimension_numbers = #tpu.dot_dimension_numbers<[1], [0], [0], [1], [0, 0, 1, 1], [], []>} : vector<2x128xf32>, vector<128x128xf32>, vector<2x128xf32> -> vector<2x128xf32>
    %103 = arith.mulf %33, %100 : vector<2x128xf32>
    %cst_110 = arith.constant dense<0.000000e+00> : vector<2x128xf32>
    %104 = tpu.matmul %103, %21, %cst_110 {dimension_numbers = #tpu.dot_dimension_numbers<[1], [0], [0], [1], [0, 0, 1, 1], [], []>} : vector<2x128xf32>, vector<128x128xf32>, vector<2x128xf32> -> vector<2x128xf32>
    %105 = arith.addf %102, %104 : vector<2x128xf32>
    %106 = arith.addf %105, %39 : vector<2x128xf32>
    %107 = vector.extract_strided_slice %106 {offsets = [0, 0], sizes = [2, 32], strides = [1, 1]} : vector<2x128xf32> to vector<2x32xf32>
    %108 = arith.negf %107 : vector<2x32xf32>
    %109 = math.exp %108 : vector<2x32xf32>
    %cst_111 = arith.constant 1.000000e+00 : f32
    %110 = vector.broadcast %cst_111 : f32 to vector<2x32xf32>
    %111 = arith.addf %110, %109 : vector<2x32xf32>
    %112 = arith.divf %110, %111 : vector<2x32xf32>
    %113 = vector.extract_strided_slice %106 {offsets = [0, 32], sizes = [2, 32], strides = [1, 1]} : vector<2x128xf32> to vector<2x32xf32>
    %114 = arith.negf %113 : vector<2x32xf32>
    %115 = math.exp %114 : vector<2x32xf32>
    %cst_112 = arith.constant 1.000000e+00 : f32
    %116 = vector.broadcast %cst_112 : f32 to vector<2x32xf32>
    %117 = arith.addf %116, %115 : vector<2x32xf32>
    %118 = arith.divf %116, %117 : vector<2x32xf32>
    %119 = vector.extract_strided_slice %106 {offsets = [0, 64], sizes = [2, 32], strides = [1, 1]} : vector<2x128xf32> to vector<2x32xf32>
    %120 = arith.negf %119 : vector<2x32xf32>
    %121 = math.exp %120 : vector<2x32xf32>
    %cst_113 = arith.constant 1.000000e+00 : f32
    %122 = vector.broadcast %cst_113 : f32 to vector<2x32xf32>
    %123 = arith.addf %122, %121 : vector<2x32xf32>
    %124 = arith.divf %122, %123 : vector<2x32xf32>
    %125 = vector.extract_strided_slice %106 {offsets = [0, 96], sizes = [2, 32], strides = [1, 1]} : vector<2x128xf32> to vector<2x32xf32>
    %126 = math.tanh %125 : vector<2x32xf32>
    %127 = arith.mulf %118, %2 : vector<2x32xf32>
    %128 = arith.mulf %112, %126 : vector<2x32xf32>
    %129 = arith.addf %127, %128 : vector<2x32xf32>
    %130 = math.tanh %129 : vector<2x32xf32>
    %131 = arith.mulf %124, %130 : vector<2x32xf32>
    %132 = vector.extract_strided_slice %65 {offsets = [0, 256], sizes = [2, 128], strides = [1, 1]} : vector<2x384xf32> to vector<2x128xf32>
    %cst_114 = arith.constant dense<0.000000e+00> : vector<2x128xf32>
    %133 = tpu.matmul %1, %11, %cst_114 {dimension_numbers = #tpu.dot_dimension_numbers<[1], [0], [0], [1], [0, 0, 1, 1], [], []>} : vector<2x32xf32>, vector<32x128xf32>, vector<2x128xf32> -> vector<2x128xf32>
    %134 = arith.mulf %132, %29 : vector<2x128xf32>
    %cst_115 = arith.constant dense<0.000000e+00> : vector<2x128xf32>
    %135 = tpu.matmul %134, %17, %cst_115 {dimension_numbers = #tpu.dot_dimension_numbers<[1], [0], [0], [1], [0, 0, 1, 1], [], []>} : vector<2x128xf32>, vector<128x128xf32>, vector<2x128xf32> -> vector<2x128xf32>
    %136 = arith.mulf %35, %133 : vector<2x128xf32>
    %cst_116 = arith.constant dense<0.000000e+00> : vector<2x128xf32>
    %137 = tpu.matmul %136, %23, %cst_116 {dimension_numbers = #tpu.dot_dimension_numbers<[1], [0], [0], [1], [0, 0, 1, 1], [], []>} : vector<2x128xf32>, vector<128x128xf32>, vector<2x128xf32> -> vector<2x128xf32>
    %138 = arith.addf %135, %137 : vector<2x128xf32>
    %139 = arith.addf %138, %41 : vector<2x128xf32>
    %140 = vector.extract_strided_slice %139 {offsets = [0, 0], sizes = [2, 32], strides = [1, 1]} : vector<2x128xf32> to vector<2x32xf32>
    %141 = arith.negf %140 : vector<2x32xf32>
    %142 = math.exp %141 : vector<2x32xf32>
    %cst_117 = arith.constant 1.000000e+00 : f32
    %143 = vector.broadcast %cst_117 : f32 to vector<2x32xf32>
    %144 = arith.addf %143, %142 : vector<2x32xf32>
    %145 = arith.divf %143, %144 : vector<2x32xf32>
    %146 = vector.extract_strided_slice %139 {offsets = [0, 32], sizes = [2, 32], strides = [1, 1]} : vector<2x128xf32> to vector<2x32xf32>
    %147 = arith.negf %146 : vector<2x32xf32>
    %148 = math.exp %147 : vector<2x32xf32>
    %cst_118 = arith.constant 1.000000e+00 : f32
    %149 = vector.broadcast %cst_118 : f32 to vector<2x32xf32>
    %150 = arith.addf %149, %148 : vector<2x32xf32>
    %151 = arith.divf %149, %150 : vector<2x32xf32>
    %152 = vector.extract_strided_slice %139 {offsets = [0, 64], sizes = [2, 32], strides = [1, 1]} : vector<2x128xf32> to vector<2x32xf32>
    %153 = arith.negf %152 : vector<2x32xf32>
    %154 = math.exp %153 : vector<2x32xf32>
    %cst_119 = arith.constant 1.000000e+00 : f32
    %155 = vector.broadcast %cst_119 : f32 to vector<2x32xf32>
    %156 = arith.addf %155, %154 : vector<2x32xf32>
    %157 = arith.divf %155, %156 : vector<2x32xf32>
    %158 = vector.extract_strided_slice %139 {offsets = [0, 96], sizes = [2, 32], strides = [1, 1]} : vector<2x128xf32> to vector<2x32xf32>
    %159 = math.tanh %158 : vector<2x32xf32>
    %160 = arith.mulf %151, %2 : vector<2x32xf32>
    %161 = arith.mulf %145, %159 : vector<2x32xf32>
    %162 = arith.addf %160, %161 : vector<2x32xf32>
    %163 = math.tanh %162 : vector<2x32xf32>
    %164 = arith.mulf %157, %163 : vector<2x32xf32>
    %cst_120 = arith.constant 0.000000e+00 : f32
    %165 = vector.broadcast %cst_120 : f32 to vector<2x64xf32>
    %cst_121 = arith.constant dense<0.000000e+00> : vector<2x32xf32>
    %166 = tpu.matmul %98, %46, %cst_121 {dimension_numbers = #tpu.dot_dimension_numbers<[1], [0], [0], [1], [0, 0, 1, 1], [], []>} : vector<2x32xf32>, vector<32x32xf32>, vector<2x32xf32> -> vector<2x32xf32>
    %167 = vector.shape_cast %166 : vector<2x32xf32> to vector<2x1x32xf32>
    %168 = vector.broadcast %167 : vector<2x1x32xf32> to vector<2x8x32xf32>
    %169 = arith.addf %42, %168 : vector<2x8x32xf32>
    %170 = math.tanh %169 : vector<2x8x32xf32>
    %171 = vector.shape_cast %52 : vector<1x32xf32> to vector<1x1x32xf32>
    %172 = vector.broadcast %171 : vector<1x1x32xf32> to vector<2x8x32xf32>
    %173 = arith.mulf %170, %172 : vector<2x8x32xf32>
    %cst_122 = arith.constant dense<0.000000e+00> : vector<2x8xf32>
    %174 = vector.multi_reduction <add>, %173, %cst_122 [2] : vector<2x8x32xf32> to vector<2x8xf32>
    %cst_123 = arith.constant dense<0xFF800000> : vector<2xf32>
    %175 = vector.multi_reduction <maximumf>, %174, %cst_123 [1] : vector<2x8xf32> to vector<2xf32>
    %176 = vector.shape_cast %175 : vector<2xf32> to vector<2x1xf32>
    %177 = vector.broadcast %176 : vector<2x1xf32> to vector<2x8xf32>
    %178 = arith.subf %174, %177 : vector<2x8xf32>
    %179 = math.exp %178 : vector<2x8xf32>
    %cst_124 = arith.constant dense<0.000000e+00> : vector<2xf32>
    %180 = vector.multi_reduction <add>, %179, %cst_124 [1] : vector<2x8xf32> to vector<2xf32>
    %181 = vector.shape_cast %180 : vector<2xf32> to vector<2x1xf32>
    %182 = vector.broadcast %181 : vector<2x1xf32> to vector<2x8xf32>
    %183 = arith.divf %179, %182 : vector<2x8xf32>
    %184 = vector.shape_cast %183 : vector<2x8xf32> to vector<2x8x1xf32>
    %185 = vector.broadcast %184 : vector<2x8x1xf32> to vector<2x8x64xf32>
    %186 = arith.mulf %185, %0 : vector<2x8x64xf32>
    %cst_125 = arith.constant dense<0.000000e+00> : vector<2x64xf32>
    %187 = vector.multi_reduction <add>, %186, %cst_125 [1] : vector<2x8x64xf32> to vector<2x64xf32>
    %188 = arith.addf %165, %187 : vector<2x64xf32>
    %cst_126 = arith.constant dense<0.000000e+00> : vector<2x32xf32>
    %189 = tpu.matmul %131, %48, %cst_126 {dimension_numbers = #tpu.dot_dimension_numbers<[1], [0], [0], [1], [0, 0, 1, 1], [], []>} : vector<2x32xf32>, vector<32x32xf32>, vector<2x32xf32> -> vector<2x32xf32>
    %190 = vector.shape_cast %189 : vector<2x32xf32> to vector<2x1x32xf32>
    %191 = vector.broadcast %190 : vector<2x1x32xf32> to vector<2x8x32xf32>
    %192 = arith.addf %43, %191 : vector<2x8x32xf32>
    %193 = math.tanh %192 : vector<2x8x32xf32>
    %194 = vector.shape_cast %54 : vector<1x32xf32> to vector<1x1x32xf32>
    %195 = vector.broadcast %194 : vector<1x1x32xf32> to vector<2x8x32xf32>
    %196 = arith.mulf %193, %195 : vector<2x8x32xf32>
    %cst_127 = arith.constant dense<0.000000e+00> : vector<2x8xf32>
    %197 = vector.multi_reduction <add>, %196, %cst_127 [2] : vector<2x8x32xf32> to vector<2x8xf32>
    %cst_128 = arith.constant dense<0xFF800000> : vector<2xf32>
    %198 = vector.multi_reduction <maximumf>, %197, %cst_128 [1] : vector<2x8xf32> to vector<2xf32>
    %199 = vector.shape_cast %198 : vector<2xf32> to vector<2x1xf32>
    %200 = vector.broadcast %199 : vector<2x1xf32> to vector<2x8xf32>
    %201 = arith.subf %197, %200 : vector<2x8xf32>
    %202 = math.exp %201 : vector<2x8xf32>
    %cst_129 = arith.constant dense<0.000000e+00> : vector<2xf32>
    %203 = vector.multi_reduction <add>, %202, %cst_129 [1] : vector<2x8xf32> to vector<2xf32>
    %204 = vector.shape_cast %203 : vector<2xf32> to vector<2x1xf32>
    %205 = vector.broadcast %204 : vector<2x1xf32> to vector<2x8xf32>
    %206 = arith.divf %202, %205 : vector<2x8xf32>
    %207 = vector.shape_cast %206 : vector<2x8xf32> to vector<2x8x1xf32>
    %208 = vector.broadcast %207 : vector<2x8x1xf32> to vector<2x8x64xf32>
    %209 = arith.mulf %208, %0 : vector<2x8x64xf32>
    %cst_130 = arith.constant dense<0.000000e+00> : vector<2x64xf32>
    %210 = vector.multi_reduction <add>, %209, %cst_130 [1] : vector<2x8x64xf32> to vector<2x64xf32>
    %211 = arith.addf %188, %210 : vector<2x64xf32>
    %cst_131 = arith.constant dense<0.000000e+00> : vector<2x32xf32>
    %212 = tpu.matmul %164, %50, %cst_131 {dimension_numbers = #tpu.dot_dimension_numbers<[1], [0], [0], [1], [0, 0, 1, 1], [], []>} : vector<2x32xf32>, vector<32x32xf32>, vector<2x32xf32> -> vector<2x32xf32>
    %213 = vector.shape_cast %212 : vector<2x32xf32> to vector<2x1x32xf32>
    %214 = vector.broadcast %213 : vector<2x1x32xf32> to vector<2x8x32xf32>
    %215 = arith.addf %44, %214 : vector<2x8x32xf32>
    %216 = math.tanh %215 : vector<2x8x32xf32>
    %217 = vector.shape_cast %56 : vector<1x32xf32> to vector<1x1x32xf32>
    %218 = vector.broadcast %217 : vector<1x1x32xf32> to vector<2x8x32xf32>
    %219 = arith.mulf %216, %218 : vector<2x8x32xf32>
    %cst_132 = arith.constant dense<0.000000e+00> : vector<2x8xf32>
    %220 = vector.multi_reduction <add>, %219, %cst_132 [2] : vector<2x8x32xf32> to vector<2x8xf32>
    %cst_133 = arith.constant dense<0xFF800000> : vector<2xf32>
    %221 = vector.multi_reduction <maximumf>, %220, %cst_133 [1] : vector<2x8xf32> to vector<2xf32>
    %222 = vector.shape_cast %221 : vector<2xf32> to vector<2x1xf32>
    %223 = vector.broadcast %222 : vector<2x1xf32> to vector<2x8xf32>
    %224 = arith.subf %220, %223 : vector<2x8xf32>
    %225 = math.exp %224 : vector<2x8xf32>
    %cst_134 = arith.constant dense<0.000000e+00> : vector<2xf32>
    %226 = vector.multi_reduction <add>, %225, %cst_134 [1] : vector<2x8xf32> to vector<2xf32>
    %227 = vector.shape_cast %226 : vector<2xf32> to vector<2x1xf32>
    %228 = vector.broadcast %227 : vector<2x1xf32> to vector<2x8xf32>
    %229 = arith.divf %225, %228 : vector<2x8xf32>
    %230 = vector.shape_cast %229 : vector<2x8xf32> to vector<2x8x1xf32>
    %231 = vector.broadcast %230 : vector<2x8x1xf32> to vector<2x8x64xf32>
    %232 = arith.mulf %231, %0 : vector<2x8x64xf32>
    %cst_135 = arith.constant dense<0.000000e+00> : vector<2x64xf32>
    %233 = vector.multi_reduction <add>, %232, %cst_135 [1] : vector<2x8x64xf32> to vector<2x64xf32>
    %234 = arith.addf %211, %233 : vector<2x64xf32>
    %cst_136 = arith.constant 0.333333343 : f32
    %235 = vector.broadcast %cst_136 : f32 to vector<2x64xf32>
    %236 = arith.mulf %234, %235 : vector<2x64xf32>
    %cst_137 = arith.constant dense<0.000000e+00> : vector<2x64xf32>
    %237 = tpu.matmul %3, %57, %cst_137 {dimension_numbers = #tpu.dot_dimension_numbers<[1], [0], [0], [1], [0, 0, 1, 1], [], []>} : vector<2x32xf32>, vector<32x64xf32>, vector<2x64xf32> -> vector<2x64xf32>
    %cst_138 = arith.constant dense<0.000000e+00> : vector<2x64xf32>
    %238 = tpu.matmul %236, %58, %cst_138 {dimension_numbers = #tpu.dot_dimension_numbers<[1], [0], [0], [1], [0, 0, 1, 1], [], []>} : vector<2x64xf32>, vector<64x64xf32>, vector<2x64xf32> -> vector<2x64xf32>
    %239 = arith.addf %237, %238 : vector<2x64xf32>
    %240 = vector.broadcast %59 : vector<1x64xf32> to vector<2x64xf32>
    %241 = arith.addf %239, %240 : vector<2x64xf32>
    %242 = arith.negf %241 : vector<2x64xf32>
    %243 = math.exp %242 : vector<2x64xf32>
    %cst_139 = arith.constant 1.000000e+00 : f32
    %244 = vector.broadcast %cst_139 : f32 to vector<2x64xf32>
    %245 = arith.addf %244, %243 : vector<2x64xf32>
    %246 = arith.divf %244, %245 : vector<2x64xf32>
    %247 = vector.extract_strided_slice %246 {offsets = [0, 0], sizes = [2, 32], strides = [1, 1]} : vector<2x64xf32> to vector<2x32xf32>
    %248 = vector.extract_strided_slice %246 {offsets = [0, 32], sizes = [2, 32], strides = [1, 1]} : vector<2x64xf32> to vector<2x32xf32>
    %249 = arith.mulf %247, %98 : vector<2x32xf32>
    %cst_140 = arith.constant 1.000000e+00 : f32
    %250 = vector.broadcast %cst_140 : f32 to vector<2x32xf32>
    %251 = arith.subf %250, %247 : vector<2x32xf32>
    %252 = arith.mulf %251, %131 : vector<2x32xf32>
    %253 = arith.addf %249, %252 : vector<2x32xf32>
    %254 = arith.mulf %248, %253 : vector<2x32xf32>
    %cst_141 = arith.constant 1.000000e+00 : f32
    %255 = vector.broadcast %cst_141 : f32 to vector<2x32xf32>
    %256 = arith.subf %255, %248 : vector<2x32xf32>
    %257 = arith.mulf %256, %164 : vector<2x32xf32>
    %258 = arith.addf %254, %257 : vector<2x32xf32>
    %cst_142 = arith.constant dense<0.000000e+00> : vector<2x128xf32>
    %259 = tpu.matmul %258, %60, %cst_142 {dimension_numbers = #tpu.dot_dimension_numbers<[1], [0], [0], [1], [0, 0, 1, 1], [], []>} : vector<2x32xf32>, vector<32x128xf32>, vector<2x128xf32> -> vector<2x128xf32>
    %260 = vector.broadcast %61 : vector<1x128xf32> to vector<2x128xf32>
    %261 = arith.addf %259, %260 : vector<2x128xf32>
    %c0_143 = arith.constant 0 : index
    %c0_144 = arith.constant 0 : index
    %c0_145 = arith.constant 0 : index
    %262 = vector.load %arg22[%c0_143, %c0_144, %c0_145] : memref<4x2x128xf32, #tpu.memory_space<vmem>>, vector<1x2x128xf32>
    %263 = vector.shape_cast %262 : vector<1x2x128xf32> to vector<2x128xf32>
    %264 = vector.shape_cast %261 : vector<2x128xf32> to vector<1x2x128xf32>
    tpu.vector_store %arg22[%c0_143, %c0_144, %c0_145], %264 {strides = array<i32>} : memref<4x2x128xf32, #tpu.memory_space<vmem>>, vector<1x2x128xf32>,
    %cst_146 = arith.constant dense<0xFF800000> : vector<2xf32>
    %265 = vector.multi_reduction <maximumf>, %261, %cst_146 [1] : vector<2x128xf32> to vector<2xf32>
    %266 = vector.shape_cast %265 : vector<2xf32> to vector<2x1xf32>
    %267 = vector.broadcast %266 : vector<2x1xf32> to vector<2x128xf32>
    %268 = arith.cmpf oeq, %261, %267 : vector<2x128xf32>
    %cst_147 = arith.constant 1.280000e+02 : f32
    %269 = vector.broadcast %cst_147 : f32 to vector<2x128xf32>
    %270 = arith.select %268, %64, %269 : vector<2x128xi1>, vector<2x128xf32>
    %cst_148 = arith.constant dense<0x7F800000> : vector<2xf32>
    %271 = vector.multi_reduction <minimumf>, %270, %cst_148 [1] : vector<2x128xf32> to vector<2xf32>
    %272 = vector.shape_cast %271 : vector<2xf32> to vector<2x1xf32>
    %273 = vector.broadcast %272 : vector<2x1xf32> to vector<2x128xf32>
    %274 = arith.cmpf oeq, %64, %273 : vector<2x128xf32>
    %275 = arith.extui %274 : vector<2x128xi1> to vector<2x128xi32>
    %276 = arith.sitofp %275 : vector<2x128xi32> to vector<2x128xf32>
    %cst_149 = arith.constant dense<0.000000e+00> : vector<2x32xf32>
    %277 = tpu.matmul %276, %62, %cst_149 {dimension_numbers = #tpu.dot_dimension_numbers<[1], [0], [0], [1], [0, 0, 1, 1], [], []>} : vector<2x128xf32>, vector<128x32xf32>, vector<2x32xf32> -> vector<2x32xf32>
    %cst_150 = arith.constant dense<0.000000e+00> : vector<2x384xf32>
    %278 = tpu.matmul %277, %5, %cst_150 {dimension_numbers = #tpu.dot_dimension_numbers<[1], [0], [0], [1], [0, 0, 1, 1], [], []>} : vector<2x32xf32>, vector<32x384xf32>, vector<2x384xf32> -> vector<2x384xf32>
    %279 = vector.extract_strided_slice %278 {offsets = [0, 0], sizes = [2, 128], strides = [1, 1]} : vector<2x384xf32> to vector<2x128xf32>
    %cst_151 = arith.constant dense<0.000000e+00> : vector<2x128xf32>
    %280 = tpu.matmul %98, %7, %cst_151 {dimension_numbers = #tpu.dot_dimension_numbers<[1], [0], [0], [1], [0, 0, 1, 1], [], []>} : vector<2x32xf32>, vector<32x128xf32>, vector<2x128xf32> -> vector<2x128xf32>
    %281 = arith.mulf %279, %25 : vector<2x128xf32>
    %cst_152 = arith.constant dense<0.000000e+00> : vector<2x128xf32>
    %282 = tpu.matmul %281, %13, %cst_152 {dimension_numbers = #tpu.dot_dimension_numbers<[1], [0], [0], [1], [0, 0, 1, 1], [], []>} : vector<2x128xf32>, vector<128x128xf32>, vector<2x128xf32> -> vector<2x128xf32>
    %283 = arith.mulf %31, %280 : vector<2x128xf32>
    %cst_153 = arith.constant dense<0.000000e+00> : vector<2x128xf32>
    %284 = tpu.matmul %283, %19, %cst_153 {dimension_numbers = #tpu.dot_dimension_numbers<[1], [0], [0], [1], [0, 0, 1, 1], [], []>} : vector<2x128xf32>, vector<128x128xf32>, vector<2x128xf32> -> vector<2x128xf32>
    %285 = arith.addf %282, %284 : vector<2x128xf32>
    %286 = arith.addf %285, %37 : vector<2x128xf32>
    %287 = vector.extract_strided_slice %286 {offsets = [0, 0], sizes = [2, 32], strides = [1, 1]} : vector<2x128xf32> to vector<2x32xf32>
    %288 = arith.negf %287 : vector<2x32xf32>
    %289 = math.exp %288 : vector<2x32xf32>
    %cst_154 = arith.constant 1.000000e+00 : f32
    %290 = vector.broadcast %cst_154 : f32 to vector<2x32xf32>
    %291 = arith.addf %290, %289 : vector<2x32xf32>
    %292 = arith.divf %290, %291 : vector<2x32xf32>
    %293 = vector.extract_strided_slice %286 {offsets = [0, 32], sizes = [2, 32], strides = [1, 1]} : vector<2x128xf32> to vector<2x32xf32>
    %294 = arith.negf %293 : vector<2x32xf32>
    %295 = math.exp %294 : vector<2x32xf32>
    %cst_155 = arith.constant 1.000000e+00 : f32
    %296 = vector.broadcast %cst_155 : f32 to vector<2x32xf32>
    %297 = arith.addf %296, %295 : vector<2x32xf32>
    %298 = arith.divf %296, %297 : vector<2x32xf32>
    %299 = vector.extract_strided_slice %286 {offsets = [0, 64], sizes = [2, 32], strides = [1, 1]} : vector<2x128xf32> to vector<2x32xf32>
    %300 = arith.negf %299 : vector<2x32xf32>
    %301 = math.exp %300 : vector<2x32xf32>
    %cst_156 = arith.constant 1.000000e+00 : f32
    %302 = vector.broadcast %cst_156 : f32 to vector<2x32xf32>
    %303 = arith.addf %302, %301 : vector<2x32xf32>
    %304 = arith.divf %302, %303 : vector<2x32xf32>
    %305 = vector.extract_strided_slice %286 {offsets = [0, 96], sizes = [2, 32], strides = [1, 1]} : vector<2x128xf32> to vector<2x32xf32>
    %306 = math.tanh %305 : vector<2x32xf32>
    %307 = arith.mulf %298, %96 : vector<2x32xf32>
    %308 = arith.mulf %292, %306 : vector<2x32xf32>
    %309 = arith.addf %307, %308 : vector<2x32xf32>
    %310 = math.tanh %309 : vector<2x32xf32>
    %311 = arith.mulf %304, %310 : vector<2x32xf32>
    %312 = vector.extract_strided_slice %278 {offsets = [0, 128], sizes = [2, 128], strides = [1, 1]} : vector<2x384xf32> to vector<2x128xf32>
    %cst_157 = arith.constant dense<0.000000e+00> : vector<2x128xf32>
    %313 = tpu.matmul %131, %9, %cst_157 {dimension_numbers = #tpu.dot_dimension_numbers<[1], [0], [0], [1], [0, 0, 1, 1], [], []>} : vector<2x32xf32>, vector<32x128xf32>, vector<2x128xf32> -> vector<2x128xf32>
    %314 = arith.mulf %312, %27 : vector<2x128xf32>
    %cst_158 = arith.constant dense<0.000000e+00> : vector<2x128xf32>
    %315 = tpu.matmul %314, %15, %cst_158 {dimension_numbers = #tpu.dot_dimension_numbers<[1], [0], [0], [1], [0, 0, 1, 1], [], []>} : vector<2x128xf32>, vector<128x128xf32>, vector<2x128xf32> -> vector<2x128xf32>
    %316 = arith.mulf %33, %313 : vector<2x128xf32>
    %cst_159 = arith.constant dense<0.000000e+00> : vector<2x128xf32>
    %317 = tpu.matmul %316, %21, %cst_159 {dimension_numbers = #tpu.dot_dimension_numbers<[1], [0], [0], [1], [0, 0, 1, 1], [], []>} : vector<2x128xf32>, vector<128x128xf32>, vector<2x128xf32> -> vector<2x128xf32>
    %318 = arith.addf %315, %317 : vector<2x128xf32>
    %319 = arith.addf %318, %39 : vector<2x128xf32>
    %320 = vector.extract_strided_slice %319 {offsets = [0, 0], sizes = [2, 32], strides = [1, 1]} : vector<2x128xf32> to vector<2x32xf32>
    %321 = arith.negf %320 : vector<2x32xf32>
    %322 = math.exp %321 : vector<2x32xf32>
    %cst_160 = arith.constant 1.000000e+00 : f32
    %323 = vector.broadcast %cst_160 : f32 to vector<2x32xf32>
    %324 = arith.addf %323, %322 : vector<2x32xf32>
    %325 = arith.divf %323, %324 : vector<2x32xf32>
    %326 = vector.extract_strided_slice %319 {offsets = [0, 32], sizes = [2, 32], strides = [1, 1]} : vector<2x128xf32> to vector<2x32xf32>
    %327 = arith.negf %326 : vector<2x32xf32>
    %328 = math.exp %327 : vector<2x32xf32>
    %cst_161 = arith.constant 1.000000e+00 : f32
    %329 = vector.broadcast %cst_161 : f32 to vector<2x32xf32>
    %330 = arith.addf %329, %328 : vector<2x32xf32>
    %331 = arith.divf %329, %330 : vector<2x32xf32>
    %332 = vector.extract_strided_slice %319 {offsets = [0, 64], sizes = [2, 32], strides = [1, 1]} : vector<2x128xf32> to vector<2x32xf32>
    %333 = arith.negf %332 : vector<2x32xf32>
    %334 = math.exp %333 : vector<2x32xf32>
    %cst_162 = arith.constant 1.000000e+00 : f32
    %335 = vector.broadcast %cst_162 : f32 to vector<2x32xf32>
    %336 = arith.addf %335, %334 : vector<2x32xf32>
    %337 = arith.divf %335, %336 : vector<2x32xf32>
    %338 = vector.extract_strided_slice %319 {offsets = [0, 96], sizes = [2, 32], strides = [1, 1]} : vector<2x128xf32> to vector<2x32xf32>
    %339 = math.tanh %338 : vector<2x32xf32>
    %340 = arith.mulf %331, %129 : vector<2x32xf32>
    %341 = arith.mulf %325, %339 : vector<2x32xf32>
    %342 = arith.addf %340, %341 : vector<2x32xf32>
    %343 = math.tanh %342 : vector<2x32xf32>
    %344 = arith.mulf %337, %343 : vector<2x32xf32>
    %345 = vector.extract_strided_slice %278 {offsets = [0, 256], sizes = [2, 128], strides = [1, 1]} : vector<2x384xf32> to vector<2x128xf32>
    %cst_163 = arith.constant dense<0.000000e+00> : vector<2x128xf32>
    %346 = tpu.matmul %164, %11, %cst_163 {dimension_numbers = #tpu.dot_dimension_numbers<[1], [0], [0], [1], [0, 0, 1, 1], [], []>} : vector<2x32xf32>, vector<32x128xf32>, vector<2x128xf32> -> vector<2x128xf32>
    %347 = arith.mulf %345, %29 : vector<2x128xf32>
    %cst_164 = arith.constant dense<0.000000e+00> : vector<2x128xf32>
    %348 = tpu.matmul %347, %17, %cst_164 {dimension_numbers = #tpu.dot_dimension_numbers<[1], [0], [0], [1], [0, 0, 1, 1], [], []>} : vector<2x128xf32>, vector<128x128xf32>, vector<2x128xf32> -> vector<2x128xf32>
    %349 = arith.mulf %35, %346 : vector<2x128xf32>
    %cst_165 = arith.constant dense<0.000000e+00> : vector<2x128xf32>
    %350 = tpu.matmul %349, %23, %cst_165 {dimension_numbers = #tpu.dot_dimension_numbers<[1], [0], [0], [1], [0, 0, 1, 1], [], []>} : vector<2x128xf32>, vector<128x128xf32>, vector<2x128xf32> -> vector<2x128xf32>
    %351 = arith.addf %348, %350 : vector<2x128xf32>
    %352 = arith.addf %351, %41 : vector<2x128xf32>
    %353 = vector.extract_strided_slice %352 {offsets = [0, 0], sizes = [2, 32], strides = [1, 1]} : vector<2x128xf32> to vector<2x32xf32>
    %354 = arith.negf %353 : vector<2x32xf32>
    %355 = math.exp %354 : vector<2x32xf32>
    %cst_166 = arith.constant 1.000000e+00 : f32
    %356 = vector.broadcast %cst_166 : f32 to vector<2x32xf32>
    %357 = arith.addf %356, %355 : vector<2x32xf32>
    %358 = arith.divf %356, %357 : vector<2x32xf32>
    %359 = vector.extract_strided_slice %352 {offsets = [0, 32], sizes = [2, 32], strides = [1, 1]} : vector<2x128xf32> to vector<2x32xf32>
    %360 = arith.negf %359 : vector<2x32xf32>
    %361 = math.exp %360 : vector<2x32xf32>
    %cst_167 = arith.constant 1.000000e+00 : f32
    %362 = vector.broadcast %cst_167 : f32 to vector<2x32xf32>
    %363 = arith.addf %362, %361 : vector<2x32xf32>
    %364 = arith.divf %362, %363 : vector<2x32xf32>
    %365 = vector.extract_strided_slice %352 {offsets = [0, 64], sizes = [2, 32], strides = [1, 1]} : vector<2x128xf32> to vector<2x32xf32>
    %366 = arith.negf %365 : vector<2x32xf32>
    %367 = math.exp %366 : vector<2x32xf32>
    %cst_168 = arith.constant 1.000000e+00 : f32
    %368 = vector.broadcast %cst_168 : f32 to vector<2x32xf32>
    %369 = arith.addf %368, %367 : vector<2x32xf32>
    %370 = arith.divf %368, %369 : vector<2x32xf32>
    %371 = vector.extract_strided_slice %352 {offsets = [0, 96], sizes = [2, 32], strides = [1, 1]} : vector<2x128xf32> to vector<2x32xf32>
    %372 = math.tanh %371 : vector<2x32xf32>
    %373 = arith.mulf %364, %162 : vector<2x32xf32>
    %374 = arith.mulf %358, %372 : vector<2x32xf32>
    %375 = arith.addf %373, %374 : vector<2x32xf32>
    %376 = math.tanh %375 : vector<2x32xf32>
    %377 = arith.mulf %370, %376 : vector<2x32xf32>
    %cst_169 = arith.constant 0.000000e+00 : f32
    %378 = vector.broadcast %cst_169 : f32 to vector<2x64xf32>
    %cst_170 = arith.constant dense<0.000000e+00> : vector<2x32xf32>
    %379 = tpu.matmul %311, %46, %cst_170 {dimension_numbers = #tpu.dot_dimension_numbers<[1], [0], [0], [1], [0, 0, 1, 1], [], []>} : vector<2x32xf32>, vector<32x32xf32>, vector<2x32xf32> -> vector<2x32xf32>
    %380 = vector.shape_cast %379 : vector<2x32xf32> to vector<2x1x32xf32>
    %381 = vector.broadcast %380 : vector<2x1x32xf32> to vector<2x8x32xf32>
    %382 = arith.addf %42, %381 : vector<2x8x32xf32>
    %383 = math.tanh %382 : vector<2x8x32xf32>
    %384 = vector.shape_cast %52 : vector<1x32xf32> to vector<1x1x32xf32>
    %385 = vector.broadcast %384 : vector<1x1x32xf32> to vector<2x8x32xf32>
    %386 = arith.mulf %383, %385 : vector<2x8x32xf32>
    %cst_171 = arith.constant dense<0.000000e+00> : vector<2x8xf32>
    %387 = vector.multi_reduction <add>, %386, %cst_171 [2] : vector<2x8x32xf32> to vector<2x8xf32>
    %cst_172 = arith.constant dense<0xFF800000> : vector<2xf32>
    %388 = vector.multi_reduction <maximumf>, %387, %cst_172 [1] : vector<2x8xf32> to vector<2xf32>
    %389 = vector.shape_cast %388 : vector<2xf32> to vector<2x1xf32>
    %390 = vector.broadcast %389 : vector<2x1xf32> to vector<2x8xf32>
    %391 = arith.subf %387, %390 : vector<2x8xf32>
    %392 = math.exp %391 : vector<2x8xf32>
    %cst_173 = arith.constant dense<0.000000e+00> : vector<2xf32>
    %393 = vector.multi_reduction <add>, %392, %cst_173 [1] : vector<2x8xf32> to vector<2xf32>
    %394 = vector.shape_cast %393 : vector<2xf32> to vector<2x1xf32>
    %395 = vector.broadcast %394 : vector<2x1xf32> to vector<2x8xf32>
    %396 = arith.divf %392, %395 : vector<2x8xf32>
    %397 = vector.shape_cast %396 : vector<2x8xf32> to vector<2x8x1xf32>
    %398 = vector.broadcast %397 : vector<2x8x1xf32> to vector<2x8x64xf32>
    %399 = arith.mulf %398, %0 : vector<2x8x64xf32>
    %cst_174 = arith.constant dense<0.000000e+00> : vector<2x64xf32>
    %400 = vector.multi_reduction <add>, %399, %cst_174 [1] : vector<2x8x64xf32> to vector<2x64xf32>
    %401 = arith.addf %378, %400 : vector<2x64xf32>
    %cst_175 = arith.constant dense<0.000000e+00> : vector<2x32xf32>
    %402 = tpu.matmul %344, %48, %cst_175 {dimension_numbers = #tpu.dot_dimension_numbers<[1], [0], [0], [1], [0, 0, 1, 1], [], []>} : vector<2x32xf32>, vector<32x32xf32>, vector<2x32xf32> -> vector<2x32xf32>
    %403 = vector.shape_cast %402 : vector<2x32xf32> to vector<2x1x32xf32>
    %404 = vector.broadcast %403 : vector<2x1x32xf32> to vector<2x8x32xf32>
    %405 = arith.addf %43, %404 : vector<2x8x32xf32>
    %406 = math.tanh %405 : vector<2x8x32xf32>
    %407 = vector.shape_cast %54 : vector<1x32xf32> to vector<1x1x32xf32>
    %408 = vector.broadcast %407 : vector<1x1x32xf32> to vector<2x8x32xf32>
    %409 = arith.mulf %406, %408 : vector<2x8x32xf32>
    %cst_176 = arith.constant dense<0.000000e+00> : vector<2x8xf32>
    %410 = vector.multi_reduction <add>, %409, %cst_176 [2] : vector<2x8x32xf32> to vector<2x8xf32>
    %cst_177 = arith.constant dense<0xFF800000> : vector<2xf32>
    %411 = vector.multi_reduction <maximumf>, %410, %cst_177 [1] : vector<2x8xf32> to vector<2xf32>
    %412 = vector.shape_cast %411 : vector<2xf32> to vector<2x1xf32>
    %413 = vector.broadcast %412 : vector<2x1xf32> to vector<2x8xf32>
    %414 = arith.subf %410, %413 : vector<2x8xf32>
    %415 = math.exp %414 : vector<2x8xf32>
    %cst_178 = arith.constant dense<0.000000e+00> : vector<2xf32>
    %416 = vector.multi_reduction <add>, %415, %cst_178 [1] : vector<2x8xf32> to vector<2xf32>
    %417 = vector.shape_cast %416 : vector<2xf32> to vector<2x1xf32>
    %418 = vector.broadcast %417 : vector<2x1xf32> to vector<2x8xf32>
    %419 = arith.divf %415, %418 : vector<2x8xf32>
    %420 = vector.shape_cast %419 : vector<2x8xf32> to vector<2x8x1xf32>
    %421 = vector.broadcast %420 : vector<2x8x1xf32> to vector<2x8x64xf32>
    %422 = arith.mulf %421, %0 : vector<2x8x64xf32>
    %cst_179 = arith.constant dense<0.000000e+00> : vector<2x64xf32>
    %423 = vector.multi_reduction <add>, %422, %cst_179 [1] : vector<2x8x64xf32> to vector<2x64xf32>
    %424 = arith.addf %401, %423 : vector<2x64xf32>
    %cst_180 = arith.constant dense<0.000000e+00> : vector<2x32xf32>
    %425 = tpu.matmul %377, %50, %cst_180 {dimension_numbers = #tpu.dot_dimension_numbers<[1], [0], [0], [1], [0, 0, 1, 1], [], []>} : vector<2x32xf32>, vector<32x32xf32>, vector<2x32xf32> -> vector<2x32xf32>
    %426 = vector.shape_cast %425 : vector<2x32xf32> to vector<2x1x32xf32>
    %427 = vector.broadcast %426 : vector<2x1x32xf32> to vector<2x8x32xf32>
    %428 = arith.addf %44, %427 : vector<2x8x32xf32>
    %429 = math.tanh %428 : vector<2x8x32xf32>
    %430 = vector.shape_cast %56 : vector<1x32xf32> to vector<1x1x32xf32>
    %431 = vector.broadcast %430 : vector<1x1x32xf32> to vector<2x8x32xf32>
    %432 = arith.mulf %429, %431 : vector<2x8x32xf32>
    %cst_181 = arith.constant dense<0.000000e+00> : vector<2x8xf32>
    %433 = vector.multi_reduction <add>, %432, %cst_181 [2] : vector<2x8x32xf32> to vector<2x8xf32>
    %cst_182 = arith.constant dense<0xFF800000> : vector<2xf32>
    %434 = vector.multi_reduction <maximumf>, %433, %cst_182 [1] : vector<2x8xf32> to vector<2xf32>
    %435 = vector.shape_cast %434 : vector<2xf32> to vector<2x1xf32>
    %436 = vector.broadcast %435 : vector<2x1xf32> to vector<2x8xf32>
    %437 = arith.subf %433, %436 : vector<2x8xf32>
    %438 = math.exp %437 : vector<2x8xf32>
    %cst_183 = arith.constant dense<0.000000e+00> : vector<2xf32>
    %439 = vector.multi_reduction <add>, %438, %cst_183 [1] : vector<2x8xf32> to vector<2xf32>
    %440 = vector.shape_cast %439 : vector<2xf32> to vector<2x1xf32>
    %441 = vector.broadcast %440 : vector<2x1xf32> to vector<2x8xf32>
    %442 = arith.divf %438, %441 : vector<2x8xf32>
    %443 = vector.shape_cast %442 : vector<2x8xf32> to vector<2x8x1xf32>
    %444 = vector.broadcast %443 : vector<2x8x1xf32> to vector<2x8x64xf32>
    %445 = arith.mulf %444, %0 : vector<2x8x64xf32>
    %cst_184 = arith.constant dense<0.000000e+00> : vector<2x64xf32>
    %446 = vector.multi_reduction <add>, %445, %cst_184 [1] : vector<2x8x64xf32> to vector<2x64xf32>
    %447 = arith.addf %424, %446 : vector<2x64xf32>
    %cst_185 = arith.constant 0.333333343 : f32
    %448 = vector.broadcast %cst_185 : f32 to vector<2x64xf32>
    %449 = arith.mulf %447, %448 : vector<2x64xf32>
    %cst_186 = arith.constant dense<0.000000e+00> : vector<2x64xf32>
    %450 = tpu.matmul %258, %57, %cst_186 {dimension_numbers = #tpu.dot_dimension_numbers<[1], [0], [0], [1], [0, 0, 1, 1], [], []>} : vector<2x32xf32>, vector<32x64xf32>, vector<2x64xf32> -> vector<2x64xf32>
    %cst_187 = arith.constant dense<0.000000e+00> : vector<2x64xf32>
    %451 = tpu.matmul %449, %58, %cst_187 {dimension_numbers = #tpu.dot_dimension_numbers<[1], [0], [0], [1], [0, 0, 1, 1], [], []>} : vector<2x64xf32>, vector<64x64xf32>, vector<2x64xf32> -> vector<2x64xf32>
    %452 = arith.addf %450, %451 : vector<2x64xf32>
    %453 = vector.broadcast %59 : vector<1x64xf32> to vector<2x64xf32>
    %454 = arith.addf %452, %453 : vector<2x64xf32>
    %455 = arith.negf %454 : vector<2x64xf32>
    %456 = math.exp %455 : vector<2x64xf32>
    %cst_188 = arith.constant 1.000000e+00 : f32
    %457 = vector.broadcast %cst_188 : f32 to vector<2x64xf32>
    %458 = arith.addf %457, %456 : vector<2x64xf32>
    %459 = arith.divf %457, %458 : vector<2x64xf32>
    %460 = vector.extract_strided_slice %459 {offsets = [0, 0], sizes = [2, 32], strides = [1, 1]} : vector<2x64xf32> to vector<2x32xf32>
    %461 = vector.extract_strided_slice %459 {offsets = [0, 32], sizes = [2, 32], strides = [1, 1]} : vector<2x64xf32> to vector<2x32xf32>
    %462 = arith.mulf %460, %311 : vector<2x32xf32>
    %cst_189 = arith.constant 1.000000e+00 : f32
    %463 = vector.broadcast %cst_189 : f32 to vector<2x32xf32>
    %464 = arith.subf %463, %460 : vector<2x32xf32>
    %465 = arith.mulf %464, %344 : vector<2x32xf32>
    %466 = arith.addf %462, %465 : vector<2x32xf32>
    %467 = arith.mulf %461, %466 : vector<2x32xf32>
    %cst_190 = arith.constant 1.000000e+00 : f32
    %468 = vector.broadcast %cst_190 : f32 to vector<2x32xf32>
    %469 = arith.subf %468, %461 : vector<2x32xf32>
    %470 = arith.mulf %469, %377 : vector<2x32xf32>
    %471 = arith.addf %467, %470 : vector<2x32xf32>
    %cst_191 = arith.constant dense<0.000000e+00> : vector<2x128xf32>
    %472 = tpu.matmul %471, %60, %cst_191 {dimension_numbers = #tpu.dot_dimension_numbers<[1], [0], [0], [1], [0, 0, 1, 1], [], []>} : vector<2x32xf32>, vector<32x128xf32>, vector<2x128xf32> -> vector<2x128xf32>
    %473 = vector.broadcast %61 : vector<1x128xf32> to vector<2x128xf32>
    %474 = arith.addf %472, %473 : vector<2x128xf32>
    %c1_192 = arith.constant 1 : index
    %c0_193 = arith.constant 0 : index
    %c0_194 = arith.constant 0 : index
    %475 = vector.load %arg22[%c1_192, %c0_193, %c0_194] : memref<4x2x128xf32, #tpu.memory_space<vmem>>, vector<1x2x128xf32>
    %476 = vector.shape_cast %475 : vector<1x2x128xf32> to vector<2x128xf32>
    %477 = vector.shape_cast %474 : vector<2x128xf32> to vector<1x2x128xf32>
    tpu.vector_store %arg22[%c1_192, %c0_193, %c0_194], %477 {strides = array<i32>} : memref<4x2x128xf32, #tpu.memory_space<vmem>>, vector<1x2x128xf32>,
    %cst_195 = arith.constant dense<0xFF800000> : vector<2xf32>
    %478 = vector.multi_reduction <maximumf>, %474, %cst_195 [1] : vector<2x128xf32> to vector<2xf32>
    %479 = vector.shape_cast %478 : vector<2xf32> to vector<2x1xf32>
    %480 = vector.broadcast %479 : vector<2x1xf32> to vector<2x128xf32>
    %481 = arith.cmpf oeq, %474, %480 : vector<2x128xf32>
    %cst_196 = arith.constant 1.280000e+02 : f32
    %482 = vector.broadcast %cst_196 : f32 to vector<2x128xf32>
    %483 = arith.select %481, %64, %482 : vector<2x128xi1>, vector<2x128xf32>
    %cst_197 = arith.constant dense<0x7F800000> : vector<2xf32>
    %484 = vector.multi_reduction <minimumf>, %483, %cst_197 [1] : vector<2x128xf32> to vector<2xf32>
    %485 = vector.shape_cast %484 : vector<2xf32> to vector<2x1xf32>
    %486 = vector.broadcast %485 : vector<2x1xf32> to vector<2x128xf32>
    %487 = arith.cmpf oeq, %64, %486 : vector<2x128xf32>
    %488 = arith.extui %487 : vector<2x128xi1> to vector<2x128xi32>
    %489 = arith.sitofp %488 : vector<2x128xi32> to vector<2x128xf32>
    %cst_198 = arith.constant dense<0.000000e+00> : vector<2x32xf32>
    %490 = tpu.matmul %489, %62, %cst_198 {dimension_numbers = #tpu.dot_dimension_numbers<[1], [0], [0], [1], [0, 0, 1, 1], [], []>} : vector<2x128xf32>, vector<128x32xf32>, vector<2x32xf32> -> vector<2x32xf32>
    %cst_199 = arith.constant dense<0.000000e+00> : vector<2x384xf32>
    %491 = tpu.matmul %490, %5, %cst_199 {dimension_numbers = #tpu.dot_dimension_numbers<[1], [0], [0], [1], [0, 0, 1, 1], [], []>} : vector<2x32xf32>, vector<32x384xf32>, vector<2x384xf32> -> vector<2x384xf32>
    %492 = vector.extract_strided_slice %491 {offsets = [0, 0], sizes = [2, 128], strides = [1, 1]} : vector<2x384xf32> to vector<2x128xf32>
    %cst_200 = arith.constant dense<0.000000e+00> : vector<2x128xf32>
    %493 = tpu.matmul %311, %7, %cst_200 {dimension_numbers = #tpu.dot_dimension_numbers<[1], [0], [0], [1], [0, 0, 1, 1], [], []>} : vector<2x32xf32>, vector<32x128xf32>, vector<2x128xf32> -> vector<2x128xf32>
    %494 = arith.mulf %492, %25 : vector<2x128xf32>
    %cst_201 = arith.constant dense<0.000000e+00> : vector<2x128xf32>
    %495 = tpu.matmul %494, %13, %cst_201 {dimension_numbers = #tpu.dot_dimension_numbers<[1], [0], [0], [1], [0, 0, 1, 1], [], []>} : vector<2x128xf32>, vector<128x128xf32>, vector<2x128xf32> -> vector<2x128xf32>
    %496 = arith.mulf %31, %493 : vector<2x128xf32>
    %cst_202 = arith.constant dense<0.000000e+00> : vector<2x128xf32>
    %497 = tpu.matmul %496, %19, %cst_202 {dimension_numbers = #tpu.dot_dimension_numbers<[1], [0], [0], [1], [0, 0, 1, 1], [], []>} : vector<2x128xf32>, vector<128x128xf32>, vector<2x128xf32> -> vector<2x128xf32>
    %498 = arith.addf %495, %497 : vector<2x128xf32>
    %499 = arith.addf %498, %37 : vector<2x128xf32>
    %500 = vector.extract_strided_slice %499 {offsets = [0, 0], sizes = [2, 32], strides = [1, 1]} : vector<2x128xf32> to vector<2x32xf32>
    %501 = arith.negf %500 : vector<2x32xf32>
    %502 = math.exp %501 : vector<2x32xf32>
    %cst_203 = arith.constant 1.000000e+00 : f32
    %503 = vector.broadcast %cst_203 : f32 to vector<2x32xf32>
    %504 = arith.addf %503, %502 : vector<2x32xf32>
    %505 = arith.divf %503, %504 : vector<2x32xf32>
    %506 = vector.extract_strided_slice %499 {offsets = [0, 32], sizes = [2, 32], strides = [1, 1]} : vector<2x128xf32> to vector<2x32xf32>
    %507 = arith.negf %506 : vector<2x32xf32>
    %508 = math.exp %507 : vector<2x32xf32>
    %cst_204 = arith.constant 1.000000e+00 : f32
    %509 = vector.broadcast %cst_204 : f32 to vector<2x32xf32>
    %510 = arith.addf %509, %508 : vector<2x32xf32>
    %511 = arith.divf %509, %510 : vector<2x32xf32>
    %512 = vector.extract_strided_slice %499 {offsets = [0, 64], sizes = [2, 32], strides = [1, 1]} : vector<2x128xf32> to vector<2x32xf32>
    %513 = arith.negf %512 : vector<2x32xf32>
    %514 = math.exp %513 : vector<2x32xf32>
    %cst_205 = arith.constant 1.000000e+00 : f32
    %515 = vector.broadcast %cst_205 : f32 to vector<2x32xf32>
    %516 = arith.addf %515, %514 : vector<2x32xf32>
    %517 = arith.divf %515, %516 : vector<2x32xf32>
    %518 = vector.extract_strided_slice %499 {offsets = [0, 96], sizes = [2, 32], strides = [1, 1]} : vector<2x128xf32> to vector<2x32xf32>
    %519 = math.tanh %518 : vector<2x32xf32>
    %520 = arith.mulf %511, %309 : vector<2x32xf32>
    %521 = arith.mulf %505, %519 : vector<2x32xf32>
    %522 = arith.addf %520, %521 : vector<2x32xf32>
    %523 = math.tanh %522 : vector<2x32xf32>
    %524 = arith.mulf %517, %523 : vector<2x32xf32>
    %525 = vector.extract_strided_slice %491 {offsets = [0, 128], sizes = [2, 128], strides = [1, 1]} : vector<2x384xf32> to vector<2x128xf32>
    %cst_206 = arith.constant dense<0.000000e+00> : vector<2x128xf32>
    %526 = tpu.matmul %344, %9, %cst_206 {dimension_numbers = #tpu.dot_dimension_numbers<[1], [0], [0], [1], [0, 0, 1, 1], [], []>} : vector<2x32xf32>, vector<32x128xf32>, vector<2x128xf32> -> vector<2x128xf32>
    %527 = arith.mulf %525, %27 : vector<2x128xf32>
    %cst_207 = arith.constant dense<0.000000e+00> : vector<2x128xf32>
    %528 = tpu.matmul %527, %15, %cst_207 {dimension_numbers = #tpu.dot_dimension_numbers<[1], [0], [0], [1], [0, 0, 1, 1], [], []>} : vector<2x128xf32>, vector<128x128xf32>, vector<2x128xf32> -> vector<2x128xf32>
    %529 = arith.mulf %33, %526 : vector<2x128xf32>
    %cst_208 = arith.constant dense<0.000000e+00> : vector<2x128xf32>
    %530 = tpu.matmul %529, %21, %cst_208 {dimension_numbers = #tpu.dot_dimension_numbers<[1], [0], [0], [1], [0, 0, 1, 1], [], []>} : vector<2x128xf32>, vector<128x128xf32>, vector<2x128xf32> -> vector<2x128xf32>
    %531 = arith.addf %528, %530 : vector<2x128xf32>
    %532 = arith.addf %531, %39 : vector<2x128xf32>
    %533 = vector.extract_strided_slice %532 {offsets = [0, 0], sizes = [2, 32], strides = [1, 1]} : vector<2x128xf32> to vector<2x32xf32>
    %534 = arith.negf %533 : vector<2x32xf32>
    %535 = math.exp %534 : vector<2x32xf32>
    %cst_209 = arith.constant 1.000000e+00 : f32
    %536 = vector.broadcast %cst_209 : f32 to vector<2x32xf32>
    %537 = arith.addf %536, %535 : vector<2x32xf32>
    %538 = arith.divf %536, %537 : vector<2x32xf32>
    %539 = vector.extract_strided_slice %532 {offsets = [0, 32], sizes = [2, 32], strides = [1, 1]} : vector<2x128xf32> to vector<2x32xf32>
    %540 = arith.negf %539 : vector<2x32xf32>
    %541 = math.exp %540 : vector<2x32xf32>
    %cst_210 = arith.constant 1.000000e+00 : f32
    %542 = vector.broadcast %cst_210 : f32 to vector<2x32xf32>
    %543 = arith.addf %542, %541 : vector<2x32xf32>
    %544 = arith.divf %542, %543 : vector<2x32xf32>
    %545 = vector.extract_strided_slice %532 {offsets = [0, 64], sizes = [2, 32], strides = [1, 1]} : vector<2x128xf32> to vector<2x32xf32>
    %546 = arith.negf %545 : vector<2x32xf32>
    %547 = math.exp %546 : vector<2x32xf32>
    %cst_211 = arith.constant 1.000000e+00 : f32
    %548 = vector.broadcast %cst_211 : f32 to vector<2x32xf32>
    %549 = arith.addf %548, %547 : vector<2x32xf32>
    %550 = arith.divf %548, %549 : vector<2x32xf32>
    %551 = vector.extract_strided_slice %532 {offsets = [0, 96], sizes = [2, 32], strides = [1, 1]} : vector<2x128xf32> to vector<2x32xf32>
    %552 = math.tanh %551 : vector<2x32xf32>
    %553 = arith.mulf %544, %342 : vector<2x32xf32>
    %554 = arith.mulf %538, %552 : vector<2x32xf32>
    %555 = arith.addf %553, %554 : vector<2x32xf32>
    %556 = math.tanh %555 : vector<2x32xf32>
    %557 = arith.mulf %550, %556 : vector<2x32xf32>
    %558 = vector.extract_strided_slice %491 {offsets = [0, 256], sizes = [2, 128], strides = [1, 1]} : vector<2x384xf32> to vector<2x128xf32>
    %cst_212 = arith.constant dense<0.000000e+00> : vector<2x128xf32>
    %559 = tpu.matmul %377, %11, %cst_212 {dimension_numbers = #tpu.dot_dimension_numbers<[1], [0], [0], [1], [0, 0, 1, 1], [], []>} : vector<2x32xf32>, vector<32x128xf32>, vector<2x128xf32> -> vector<2x128xf32>
    %560 = arith.mulf %558, %29 : vector<2x128xf32>
    %cst_213 = arith.constant dense<0.000000e+00> : vector<2x128xf32>
    %561 = tpu.matmul %560, %17, %cst_213 {dimension_numbers = #tpu.dot_dimension_numbers<[1], [0], [0], [1], [0, 0, 1, 1], [], []>} : vector<2x128xf32>, vector<128x128xf32>, vector<2x128xf32> -> vector<2x128xf32>
    %562 = arith.mulf %35, %559 : vector<2x128xf32>
    %cst_214 = arith.constant dense<0.000000e+00> : vector<2x128xf32>
    %563 = tpu.matmul %562, %23, %cst_214 {dimension_numbers = #tpu.dot_dimension_numbers<[1], [0], [0], [1], [0, 0, 1, 1], [], []>} : vector<2x128xf32>, vector<128x128xf32>, vector<2x128xf32> -> vector<2x128xf32>
    %564 = arith.addf %561, %563 : vector<2x128xf32>
    %565 = arith.addf %564, %41 : vector<2x128xf32>
    %566 = vector.extract_strided_slice %565 {offsets = [0, 0], sizes = [2, 32], strides = [1, 1]} : vector<2x128xf32> to vector<2x32xf32>
    %567 = arith.negf %566 : vector<2x32xf32>
    %568 = math.exp %567 : vector<2x32xf32>
    %cst_215 = arith.constant 1.000000e+00 : f32
    %569 = vector.broadcast %cst_215 : f32 to vector<2x32xf32>
    %570 = arith.addf %569, %568 : vector<2x32xf32>
    %571 = arith.divf %569, %570 : vector<2x32xf32>
    %572 = vector.extract_strided_slice %565 {offsets = [0, 32], sizes = [2, 32], strides = [1, 1]} : vector<2x128xf32> to vector<2x32xf32>
    %573 = arith.negf %572 : vector<2x32xf32>
    %574 = math.exp %573 : vector<2x32xf32>
    %cst_216 = arith.constant 1.000000e+00 : f32
    %575 = vector.broadcast %cst_216 : f32 to vector<2x32xf32>
    %576 = arith.addf %575, %574 : vector<2x32xf32>
    %577 = arith.divf %575, %576 : vector<2x32xf32>
    %578 = vector.extract_strided_slice %565 {offsets = [0, 64], sizes = [2, 32], strides = [1, 1]} : vector<2x128xf32> to vector<2x32xf32>
    %579 = arith.negf %578 : vector<2x32xf32>
    %580 = math.exp %579 : vector<2x32xf32>
    %cst_217 = arith.constant 1.000000e+00 : f32
    %581 = vector.broadcast %cst_217 : f32 to vector<2x32xf32>
    %582 = arith.addf %581, %580 : vector<2x32xf32>
    %583 = arith.divf %581, %582 : vector<2x32xf32>
    %584 = vector.extract_strided_slice %565 {offsets = [0, 96], sizes = [2, 32], strides = [1, 1]} : vector<2x128xf32> to vector<2x32xf32>
    %585 = math.tanh %584 : vector<2x32xf32>
    %586 = arith.mulf %577, %375 : vector<2x32xf32>
    %587 = arith.mulf %571, %585 : vector<2x32xf32>
    %588 = arith.addf %586, %587 : vector<2x32xf32>
    %589 = math.tanh %588 : vector<2x32xf32>
    %590 = arith.mulf %583, %589 : vector<2x32xf32>
    %cst_218 = arith.constant 0.000000e+00 : f32
    %591 = vector.broadcast %cst_218 : f32 to vector<2x64xf32>
    %cst_219 = arith.constant dense<0.000000e+00> : vector<2x32xf32>
    %592 = tpu.matmul %524, %46, %cst_219 {dimension_numbers = #tpu.dot_dimension_numbers<[1], [0], [0], [1], [0, 0, 1, 1], [], []>} : vector<2x32xf32>, vector<32x32xf32>, vector<2x32xf32> -> vector<2x32xf32>
    %593 = vector.shape_cast %592 : vector<2x32xf32> to vector<2x1x32xf32>
    %594 = vector.broadcast %593 : vector<2x1x32xf32> to vector<2x8x32xf32>
    %595 = arith.addf %42, %594 : vector<2x8x32xf32>
    %596 = math.tanh %595 : vector<2x8x32xf32>
    %597 = vector.shape_cast %52 : vector<1x32xf32> to vector<1x1x32xf32>
    %598 = vector.broadcast %597 : vector<1x1x32xf32> to vector<2x8x32xf32>
    %599 = arith.mulf %596, %598 : vector<2x8x32xf32>
    %cst_220 = arith.constant dense<0.000000e+00> : vector<2x8xf32>
    %600 = vector.multi_reduction <add>, %599, %cst_220 [2] : vector<2x8x32xf32> to vector<2x8xf32>
    %cst_221 = arith.constant dense<0xFF800000> : vector<2xf32>
    %601 = vector.multi_reduction <maximumf>, %600, %cst_221 [1] : vector<2x8xf32> to vector<2xf32>
    %602 = vector.shape_cast %601 : vector<2xf32> to vector<2x1xf32>
    %603 = vector.broadcast %602 : vector<2x1xf32> to vector<2x8xf32>
    %604 = arith.subf %600, %603 : vector<2x8xf32>
    %605 = math.exp %604 : vector<2x8xf32>
    %cst_222 = arith.constant dense<0.000000e+00> : vector<2xf32>
    %606 = vector.multi_reduction <add>, %605, %cst_222 [1] : vector<2x8xf32> to vector<2xf32>
    %607 = vector.shape_cast %606 : vector<2xf32> to vector<2x1xf32>
    %608 = vector.broadcast %607 : vector<2x1xf32> to vector<2x8xf32>
    %609 = arith.divf %605, %608 : vector<2x8xf32>
    %610 = vector.shape_cast %609 : vector<2x8xf32> to vector<2x8x1xf32>
    %611 = vector.broadcast %610 : vector<2x8x1xf32> to vector<2x8x64xf32>
    %612 = arith.mulf %611, %0 : vector<2x8x64xf32>
    %cst_223 = arith.constant dense<0.000000e+00> : vector<2x64xf32>
    %613 = vector.multi_reduction <add>, %612, %cst_223 [1] : vector<2x8x64xf32> to vector<2x64xf32>
    %614 = arith.addf %591, %613 : vector<2x64xf32>
    %cst_224 = arith.constant dense<0.000000e+00> : vector<2x32xf32>
    %615 = tpu.matmul %557, %48, %cst_224 {dimension_numbers = #tpu.dot_dimension_numbers<[1], [0], [0], [1], [0, 0, 1, 1], [], []>} : vector<2x32xf32>, vector<32x32xf32>, vector<2x32xf32> -> vector<2x32xf32>
    %616 = vector.shape_cast %615 : vector<2x32xf32> to vector<2x1x32xf32>
    %617 = vector.broadcast %616 : vector<2x1x32xf32> to vector<2x8x32xf32>
    %618 = arith.addf %43, %617 : vector<2x8x32xf32>
    %619 = math.tanh %618 : vector<2x8x32xf32>
    %620 = vector.shape_cast %54 : vector<1x32xf32> to vector<1x1x32xf32>
    %621 = vector.broadcast %620 : vector<1x1x32xf32> to vector<2x8x32xf32>
    %622 = arith.mulf %619, %621 : vector<2x8x32xf32>
    %cst_225 = arith.constant dense<0.000000e+00> : vector<2x8xf32>
    %623 = vector.multi_reduction <add>, %622, %cst_225 [2] : vector<2x8x32xf32> to vector<2x8xf32>
    %cst_226 = arith.constant dense<0xFF800000> : vector<2xf32>
    %624 = vector.multi_reduction <maximumf>, %623, %cst_226 [1] : vector<2x8xf32> to vector<2xf32>
    %625 = vector.shape_cast %624 : vector<2xf32> to vector<2x1xf32>
    %626 = vector.broadcast %625 : vector<2x1xf32> to vector<2x8xf32>
    %627 = arith.subf %623, %626 : vector<2x8xf32>
    %628 = math.exp %627 : vector<2x8xf32>
    %cst_227 = arith.constant dense<0.000000e+00> : vector<2xf32>
    %629 = vector.multi_reduction <add>, %628, %cst_227 [1] : vector<2x8xf32> to vector<2xf32>
    %630 = vector.shape_cast %629 : vector<2xf32> to vector<2x1xf32>
    %631 = vector.broadcast %630 : vector<2x1xf32> to vector<2x8xf32>
    %632 = arith.divf %628, %631 : vector<2x8xf32>
    %633 = vector.shape_cast %632 : vector<2x8xf32> to vector<2x8x1xf32>
    %634 = vector.broadcast %633 : vector<2x8x1xf32> to vector<2x8x64xf32>
    %635 = arith.mulf %634, %0 : vector<2x8x64xf32>
    %cst_228 = arith.constant dense<0.000000e+00> : vector<2x64xf32>
    %636 = vector.multi_reduction <add>, %635, %cst_228 [1] : vector<2x8x64xf32> to vector<2x64xf32>
    %637 = arith.addf %614, %636 : vector<2x64xf32>
    %cst_229 = arith.constant dense<0.000000e+00> : vector<2x32xf32>
    %638 = tpu.matmul %590, %50, %cst_229 {dimension_numbers = #tpu.dot_dimension_numbers<[1], [0], [0], [1], [0, 0, 1, 1], [], []>} : vector<2x32xf32>, vector<32x32xf32>, vector<2x32xf32> -> vector<2x32xf32>
    %639 = vector.shape_cast %638 : vector<2x32xf32> to vector<2x1x32xf32>
    %640 = vector.broadcast %639 : vector<2x1x32xf32> to vector<2x8x32xf32>
    %641 = arith.addf %44, %640 : vector<2x8x32xf32>
    %642 = math.tanh %641 : vector<2x8x32xf32>
    %643 = vector.shape_cast %56 : vector<1x32xf32> to vector<1x1x32xf32>
    %644 = vector.broadcast %643 : vector<1x1x32xf32> to vector<2x8x32xf32>
    %645 = arith.mulf %642, %644 : vector<2x8x32xf32>
    %cst_230 = arith.constant dense<0.000000e+00> : vector<2x8xf32>
    %646 = vector.multi_reduction <add>, %645, %cst_230 [2] : vector<2x8x32xf32> to vector<2x8xf32>
    %cst_231 = arith.constant dense<0xFF800000> : vector<2xf32>
    %647 = vector.multi_reduction <maximumf>, %646, %cst_231 [1] : vector<2x8xf32> to vector<2xf32>
    %648 = vector.shape_cast %647 : vector<2xf32> to vector<2x1xf32>
    %649 = vector.broadcast %648 : vector<2x1xf32> to vector<2x8xf32>
    %650 = arith.subf %646, %649 : vector<2x8xf32>
    %651 = math.exp %650 : vector<2x8xf32>
    %cst_232 = arith.constant dense<0.000000e+00> : vector<2xf32>
    %652 = vector.multi_reduction <add>, %651, %cst_232 [1] : vector<2x8xf32> to vector<2xf32>
    %653 = vector.shape_cast %652 : vector<2xf32> to vector<2x1xf32>
    %654 = vector.broadcast %653 : vector<2x1xf32> to vector<2x8xf32>
    %655 = arith.divf %651, %654 : vector<2x8xf32>
    %656 = vector.shape_cast %655 : vector<2x8xf32> to vector<2x8x1xf32>
    %657 = vector.broadcast %656 : vector<2x8x1xf32> to vector<2x8x64xf32>
    %658 = arith.mulf %657, %0 : vector<2x8x64xf32>
    %cst_233 = arith.constant dense<0.000000e+00> : vector<2x64xf32>
    %659 = vector.multi_reduction <add>, %658, %cst_233 [1] : vector<2x8x64xf32> to vector<2x64xf32>
    %660 = arith.addf %637, %659 : vector<2x64xf32>
    %cst_234 = arith.constant 0.333333343 : f32
    %661 = vector.broadcast %cst_234 : f32 to vector<2x64xf32>
    %662 = arith.mulf %660, %661 : vector<2x64xf32>
    %cst_235 = arith.constant dense<0.000000e+00> : vector<2x64xf32>
    %663 = tpu.matmul %471, %57, %cst_235 {dimension_numbers = #tpu.dot_dimension_numbers<[1], [0], [0], [1], [0, 0, 1, 1], [], []>} : vector<2x32xf32>, vector<32x64xf32>, vector<2x64xf32> -> vector<2x64xf32>
    %cst_236 = arith.constant dense<0.000000e+00> : vector<2x64xf32>
    %664 = tpu.matmul %662, %58, %cst_236 {dimension_numbers = #tpu.dot_dimension_numbers<[1], [0], [0], [1], [0, 0, 1, 1], [], []>} : vector<2x64xf32>, vector<64x64xf32>, vector<2x64xf32> -> vector<2x64xf32>
    %665 = arith.addf %663, %664 : vector<2x64xf32>
    %666 = vector.broadcast %59 : vector<1x64xf32> to vector<2x64xf32>
    %667 = arith.addf %665, %666 : vector<2x64xf32>
    %668 = arith.negf %667 : vector<2x64xf32>
    %669 = math.exp %668 : vector<2x64xf32>
    %cst_237 = arith.constant 1.000000e+00 : f32
    %670 = vector.broadcast %cst_237 : f32 to vector<2x64xf32>
    %671 = arith.addf %670, %669 : vector<2x64xf32>
    %672 = arith.divf %670, %671 : vector<2x64xf32>
    %673 = vector.extract_strided_slice %672 {offsets = [0, 0], sizes = [2, 32], strides = [1, 1]} : vector<2x64xf32> to vector<2x32xf32>
    %674 = vector.extract_strided_slice %672 {offsets = [0, 32], sizes = [2, 32], strides = [1, 1]} : vector<2x64xf32> to vector<2x32xf32>
    %675 = arith.mulf %673, %524 : vector<2x32xf32>
    %cst_238 = arith.constant 1.000000e+00 : f32
    %676 = vector.broadcast %cst_238 : f32 to vector<2x32xf32>
    %677 = arith.subf %676, %673 : vector<2x32xf32>
    %678 = arith.mulf %677, %557 : vector<2x32xf32>
    %679 = arith.addf %675, %678 : vector<2x32xf32>
    %680 = arith.mulf %674, %679 : vector<2x32xf32>
    %cst_239 = arith.constant 1.000000e+00 : f32
    %681 = vector.broadcast %cst_239 : f32 to vector<2x32xf32>
    %682 = arith.subf %681, %674 : vector<2x32xf32>
    %683 = arith.mulf %682, %590 : vector<2x32xf32>
    %684 = arith.addf %680, %683 : vector<2x32xf32>
    %cst_240 = arith.constant dense<0.000000e+00> : vector<2x128xf32>
    %685 = tpu.matmul %684, %60, %cst_240 {dimension_numbers = #tpu.dot_dimension_numbers<[1], [0], [0], [1], [0, 0, 1, 1], [], []>} : vector<2x32xf32>, vector<32x128xf32>, vector<2x128xf32> -> vector<2x128xf32>
    %686 = vector.broadcast %61 : vector<1x128xf32> to vector<2x128xf32>
    %687 = arith.addf %685, %686 : vector<2x128xf32>
    %c2_241 = arith.constant 2 : index
    %c0_242 = arith.constant 0 : index
    %c0_243 = arith.constant 0 : index
    %688 = vector.load %arg22[%c2_241, %c0_242, %c0_243] : memref<4x2x128xf32, #tpu.memory_space<vmem>>, vector<1x2x128xf32>
    %689 = vector.shape_cast %688 : vector<1x2x128xf32> to vector<2x128xf32>
    %690 = vector.shape_cast %687 : vector<2x128xf32> to vector<1x2x128xf32>
    tpu.vector_store %arg22[%c2_241, %c0_242, %c0_243], %690 {strides = array<i32>} : memref<4x2x128xf32, #tpu.memory_space<vmem>>, vector<1x2x128xf32>,
    %cst_244 = arith.constant dense<0xFF800000> : vector<2xf32>
    %691 = vector.multi_reduction <maximumf>, %687, %cst_244 [1] : vector<2x128xf32> to vector<2xf32>
    %692 = vector.shape_cast %691 : vector<2xf32> to vector<2x1xf32>
    %693 = vector.broadcast %692 : vector<2x1xf32> to vector<2x128xf32>
    %694 = arith.cmpf oeq, %687, %693 : vector<2x128xf32>
    %cst_245 = arith.constant 1.280000e+02 : f32
    %695 = vector.broadcast %cst_245 : f32 to vector<2x128xf32>
    %696 = arith.select %694, %64, %695 : vector<2x128xi1>, vector<2x128xf32>
    %cst_246 = arith.constant dense<0x7F800000> : vector<2xf32>
    %697 = vector.multi_reduction <minimumf>, %696, %cst_246 [1] : vector<2x128xf32> to vector<2xf32>
    %698 = vector.shape_cast %697 : vector<2xf32> to vector<2x1xf32>
    %699 = vector.broadcast %698 : vector<2x1xf32> to vector<2x128xf32>
    %700 = arith.cmpf oeq, %64, %699 : vector<2x128xf32>
    %701 = arith.extui %700 : vector<2x128xi1> to vector<2x128xi32>
    %702 = arith.sitofp %701 : vector<2x128xi32> to vector<2x128xf32>
    %cst_247 = arith.constant dense<0.000000e+00> : vector<2x32xf32>
    %703 = tpu.matmul %702, %62, %cst_247 {dimension_numbers = #tpu.dot_dimension_numbers<[1], [0], [0], [1], [0, 0, 1, 1], [], []>} : vector<2x128xf32>, vector<128x32xf32>, vector<2x32xf32> -> vector<2x32xf32>
    %cst_248 = arith.constant dense<0.000000e+00> : vector<2x384xf32>
    %704 = tpu.matmul %703, %5, %cst_248 {dimension_numbers = #tpu.dot_dimension_numbers<[1], [0], [0], [1], [0, 0, 1, 1], [], []>} : vector<2x32xf32>, vector<32x384xf32>, vector<2x384xf32> -> vector<2x384xf32>
    %705 = vector.extract_strided_slice %704 {offsets = [0, 0], sizes = [2, 128], strides = [1, 1]} : vector<2x384xf32> to vector<2x128xf32>
    %cst_249 = arith.constant dense<0.000000e+00> : vector<2x128xf32>
    %706 = tpu.matmul %524, %7, %cst_249 {dimension_numbers = #tpu.dot_dimension_numbers<[1], [0], [0], [1], [0, 0, 1, 1], [], []>} : vector<2x32xf32>, vector<32x128xf32>, vector<2x128xf32> -> vector<2x128xf32>
    %707 = arith.mulf %705, %25 : vector<2x128xf32>
    %cst_250 = arith.constant dense<0.000000e+00> : vector<2x128xf32>
    %708 = tpu.matmul %707, %13, %cst_250 {dimension_numbers = #tpu.dot_dimension_numbers<[1], [0], [0], [1], [0, 0, 1, 1], [], []>} : vector<2x128xf32>, vector<128x128xf32>, vector<2x128xf32> -> vector<2x128xf32>
    %709 = arith.mulf %31, %706 : vector<2x128xf32>
    %cst_251 = arith.constant dense<0.000000e+00> : vector<2x128xf32>
    %710 = tpu.matmul %709, %19, %cst_251 {dimension_numbers = #tpu.dot_dimension_numbers<[1], [0], [0], [1], [0, 0, 1, 1], [], []>} : vector<2x128xf32>, vector<128x128xf32>, vector<2x128xf32> -> vector<2x128xf32>
    %711 = arith.addf %708, %710 : vector<2x128xf32>
    %712 = arith.addf %711, %37 : vector<2x128xf32>
    %713 = vector.extract_strided_slice %712 {offsets = [0, 0], sizes = [2, 32], strides = [1, 1]} : vector<2x128xf32> to vector<2x32xf32>
    %714 = arith.negf %713 : vector<2x32xf32>
    %715 = math.exp %714 : vector<2x32xf32>
    %cst_252 = arith.constant 1.000000e+00 : f32
    %716 = vector.broadcast %cst_252 : f32 to vector<2x32xf32>
    %717 = arith.addf %716, %715 : vector<2x32xf32>
    %718 = arith.divf %716, %717 : vector<2x32xf32>
    %719 = vector.extract_strided_slice %712 {offsets = [0, 32], sizes = [2, 32], strides = [1, 1]} : vector<2x128xf32> to vector<2x32xf32>
    %720 = arith.negf %719 : vector<2x32xf32>
    %721 = math.exp %720 : vector<2x32xf32>
    %cst_253 = arith.constant 1.000000e+00 : f32
    %722 = vector.broadcast %cst_253 : f32 to vector<2x32xf32>
    %723 = arith.addf %722, %721 : vector<2x32xf32>
    %724 = arith.divf %722, %723 : vector<2x32xf32>
    %725 = vector.extract_strided_slice %712 {offsets = [0, 64], sizes = [2, 32], strides = [1, 1]} : vector<2x128xf32> to vector<2x32xf32>
    %726 = arith.negf %725 : vector<2x32xf32>
    %727 = math.exp %726 : vector<2x32xf32>
    %cst_254 = arith.constant 1.000000e+00 : f32
    %728 = vector.broadcast %cst_254 : f32 to vector<2x32xf32>
    %729 = arith.addf %728, %727 : vector<2x32xf32>
    %730 = arith.divf %728, %729 : vector<2x32xf32>
    %731 = vector.extract_strided_slice %712 {offsets = [0, 96], sizes = [2, 32], strides = [1, 1]} : vector<2x128xf32> to vector<2x32xf32>
    %732 = math.tanh %731 : vector<2x32xf32>
    %733 = arith.mulf %724, %522 : vector<2x32xf32>
    %734 = arith.mulf %718, %732 : vector<2x32xf32>
    %735 = arith.addf %733, %734 : vector<2x32xf32>
    %736 = math.tanh %735 : vector<2x32xf32>
    %737 = arith.mulf %730, %736 : vector<2x32xf32>
    %738 = vector.extract_strided_slice %704 {offsets = [0, 128], sizes = [2, 128], strides = [1, 1]} : vector<2x384xf32> to vector<2x128xf32>
    %cst_255 = arith.constant dense<0.000000e+00> : vector<2x128xf32>
    %739 = tpu.matmul %557, %9, %cst_255 {dimension_numbers = #tpu.dot_dimension_numbers<[1], [0], [0], [1], [0, 0, 1, 1], [], []>} : vector<2x32xf32>, vector<32x128xf32>, vector<2x128xf32> -> vector<2x128xf32>
    %740 = arith.mulf %738, %27 : vector<2x128xf32>
    %cst_256 = arith.constant dense<0.000000e+00> : vector<2x128xf32>
    %741 = tpu.matmul %740, %15, %cst_256 {dimension_numbers = #tpu.dot_dimension_numbers<[1], [0], [0], [1], [0, 0, 1, 1], [], []>} : vector<2x128xf32>, vector<128x128xf32>, vector<2x128xf32> -> vector<2x128xf32>
    %742 = arith.mulf %33, %739 : vector<2x128xf32>
    %cst_257 = arith.constant dense<0.000000e+00> : vector<2x128xf32>
    %743 = tpu.matmul %742, %21, %cst_257 {dimension_numbers = #tpu.dot_dimension_numbers<[1], [0], [0], [1], [0, 0, 1, 1], [], []>} : vector<2x128xf32>, vector<128x128xf32>, vector<2x128xf32> -> vector<2x128xf32>
    %744 = arith.addf %741, %743 : vector<2x128xf32>
    %745 = arith.addf %744, %39 : vector<2x128xf32>
    %746 = vector.extract_strided_slice %745 {offsets = [0, 0], sizes = [2, 32], strides = [1, 1]} : vector<2x128xf32> to vector<2x32xf32>
    %747 = arith.negf %746 : vector<2x32xf32>
    %748 = math.exp %747 : vector<2x32xf32>
    %cst_258 = arith.constant 1.000000e+00 : f32
    %749 = vector.broadcast %cst_258 : f32 to vector<2x32xf32>
    %750 = arith.addf %749, %748 : vector<2x32xf32>
    %751 = arith.divf %749, %750 : vector<2x32xf32>
    %752 = vector.extract_strided_slice %745 {offsets = [0, 32], sizes = [2, 32], strides = [1, 1]} : vector<2x128xf32> to vector<2x32xf32>
    %753 = arith.negf %752 : vector<2x32xf32>
    %754 = math.exp %753 : vector<2x32xf32>
    %cst_259 = arith.constant 1.000000e+00 : f32
    %755 = vector.broadcast %cst_259 : f32 to vector<2x32xf32>
    %756 = arith.addf %755, %754 : vector<2x32xf32>
    %757 = arith.divf %755, %756 : vector<2x32xf32>
    %758 = vector.extract_strided_slice %745 {offsets = [0, 64], sizes = [2, 32], strides = [1, 1]} : vector<2x128xf32> to vector<2x32xf32>
    %759 = arith.negf %758 : vector<2x32xf32>
    %760 = math.exp %759 : vector<2x32xf32>
    %cst_260 = arith.constant 1.000000e+00 : f32
    %761 = vector.broadcast %cst_260 : f32 to vector<2x32xf32>
    %762 = arith.addf %761, %760 : vector<2x32xf32>
    %763 = arith.divf %761, %762 : vector<2x32xf32>
    %764 = vector.extract_strided_slice %745 {offsets = [0, 96], sizes = [2, 32], strides = [1, 1]} : vector<2x128xf32> to vector<2x32xf32>
    %765 = math.tanh %764 : vector<2x32xf32>
    %766 = arith.mulf %757, %555 : vector<2x32xf32>
    %767 = arith.mulf %751, %765 : vector<2x32xf32>
    %768 = arith.addf %766, %767 : vector<2x32xf32>
    %769 = math.tanh %768 : vector<2x32xf32>
    %770 = arith.mulf %763, %769 : vector<2x32xf32>
    %771 = vector.extract_strided_slice %704 {offsets = [0, 256], sizes = [2, 128], strides = [1, 1]} : vector<2x384xf32> to vector<2x128xf32>
    %cst_261 = arith.constant dense<0.000000e+00> : vector<2x128xf32>
    %772 = tpu.matmul %590, %11, %cst_261 {dimension_numbers = #tpu.dot_dimension_numbers<[1], [0], [0], [1], [0, 0, 1, 1], [], []>} : vector<2x32xf32>, vector<32x128xf32>, vector<2x128xf32> -> vector<2x128xf32>
    %773 = arith.mulf %771, %29 : vector<2x128xf32>
    %cst_262 = arith.constant dense<0.000000e+00> : vector<2x128xf32>
    %774 = tpu.matmul %773, %17, %cst_262 {dimension_numbers = #tpu.dot_dimension_numbers<[1], [0], [0], [1], [0, 0, 1, 1], [], []>} : vector<2x128xf32>, vector<128x128xf32>, vector<2x128xf32> -> vector<2x128xf32>
    %775 = arith.mulf %35, %772 : vector<2x128xf32>
    %cst_263 = arith.constant dense<0.000000e+00> : vector<2x128xf32>
    %776 = tpu.matmul %775, %23, %cst_263 {dimension_numbers = #tpu.dot_dimension_numbers<[1], [0], [0], [1], [0, 0, 1, 1], [], []>} : vector<2x128xf32>, vector<128x128xf32>, vector<2x128xf32> -> vector<2x128xf32>
    %777 = arith.addf %774, %776 : vector<2x128xf32>
    %778 = arith.addf %777, %41 : vector<2x128xf32>
    %779 = vector.extract_strided_slice %778 {offsets = [0, 0], sizes = [2, 32], strides = [1, 1]} : vector<2x128xf32> to vector<2x32xf32>
    %780 = arith.negf %779 : vector<2x32xf32>
    %781 = math.exp %780 : vector<2x32xf32>
    %cst_264 = arith.constant 1.000000e+00 : f32
    %782 = vector.broadcast %cst_264 : f32 to vector<2x32xf32>
    %783 = arith.addf %782, %781 : vector<2x32xf32>
    %784 = arith.divf %782, %783 : vector<2x32xf32>
    %785 = vector.extract_strided_slice %778 {offsets = [0, 32], sizes = [2, 32], strides = [1, 1]} : vector<2x128xf32> to vector<2x32xf32>
    %786 = arith.negf %785 : vector<2x32xf32>
    %787 = math.exp %786 : vector<2x32xf32>
    %cst_265 = arith.constant 1.000000e+00 : f32
    %788 = vector.broadcast %cst_265 : f32 to vector<2x32xf32>
    %789 = arith.addf %788, %787 : vector<2x32xf32>
    %790 = arith.divf %788, %789 : vector<2x32xf32>
    %791 = vector.extract_strided_slice %778 {offsets = [0, 64], sizes = [2, 32], strides = [1, 1]} : vector<2x128xf32> to vector<2x32xf32>
    %792 = arith.negf %791 : vector<2x32xf32>
    %793 = math.exp %792 : vector<2x32xf32>
    %cst_266 = arith.constant 1.000000e+00 : f32
    %794 = vector.broadcast %cst_266 : f32 to vector<2x32xf32>
    %795 = arith.addf %794, %793 : vector<2x32xf32>
    %796 = arith.divf %794, %795 : vector<2x32xf32>
    %797 = vector.extract_strided_slice %778 {offsets = [0, 96], sizes = [2, 32], strides = [1, 1]} : vector<2x128xf32> to vector<2x32xf32>
    %798 = math.tanh %797 : vector<2x32xf32>
    %799 = arith.mulf %790, %588 : vector<2x32xf32>
    %800 = arith.mulf %784, %798 : vector<2x32xf32>
    %801 = arith.addf %799, %800 : vector<2x32xf32>
    %802 = math.tanh %801 : vector<2x32xf32>
    %803 = arith.mulf %796, %802 : vector<2x32xf32>
    %cst_267 = arith.constant 0.000000e+00 : f32
    %804 = vector.broadcast %cst_267 : f32 to vector<2x64xf32>
    %cst_268 = arith.constant dense<0.000000e+00> : vector<2x32xf32>
    %805 = tpu.matmul %737, %46, %cst_268 {dimension_numbers = #tpu.dot_dimension_numbers<[1], [0], [0], [1], [0, 0, 1, 1], [], []>} : vector<2x32xf32>, vector<32x32xf32>, vector<2x32xf32> -> vector<2x32xf32>
    %806 = vector.shape_cast %805 : vector<2x32xf32> to vector<2x1x32xf32>
    %807 = vector.broadcast %806 : vector<2x1x32xf32> to vector<2x8x32xf32>
    %808 = arith.addf %42, %807 : vector<2x8x32xf32>
    %809 = math.tanh %808 : vector<2x8x32xf32>
    %810 = vector.shape_cast %52 : vector<1x32xf32> to vector<1x1x32xf32>
    %811 = vector.broadcast %810 : vector<1x1x32xf32> to vector<2x8x32xf32>
    %812 = arith.mulf %809, %811 : vector<2x8x32xf32>
    %cst_269 = arith.constant dense<0.000000e+00> : vector<2x8xf32>
    %813 = vector.multi_reduction <add>, %812, %cst_269 [2] : vector<2x8x32xf32> to vector<2x8xf32>
    %cst_270 = arith.constant dense<0xFF800000> : vector<2xf32>
    %814 = vector.multi_reduction <maximumf>, %813, %cst_270 [1] : vector<2x8xf32> to vector<2xf32>
    %815 = vector.shape_cast %814 : vector<2xf32> to vector<2x1xf32>
    %816 = vector.broadcast %815 : vector<2x1xf32> to vector<2x8xf32>
    %817 = arith.subf %813, %816 : vector<2x8xf32>
    %818 = math.exp %817 : vector<2x8xf32>
    %cst_271 = arith.constant dense<0.000000e+00> : vector<2xf32>
    %819 = vector.multi_reduction <add>, %818, %cst_271 [1] : vector<2x8xf32> to vector<2xf32>
    %820 = vector.shape_cast %819 : vector<2xf32> to vector<2x1xf32>
    %821 = vector.broadcast %820 : vector<2x1xf32> to vector<2x8xf32>
    %822 = arith.divf %818, %821 : vector<2x8xf32>
    %823 = vector.shape_cast %822 : vector<2x8xf32> to vector<2x8x1xf32>
    %824 = vector.broadcast %823 : vector<2x8x1xf32> to vector<2x8x64xf32>
    %825 = arith.mulf %824, %0 : vector<2x8x64xf32>
    %cst_272 = arith.constant dense<0.000000e+00> : vector<2x64xf32>
    %826 = vector.multi_reduction <add>, %825, %cst_272 [1] : vector<2x8x64xf32> to vector<2x64xf32>
    %827 = arith.addf %804, %826 : vector<2x64xf32>
    %cst_273 = arith.constant dense<0.000000e+00> : vector<2x32xf32>
    %828 = tpu.matmul %770, %48, %cst_273 {dimension_numbers = #tpu.dot_dimension_numbers<[1], [0], [0], [1], [0, 0, 1, 1], [], []>} : vector<2x32xf32>, vector<32x32xf32>, vector<2x32xf32> -> vector<2x32xf32>
    %829 = vector.shape_cast %828 : vector<2x32xf32> to vector<2x1x32xf32>
    %830 = vector.broadcast %829 : vector<2x1x32xf32> to vector<2x8x32xf32>
    %831 = arith.addf %43, %830 : vector<2x8x32xf32>
    %832 = math.tanh %831 : vector<2x8x32xf32>
    %833 = vector.shape_cast %54 : vector<1x32xf32> to vector<1x1x32xf32>
    %834 = vector.broadcast %833 : vector<1x1x32xf32> to vector<2x8x32xf32>
    %835 = arith.mulf %832, %834 : vector<2x8x32xf32>
    %cst_274 = arith.constant dense<0.000000e+00> : vector<2x8xf32>
    %836 = vector.multi_reduction <add>, %835, %cst_274 [2] : vector<2x8x32xf32> to vector<2x8xf32>
    %cst_275 = arith.constant dense<0xFF800000> : vector<2xf32>
    %837 = vector.multi_reduction <maximumf>, %836, %cst_275 [1] : vector<2x8xf32> to vector<2xf32>
    %838 = vector.shape_cast %837 : vector<2xf32> to vector<2x1xf32>
    %839 = vector.broadcast %838 : vector<2x1xf32> to vector<2x8xf32>
    %840 = arith.subf %836, %839 : vector<2x8xf32>
    %841 = math.exp %840 : vector<2x8xf32>
    %cst_276 = arith.constant dense<0.000000e+00> : vector<2xf32>
    %842 = vector.multi_reduction <add>, %841, %cst_276 [1] : vector<2x8xf32> to vector<2xf32>
    %843 = vector.shape_cast %842 : vector<2xf32> to vector<2x1xf32>
    %844 = vector.broadcast %843 : vector<2x1xf32> to vector<2x8xf32>
    %845 = arith.divf %841, %844 : vector<2x8xf32>
    %846 = vector.shape_cast %845 : vector<2x8xf32> to vector<2x8x1xf32>
    %847 = vector.broadcast %846 : vector<2x8x1xf32> to vector<2x8x64xf32>
    %848 = arith.mulf %847, %0 : vector<2x8x64xf32>
    %cst_277 = arith.constant dense<0.000000e+00> : vector<2x64xf32>
    %849 = vector.multi_reduction <add>, %848, %cst_277 [1] : vector<2x8x64xf32> to vector<2x64xf32>
    %850 = arith.addf %827, %849 : vector<2x64xf32>
    %cst_278 = arith.constant dense<0.000000e+00> : vector<2x32xf32>
    %851 = tpu.matmul %803, %50, %cst_278 {dimension_numbers = #tpu.dot_dimension_numbers<[1], [0], [0], [1], [0, 0, 1, 1], [], []>} : vector<2x32xf32>, vector<32x32xf32>, vector<2x32xf32> -> vector<2x32xf32>
    %852 = vector.shape_cast %851 : vector<2x32xf32> to vector<2x1x32xf32>
    %853 = vector.broadcast %852 : vector<2x1x32xf32> to vector<2x8x32xf32>
    %854 = arith.addf %44, %853 : vector<2x8x32xf32>
    %855 = math.tanh %854 : vector<2x8x32xf32>
    %856 = vector.shape_cast %56 : vector<1x32xf32> to vector<1x1x32xf32>
    %857 = vector.broadcast %856 : vector<1x1x32xf32> to vector<2x8x32xf32>
    %858 = arith.mulf %855, %857 : vector<2x8x32xf32>
    %cst_279 = arith.constant dense<0.000000e+00> : vector<2x8xf32>
    %859 = vector.multi_reduction <add>, %858, %cst_279 [2] : vector<2x8x32xf32> to vector<2x8xf32>
    %cst_280 = arith.constant dense<0xFF800000> : vector<2xf32>
    %860 = vector.multi_reduction <maximumf>, %859, %cst_280 [1] : vector<2x8xf32> to vector<2xf32>
    %861 = vector.shape_cast %860 : vector<2xf32> to vector<2x1xf32>
    %862 = vector.broadcast %861 : vector<2x1xf32> to vector<2x8xf32>
    %863 = arith.subf %859, %862 : vector<2x8xf32>
    %864 = math.exp %863 : vector<2x8xf32>
    %cst_281 = arith.constant dense<0.000000e+00> : vector<2xf32>
    %865 = vector.multi_reduction <add>, %864, %cst_281 [1] : vector<2x8xf32> to vector<2xf32>
    %866 = vector.shape_cast %865 : vector<2xf32> to vector<2x1xf32>
    %867 = vector.broadcast %866 : vector<2x1xf32> to vector<2x8xf32>
    %868 = arith.divf %864, %867 : vector<2x8xf32>
    %869 = vector.shape_cast %868 : vector<2x8xf32> to vector<2x8x1xf32>
    %870 = vector.broadcast %869 : vector<2x8x1xf32> to vector<2x8x64xf32>
    %871 = arith.mulf %870, %0 : vector<2x8x64xf32>
    %cst_282 = arith.constant dense<0.000000e+00> : vector<2x64xf32>
    %872 = vector.multi_reduction <add>, %871, %cst_282 [1] : vector<2x8x64xf32> to vector<2x64xf32>
    %873 = arith.addf %850, %872 : vector<2x64xf32>
    %cst_283 = arith.constant 0.333333343 : f32
    %874 = vector.broadcast %cst_283 : f32 to vector<2x64xf32>
    %875 = arith.mulf %873, %874 : vector<2x64xf32>
    %cst_284 = arith.constant dense<0.000000e+00> : vector<2x64xf32>
    %876 = tpu.matmul %684, %57, %cst_284 {dimension_numbers = #tpu.dot_dimension_numbers<[1], [0], [0], [1], [0, 0, 1, 1], [], []>} : vector<2x32xf32>, vector<32x64xf32>, vector<2x64xf32> -> vector<2x64xf32>
    %cst_285 = arith.constant dense<0.000000e+00> : vector<2x64xf32>
    %877 = tpu.matmul %875, %58, %cst_285 {dimension_numbers = #tpu.dot_dimension_numbers<[1], [0], [0], [1], [0, 0, 1, 1], [], []>} : vector<2x64xf32>, vector<64x64xf32>, vector<2x64xf32> -> vector<2x64xf32>
    %878 = arith.addf %876, %877 : vector<2x64xf32>
    %879 = vector.broadcast %59 : vector<1x64xf32> to vector<2x64xf32>
    %880 = arith.addf %878, %879 : vector<2x64xf32>
    %881 = arith.negf %880 : vector<2x64xf32>
    %882 = math.exp %881 : vector<2x64xf32>
    %cst_286 = arith.constant 1.000000e+00 : f32
    %883 = vector.broadcast %cst_286 : f32 to vector<2x64xf32>
    %884 = arith.addf %883, %882 : vector<2x64xf32>
    %885 = arith.divf %883, %884 : vector<2x64xf32>
    %886 = vector.extract_strided_slice %885 {offsets = [0, 0], sizes = [2, 32], strides = [1, 1]} : vector<2x64xf32> to vector<2x32xf32>
    %887 = vector.extract_strided_slice %885 {offsets = [0, 32], sizes = [2, 32], strides = [1, 1]} : vector<2x64xf32> to vector<2x32xf32>
    %888 = arith.mulf %886, %737 : vector<2x32xf32>
    %cst_287 = arith.constant 1.000000e+00 : f32
    %889 = vector.broadcast %cst_287 : f32 to vector<2x32xf32>
    %890 = arith.subf %889, %886 : vector<2x32xf32>
    %891 = arith.mulf %890, %770 : vector<2x32xf32>
    %892 = arith.addf %888, %891 : vector<2x32xf32>
    %893 = arith.mulf %887, %892 : vector<2x32xf32>
    %cst_288 = arith.constant 1.000000e+00 : f32
    %894 = vector.broadcast %cst_288 : f32 to vector<2x32xf32>
    %895 = arith.subf %894, %887 : vector<2x32xf32>
    %896 = arith.mulf %895, %803 : vector<2x32xf32>
    %897 = arith.addf %893, %896 : vector<2x32xf32>
    %cst_289 = arith.constant dense<0.000000e+00> : vector<2x128xf32>
    %898 = tpu.matmul %897, %60, %cst_289 {dimension_numbers = #tpu.dot_dimension_numbers<[1], [0], [0], [1], [0, 0, 1, 1], [], []>} : vector<2x32xf32>, vector<32x128xf32>, vector<2x128xf32> -> vector<2x128xf32>
    %899 = vector.broadcast %61 : vector<1x128xf32> to vector<2x128xf32>
    %900 = arith.addf %898, %899 : vector<2x128xf32>
    %c3 = arith.constant 3 : index
    %c0_290 = arith.constant 0 : index
    %c0_291 = arith.constant 0 : index
    %901 = vector.load %arg22[%c3, %c0_290, %c0_291] : memref<4x2x128xf32, #tpu.memory_space<vmem>>, vector<1x2x128xf32>
    %902 = vector.shape_cast %901 : vector<1x2x128xf32> to vector<2x128xf32>
    %903 = vector.shape_cast %900 : vector<2x128xf32> to vector<1x2x128xf32>
    tpu.vector_store %arg22[%c3, %c0_290, %c0_291], %903 {strides = array<i32>} : memref<4x2x128xf32, #tpu.memory_space<vmem>>, vector<1x2x128xf32>,
    return
  }
}

</mosaic_0001>

<llo_original>
// kernel: decoder_forward.1
$region0: #{decoder_forward.1}
  #allocation0 [shape = 'u32[]', space=smem, size = 0x4, offset = 0x4, fixed_abs, tag = 'smem constant byte address 0x4 - core index']
  #allocation1 [shape = 'u32[144,128]{1,0:T(1,128)}', space=vmem, size = 0x12000, scoped, tag = 'internal scratch']
  %s0 = inlined_call_operand.vmem [shape: f32[2,8,64], index: 0, kind: input, shape index: {}]
  %s1 = inlined_call_operand.vmem [shape: f32[2,32], index: 1, kind: input, shape index: {}, may-alias: {1,3}]
  %s2 = inlined_call_operand.vmem [shape: f32[2,32], index: 2, kind: input, shape index: {}]
  %s3 = inlined_call_operand.vmem [shape: f32[2,32], index: 3, kind: input, shape index: {}, may-alias: {1,3}]
  %s4 = inlined_call_operand.vmem [shape: f32[32,384], index: 4, kind: input, shape index: {}]
  %s5 = inlined_call_operand.hbm [shape: f32[3,32,128], index: 5, kind: input, shape index: {}]
  %s6 = inlined_call_operand.vmem [shape: f32[3,128,128], index: 6, kind: input, shape index: {}]
  %s7 = inlined_call_operand.vmem [shape: f32[3,128,128], index: 7, kind: input, shape index: {}]
  %s8 = inlined_call_operand.vmem [shape: f32[3,2,128], index: 8, kind: input, shape index: {}]
  %s9 = inlined_call_operand.vmem [shape: f32[3,2,128], index: 9, kind: input, shape index: {}]
  %s10 = inlined_call_operand.vmem [shape: f32[3,2,128], index: 10, kind: input, shape index: {}]
  %s11 = inlined_call_operand.vmem [shape: f32[2,8,32], index: 11, kind: input, shape index: {}]
  %s12 = inlined_call_operand.vmem [shape: f32[2,8,32], index: 12, kind: input, shape index: {}]
  %s13 = inlined_call_operand.vmem [shape: f32[2,8,32], index: 13, kind: input, shape index: {}]
  %s14 = inlined_call_operand.hbm [shape: f32[3,32,32], index: 14, kind: input, shape index: {}]
  %s15 = inlined_call_operand.vmem [shape: f32[3,1,32], index: 15, kind: input, shape index: {}]
  %s16 = inlined_call_operand.hbm [shape: f32[32,64], index: 16, kind: input, shape index: {}]
  %s17 = inlined_call_operand.hbm [shape: f32[64,64], index: 17, kind: input, shape index: {}]
  %s18 = inlined_call_operand.hbm [shape: f32[1,64], index: 18, kind: input, shape index: {}]
  %s19 = inlined_call_operand.hbm [shape: f32[32,128], index: 19, kind: input, shape index: {}]
  %s20 = inlined_call_operand.hbm [shape: f32[1,128], index: 20, kind: input, shape index: {}]
  %s21 = inlined_call_operand.vmem [shape: f32[128,32], index: 21, kind: input, shape index: {}]
  %s22 = inlined_call_operand.vmem [shape: f32[4,2,128], index: 22, kind: output, shape index: {}]
  %s23 = sld [smem:[#allocation0]]
  $region126: #{decoder_forward.1} parent=0
    _
  %s25 = ssub.s32 1, %s23
  %s26 = scalar_select 0, %s25, %s23
  $region1: #{decoder_forward.1} parent=0
    #allocation2 [shape = 'u8[49152]{0}', space=vmem, size = 0xc000, scoped, tag = 'input window, operand 5, single buffered']
    #allocation3 [shape = 's32[1]{0}', space=sflag, size = 0x4, scoped, tag = 'scoped memory for decoder_forward.1']
    #allocation4 [shape = 'u8[49152]{0}', space=vmem, size = 0xc000, scoped, tag = 'input window, operand 14, single buffered']
    #allocation5 [shape = 's32[1]{0}', space=sflag, size = 0x4, scoped, tag = 'scoped memory for decoder_forward.1']
    #allocation6 [shape = 'u8[16384]{0}', space=vmem, size = 0x4000, scoped, tag = 'input window, operand 16, single buffered']
    #allocation7 [shape = 'u8[32768]{0}', space=vmem, size = 0x8000, scoped, tag = 'input window, operand 17, single buffered']
    #allocation8 [shape = 's32[1]{0}', space=sflag, size = 0x4, scoped, tag = 'scoped memory for decoder_forward.1']
    #allocation9 [shape = 'u8[512]{0}', space=vmem, size = 0x400, scoped, tag = 'input window, operand 18, single buffered']
    #allocation10 [shape = 'u8[16384]{0}', space=vmem, size = 0x4000, scoped, tag = 'input window, operand 19, single buffered']
    #allocation11 [shape = 's32[1]{0}', space=sflag, size = 0x4, scoped, tag = 'scoped memory for decoder_forward.1']
    #allocation12 [shape = 'u8[512]{0}', space=vmem, size = 0x400, scoped, tag = 'input window, operand 20, single buffered']
    %27 = vsyncpa [#allocation3], 0
    %28 = vsyncpa [#allocation5], 0
    %29 = vsyncpa [#allocation8], 0
    %30 = vsyncpa [#allocation11], 0
    // Predicated region
    $region2: #{decoder_forward.1} parent=1 // pred_check
      _
    $region3: #{decoder_forward.1} parent=1 // pred_check_branch
      %32 = sbr.rel (0) target = $region5
    $region4: #{decoder_forward.1} parent=1 // pred_region
      _
    $region5: #{decoder_forward.1} parent=1 // pred_fallthru
      _
    // Predicated region
    $region6: #{decoder_forward.1} parent=1 // pred_check
      _
    $region7: #{decoder_forward.1} parent=1 // pred_check_branch
      %34 = sbr.rel (0) target = $region9
    $region8: #{decoder_forward.1} parent=1 // pred_region
      _
    $region9: #{decoder_forward.1} parent=1 // pred_fallthru
      _
    // Predicated region
    $region10: #{decoder_forward.1} parent=1 // pred_check
      _
    $region11: #{decoder_forward.1} parent=1 // pred_check_branch
      %36 = sbr.rel (0) target = $region13
    $region12: #{decoder_forward.1} parent=1 // pred_region
      _
    $region13: #{decoder_forward.1} parent=1 // pred_fallthru
      _
    // Predicated region
    $region14: #{decoder_forward.1} parent=1 // pred_check
      _
    $region15: #{decoder_forward.1} parent=1 // pred_check_branch
      %38 = sbr.rel (0) target = $region17
    $region16: #{decoder_forward.1} parent=1 // pred_region
      _
    $region17: #{decoder_forward.1} parent=1 // pred_fallthru
      _
    // Predicated region
    $region18: #{decoder_forward.1} parent=1 // pred_check
      _
    $region19: #{decoder_forward.1} parent=1 // pred_check_branch
      %40 = sbr.rel (0) target = $region21
    $region20: #{decoder_forward.1} parent=1 // pred_region
      _
    $region21: #{decoder_forward.1} parent=1 // pred_fallthru
      _
    // Predicated region
    $region22: #{decoder_forward.1} parent=1 // pred_check
      _
    $region23: #{decoder_forward.1} parent=1 // pred_check_branch
      %42 = sbr.rel (0) target = $region25
    $region24: #{decoder_forward.1} parent=1 // pred_region
      %s44 = ssub.s32 1536, 1536
      %45 = vsyncadd [#allocation3], %s44
      %s46 = sshll.u32 [#allocation2], 4
      %s47 = int_to_ptr.vmem [resolvable:$true] %s46
      %52 = dma.hbm_to_vmem [thread:$0]  %s5, 1536, %s47, [#allocation3], 128, 128, 8
    $region25: #{decoder_forward.1} parent=1 // pred_fallthru
      _
    // Predicated region
    $region26: #{decoder_forward.1} parent=1 // pred_check
      _
    $region27: #{decoder_forward.1} parent=1 // pred_check_branch
      %54 = sbr.rel (0) target = $region29
    $region28: #{decoder_forward.1} parent=1 // pred_region
      _
    $region29: #{decoder_forward.1} parent=1 // pred_fallthru
      _
    // Predicated region
    $region30: #{decoder_forward.1} parent=1 // pred_check
      _
    $region31: #{decoder_forward.1} parent=1 // pred_check_branch
      %56 = sbr.rel (0) target = $region33
    $region32: #{decoder_forward.1} parent=1 // pred_region
      _
    $region33: #{decoder_forward.1} parent=1 // pred_fallthru
      _
    // Predicated region
    $region34: #{decoder_forward.1} parent=1 // pred_check
      _
    $region35: #{decoder_forward.1} parent=1 // pred_check_branch
      %58 = sbr.rel (0) target = $region37
    $region36: #{decoder_forward.1} parent=1 // pred_region
      _
    $region37: #{decoder_forward.1} parent=1 // pred_fallthru
      _
    // Predicated region
    $region38: #{decoder_forward.1} parent=1 // pred_check
      _
    $region39: #{decoder_forward.1} parent=1 // pred_check_branch
      %60 = sbr.rel (0) target = $region41
    $region40: #{decoder_forward.1} parent=1 // pred_region
      _
    $region41: #{decoder_forward.1} parent=1 // pred_fallthru
      _
    // Predicated region
    $region42: #{decoder_forward.1} parent=1 // pred_check
      _
    $region43: #{decoder_forward.1} parent=1 // pred_check_branch
      %62 = sbr.rel (0) target = $region45
    $region44: #{decoder_forward.1} parent=1 // pred_region
      _
    $region45: #{decoder_forward.1} parent=1 // pred_fallthru
      _
    // Predicated region
    $region46: #{decoder_forward.1} parent=1 // pred_check
      _
    $region47: #{decoder_forward.1} parent=1 // pred_check_branch
      %64 = sbr.rel (0) target = $region49
    $region48: #{decoder_forward.1} parent=1 // pred_region
      _
    $region49: #{decoder_forward.1} parent=1 // pred_fallthru
      _
    // Predicated region
    $region50: #{decoder_forward.1} parent=1 // pred_check
      _
    $region51: #{decoder_forward.1} parent=1 // pred_check_branch
      %66 = sbr.rel (0) target = $region53
    $region52: #{decoder_forward.1} parent=1 // pred_region
      _
    $region53: #{decoder_forward.1} parent=1 // pred_fallthru
      _
    // Predicated region
    $region54: #{decoder_forward.1} parent=1 // pred_check
      _
    $region55: #{decoder_forward.1} parent=1 // pred_check_branch
      %68 = sbr.rel (0) target = $region57
    $region56: #{decoder_forward.1} parent=1 // pred_region
      _
    $region57: #{decoder_forward.1} parent=1 // pred_fallthru
      _
    // Predicated region
    $region58: #{decoder_forward.1} parent=1 // pred_check
      _
    $region59: #{decoder_forward.1} parent=1 // pred_check_branch
      %70 = sbr.rel (0) target = $region61
    $region60: #{decoder_forward.1} parent=1 // pred_region
      %s72 = ssub.s32 1536, 1536
      %73 = vsyncadd [#allocation5], %s72
      %s74 = sshll.u32 [#allocation4], 4
      %s75 = int_to_ptr.vmem [resolvable:$true] %s74
      %80 = dma.hbm_to_vmem [thread:$0]  %s14, 1536, %s75, [#allocation5], 128, 128, 8
    $region61: #{decoder_forward.1} parent=1 // pred_fallthru
      _
    // Predicated region
    $region62: #{decoder_forward.1} parent=1 // pred_check
      _
    $region63: #{decoder_forward.1} parent=1 // pred_check_branch
      %82 = sbr.rel (0) target = $region65
    $region64: #{decoder_forward.1} parent=1 // pred_region
      _
    $region65: #{decoder_forward.1} parent=1 // pred_fallthru
      _
    // Predicated region
    $region66: #{decoder_forward.1} parent=1 // pred_check
      _
    $region67: #{decoder_forward.1} parent=1 // pred_check_branch
      %84 = sbr.rel (0) target = $region69
    $region68: #{decoder_forward.1} parent=1 // pred_region
      %s86 = ssub.s32 512, 512
      %87 = vsyncadd [#allocation5], %s86
      %s88 = sshll.u32 [#allocation6], 4
      %s89 = int_to_ptr.vmem [resolvable:$true] %s88
      %94 = dma.hbm_to_vmem [thread:$0]  %s16, 512, %s89, [#allocation5], 128, 128, 8
    $region69: #{decoder_forward.1} parent=1 // pred_fallthru
      _
    // Predicated region
    $region70: #{decoder_forward.1} parent=1 // pred_check
      _
    $region71: #{decoder_forward.1} parent=1 // pred_check_branch
      %96 = sbr.rel (0) target = $region73
    $region72: #{decoder_forward.1} parent=1 // pred_region
      %s98 = ssub.s32 1024, 1024
      %99 = vsyncadd [#allocation8], %s98
      %s100 = sshll.u32 [#allocation7], 4
      %s101 = int_to_ptr.vmem [resolvable:$true] %s100
      %106 = dma.hbm_to_vmem [thread:$0]  %s17, 1024, %s101, [#allocation8], 128, 128, 8
    $region73: #{decoder_forward.1} parent=1 // pred_fallthru
      _
    // Predicated region
    $region74: #{decoder_forward.1} parent=1 // pred_check
      _
    $region75: #{decoder_forward.1} parent=1 // pred_check_branch
      %108 = sbr.rel (0) target = $region77
    $region76: #{decoder_forward.1} parent=1 // pred_region
      %s110 = ssub.s32 16, 16
      %111 = vsyncadd [#allocation8], %s110
      %s113 = sshll.u32 [#allocation9], 4
      %s114 = int_to_ptr.vmem [resolvable:$true] %s113
      %116 = dma.hbm_to_vmem [thread:$0]  %s18, 16, %s114, [#allocation8]
    $region77: #{decoder_forward.1} parent=1 // pred_fallthru
      _
    // Predicated region
    $region78: #{decoder_forward.1} parent=1 // pred_check
      _
    $region79: #{decoder_forward.1} parent=1 // pred_check_branch
      %118 = sbr.rel (0) target = $region81
    $region80: #{decoder_forward.1} parent=1 // pred_region
      %s120 = ssub.s32 512, 512
      %121 = vsyncadd [#allocation11], %s120
      %s122 = sshll.u32 [#allocation10], 4
      %s123 = int_to_ptr.vmem [resolvable:$true] %s122
      %128 = dma.hbm_to_vmem [thread:$0]  %s19, 512, %s123, [#allocation11], 128, 128, 8
    $region81: #{decoder_forward.1} parent=1 // pred_fallthru
      _
    // Predicated region
    $region82: #{decoder_forward.1} parent=1 // pred_check
      _
    $region83: #{decoder_forward.1} parent=1 // pred_check_branch
      %130 = sbr.rel (0) target = $region85
    $region84: #{decoder_forward.1} parent=1 // pred_region
      %s132 = ssub.s32 16, 16
      %133 = vsyncadd [#allocation11], %s132
      %s135 = sshll.u32 [#allocation12], 4
      %s136 = int_to_ptr.vmem [resolvable:$true] %s135
      %138 = dma.hbm_to_vmem [thread:$0]  %s20, 16, %s136, [#allocation11]
    $region85: #{decoder_forward.1} parent=1 // pred_fallthru
      _
    // Predicated region
    $region86: #{decoder_forward.1} parent=1 // pred_check
      _
    $region87: #{decoder_forward.1} parent=1 // pred_check_branch
      %140 = sbr.rel (0) target = $region89
    $region88: #{decoder_forward.1} parent=1 // pred_region
      _
    $region89: #{decoder_forward.1} parent=1 // pred_fallthru
      _
    // Predicated region
    $region90: #{decoder_forward.1} parent=1 // pred_check
      _
    $region91: #{decoder_forward.1} parent=1 // pred_check_branch
      %142 = sbr.rel (0) target = $region93
    $region92: #{decoder_forward.1} parent=1 // pred_region
      %143 = dma.done [#allocation3], 1536
    $region93: #{decoder_forward.1} parent=1 // pred_fallthru
      _
    // Predicated region
    $region94: #{decoder_forward.1} parent=1 // pred_check
      _
    $region95: #{decoder_forward.1} parent=1 // pred_check_branch
      %145 = sbr.rel (0) target = $region97
    $region96: #{decoder_forward.1} parent=1 // pred_region
      %146 = dma.done [#allocation5], 1536
    $region97: #{decoder_forward.1} parent=1 // pred_fallthru
      _
    // Predicated region
    $region98: #{decoder_forward.1} parent=1 // pred_check
      _
    $region99: #{decoder_forward.1} parent=1 // pred_check_branch
      %148 = sbr.rel (0) target = $region101
    $region100: #{decoder_forward.1} parent=1 // pred_region
      %149 = dma.done [#allocation5], 512
    $region101: #{decoder_forward.1} parent=1 // pred_fallthru
      _
    // Predicated region
    $region102: #{decoder_forward.1} parent=1 // pred_check
      _
    $region103: #{decoder_forward.1} parent=1 // pred_check_branch
      %151 = sbr.rel (0) target = $region105
    $region104: #{decoder_forward.1} parent=1 // pred_region
      %152 = dma.done [#allocation8], 1024
    $region105: #{decoder_forward.1} parent=1 // pred_fallthru
      _
    // Predicated region
    $region106: #{decoder_forward.1} parent=1 // pred_check
      _
    $region107: #{decoder_forward.1} parent=1 // pred_check_branch
      %154 = sbr.rel (0) target = $region109
    $region108: #{decoder_forward.1} parent=1 // pred_region
      %155 = dma.done [#allocation8], 16
    $region109: #{decoder_forward.1} parent=1 // pred_fallthru
      _
    // Predicated region
    $region110: #{decoder_forward.1} parent=1 // pred_check
      _
    $region111: #{decoder_forward.1} parent=1 // pred_check_branch
      %157 = sbr.rel (0) target = $region113
    $region112: #{decoder_forward.1} parent=1 // pred_region
      %158 = dma.done [#allocation11], 512
    $region113: #{decoder_forward.1} parent=1 // pred_fallthru
      _
    // Predicated region
    $region114: #{decoder_forward.1} parent=1 // pred_check
      _
    $region115: #{decoder_forward.1} parent=1 // pred_check_branch
      %160 = sbr.rel (0) target = $region117
    $region116: #{decoder_forward.1} parent=1 // pred_region
      %161 = dma.done [#allocation11], 16
    $region117: #{decoder_forward.1} parent=1 // pred_fallthru
      _
    %v162 = vld [vmem:[%s0] sm:$0xff]
    %v163 = vld [vmem:[%s0 + $0x8] sm:$0xff]
    %v164 = vld [vmem:[%s1] sm:$0x3]
    %v165 = vld [vmem:[%s2] sm:$0x3]
    %v166 = vld [vmem:[%s3] sm:$0x3]
    %v167 = vld [vmem:[%s4] sm:$0xff]
    %v168 = vld [vmem:[%s4 + $0x8] sm:$0xff]
    %v169 = vld [vmem:[%s4 + $0x10] sm:$0xff]
    %v170 = vld [vmem:[%s4 + $0x18] sm:$0xff]
    %v171 = vld [vmem:[%s4 + $0x20] sm:$0xff]
    %v172 = vld [vmem:[%s4 + $0x28] sm:$0xff]
    %v173 = vld [vmem:[%s4 + $0x30] sm:$0xff]
    %v174 = vld [vmem:[%s4 + $0x38] sm:$0xff]
    %v175 = vld [vmem:[%s4 + $0x40] sm:$0xff]
    %v176 = vld [vmem:[%s4 + $0x48] sm:$0xff]
    %v177 = vld [vmem:[%s4 + $0x50] sm:$0xff]
    %v178 = vld [vmem:[%s4 + $0x58] sm:$0xff]
    %v179 = vld [vmem:[#allocation2] sm:$0xff]
    %v180 = vld [vmem:[#allocation2 + $0x8] sm:$0xff]
    %v181 = vld [vmem:[#allocation2 + $0x10] sm:$0xff]
    %v182 = vld [vmem:[#allocation2 + $0x18] sm:$0xff]
    %s183 = scalar_lea.vmem [#allocation2], 32
    %v184 = vld [vmem:[%s183] sm:$0xff]
    %v185 = vld [vmem:[%s183 + $0x8] sm:$0xff]
    %v186 = vld [vmem:[%s183 + $0x10] sm:$0xff]
    %v187 = vld [vmem:[%s183 + $0x18] sm:$0xff]
    %s188 = scalar_lea.vmem [#allocation2], 64
    %v189 = vld [vmem:[%s188] sm:$0xff]
    %v190 = vld [vmem:[%s188 + $0x8] sm:$0xff]
    %v191 = vld [vmem:[%s188 + $0x10] sm:$0xff]
    %v192 = vld [vmem:[%s188 + $0x18] sm:$0xff]
    %v193 = vld [vmem:[%s6] sm:$0xff]
    %v194 = vld [vmem:[%s6 + $0x8] sm:$0xff]
    %v195 = vld [vmem:[%s6 + $0x10] sm:$0xff]
    %v196 = vld [vmem:[%s6 + $0x18] sm:$0xff]
    %v197 = vld [vmem:[%s6 + $0x20] sm:$0xff]
    %v198 = vld [vmem:[%s6 + $0x28] sm:$0xff]
    %v199 = vld [vmem:[%s6 + $0x30] sm:$0xff]
    %v200 = vld [vmem:[%s6 + $0x38] sm:$0xff]
    %v201 = vld [vmem:[%s6 + $0x40] sm:$0xff]
    %v202 = vld [vmem:[%s6 + $0x48] sm:$0xff]
    %v203 = vld [vmem:[%s6 + $0x50] sm:$0xff]
    %v204 = vld [vmem:[%s6 + $0x58] sm:$0xff]
    %v205 = vld [vmem:[%s6 + $0x60] sm:$0xff]
    %v206 = vld [vmem:[%s6 + $0x68] sm:$0xff]
    %v207 = vld [vmem:[%s6 + $0x70] sm:$0xff]
    %v208 = vld [vmem:[%s6 + $0x78] sm:$0xff]
    %s209 = scalar_lea.vmem %s6, 128
    %v210 = vld [vmem:[%s209] sm:$0xff]
    %v211 = vld [vmem:[%s209 + $0x8] sm:$0xff]
    %v212 = vld [vmem:[%s209 + $0x10] sm:$0xff]
    %v213 = vld [vmem:[%s209 + $0x18] sm:$0xff]
    %v214 = vld [vmem:[%s209 + $0x20] sm:$0xff]
    %v215 = vld [vmem:[%s209 + $0x28] sm:$0xff]
    %v216 = vld [vmem:[%s209 + $0x30] sm:$0xff]
    %v217 = vld [vmem:[%s209 + $0x38] sm:$0xff]
    %v218 = vld [vmem:[%s209 + $0x40] sm:$0xff]
    %v219 = vld [vmem:[%s209 + $0x48] sm:$0xff]
    %v220 = vld [vmem:[%s209 + $0x50] sm:$0xff]
    %v221 = vld [vmem:[%s209 + $0x58] sm:$0xff]
    %v222 = vld [vmem:[%s209 + $0x60] sm:$0xff]
    %v223 = vld [vmem:[%s209 + $0x68] sm:$0xff]
    %v224 = vld [vmem:[%s209 + $0x70] sm:$0xff]
    %v225 = vld [vmem:[%s209 + $0x78] sm:$0xff]
    %s226 = scalar_lea.vmem %s6, 256
    %v227 = vld [vmem:[%s226] sm:$0xff]
    %v228 = vld [vmem:[%s226 + $0x8] sm:$0xff]
    %v229 = vld [vmem:[%s226 + $0x10] sm:$0xff]
    %v230 = vld [vmem:[%s226 + $0x18] sm:$0xff]
    %v231 = vld [vmem:[%s226 + $0x20] sm:$0xff]
    %v232 = vld [vmem:[%s226 + $0x28] sm:$0xff]
    %v233 = vld [vmem:[%s226 + $0x30] sm:$0xff]
    %v234 = vld [vmem:[%s226 + $0x38] sm:$0xff]
    %v235 = vld [vmem:[%s226 + $0x40] sm:$0xff]
    %v236 = vld [vmem:[%s226 + $0x48] sm:$0xff]
    %v237 = vld [vmem:[%s226 + $0x50] sm:$0xff]
    %v238 = vld [vmem:[%s226 + $0x58] sm:$0xff]
    %v239 = vld [vmem:[%s226 + $0x60] sm:$0xff]
    %v240 = vld [vmem:[%s226 + $0x68] sm:$0xff]
    %v241 = vld [vmem:[%s226 + $0x70] sm:$0xff]
    %v242 = vld [vmem:[%s226 + $0x78] sm:$0xff]
    %v243 = vld [vmem:[%s7] sm:$0xff]
    %v244 = vld [vmem:[%s7 + $0x8] sm:$0xff]
    %v245 = vld [vmem:[%s7 + $0x10] sm:$0xff]
    %v246 = vld [vmem:[%s7 + $0x18] sm:$0xff]
    %v247 = vld [vmem:[%s7 + $0x20] sm:$0xff]
    %v248 = vld [vmem:[%s7 + $0x28] sm:$0xff]
    %v249 = vld [vmem:[%s7 + $0x30] sm:$0xff]
    %v250 = vld [vmem:[%s7 + $0x38] sm:$0xff]
    %v251 = vld [vmem:[%s7 + $0x40] sm:$0xff]
    %v252 = vld [vmem:[%s7 + $0x48] sm:$0xff]
    %v253 = vld [vmem:[%s7 + $0x50] sm:$0xff]
    %v254 = vld [vmem:[%s7 + $0x58] sm:$0xff]
    %v255 = vld [vmem:[%s7 + $0x60] sm:$0xff]
    %v256 = vld [vmem:[%s7 + $0x68] sm:$0xff]
    %v257 = vld [vmem:[%s7 + $0x70] sm:$0xff]
    %v258 = vld [vmem:[%s7 + $0x78] sm:$0xff]
    %s259 = scalar_lea.vmem %s7, 128
    %v260 = vld [vmem:[%s259] sm:$0xff]
    %v261 = vld [vmem:[%s259 + $0x8] sm:$0xff]
    %v262 = vld [vmem:[%s259 + $0x10] sm:$0xff]
    %v263 = vld [vmem:[%s259 + $0x18] sm:$0xff]
    %v264 = vld [vmem:[%s259 + $0x20] sm:$0xff]
    %v265 = vld [vmem:[%s259 + $0x28] sm:$0xff]
    %v266 = vld [vmem:[%s259 + $0x30] sm:$0xff]
    %v267 = vld [vmem:[%s259 + $0x38] sm:$0xff]
    %v268 = vld [vmem:[%s259 + $0x40] sm:$0xff]
    %v269 = vld [vmem:[%s259 + $0x48] sm:$0xff]
    %v270 = vld [vmem:[%s259 + $0x50] sm:$0xff]
    %v271 = vld [vmem:[%s259 + $0x58] sm:$0xff]
    %v272 = vld [vmem:[%s259 + $0x60] sm:$0xff]
    %v273 = vld [vmem:[%s259 + $0x68] sm:$0xff]
    %v274 = vld [vmem:[%s259 + $0x70] sm:$0xff]
    %v275 = vld [vmem:[%s259 + $0x78] sm:$0xff]
    %s276 = scalar_lea.vmem %s7, 256
    %v277 = vld [vmem:[%s276] sm:$0xff]
    %v278 = vld [vmem:[%s276 + $0x8] sm:$0xff]
    %v279 = vld [vmem:[%s276 + $0x10] sm:$0xff]
    %v280 = vld [vmem:[%s276 + $0x18] sm:$0xff]
    %v281 = vld [vmem:[%s276 + $0x20] sm:$0xff]
    %v282 = vld [vmem:[%s276 + $0x28] sm:$0xff]
    %v283 = vld [vmem:[%s276 + $0x30] sm:$0xff]
    %v284 = vld [vmem:[%s276 + $0x38] sm:$0xff]
    %v285 = vld [vmem:[%s276 + $0x40] sm:$0xff]
    %v286 = vld [vmem:[%s276 + $0x48] sm:$0xff]
    %v287 = vld [vmem:[%s276 + $0x50] sm:$0xff]
    %v288 = vld [vmem:[%s276 + $0x58] sm:$0xff]
    %v289 = vld [vmem:[%s276 + $0x60] sm:$0xff]
    %v290 = vld [vmem:[%s276 + $0x68] sm:$0xff]
    %v291 = vld [vmem:[%s276 + $0x70] sm:$0xff]
    %v292 = vld [vmem:[%s276 + $0x78] sm:$0xff]
    %v293 = vld [vmem:[%s8] sm:$0x3]
    %s294 = scalar_lea.vmem %s8, 2
    %v295 = vld [vmem:[%s294] sm:$0x3]
    %s296 = scalar_lea.vmem %s8, 4
    %v297 = vld [vmem:[%s296] sm:$0x3]
    %v298 = vld [vmem:[%s9] sm:$0x3]
    %s299 = scalar_lea.vmem %s9, 2
    %v300 = vld [vmem:[%s299] sm:$0x3]
    %s301 = scalar_lea.vmem %s9, 4
    %v302 = vld [vmem:[%s301] sm:$0x3]
    %v303 = vld [vmem:[%s10] sm:$0x3]
    %s304 = scalar_lea.vmem %s10, 2
    %v305 = vld [vmem:[%s304] sm:$0x3]
    %s306 = scalar_lea.vmem %s10, 4
    %v307 = vld [vmem:[%s306] sm:$0x3]
    %v308 = vld [vmem:[%s11] sm:$0xff]
    %v309 = vld [vmem:[%s11 + $0x8] sm:$0xff]
    %v310 = vld [vmem:[%s12] sm:$0xff]
    %v311 = vld [vmem:[%s12 + $0x8] sm:$0xff]
    %v312 = vld [vmem:[%s13] sm:$0xff]
    %v313 = vld [vmem:[%s13 + $0x8] sm:$0xff]
    %v314 = vld [vmem:[#allocation4] sm:$0xff]
    %v315 = vld [vmem:[#allocation4 + $0x8] sm:$0xff]
    %v316 = vld [vmem:[#allocation4 + $0x10] sm:$0xff]
    %v317 = vld [vmem:[#allocation4 + $0x18] sm:$0xff]
    %s318 = scalar_lea.vmem [#allocation4], 32
    %v319 = vld [vmem:[%s318] sm:$0xff]
    %v320 = vld [vmem:[%s318 + $0x8] sm:$0xff]
    %v321 = vld [vmem:[%s318 + $0x10] sm:$0xff]
    %v322 = vld [vmem:[%s318 + $0x18] sm:$0xff]
    %s323 = scalar_lea.vmem [#allocation4], 64
    %v324 = vld [vmem:[%s323] sm:$0xff]
    %v325 = vld [vmem:[%s323 + $0x8] sm:$0xff]
    %v326 = vld [vmem:[%s323 + $0x10] sm:$0xff]
    %v327 = vld [vmem:[%s323 + $0x18] sm:$0xff]
    %v328 = vld [vmem:[%s15] sm:$0x1]
    %s329 = scalar_lea.vmem %s15, 1
    %v330 = vld [vmem:[%s329] sm:$0x1]
    %s331 = scalar_lea.vmem %s15, 2
    %v332 = vld [vmem:[%s331] sm:$0x1]
    %v333 = vld [vmem:[#allocation6] sm:$0xff]
    %v334 = vld [vmem:[#allocation6 + $0x8] sm:$0xff]
    %v335 = vld [vmem:[#allocation6 + $0x10] sm:$0xff]
    %v336 = vld [vmem:[#allocation6 + $0x18] sm:$0xff]
    %v337 = vld [vmem:[#allocation7] sm:$0xff]
    %v338 = vld [vmem:[#allocation7 + $0x8] sm:$0xff]
    %v339 = vld [vmem:[#allocation7 + $0x10] sm:$0xff]
    %v340 = vld [vmem:[#allocation7 + $0x18] sm:$0xff]
    %v341 = vld [vmem:[#allocation7 + $0x20] sm:$0xff]
    %v342 = vld [vmem:[#allocation7 + $0x28] sm:$0xff]
    %v343 = vld [vmem:[#allocation7 + $0x30] sm:$0xff]
    %v344 = vld [vmem:[#allocation7 + $0x38] sm:$0xff]
    %v345 = vld [vmem:[#allocation9] sm:$0x1]
    %v346 = vld [vmem:[#allocation10] sm:$0xff]
    %v347 = vld [vmem:[#allocation10 + $0x8] sm:$0xff]
    %v348 = vld [vmem:[#allocation10 + $0x10] sm:$0xff]
    %v349 = vld [vmem:[#allocation10 + $0x18] sm:$0xff]
    %v350 = vld [vmem:[#allocation12] sm:$0x1]
    %v351 = vld [vmem:[%s21] sm:$0xff]
    %v352 = vld [vmem:[%s21 + $0x8] sm:$0xff]
    %v353 = vld [vmem:[%s21 + $0x10] sm:$0xff]
    %v354 = vld [vmem:[%s21 + $0x18] sm:$0xff]
    %v355 = vld [vmem:[%s21 + $0x20] sm:$0xff]
    %v356 = vld [vmem:[%s21 + $0x28] sm:$0xff]
    %v357 = vld [vmem:[%s21 + $0x30] sm:$0xff]
    %v358 = vld [vmem:[%s21 + $0x38] sm:$0xff]
    %v359 = vld [vmem:[%s21 + $0x40] sm:$0xff]
    %v360 = vld [vmem:[%s21 + $0x48] sm:$0xff]
    %v361 = vld [vmem:[%s21 + $0x50] sm:$0xff]
    %v362 = vld [vmem:[%s21 + $0x58] sm:$0xff]
    %v363 = vld [vmem:[%s21 + $0x60] sm:$0xff]
    %v364 = vld [vmem:[%s21 + $0x68] sm:$0xff]
    %v365 = vld [vmem:[%s21 + $0x70] sm:$0xff]
    %v366 = vld [vmem:[%s21 + $0x78] sm:$0xff]
    %v367 = vlaneseq
    %v368 = vand.u32 %v367, 127
    %v369 = vcvt.s32.f32 %v368
    %vm370 = vcmask 261120
    %v372 = vsel %vm370, 0.0, 0
    %374 = vmatprep.subr.mxu0 %v168
    %375 = vmatpush1.msra.mxu0 %v167
    %376 = vmatprep.subr.mxu0 %v171
    %377 = vmatpush1.msra.mxu0 %v170
    %378 = vmatprep.subr.mxu0 %v174
    %379 = vmatpush1.msra.mxu0 %v173
    %380 = vmatprep.subr.mxu0 %v177
    %381 = vmatpush1.msra.mxu0 %v176
    %382 = vmatprep.subr.mxu0 0.0
    %383 = vmatpush1.msra.mxu0 0.0
    %384 = vmatprep.subr.mxu0 0.0
    %385 = vmatpush1.msra.mxu0 0.0
    %386 = vmatprep.subr.mxu0 0.0
    %387 = vmatpush1.msra.mxu0 0.0
    %388 = vmatprep.subr.mxu0 0.0
    %389 = vmatpush1.msra.mxu0 0.0
    %390 = vmatprep.subr.mxu0 0.0
    %391 = vmatpush1.msra.mxu0 0.0
    %392 = vmatprep.subr.mxu0 0.0
    %393 = vmatpush1.msra.mxu0 0.0
    %394 = vmatprep.subr.mxu0 0.0
    %395 = vmatpush1.msra.mxu0 0.0
    %396 = vmatprep.subr.mxu0 0.0
    %397 = vmatpush1.msra.mxu0 0.0
    %398 = vmatprep.subr.mxu0 0.0
    %399 = vmatpush1.msra.mxu0 0.0
    %400 = vmatprep.subr.mxu0 0.0
    %401 = vmatpush1.msra.mxu0 0.0
    %402 = vmatprep.subr.mxu0 0.0
    %403 = vmatpush1.msra.mxu0 0.0
    %404 = vmatprep.subr.mxu0 0.0
    %405 = vmatpush1.msra.mxu0 0.0
    %406 = vmatprep.subr.mxu0 0.0
    %407 = vmatpush1.msra.mxu0 0.0
    %408 = vmatprep.subr.mxu0 0.0
    %409 = vmatpush1.msra.mxu0 0.0
    %410 = vmatprep.subr.mxu0 0.0
    %411 = vmatpush1.msra.mxu0 0.0
    %412 = vmatprep.subr.mxu0 0.0
    %413 = vmatpush1.msra.mxu0 0.0
    %414 = vmatprep.subr.mxu0 0.0
    %415 = vmatpush1.msra.mxu0 0.0
    %416 = vmatprep.subr.mxu0 0.0
    %417 = vmatpush1.msra.mxu0 0.0
    %418 = vmatprep.subr.mxu0 0.0
    %419 = vmatpush1.msra.mxu0 0.0
    %420 = vmatprep.subr.mxu0 0.0
    %421 = vmatpush1.msra.mxu0 0.0
    %422 = vmatprep.subr.mxu0 0.0
    %423 = vmatpush1.msra.mxu0 0.0
    %424 = vmatprep.subr.mxu0 0.0
    %425 = vmatpush1.msra.mxu0 0.0
    %426 = vmatprep.subr.mxu0 0.0
    %427 = vmatpush1.msra.mxu0 0.0
    %428 = vmatprep.subr.mxu0 0.0
    %429 = vmatpush1.msra.mxu0 0.0
    %430 = vmatprep.subr.mxu0 0.0
    %431 = vmatpush1.msra.mxu0 0.0
    %432 = vmatprep.subr.mxu0 0.0
    %433 = vmatpush1.msra.mxu0 0.0
    %434 = vmatprep.subr.mxu0 0.0
    %435 = vmatpush1.msra.mxu0 0.0
    %436 = vmatprep.subr.mxu0 0.0
    %437 = vmatpush1.msra.mxu0 0.0
    %438 = vmatprep.mubr.f32.mxu0 0.0
    %439 = vmatmul.mubr.f32.gmra.mrb[0].mxu0 %v372
    %v440 = vpop.f32.mrb[0].mxu0
    %v441 = vadd.f32 0.0, %v440
    %v442 = vpop.f32.mrb[0].mxu0
    %v443 = vadd.f32 0.0, %v442
    %444 = vdwg.mxu0
    %445 = vmatprep.subr.mxu0 0.0
    %446 = vmatpush1.msra.mxu0 %v169
    %447 = vmatprep.subr.mxu0 0.0
    %448 = vmatpush1.msra.mxu0 %v172
    %449 = vmatprep.subr.mxu0 0.0
    %450 = vmatpush1.msra.mxu0 %v175
    %451 = vmatprep.subr.mxu0 0.0
    %452 = vmatpush1.msra.mxu0 %v178
    %453 = vmatprep.subr.mxu0 0.0
    %454 = vmatpush1.msra.mxu0 0.0
    %455 = vmatprep.subr.mxu0 0.0
    %456 = vmatpush1.msra.mxu0 0.0
    %457 = vmatprep.subr.mxu0 0.0
    %458 = vmatpush1.msra.mxu0 0.0
    %459 = vmatprep.subr.mxu0 0.0
    %460 = vmatpush1.msra.mxu0 0.0
    %461 = vmatprep.subr.mxu0 0.0
    %462 = vmatpush1.msra.mxu0 0.0
    %463 = vmatprep.subr.mxu0 0.0
    %464 = vmatpush1.msra.mxu0 0.0
    %465 = vmatprep.subr.mxu0 0.0
    %466 = vmatpush1.msra.mxu0 0.0
    %467 = vmatprep.subr.mxu0 0.0
    %468 = vmatpush1.msra.mxu0 0.0
    %469 = vmatprep.subr.mxu0 0.0
    %470 = vmatpush1.msra.mxu0 0.0
    %471 = vmatprep.subr.mxu0 0.0
    %472 = vmatpush1.msra.mxu0 0.0
    %473 = vmatprep.subr.mxu0 0.0
    %474 = vmatpush1.msra.mxu0 0.0
    %475 = vmatprep.subr.mxu0 0.0
    %476 = vmatpush1.msra.mxu0 0.0
    %477 = vmatprep.subr.mxu0 0.0
    %478 = vmatpush1.msra.mxu0 0.0
    %479 = vmatprep.subr.mxu0 0.0
    %480 = vmatpush1.msra.mxu0 0.0
    %481 = vmatprep.subr.mxu0 0.0
    %482 = vmatpush1.msra.mxu0 0.0
    %483 = vmatprep.subr.mxu0 0.0
    %484 = vmatpush1.msra.mxu0 0.0
    %485 = vmatprep.subr.mxu0 0.0
    %486 = vmatpush1.msra.mxu0 0.0
    %487 = vmatprep.subr.mxu0 0.0
    %488 = vmatpush1.msra.mxu0 0.0
    %489 = vmatprep.subr.mxu0 0.0
    %490 = vmatpush1.msra.mxu0 0.0
    %491 = vmatprep.subr.mxu0 0.0
    %492 = vmatpush1.msra.mxu0 0.0
    %493 = vmatprep.subr.mxu0 0.0
    %494 = vmatpush1.msra.mxu0 0.0
    %495 = vmatprep.subr.mxu0 0.0
    %496 = vmatpush1.msra.mxu0 0.0
    %497 = vmatprep.subr.mxu0 0.0
    %498 = vmatpush1.msra.mxu0 0.0
    %499 = vmatprep.subr.mxu0 0.0
    %500 = vmatpush1.msra.mxu0 0.0
    %501 = vmatprep.subr.mxu0 0.0
    %502 = vmatpush1.msra.mxu0 0.0
    %503 = vmatprep.subr.mxu0 0.0
    %504 = vmatpush1.msra.mxu0 0.0
    %505 = vmatprep.subr.mxu0 0.0
    %506 = vmatpush1.msra.mxu0 0.0
    %507 = vmatprep.subr.mxu0 0.0
    %508 = vmatpush1.msra.mxu0 0.0
    %509 = vmatprep.mubr.f32.mxu0 0.0
    %510 = vmatmul.mubr.f32.gmra.mrb[0].mxu0 %v372
    %v511 = vpop.f32.mrb[0].mxu0
    %v512 = vadd.f32 0.0, %v511
    %v513 = vpop.f32.mrb[0].mxu0
    %514 = vdwg.mxu0
    %v516 = vsel %vm370, %v164, 0
    %518 = vmatprep.subr.mxu0 0.0
    %519 = vmatpush1.msra.mxu0 %v179
    %520 = vmatprep.subr.mxu0 0.0
    %521 = vmatpush1.msra.mxu0 %v180
    %522 = vmatprep.subr.mxu0 0.0
    %523 = vmatpush1.msra.mxu0 %v181
    %524 = vmatprep.subr.mxu0 0.0
    %525 = vmatpush1.msra.mxu0 %v182
    %526 = vmatprep.subr.mxu0 0.0
    %527 = vmatpush1.msra.mxu0 0.0
    %528 = vmatprep.subr.mxu0 0.0
    %529 = vmatpush1.msra.mxu0 0.0
    %530 = vmatprep.subr.mxu0 0.0
    %531 = vmatpush1.msra.mxu0 0.0
    %532 = vmatprep.subr.mxu0 0.0
    %533 = vmatpush1.msra.mxu0 0.0
    %534 = vmatprep.subr.mxu0 0.0
    %535 = vmatpush1.msra.mxu0 0.0
    %536 = vmatprep.subr.mxu0 0.0
    %537 = vmatpush1.msra.mxu0 0.0
    %538 = vmatprep.subr.mxu0 0.0
    %539 = vmatpush1.msra.mxu0 0.0
    %540 = vmatprep.subr.mxu0 0.0
    %541 = vmatpush1.msra.mxu0 0.0
    %542 = vmatprep.subr.mxu0 0.0
    %543 = vmatpush1.msra.mxu0 0.0
    %544 = vmatprep.subr.mxu0 0.0
    %545 = vmatpush1.msra.mxu0 0.0
    %546 = vmatprep.subr.mxu0 0.0
    %547 = vmatpush1.msra.mxu0 0.0
    %548 = vmatprep.subr.mxu0 0.0
    %549 = vmatpush1.msra.mxu0 0.0
    %550 = vmatprep.subr.mxu0 0.0
    %551 = vmatpush1.msra.mxu0 0.0
    %552 = vmatprep.subr.mxu0 0.0
    %553 = vmatpush1.msra.mxu0 0.0
    %554 = vmatprep.subr.mxu0 0.0
    %555 = vmatpush1.msra.mxu0 0.0
    %556 = vmatprep.subr.mxu0 0.0
    %557 = vmatpush1.msra.mxu0 0.0
    %558 = vmatprep.subr.mxu0 0.0
    %559 = vmatpush1.msra.mxu0 0.0
    %560 = vmatprep.subr.mxu0 0.0
    %561 = vmatpush1.msra.mxu0 0.0
    %562 = vmatprep.subr.mxu0 0.0
    %563 = vmatpush1.msra.mxu0 0.0
    %564 = vmatprep.subr.mxu0 0.0
    %565 = vmatpush1.msra.mxu0 0.0
    %566 = vmatprep.subr.mxu0 0.0
    %567 = vmatpush1.msra.mxu0 0.0
    %568 = vmatprep.subr.mxu0 0.0
    %569 = vmatpush1.msra.mxu0 0.0
    %570 = vmatprep.subr.mxu0 0.0
    %571 = vmatpush1.msra.mxu0 0.0
    %572 = vmatprep.subr.mxu0 0.0
    %573 = vmatpush1.msra.mxu0 0.0
    %574 = vmatprep.subr.mxu0 0.0
    %575 = vmatpush1.msra.mxu0 0.0
    %576 = vmatprep.subr.mxu0 0.0
    %577 = vmatpush1.msra.mxu0 0.0
    %578 = vmatprep.subr.mxu0 0.0
    %579 = vmatpush1.msra.mxu0 0.0
    %580 = vmatprep.subr.mxu0 0.0
    %581 = vmatpush1.msra.mxu0 0.0
    %582 = vmatprep.mubr.f32.mxu0 0.0
    %583 = vmatmul.mubr.f32.gmra.mrb[0].mxu0 %v516
    %v584 = vpop.f32.mrb[0].mxu0
    %v585 = vadd.f32 0.0, %v584
    %v586 = vpop.f32.mrb[0].mxu0
    %587 = vdwg.mxu0
    %v588 = vmul.f32 %v441, %v293
    %v589 = vmul.f32 %v298, %v585
    %590 = vmatprep.subr.mxu0 0.0
    %591 = vmatpush1.msra.mxu0 %v243
    %592 = vmatprep.subr.mxu0 0.0
    %593 = vmatpush1.msra.mxu0 %v244
    %594 = vmatprep.subr.mxu0 0.0
    %595 = vmatpush1.msra.mxu0 %v245
    %596 = vmatprep.subr.mxu0 0.0
    %597 = vmatpush1.msra.mxu0 %v246
    %598 = vmatprep.subr.mxu0 0.0
    %599 = vmatpush1.msra.mxu0 %v247
    %600 = vmatprep.subr.mxu0 0.0
    %601 = vmatpush1.msra.mxu0 %v248
    %602 = vmatprep.subr.mxu0 0.0
    %603 = vmatpush1.msra.mxu0 %v249
    %604 = vmatprep.subr.mxu0 0.0
    %605 = vmatpush1.msra.mxu0 %v250
    %606 = vmatprep.subr.mxu0 0.0
    %607 = vmatpush1.msra.mxu0 %v251
    %608 = vmatprep.subr.mxu0 0.0
    %609 = vmatpush1.msra.mxu0 %v252
    %610 = vmatprep.subr.mxu0 0.0
    %611 = vmatpush1.msra.mxu0 %v253
    %612 = vmatprep.subr.mxu0 0.0
    %613 = vmatpush1.msra.mxu0 %v254
    %614 = vmatprep.subr.mxu0 0.0
    %615 = vmatpush1.msra.mxu0 %v255
    %616 = vmatprep.subr.mxu0 0.0
    %617 = vmatpush1.msra.mxu0 %v256
    %618 = vmatprep.subr.mxu0 0.0
    %619 = vmatpush1.msra.mxu0 %v257
    %620 = vmatprep.subr.mxu0 0.0
    %621 = vmatpush1.msra.mxu0 %v258
    %622 = vmatprep.subr.mxu0 0.0
    %623 = vmatpush1.msra.mxu0 0.0
    %624 = vmatprep.subr.mxu0 0.0
    %625 = vmatpush1.msra.mxu0 0.0
    %626 = vmatprep.subr.mxu0 0.0
    %627 = vmatpush1.msra.mxu0 0.0
    %628 = vmatprep.subr.mxu0 0.0
    %629 = vmatpush1.msra.mxu0 0.0
    %630 = vmatprep.subr.mxu0 0.0
    %631 = vmatpush1.msra.mxu0 0.0
    %632 = vmatprep.subr.mxu0 0.0
    %633 = vmatpush1.msra.mxu0 0.0
    %634 = vmatprep.subr.mxu0 0.0
    %635 = vmatpush1.msra.mxu0 0.0
    %636 = vmatprep.subr.mxu0 0.0
    %637 = vmatpush1.msra.mxu0 0.0
    %638 = vmatprep.subr.mxu0 0.0
    %639 = vmatpush1.msra.mxu0 0.0
    %640 = vmatprep.subr.mxu0 0.0
    %641 = vmatpush1.msra.mxu0 0.0
    %642 = vmatprep.subr.mxu0 0.0
    %643 = vmatpush1.msra.mxu0 0.0
    %644 = vmatprep.subr.mxu0 0.0
    %645 = vmatpush1.msra.mxu0 0.0
    %646 = vmatprep.subr.mxu0 0.0
    %647 = vmatpush1.msra.mxu0 0.0
    %648 = vmatprep.subr.mxu0 0.0
    %649 = vmatpush1.msra.mxu0 0.0
    %650 = vmatprep.subr.mxu0 0.0
    %651 = vmatpush1.msra.mxu0 0.0
    %652 = vmatprep.subr.mxu0 0.0
    %653 = vmatpush1.msra.mxu0 0.0
    %654 = vmatprep.mubr.f32.mxu0 0.0
    %655 = vmatmul.mubr.f32.gmra.mrb[0].mxu0 %v589
    %v656 = vpop.f32.mrb[0].mxu0
    %v657 = vadd.f32 0.0, %v656
    %v658 = vpop.f32.mrb[0].mxu0
    %659 = vdwg.mxu0
    %660 = vmatprep.subr.mxu0 0.0
    %661 = vmatpush1.msra.mxu0 %v193
    %662 = vmatprep.subr.mxu0 0.0
    %663 = vmatpush1.msra.mxu0 %v194
    %664 = vmatprep.subr.mxu0 0.0
    %665 = vmatpush1.msra.mxu0 %v195
    %666 = vmatprep.subr.mxu0 0.0
    %667 = vmatpush1.msra.mxu0 %v196
    %668 = vmatprep.subr.mxu0 0.0
    %669 = vmatpush1.msra.mxu0 %v197
    %670 = vmatprep.subr.mxu0 0.0
    %671 = vmatpush1.msra.mxu0 %v198
    %672 = vmatprep.subr.mxu0 0.0
    %673 = vmatpush1.msra.mxu0 %v199
    %674 = vmatprep.subr.mxu0 0.0
    %675 = vmatpush1.msra.mxu0 %v200
    %676 = vmatprep.subr.mxu0 0.0
    %677 = vmatpush1.msra.mxu0 %v201
    %678 = vmatprep.subr.mxu0 0.0
    %679 = vmatpush1.msra.mxu0 %v202
    %680 = vmatprep.subr.mxu0 0.0
    %681 = vmatpush1.msra.mxu0 %v203
    %682 = vmatprep.subr.mxu0 0.0
    %683 = vmatpush1.msra.mxu0 %v204
    %684 = vmatprep.subr.mxu0 0.0
    %685 = vmatpush1.msra.mxu0 %v205
    %686 = vmatprep.subr.mxu0 0.0
    %687 = vmatpush1.msra.mxu0 %v206
    %688 = vmatprep.subr.mxu0 0.0
    %689 = vmatpush1.msra.mxu0 %v207
    %690 = vmatprep.subr.mxu0 0.0
    %691 = vmatpush1.msra.mxu0 %v208
    %692 = vmatprep.subr.mxu0 0.0
    %693 = vmatpush1.msra.mxu0 0.0
    %694 = vmatprep.subr.mxu0 0.0
    %695 = vmatpush1.msra.mxu0 0.0
    %696 = vmatprep.subr.mxu0 0.0
    %697 = vmatpush1.msra.mxu0 0.0
    %698 = vmatprep.subr.mxu0 0.0
    %699 = vmatpush1.msra.mxu0 0.0
    %700 = vmatprep.subr.mxu0 0.0
    %701 = vmatpush1.msra.mxu0 0.0
    %702 = vmatprep.subr.mxu0 0.0
    %703 = vmatpush1.msra.mxu0 0.0
    %704 = vmatprep.subr.mxu0 0.0
    %705 = vmatpush1.msra.mxu0 0.0
    %706 = vmatprep.subr.mxu0 0.0
    %707 = vmatpush1.msra.mxu0 0.0
    %708 = vmatprep.subr.mxu0 0.0
    %709 = vmatpush1.msra.mxu0 0.0
    %710 = vmatprep.subr.mxu0 0.0
    %711 = vmatpush1.msra.mxu0 0.0
    %712 = vmatprep.subr.mxu0 0.0
    %713 = vmatpush1.msra.mxu0 0.0
    %714 = vmatprep.subr.mxu0 0.0
    %715 = vmatpush1.msra.mxu0 0.0
    %716 = vmatprep.subr.mxu0 0.0
    %717 = vmatpush1.msra.mxu0 0.0
    %718 = vmatprep.subr.mxu0 0.0
    %719 = vmatpush1.msra.mxu0 0.0
    %720 = vmatprep.subr.mxu0 0.0
    %721 = vmatpush1.msra.mxu0 0.0
    %722 = vmatprep.subr.mxu0 0.0
    %723 = vmatpush1.msra.mxu0 0.0
    %724 = vmatprep.mubr.f32.mxu0 0.0
    %725 = vmatmul.mubr.f32.gmra.mrb[0].mxu0 %v588
    %v726 = vpop.f32.mrb[0].mxu0
    %v727 = vadd.f32 %v657, %v726
    %v728 = vpop.f32.mrb[0].mxu0
    %729 = vdwg.mxu0
    %v730 = vadd.f32 %v727, %v303
    %v731 = vxor.u32 %v730, 2147483648
    %v732 = vmul.f32 %v731, 1.442695
    %v733 = vpow.pop %v732
    %v734 = vadd.f32 %v733, 1.0
    %v735 = vrcp.pop %v734
    %v736 = vmul.f32 1.0, %v735
    %v737 = vtanh.pop %v730
    %739 = vrot.lane.b32.xlu0 %v165, 32
    %v740 = vpop.permute.xlu0 %739
    %v742 = vmul.f32 %v736, %v740
    %744 = vrot.lane.b32.xlu0 %v737, 32
    %v745 = vpop.permute.xlu0 %744
    %v747 = vmul.f32 %v736, %v745
    %749 = vrot.lane.b32.xlu0 %v747, 32
    %v750 = vpop.permute.xlu0 %749
    %v752 = vadd.f32 %v742, %v750
    %v753 = vtanh.pop %v752
    %755 = vrot.lane.b32.xlu0 %v753, 32
    %v756 = vpop.permute.xlu0 %755
    %v758 = vmul.f32 %v736, %v756
    %759 = vmatprep.subr.mxu0 0.0
    %760 = vmatpush1.msra.mxu0 %v184
    %761 = vmatprep.subr.mxu0 0.0
    %762 = vmatpush1.msra.mxu0 %v185
    %763 = vmatprep.subr.mxu0 0.0
    %764 = vmatpush1.msra.mxu0 %v186
    %765 = vmatprep.subr.mxu0 0.0
    %766 = vmatpush1.msra.mxu0 %v187
    %767 = vmatprep.subr.mxu0 0.0
    %768 = vmatpush1.msra.mxu0 0.0
    %769 = vmatprep.subr.mxu0 0.0
    %770 = vmatpush1.msra.mxu0 0.0
    %771 = vmatprep.subr.mxu0 0.0
    %772 = vmatpush1.msra.mxu0 0.0
    %773 = vmatprep.subr.mxu0 0.0
    %774 = vmatpush1.msra.mxu0 0.0
    %775 = vmatprep.subr.mxu0 0.0
    %776 = vmatpush1.msra.mxu0 0.0
    %777 = vmatprep.subr.mxu0 0.0
    %778 = vmatpush1.msra.mxu0 0.0
    %779 = vmatprep.subr.mxu0 0.0
    %780 = vmatpush1.msra.mxu0 0.0
    %781 = vmatprep.subr.mxu0 0.0
    %782 = vmatpush1.msra.mxu0 0.0
    %783 = vmatprep.subr.mxu0 0.0
    %784 = vmatpush1.msra.mxu0 0.0
    %785 = vmatprep.subr.mxu0 0.0
    %786 = vmatpush1.msra.mxu0 0.0
    %787 = vmatprep.subr.mxu0 0.0
    %788 = vmatpush1.msra.mxu0 0.0
    %789 = vmatprep.subr.mxu0 0.0
    %790 = vmatpush1.msra.mxu0 0.0
    %791 = vmatprep.subr.mxu0 0.0
    %792 = vmatpush1.msra.mxu0 0.0
    %793 = vmatprep.subr.mxu0 0.0
    %794 = vmatpush1.msra.mxu0 0.0
    %795 = vmatprep.subr.mxu0 0.0
    %796 = vmatpush1.msra.mxu0 0.0
    %797 = vmatprep.subr.mxu0 0.0
    %798 = vmatpush1.msra.mxu0 0.0
    %799 = vmatprep.subr.mxu0 0.0
    %800 = vmatpush1.msra.mxu0 0.0
    %801 = vmatprep.subr.mxu0 0.0
    %802 = vmatpush1.msra.mxu0 0.0
    %803 = vmatprep.subr.mxu0 0.0
    %804 = vmatpush1.msra.mxu0 0.0
    %805 = vmatprep.subr.mxu0 0.0
    %806 = vmatpush1.msra.mxu0 0.0
    %807 = vmatprep.subr.mxu0 0.0
    %808 = vmatpush1.msra.mxu0 0.0
    %809 = vmatprep.subr.mxu0 0.0
    %810 = vmatpush1.msra.mxu0 0.0
    %811 = vmatprep.subr.mxu0 0.0
    %812 = vmatpush1.msra.mxu0 0.0
    %813 = vmatprep.subr.mxu0 0.0
    %814 = vmatpush1.msra.mxu0 0.0
    %815 = vmatprep.subr.mxu0 0.0
    %816 = vmatpush1.msra.mxu0 0.0
    %817 = vmatprep.subr.mxu0 0.0
    %818 = vmatpush1.msra.mxu0 0.0
    %819 = vmatprep.subr.mxu0 0.0
    %820 = vmatpush1.msra.mxu0 0.0
    %821 = vmatprep.subr.mxu0 0.0
    %822 = vmatpush1.msra.mxu0 0.0
    %823 = vmatprep.mubr.f32.mxu0 0.0
    %824 = vmatmul.mubr.f32.gmra.mrb[0].mxu0 %v516
    %v825 = vpop.f32.mrb[0].mxu0
    %v826 = vadd.f32 0.0, %v825
    %v827 = vpop.f32.mrb[0].mxu0
    %828 = vdwg.mxu0
    %v829 = vmul.f32 %v443, %v295
    %v830 = vmul.f32 %v300, %v826
    %831 = vmatprep.subr.mxu0 0.0
    %832 = vmatpush1.msra.mxu0 %v260
    %833 = vmatprep.subr.mxu0 0.0
    %834 = vmatpush1.msra.mxu0 %v261
    %835 = vmatprep.subr.mxu0 0.0
    %836 = vmatpush1.msra.mxu0 %v262
    %837 = vmatprep.subr.mxu0 0.0
    %838 = vmatpush1.msra.mxu0 %v263
    %839 = vmatprep.subr.mxu0 0.0
    %840 = vmatpush1.msra.mxu0 %v264
    %841 = vmatprep.subr.mxu0 0.0
    %842 = vmatpush1.msra.mxu0 %v265
    %843 = vmatprep.subr.mxu0 0.0
    %844 = vmatpush1.msra.mxu0 %v266
    %845 = vmatprep.subr.mxu0 0.0
    %846 = vmatpush1.msra.mxu0 %v267
    %847 = vmatprep.subr.mxu0 0.0
    %848 = vmatpush1.msra.mxu0 %v268
    %849 = vmatprep.subr.mxu0 0.0
    %850 = vmatpush1.msra.mxu0 %v269
    %851 = vmatprep.subr.mxu0 0.0
    %852 = vmatpush1.msra.mxu0 %v270
    %853 = vmatprep.subr.mxu0 0.0
    %854 = vmatpush1.msra.mxu0 %v271
    %855 = vmatprep.subr.mxu0 0.0
    %856 = vmatpush1.msra.mxu0 %v272
    %857 = vmatprep.subr.mxu0 0.0
    %858 = vmatpush1.msra.mxu0 %v273
    %859 = vmatprep.subr.mxu0 0.0
    %860 = vmatpush1.msra.mxu0 %v274
    %861 = vmatprep.subr.mxu0 0.0
    %862 = vmatpush1.msra.mxu0 %v275
    %863 = vmatprep.subr.mxu0 0.0
    %864 = vmatpush1.msra.mxu0 0.0
    %865 = vmatprep.subr.mxu0 0.0
    %866 = vmatpush1.msra.mxu0 0.0
    %867 = vmatprep.subr.mxu0 0.0
    %868 = vmatpush1.msra.mxu0 0.0
    %869 = vmatprep.subr.mxu0 0.0
    %870 = vmatpush1.msra.mxu0 0.0
    %871 = vmatprep.subr.mxu0 0.0
    %872 = vmatpush1.msra.mxu0 0.0
    %873 = vmatprep.subr.mxu0 0.0
    %874 = vmatpush1.msra.mxu0 0.0
    %875 = vmatprep.subr.mxu0 0.0
    %876 = vmatpush1.msra.mxu0 0.0
    %877 = vmatprep.subr.mxu0 0.0
    %878 = vmatpush1.msra.mxu0 0.0
    %879 = vmatprep.subr.mxu0 0.0
    %880 = vmatpush1.msra.mxu0 0.0
    %881 = vmatprep.subr.mxu0 0.0
    %882 = vmatpush1.msra.mxu0 0.0
    %883 = vmatprep.subr.mxu0 0.0
    %884 = vmatpush1.msra.mxu0 0.0
    %885 = vmatprep.subr.mxu0 0.0
    %886 = vmatpush1.msra.mxu0 0.0
    %887 = vmatprep.subr.mxu0 0.0
    %888 = vmatpush1.msra.mxu0 0.0
    %889 = vmatprep.subr.mxu0 0.0
    %890 = vmatpush1.msra.mxu0 0.0
    %891 = vmatprep.subr.mxu0 0.0
    %892 = vmatpush1.msra.mxu0 0.0
    %893 = vmatprep.subr.mxu0 0.0
    %894 = vmatpush1.msra.mxu0 0.0
    %895 = vmatprep.mubr.f32.mxu0 0.0
    %896 = vmatmul.mubr.f32.gmra.mrb[0].mxu0 %v830
    %v897 = vpop.f32.mrb[0].mxu0
    %v898 = vadd.f32 0.0, %v897
    %v899 = vpop.f32.mrb[0].mxu0
    %900 = vdwg.mxu0
    %901 = vmatprep.subr.mxu0 0.0
    %902 = vmatpush1.msra.mxu0 %v210
    %903 = vmatprep.subr.mxu0 0.0
    %904 = vmatpush1.msra.mxu0 %v211
    %905 = vmatprep.subr.mxu0 0.0
    %906 = vmatpush1.msra.mxu0 %v212
    %907 = vmatprep.subr.mxu0 0.0
    %908 = vmatpush1.msra.mxu0 %v213
    %909 = vmatprep.subr.mxu0 0.0
    %910 = vmatpush1.msra.mxu0 %v214
    %911 = vmatprep.subr.mxu0 0.0
    %912 = vmatpush1.msra.mxu0 %v215
    %913 = vmatprep.subr.mxu0 0.0
    %914 = vmatpush1.msra.mxu0 %v216
    %915 = vmatprep.subr.mxu0 0.0
    %916 = vmatpush1.msra.mxu0 %v217
    %917 = vmatprep.subr.mxu0 0.0
    %918 = vmatpush1.msra.mxu0 %v218
    %919 = vmatprep.subr.mxu0 0.0
    %920 = vmatpush1.msra.mxu0 %v219
    %921 = vmatprep.subr.mxu0 0.0
    %922 = vmatpush1.msra.mxu0 %v220
    %923 = vmatprep.subr.mxu0 0.0
    %924 = vmatpush1.msra.mxu0 %v221
    %925 = vmatprep.subr.mxu0 0.0
    %926 = vmatpush1.msra.mxu0 %v222
    %927 = vmatprep.subr.mxu0 0.0
    %928 = vmatpush1.msra.mxu0 %v223
    %929 = vmatprep.subr.mxu0 0.0
    %930 = vmatpush1.msra.mxu0 %v224
    %931 = vmatprep.subr.mxu0 0.0
    %932 = vmatpush1.msra.mxu0 %v225
    %933 = vmatprep.subr.mxu0 0.0
    %934 = vmatpush1.msra.mxu0 0.0
    %935 = vmatprep.subr.mxu0 0.0
    %936 = vmatpush1.msra.mxu0 0.0
    %937 = vmatprep.subr.mxu0 0.0
    %938 = vmatpush1.msra.mxu0 0.0
    %939 = vmatprep.subr.mxu0 0.0
    %940 = vmatpush1.msra.mxu0 0.0
    %941 = vmatprep.subr.mxu0 0.0
    %942 = vmatpush1.msra.mxu0 0.0
    %943 = vmatprep.subr.mxu0 0.0
    %944 = vmatpush1.msra.mxu0 0.0
    %945 = vmatprep.subr.mxu0 0.0
    %946 = vmatpush1.msra.mxu0 0.0
    %947 = vmatprep.subr.mxu0 0.0
    %948 = vmatpush1.msra.mxu0 0.0
    %949 = vmatprep.subr.mxu0 0.0
    %950 = vmatpush1.msra.mxu0 0.0
    %951 = vmatprep.subr.mxu0 0.0
    %952 = vmatpush1.msra.mxu0 0.0
    %953 = vmatprep.subr.mxu0 0.0
    %954 = vmatpush1.msra.mxu0 0.0
    %955 = vmatprep.subr.mxu0 0.0
    %956 = vmatpush1.msra.mxu0 0.0
    %957 = vmatprep.subr.mxu0 0.0
    %958 = vmatpush1.msra.mxu0 0.0
    %959 = vmatprep.subr.mxu0 0.0
    %960 = vmatpush1.msra.mxu0 0.0
    %961 = vmatprep.subr.mxu0 0.0
    %962 = vmatpush1.msra.mxu0 0.0
    %963 = vmatprep.subr.mxu0 0.0
    %964 = vmatpush1.msra.mxu0 0.0
    %965 = vmatprep.mubr.f32.mxu0 0.0
    %966 = vmatmul.mubr.f32.gmra.mrb[0].mxu0 %v829
    %v967 = vpop.f32.mrb[0].mxu0
    %v968 = vadd.f32 %v898, %v967
    %v969 = vpop.f32.mrb[0].mxu0
    %970 = vdwg.mxu0
    %v971 = vadd.f32 %v968, %v305
    %v972 = vxor.u32 %v971, 2147483648
    %v973 = vmul.f32 %v972, 1.442695
    %v974 = vpow.pop %v973
    %v975 = vadd.f32 %v974, 1.0
    %v976 = vrcp.pop %v975
    %v977 = vmul.f32 1.0, %v976
    %v978 = vtanh.pop %v971
    %v979 = vmul.f32 %v977, %v740
    %981 = vrot.lane.b32.xlu0 %v978, 32
    %v982 = vpop.permute.xlu0 %981
    %v984 = vmul.f32 %v977, %v982
    %986 = vrot.lane.b32.xlu0 %v984, 32
    %v987 = vpop.permute.xlu0 %986
    %v989 = vadd.f32 %v979, %v987
    %v990 = vtanh.pop %v989
    %992 = vrot.lane.b32.xlu0 %v990, 32
    %v993 = vpop.permute.xlu0 %992
    %v995 = vmul.f32 %v977, %v993
    %996 = vmatprep.subr.mxu0 0.0
    %997 = vmatpush1.msra.mxu0 %v189
    %998 = vmatprep.subr.mxu0 0.0
    %999 = vmatpush1.msra.mxu0 %v190
    %1000 = vmatprep.subr.mxu0 0.0
    %1001 = vmatpush1.msra.mxu0 %v191
    %1002 = vmatprep.subr.mxu0 0.0
    %1003 = vmatpush1.msra.mxu0 %v192
    %1004 = vmatprep.subr.mxu0 0.0
    %1005 = vmatpush1.msra.mxu0 0.0
    %1006 = vmatprep.subr.mxu0 0.0
    %1007 = vmatpush1.msra.mxu0 0.0
    %1008 = vmatprep.subr.mxu0 0.0
    %1009 = vmatpush1.msra.mxu0 0.0
    %1010 = vmatprep.subr.mxu0 0.0
    %1011 = vmatpush1.msra.mxu0 0.0
    %1012 = vmatprep.subr.mxu0 0.0
    %1013 = vmatpush1.msra.mxu0 0.0
    %1014 = vmatprep.subr.mxu0 0.0
    %1015 = vmatpush1.msra.mxu0 0.0
    %1016 = vmatprep.subr.mxu0 0.0
    %1017 = vmatpush1.msra.mxu0 0.0
    %1018 = vmatprep.subr.mxu0 0.0
    %1019 = vmatpush1.msra.mxu0 0.0
    %1020 = vmatprep.subr.mxu0 0.0
    %1021 = vmatpush1.msra.mxu0 0.0
    %1022 = vmatprep.subr.mxu0 0.0
    %1023 = vmatpush1.msra.mxu0 0.0
    %1024 = vmatprep.subr.mxu0 0.0
    %1025 = vmatpush1.msra.mxu0 0.0
    %1026 = vmatprep.subr.mxu0 0.0
    %1027 = vmatpush1.msra.mxu0 0.0
    %1028 = vmatprep.subr.mxu0 0.0
    %1029 = vmatpush1.msra.mxu0 0.0
    %1030 = vmatprep.subr.mxu0 0.0
    %1031 = vmatpush1.msra.mxu0 0.0
    %1032 = vmatprep.subr.mxu0 0.0
    %1033 = vmatpush1.msra.mxu0 0.0
    %1034 = vmatprep.subr.mxu0 0.0
    %1035 = vmatpush1.msra.mxu0 0.0
    %1036 = vmatprep.subr.mxu0 0.0
    %1037 = vmatpush1.msra.mxu0 0.0
    %1038 = vmatprep.subr.mxu0 0.0
    %1039 = vmatpush1.msra.mxu0 0.0
    %1040 = vmatprep.subr.mxu0 0.0
    %1041 = vmatpush1.msra.mxu0 0.0
    %1042 = vmatprep.subr.mxu0 0.0
    %1043 = vmatpush1.msra.mxu0 0.0
    %1044 = vmatprep.subr.mxu0 0.0
    %1045 = vmatpush1.msra.mxu0 0.0
    %1046 = vmatprep.subr.mxu0 0.0
    %1047 = vmatpush1.msra.mxu0 0.0
    %1048 = vmatprep.subr.mxu0 0.0
    %1049 = vmatpush1.msra.mxu0 0.0
    %1050 = vmatprep.subr.mxu0 0.0
    %1051 = vmatpush1.msra.mxu0 0.0
    %1052 = vmatprep.subr.mxu0 0.0
    %1053 = vmatpush1.msra.mxu0 0.0
    %1054 = vmatprep.subr.mxu0 0.0
    %1055 = vmatpush1.msra.mxu0 0.0
    %1056 = vmatprep.subr.mxu0 0.0
    %1057 = vmatpush1.msra.mxu0 0.0
    %1058 = vmatprep.subr.mxu0 0.0
    %1059 = vmatpush1.msra.mxu0 0.0
    %1060 = vmatprep.mubr.f32.mxu0 0.0
    %1061 = vmatmul.mubr.f32.gmra.mrb[0].mxu0 %v516
    %v1062 = vpop.f32.mrb[0].mxu0
    %v1063 = vadd.f32 0.0, %v1062
    %v1064 = vpop.f32.mrb[0].mxu0
    %1065 = vdwg.mxu0
    %v1066 = vmul.f32 %v512, %v297
    %v1067 = vmul.f32 %v302, %v1063
    %1068 = vmatprep.subr.mxu0 0.0
    %1069 = vmatpush1.msra.mxu0 %v277
    %1070 = vmatprep.subr.mxu0 0.0
    %1071 = vmatpush1.msra.mxu0 %v278
    %1072 = vmatprep.subr.mxu0 0.0
    %1073 = vmatpush1.msra.mxu0 %v279
    %1074 = vmatprep.subr.mxu0 0.0
    %1075 = vmatpush1.msra.mxu0 %v280
    %1076 = vmatprep.subr.mxu0 0.0
    %1077 = vmatpush1.msra.mxu0 %v281
    %1078 = vmatprep.subr.mxu0 0.0
    %1079 = vmatpush1.msra.mxu0 %v282
    %1080 = vmatprep.subr.mxu0 0.0
    %1081 = vmatpush1.msra.mxu0 %v283
    %1082 = vmatprep.subr.mxu0 0.0
    %1083 = vmatpush1.msra.mxu0 %v284
    %1084 = vmatprep.subr.mxu0 0.0
    %1085 = vmatpush1.msra.mxu0 %v285
    %1086 = vmatprep.subr.mxu0 0.0
    %1087 = vmatpush1.msra.mxu0 %v286
    %1088 = vmatprep.subr.mxu0 0.0
    %1089 = vmatpush1.msra.mxu0 %v287
    %1090 = vmatprep.subr.mxu0 0.0
    %1091 = vmatpush1.msra.mxu0 %v288
    %1092 = vmatprep.subr.mxu0 0.0
    %1093 = vmatpush1.msra.mxu0 %v289
    %1094 = vmatprep.subr.mxu0 0.0
    %1095 = vmatpush1.msra.mxu0 %v290
    %1096 = vmatprep.subr.mxu0 0.0
    %1097 = vmatpush1.msra.mxu0 %v291
    %1098 = vmatprep.subr.mxu0 0.0
    %1099 = vmatpush1.msra.mxu0 %v292
    %1100 = vmatprep.subr.mxu0 0.0
    %1101 = vmatpush1.msra.mxu0 0.0
    %1102 = vmatprep.subr.mxu0 0.0
    %1103 = vmatpush1.msra.mxu0 0.0
    %1104 = vmatprep.subr.mxu0 0.0
    %1105 = vmatpush1.msra.mxu0 0.0
    %1106 = vmatprep.subr.mxu0 0.0
    %1107 = vmatpush1.msra.mxu0 0.0
    %1108 = vmatprep.subr.mxu0 0.0
    %1109 = vmatpush1.msra.mxu0 0.0
    %1110 = vmatprep.subr.mxu0 0.0
    %1111 = vmatpush1.msra.mxu0 0.0
    %1112 = vmatprep.subr.mxu0 0.0
    %1113 = vmatpush1.msra.mxu0 0.0
    %1114 = vmatprep.subr.mxu0 0.0
    %1115 = vmatpush1.msra.mxu0 0.0
    %1116 = vmatprep.subr.mxu0 0.0
    %1117 = vmatpush1.msra.mxu0 0.0
    %1118 = vmatprep.subr.mxu0 0.0
    %1119 = vmatpush1.msra.mxu0 0.0
    %1120 = vmatprep.subr.mxu0 0.0
    %1121 = vmatpush1.msra.mxu0 0.0
    %1122 = vmatprep.subr.mxu0 0.0
    %1123 = vmatpush1.msra.mxu0 0.0
    %1124 = vmatprep.subr.mxu0 0.0
    %1125 = vmatpush1.msra.mxu0 0.0
    %1126 = vmatprep.subr.mxu0 0.0
    %1127 = vmatpush1.msra.mxu0 0.0
    %1128 = vmatprep.subr.mxu0 0.0
    %1129 = vmatpush1.msra.mxu0 0.0
    %1130 = vmatprep.subr.mxu0 0.0
    %1131 = vmatpush1.msra.mxu0 0.0
    %1132 = vmatprep.mubr.f32.mxu0 0.0
    %1133 = vmatmul.mubr.f32.gmra.mrb[0].mxu0 %v1067
    %v1134 = vpop.f32.mrb[0].mxu0
    %v1135 = vadd.f32 0.0, %v1134
    %v1136 = vpop.f32.mrb[0].mxu0
    %1137 = vdwg.mxu0
    %1138 = vmatprep.subr.mxu0 0.0
    %1139 = vmatpush1.msra.mxu0 %v227
    %1140 = vmatprep.subr.mxu0 0.0
    %1141 = vmatpush1.msra.mxu0 %v228
    %1142 = vmatprep.subr.mxu0 0.0
    %1143 = vmatpush1.msra.mxu0 %v229
    %1144 = vmatprep.subr.mxu0 0.0
    %1145 = vmatpush1.msra.mxu0 %v230
    %1146 = vmatprep.subr.mxu0 0.0
    %1147 = vmatpush1.msra.mxu0 %v231
    %1148 = vmatprep.subr.mxu0 0.0
    %1149 = vmatpush1.msra.mxu0 %v232
    %1150 = vmatprep.subr.mxu0 0.0
    %1151 = vmatpush1.msra.mxu0 %v233
    %1152 = vmatprep.subr.mxu0 0.0
    %1153 = vmatpush1.msra.mxu0 %v234
    %1154 = vmatprep.subr.mxu0 0.0
    %1155 = vmatpush1.msra.mxu0 %v235
    %1156 = vmatprep.subr.mxu0 0.0
    %1157 = vmatpush1.msra.mxu0 %v236
    %1158 = vmatprep.subr.mxu0 0.0
    %1159 = vmatpush1.msra.mxu0 %v237
    %1160 = vmatprep.subr.mxu0 0.0
    %1161 = vmatpush1.msra.mxu0 %v238
    %1162 = vmatprep.subr.mxu0 0.0
    %1163 = vmatpush1.msra.mxu0 %v239
    %1164 = vmatprep.subr.mxu0 0.0
    %1165 = vmatpush1.msra.mxu0 %v240
    %1166 = vmatprep.subr.mxu0 0.0
    %1167 = vmatpush1.msra.mxu0 %v241
    %1168 = vmatprep.subr.mxu0 0.0
    %1169 = vmatpush1.msra.mxu0 %v242
    %1170 = vmatprep.subr.mxu0 0.0
    %1171 = vmatpush1.msra.mxu0 0.0
    %1172 = vmatprep.subr.mxu0 0.0
    %1173 = vmatpush1.msra.mxu0 0.0
    %1174 = vmatprep.subr.mxu0 0.0
    %1175 = vmatpush1.msra.mxu0 0.0
    %1176 = vmatprep.subr.mxu0 0.0
    %1177 = vmatpush1.msra.mxu0 0.0
    %1178 = vmatprep.subr.mxu0 0.0
    %1179 = vmatpush1.msra.mxu0 0.0
    %1180 = vmatprep.subr.mxu0 0.0
    %1181 = vmatpush1.msra.mxu0 0.0
    %1182 = vmatprep.subr.mxu0 0.0
    %1183 = vmatpush1.msra.mxu0 0.0
    %1184 = vmatprep.subr.mxu0 0.0
    %1185 = vmatpush1.msra.mxu0 0.0
    %1186 = vmatprep.subr.mxu0 0.0
    %1187 = vmatpush1.msra.mxu0 0.0
    %1188 = vmatprep.subr.mxu0 0.0
    %1189 = vmatpush1.msra.mxu0 0.0
    %1190 = vmatprep.subr.mxu0 0.0
    %1191 = vmatpush1.msra.mxu0 0.0
    %1192 = vmatprep.subr.mxu0 0.0
    %1193 = vmatpush1.msra.mxu0 0.0
    %1194 = vmatprep.subr.mxu0 0.0
    %1195 = vmatpush1.msra.mxu0 0.0
    %1196 = vmatprep.subr.mxu0 0.0
    %1197 = vmatpush1.msra.mxu0 0.0
    %1198 = vmatprep.subr.mxu0 0.0
    %1199 = vmatpush1.msra.mxu0 0.0
    %1200 = vmatprep.subr.mxu0 0.0
    %1201 = vmatpush1.msra.mxu0 0.0
    %1202 = vmatprep.mubr.f32.mxu0 0.0
    %1203 = vmatmul.mubr.f32.gmra.mrb[0].mxu0 %v1066
    %v1204 = vpop.f32.mrb[0].mxu0
    %v1205 = vadd.f32 %v1135, %v1204
    %v1206 = vpop.f32.mrb[0].mxu0
    %1207 = vdwg.mxu0
    %v1208 = vadd.f32 %v1205, %v307
    %v1209 = vxor.u32 %v1208, 2147483648
    %v1210 = vmul.f32 %v1209, 1.442695
    %v1211 = vpow.pop %v1210
    %v1212 = vadd.f32 %v1211, 1.0
    %v1213 = vrcp.pop %v1212
    %v1214 = vmul.f32 1.0, %v1213
    %v1215 = vtanh.pop %v1208
    %v1216 = vmul.f32 %v1214, %v740
    %1218 = vrot.lane.b32.xlu0 %v1215, 32
    %v1219 = vpop.permute.xlu0 %1218
    %v1221 = vmul.f32 %v1214, %v1219
    %1223 = vrot.lane.b32.xlu0 %v1221, 32
    %v1224 = vpop.permute.xlu0 %1223
    %v1226 = vadd.f32 %v1216, %v1224
    %v1227 = vtanh.pop %v1226
    %1229 = vrot.lane.b32.xlu0 %v1227, 32
    %v1230 = vpop.permute.xlu0 %1229
    %v1232 = vmul.f32 %v1214, %v1230
    %1234 = vrot.lane.b32.xlu0 %v758, 64
    %v1235 = vpop.permute.xlu0 %1234
    %v1236 = vsel %vm370, %v1235, 0
    %1238 = vmatprep.subr.mxu0 0.0
    %1239 = vmatpush1.msra.mxu0 %v314
    %1240 = vmatprep.subr.mxu0 0.0
    %1241 = vmatpush1.msra.mxu0 %v315
    %1242 = vmatprep.subr.mxu0 0.0
    %1243 = vmatpush1.msra.mxu0 %v316
    %1244 = vmatprep.subr.mxu0 0.0
    %1245 = vmatpush1.msra.mxu0 %v317
    %1246 = vmatprep.subr.mxu0 0.0
    %1247 = vmatpush1.msra.mxu0 0.0
    %1248 = vmatprep.subr.mxu0 0.0
    %1249 = vmatpush1.msra.mxu0 0.0
    %1250 = vmatprep.subr.mxu0 0.0
    %1251 = vmatpush1.msra.mxu0 0.0
    %1252 = vmatprep.subr.mxu0 0.0
    %1253 = vmatpush1.msra.mxu0 0.0
    %1254 = vmatprep.subr.mxu0 0.0
    %1255 = vmatpush1.msra.mxu0 0.0
    %1256 = vmatprep.subr.mxu0 0.0
    %1257 = vmatpush1.msra.mxu0 0.0
    %1258 = vmatprep.subr.mxu0 0.0
    %1259 = vmatpush1.msra.mxu0 0.0
    %1260 = vmatprep.subr.mxu0 0.0
    %1261 = vmatpush1.msra.mxu0 0.0
    %1262 = vmatprep.subr.mxu0 0.0
    %1263 = vmatpush1.msra.mxu0 0.0
    %1264 = vmatprep.subr.mxu0 0.0
    %1265 = vmatpush1.msra.mxu0 0.0
    %1266 = vmatprep.subr.mxu0 0.0
    %1267 = vmatpush1.msra.mxu0 0.0
    %1268 = vmatprep.subr.mxu0 0.0
    %1269 = vmatpush1.msra.mxu0 0.0
    %1270 = vmatprep.subr.mxu0 0.0
    %1271 = vmatpush1.msra.mxu0 0.0
    %1272 = vmatprep.subr.mxu0 0.0
    %1273 = vmatpush1.msra.mxu0 0.0
    %1274 = vmatprep.subr.mxu0 0.0
    %1275 = vmatpush1.msra.mxu0 0.0
    %1276 = vmatprep.subr.mxu0 0.0
    %1277 = vmatpush1.msra.mxu0 0.0
    %1278 = vmatprep.subr.mxu0 0.0
    %1279 = vmatpush1.msra.mxu0 0.0
    %1280 = vmatprep.subr.mxu0 0.0
    %1281 = vmatpush1.msra.mxu0 0.0
    %1282 = vmatprep.subr.mxu0 0.0
    %1283 = vmatpush1.msra.mxu0 0.0
    %1284 = vmatprep.subr.mxu0 0.0
    %1285 = vmatpush1.msra.mxu0 0.0
    %1286 = vmatprep.subr.mxu0 0.0
    %1287 = vmatpush1.msra.mxu0 0.0
    %1288 = vmatprep.subr.mxu0 0.0
    %1289 = vmatpush1.msra.mxu0 0.0
    %1290 = vmatprep.subr.mxu0 0.0
    %1291 = vmatpush1.msra.mxu0 0.0
    %1292 = vmatprep.subr.mxu0 0.0
    %1293 = vmatpush1.msra.mxu0 0.0
    %1294 = vmatprep.subr.mxu0 0.0
    %1295 = vmatpush1.msra.mxu0 0.0
    %1296 = vmatprep.subr.mxu0 0.0
    %1297 = vmatpush1.msra.mxu0 0.0
    %1298 = vmatprep.subr.mxu0 0.0
    %1299 = vmatpush1.msra.mxu0 0.0
    %1300 = vmatprep.subr.mxu0 0.0
    %1301 = vmatpush1.msra.mxu0 0.0
    %1302 = vmatprep.mubr.f32.mxu0 0.0
    %1303 = vmatmul.mubr.f32.gmra.mrb[0].mxu0 %v1236
    %v1304 = vpop.f32.mrb[0].mxu0
    %v1305 = vadd.f32 0.0, %v1304
    %v1306 = vpop.f32.mrb[0].mxu0
    %1307 = vdwg.mxu0
    %v1310 = vunpack.c.l.s4 1966171168
    %v1311 = vunpack.c.0.s8 %v1310
    %v1312 = vlaneseq
    %v1313 = vshrl.u32 %v1312, 7
    %v1314 = vsub.s32 %v1311, %v1313
    %v1315 = vrot.slane %v1305, %v1314
    %v1316 = vcombine.high %v1315, %v1315
    %v1318 = vunpack.c.l.s4 1966171168
    %v1319 = vunpack.c.0.s8 %v1318
    %v1320 = vlaneseq
    %v1321 = vshrl.u32 %v1320, 7
    %v1322 = vsub.s32 %v1319, %v1321
    %v1323 = vrot.slane %v1315, %v1322
    %v1325 = vunpack.c.l.s4 1966171168
    %v1326 = vunpack.c.0.s8 %v1325
    %v1327 = vlaneseq
    %v1328 = vshrl.u32 %v1327, 7
    %v1329 = vsub.s32 %v1326, %v1328
    %v1330 = vrot.slane %v1316, %v1329
    %v1331 = vlaneseq
    %v1332 = vshrl.u32 %v1331, 7
    %v1333 = vsub.s32 0, %v1332
    %v1334 = vrot.slane %v1323, %v1333
    %v1335 = vlaneseq
    %v1336 = vshrl.u32 %v1335, 7
    %v1337 = vsub.s32 0, %v1336
    %v1338 = vrot.slane %v1330, %v1337
    %v1341 = vadd.f32 %v308, %v1334
    %v1342 = vadd.f32 %v309, %v1338
    %v1343 = vtanh.pop %v1341
    %v1344 = vtanh.pop %v1342
    %v1346 = vlaneseq
    %v1347 = vshrl.u32 %v1346, 7
    %v1348 = vsub.s32 0, %v1347
    %v1349 = vrot.slane %v328, %v1348
    %v1351 = vmul.f32 %v1343, %v1349
    %v1352 = vmul.f32 %v1344, %v1349
    %v1353 = vsel %vm370, %v1351, 0.0
    %1354 = vadd.xlane.f32.xlu0 %v1353
    %v1355 = vpop.xlane.xlu0 %1354
    %v1356 = vsel %vm370, %v1352, 0.0
    %1357 = vadd.xlane.f32.xlu0 %v1356
    %v1358 = vpop.xlane.xlu0 %1357
    %v1361 = vlaneseq
    %v1362 = vshrl.u32 %v1361, 7
    %v1363 = vsub.s32 %v368, %v1362
    %v1364 = vrot.slane %v1355, %v1363
    %v1365 = vlaneseq
    %v1366 = vshrl.u32 %v1365, 7
    %v1367 = vsub.s32 %v368, %v1366
    %v1368 = vrot.slane %v1358, %v1367
    %vm1369 = vcmask 1041409
    %v1370 = vsel %vm1369, %v1368, %v1364
    %vm1372 = vcmask 58368
    %v1373 = vsel %vm1372, %v1370, -inf
    %1374 = vmax.xlane.f32.xlu0 %v1373
    %v1375 = vpop.xlane.xlu0 %1374
    %v1377 = vlaneseq
    %v1378 = vshrl.u32 %v1377, 7
    %v1379 = vsub.s32 0, %v1378
    %v1380 = vrot.slane %v1375, %v1379
    %v1381 = vlaneseq
    %v1382 = vshrl.u32 %v1381, 7
    %v1383 = vsub.s32 1, %v1382
    %v1384 = vrot.slane %v1375, %v1383
    %v1387 = vsub.f32 %v1355, %v1380
    %v1388 = vsub.f32 %v1358, %v1384
    %v1389 = vmul.f32 %v1387, 1.442695
    %v1390 = vpow.pop %v1389
    %v1391 = vmul.f32 %v1388, 1.442695
    %v1392 = vpow.pop %v1391
    %1395 = vset.pattern.permute.xlu0 0
    %1396 = vperm.xlu0 %1395, %v1390
    %v1397 = vpop.permute.xlu0 %1396
    %1398 = vset.pattern.permute.xlu0 0
    %1399 = vperm.xlu0 %1398, %v1392
    %v1400 = vpop.permute.xlu0 %1399
    %v1401 = vlaneseq
    %v1402 = vshrl.u32 %v1401, 7
    %v1403 = vsub.s32 %v368, %v1402
    %v1404 = vrot.slane %v1397, %v1403
    %v1405 = vlaneseq
    %v1406 = vshrl.u32 %v1405, 7
    %v1407 = vsub.s32 %v368, %v1406
    %v1408 = vrot.slane %v1400, %v1407
    %v1409 = vsel %vm1369, %v1408, %v1404
    %v1411 = vsel %vm1372, %v1409, 0.0
    %1412 = vadd.xlane.f32.xlu0 %v1411
    %v1413 = vpop.xlane.xlu0 %1412
    %v1415 = vlaneseq
    %v1416 = vshrl.u32 %v1415, 7
    %v1417 = vsub.s32 0, %v1416
    %v1418 = vrot.slane %v1413, %v1417
    %v1419 = vlaneseq
    %v1420 = vshrl.u32 %v1419, 7
    %v1421 = vsub.s32 1, %v1420
    %v1422 = vrot.slane %v1413, %v1421
    %v1425 = vrcp.pop %v1418
    %v1426 = vmul.f32 %v1390, %v1425
    %v1427 = vrcp.pop %v1422
    %v1428 = vmul.f32 %v1392, %v1427
    %1430 = vset.pattern.permute.xlu0 0
    %1431 = vperm.xlu0 %1430, %v1426
    %v1432 = vpop.permute.xlu0 %1431
    %1435 = vset.pattern.permute.xlu0 0
    %1436 = vperm.xlu0 %1435, %v1428
    %v1437 = vpop.permute.xlu0 %1436
    %v1439 = vmul.f32 %v1432, %v162
    %v1440 = vmul.f32 %v1437, %v163
    %vm1441 = vcmask 523264
    %v1442 = vsel %vm1441, %v1439, 0.0
    %v1443 = vrot.slane %v1442, 4
    %v1444 = vadd.f32 %v1442, %v1443
    %v1445 = vrot.slane %v1444, 2
    %v1446 = vadd.f32 %v1444, %v1445
    %v1447 = vrot.slane %v1446, 1
    %v1448 = vadd.f32 %v1446, %v1447
    %v1449 = vsel %vm1441, %v1440, 0.0
    %v1450 = vrot.slane %v1449, 4
    %v1451 = vadd.f32 %v1449, %v1450
    %v1452 = vrot.slane %v1451, 2
    %v1453 = vadd.f32 %v1451, %v1452
    %v1454 = vrot.slane %v1453, 1
    %v1455 = vadd.f32 %v1453, %v1454
    %v1456 = vadd.f32 %v1448, 0.0
    %v1457 = vadd.f32 %v1455, 0.0
    %1459 = vrot.lane.b32.xlu0 %v995, 64
    %v1460 = vpop.permute.xlu0 %1459
    %v1461 = vsel %vm370, %v1460, 0
    %1463 = vmatprep.subr.mxu0 0.0
    %1464 = vmatpush1.msra.mxu0 %v319
    %1465 = vmatprep.subr.mxu0 0.0
    %1466 = vmatpush1.msra.mxu0 %v320
    %1467 = vmatprep.subr.mxu0 0.0
    %1468 = vmatpush1.msra.mxu0 %v321
    %1469 = vmatprep.subr.mxu0 0.0
    %1470 = vmatpush1.msra.mxu0 %v322
    %1471 = vmatprep.subr.mxu0 0.0
    %1472 = vmatpush1.msra.mxu0 0.0
    %1473 = vmatprep.subr.mxu0 0.0
    %1474 = vmatpush1.msra.mxu0 0.0
    %1475 = vmatprep.subr.mxu0 0.0
    %1476 = vmatpush1.msra.mxu0 0.0
    %1477 = vmatprep.subr.mxu0 0.0
    %1478 = vmatpush1.msra.mxu0 0.0
    %1479 = vmatprep.subr.mxu0 0.0
    %1480 = vmatpush1.msra.mxu0 0.0
    %1481 = vmatprep.subr.mxu0 0.0
    %1482 = vmatpush1.msra.mxu0 0.0
    %1483 = vmatprep.subr.mxu0 0.0
    %1484 = vmatpush1.msra.mxu0 0.0
    %1485 = vmatprep.subr.mxu0 0.0
    %1486 = vmatpush1.msra.mxu0 0.0
    %1487 = vmatprep.subr.mxu0 0.0
    %1488 = vmatpush1.msra.mxu0 0.0
    %1489 = vmatprep.subr.mxu0 0.0
    %1490 = vmatpush1.msra.mxu0 0.0
    %1491 = vmatprep.subr.mxu0 0.0
    %1492 = vmatpush1.msra.mxu0 0.0
    %1493 = vmatprep.subr.mxu0 0.0
    %1494 = vmatpush1.msra.mxu0 0.0
    %1495 = vmatprep.subr.mxu0 0.0
    %1496 = vmatpush1.msra.mxu0 0.0
    %1497 = vmatprep.subr.mxu0 0.0
    %1498 = vmatpush1.msra.mxu0 0.0
    %1499 = vmatprep.subr.mxu0 0.0
    %1500 = vmatpush1.msra.mxu0 0.0
    %1501 = vmatprep.subr.mxu0 0.0
    %1502 = vmatpush1.msra.mxu0 0.0
    %1503 = vmatprep.subr.mxu0 0.0
    %1504 = vmatpush1.msra.mxu0 0.0
    %1505 = vmatprep.subr.mxu0 0.0
    %1506 = vmatpush1.msra.mxu0 0.0
    %1507 = vmatprep.subr.mxu0 0.0
    %1508 = vmatpush1.msra.mxu0 0.0
    %1509 = vmatprep.subr.mxu0 0.0
    %1510 = vmatpush1.msra.mxu0 0.0
    %1511 = vmatprep.subr.mxu0 0.0
    %1512 = vmatpush1.msra.mxu0 0.0
    %1513 = vmatprep.subr.mxu0 0.0
    %1514 = vmatpush1.msra.mxu0 0.0
    %1515 = vmatprep.subr.mxu0 0.0
    %1516 = vmatpush1.msra.mxu0 0.0
    %1517 = vmatprep.subr.mxu0 0.0
    %1518 = vmatpush1.msra.mxu0 0.0
    %1519 = vmatprep.subr.mxu0 0.0
    %1520 = vmatpush1.msra.mxu0 0.0
    %1521 = vmatprep.subr.mxu0 0.0
    %1522 = vmatpush1.msra.mxu0 0.0
    %1523 = vmatprep.subr.mxu0 0.0
    %1524 = vmatpush1.msra.mxu0 0.0
    %1525 = vmatprep.subr.mxu0 0.0
    %1526 = vmatpush1.msra.mxu0 0.0
    %1527 = vmatprep.mubr.f32.mxu0 0.0
    %1528 = vmatmul.mubr.f32.gmra.mrb[0].mxu0 %v1461
    %v1529 = vpop.f32.mrb[0].mxu0
    %v1530 = vadd.f32 0.0, %v1529
    %v1531 = vpop.f32.mrb[0].mxu0
    %1532 = vdwg.mxu0
    %v1535 = vunpack.c.l.s4 1966171168
    %v1536 = vunpack.c.0.s8 %v1535
    %v1537 = vlaneseq
    %v1538 = vshrl.u32 %v1537, 7
    %v1539 = vsub.s32 %v1536, %v1538
    %v1540 = vrot.slane %v1530, %v1539
    %v1541 = vcombine.high %v1540, %v1540
    %v1543 = vunpack.c.l.s4 1966171168
    %v1544 = vunpack.c.0.s8 %v1543
    %v1545 = vlaneseq
    %v1546 = vshrl.u32 %v1545, 7
    %v1547 = vsub.s32 %v1544, %v1546
    %v1548 = vrot.slane %v1540, %v1547
    %v1550 = vunpack.c.l.s4 1966171168
    %v1551 = vunpack.c.0.s8 %v1550
    %v1552 = vlaneseq
    %v1553 = vshrl.u32 %v1552, 7
    %v1554 = vsub.s32 %v1551, %v1553
    %v1555 = vrot.slane %v1541, %v1554
    %v1556 = vlaneseq
    %v1557 = vshrl.u32 %v1556, 7
    %v1558 = vsub.s32 0, %v1557
    %v1559 = vrot.slane %v1548, %v1558
    %v1560 = vlaneseq
    %v1561 = vshrl.u32 %v1560, 7
    %v1562 = vsub.s32 0, %v1561
    %v1563 = vrot.slane %v1555, %v1562
    %v1566 = vadd.f32 %v310, %v1559
    %v1567 = vadd.f32 %v311, %v1563
    %v1568 = vtanh.pop %v1566
    %v1569 = vtanh.pop %v1567
    %v1571 = vlaneseq
    %v1572 = vshrl.u32 %v1571, 7
    %v1573 = vsub.s32 0, %v1572
    %v1574 = vrot.slane %v330, %v1573
    %v1576 = vmul.f32 %v1568, %v1574
    %v1577 = vmul.f32 %v1569, %v1574
    %v1578 = vsel %vm370, %v1576, 0.0
    %1579 = vadd.xlane.f32.xlu0 %v1578
    %v1580 = vpop.xlane.xlu0 %1579
    %v1581 = vsel %vm370, %v1577, 0.0
    %1582 = vadd.xlane.f32.xlu0 %v1581
    %v1583 = vpop.xlane.xlu0 %1582
    %v1586 = vlaneseq
    %v1587 = vshrl.u32 %v1586, 7
    %v1588 = vsub.s32 %v368, %v1587
    %v1589 = vrot.slane %v1580, %v1588
    %v1590 = vlaneseq
    %v1591 = vshrl.u32 %v1590, 7
    %v1592 = vsub.s32 %v368, %v1591
    %v1593 = vrot.slane %v1583, %v1592
    %v1594 = vsel %vm1369, %v1593, %v1589
    %v1596 = vsel %vm1372, %v1594, -inf
    %1597 = vmax.xlane.f32.xlu0 %v1596
    %v1598 = vpop.xlane.xlu0 %1597
    %v1600 = vlaneseq
    %v1601 = vshrl.u32 %v1600, 7
    %v1602 = vsub.s32 0, %v1601
    %v1603 = vrot.slane %v1598, %v1602
    %v1604 = vlaneseq
    %v1605 = vshrl.u32 %v1604, 7
    %v1606 = vsub.s32 1, %v1605
    %v1607 = vrot.slane %v1598, %v1606
    %v1610 = vsub.f32 %v1580, %v1603
    %v1611 = vsub.f32 %v1583, %v1607
    %v1612 = vmul.f32 %v1610, 1.442695
    %v1613 = vpow.pop %v1612
    %v1614 = vmul.f32 %v1611, 1.442695
    %v1615 = vpow.pop %v1614
    %1618 = vset.pattern.permute.xlu0 0
    %1619 = vperm.xlu0 %1618, %v1613
    %v1620 = vpop.permute.xlu0 %1619
    %1621 = vset.pattern.permute.xlu0 0
    %1622 = vperm.xlu0 %1621, %v1615
    %v1623 = vpop.permute.xlu0 %1622
    %v1624 = vlaneseq
    %v1625 = vshrl.u32 %v1624, 7
    %v1626 = vsub.s32 %v368, %v1625
    %v1627 = vrot.slane %v1620, %v1626
    %v1628 = vlaneseq
    %v1629 = vshrl.u32 %v1628, 7
    %v1630 = vsub.s32 %v368, %v1629
    %v1631 = vrot.slane %v1623, %v1630
    %v1632 = vsel %vm1369, %v1631, %v1627
    %v1634 = vsel %vm1372, %v1632, 0.0
    %1635 = vadd.xlane.f32.xlu0 %v1634
    %v1636 = vpop.xlane.xlu0 %1635
    %v1638 = vlaneseq
    %v1639 = vshrl.u32 %v1638, 7
    %v1640 = vsub.s32 0, %v1639
    %v1641 = vrot.slane %v1636, %v1640
    %v1642 = vlaneseq
    %v1643 = vshrl.u32 %v1642, 7
    %v1644 = vsub.s32 1, %v1643
    %v1645 = vrot.slane %v1636, %v1644
    %v1648 = vrcp.pop %v1641
    %v1649 = vmul.f32 %v1613, %v1648
    %v1650 = vrcp.pop %v1645
    %v1651 = vmul.f32 %v1615, %v1650
    %1653 = vset.pattern.permute.xlu0 0
    %1654 = vperm.xlu0 %1653, %v1649
    %v1655 = vpop.permute.xlu0 %1654
    %1658 = vset.pattern.permute.xlu0 0
    %1659 = vperm.xlu0 %1658, %v1651
    %v1660 = vpop.permute.xlu0 %1659
    %v1662 = vmul.f32 %v1655, %v162
    %v1663 = vmul.f32 %v1660, %v163
    %v1664 = vsel %vm1441, %v1662, 0.0
    %v1665 = vrot.slane %v1664, 4
    %v1666 = vadd.f32 %v1664, %v1665
    %v1667 = vrot.slane %v1666, 2
    %v1668 = vadd.f32 %v1666, %v1667
    %v1669 = vrot.slane %v1668, 1
    %v1670 = vadd.f32 %v1668, %v1669
    %v1671 = vsel %vm1441, %v1663, 0.0
    %v1672 = vrot.slane %v1671, 4
    %v1673 = vadd.f32 %v1671, %v1672
    %v1674 = vrot.slane %v1673, 2
    %v1675 = vadd.f32 %v1673, %v1674
    %v1676 = vrot.slane %v1675, 1
    %v1677 = vadd.f32 %v1675, %v1676
    %v1678 = vadd.f32 %v1456, %v1670
    %v1679 = vadd.f32 %v1457, %v1677
    %1681 = vrot.lane.b32.xlu0 %v1232, 64
    %v1682 = vpop.permute.xlu0 %1681
    %v1683 = vsel %vm370, %v1682, 0
    %1685 = vmatprep.subr.mxu0 0.0
    %1686 = vmatpush1.msra.mxu0 %v324
    %1687 = vmatprep.subr.mxu0 0.0
    %1688 = vmatpush1.msra.mxu0 %v325
    %1689 = vmatprep.subr.mxu0 0.0
    %1690 = vmatpush1.msra.mxu0 %v326
    %1691 = vmatprep.subr.mxu0 0.0
    %1692 = vmatpush1.msra.mxu0 %v327
    %1693 = vmatprep.subr.mxu0 0.0
    %1694 = vmatpush1.msra.mxu0 0.0
    %1695 = vmatprep.subr.mxu0 0.0
    %1696 = vmatpush1.msra.mxu0 0.0
    %1697 = vmatprep.subr.mxu0 0.0
    %1698 = vmatpush1.msra.mxu0 0.0
    %1699 = vmatprep.subr.mxu0 0.0
    %1700 = vmatpush1.msra.mxu0 0.0
    %1701 = vmatprep.subr.mxu0 0.0
    %1702 = vmatpush1.msra.mxu0 0.0
    %1703 = vmatprep.subr.mxu0 0.0
    %1704 = vmatpush1.msra.mxu0 0.0
    %1705 = vmatprep.subr.mxu0 0.0
    %1706 = vmatpush1.msra.mxu0 0.0
    %1707 = vmatprep.subr.mxu0 0.0
    %1708 = vmatpush1.msra.mxu0 0.0
    %1709 = vmatprep.subr.mxu0 0.0
    %1710 = vmatpush1.msra.mxu0 0.0
    %1711 = vmatprep.subr.mxu0 0.0
    %1712 = vmatpush1.msra.mxu0 0.0
    %1713 = vmatprep.subr.mxu0 0.0
    %1714 = vmatpush1.msra.mxu0 0.0
    %1715 = vmatprep.subr.mxu0 0.0
    %1716 = vmatpush1.msra.mxu0 0.0
    %1717 = vmatprep.subr.mxu0 0.0
    %1718 = vmatpush1.msra.mxu0 0.0
    %1719 = vmatprep.subr.mxu0 0.0
    %1720 = vmatpush1.msra.mxu0 0.0
    %1721 = vmatprep.subr.mxu0 0.0
    %1722 = vmatpush1.msra.mxu0 0.0
    %1723 = vmatprep.subr.mxu0 0.0
    %1724 = vmatpush1.msra.mxu0 0.0
    %1725 = vmatprep.subr.mxu0 0.0
    %1726 = vmatpush1.msra.mxu0 0.0
    %1727 = vmatprep.subr.mxu0 0.0
    %1728 = vmatpush1.msra.mxu0 0.0
    %1729 = vmatprep.subr.mxu0 0.0
    %1730 = vmatpush1.msra.mxu0 0.0
    %1731 = vmatprep.subr.mxu0 0.0
    %1732 = vmatpush1.msra.mxu0 0.0
    %1733 = vmatprep.subr.mxu0 0.0
    %1734 = vmatpush1.msra.mxu0 0.0
    %1735 = vmatprep.subr.mxu0 0.0
    %1736 = vmatpush1.msra.mxu0 0.0
    %1737 = vmatprep.subr.mxu0 0.0
    %1738 = vmatpush1.msra.mxu0 0.0
    %1739 = vmatprep.subr.mxu0 0.0
    %1740 = vmatpush1.msra.mxu0 0.0
    %1741 = vmatprep.subr.mxu0 0.0
    %1742 = vmatpush1.msra.mxu0 0.0
    %1743 = vmatprep.subr.mxu0 0.0
    %1744 = vmatpush1.msra.mxu0 0.0
    %1745 = vmatprep.subr.mxu0 0.0
    %1746 = vmatpush1.msra.mxu0 0.0
    %1747 = vmatprep.subr.mxu0 0.0
    %1748 = vmatpush1.msra.mxu0 0.0
    %1749 = vmatprep.mubr.f32.mxu0 0.0
    %1750 = vmatmul.mubr.f32.gmra.mrb[0].mxu0 %v1683
    %v1751 = vpop.f32.mrb[0].mxu0
    %v1752 = vadd.f32 0.0, %v1751
    %v1753 = vpop.f32.mrb[0].mxu0
    %1754 = vdwg.mxu0
    %v1757 = vunpack.c.l.s4 1966171168
    %v1758 = vunpack.c.0.s8 %v1757
    %v1759 = vlaneseq
    %v1760 = vshrl.u32 %v1759, 7
    %v1761 = vsub.s32 %v1758, %v1760
    %v1762 = vrot.slane %v1752, %v1761
    %v1763 = vcombine.high %v1762, %v1762
    %v1765 = vunpack.c.l.s4 1966171168
    %v1766 = vunpack.c.0.s8 %v1765
    %v1767 = vlaneseq
    %v1768 = vshrl.u32 %v1767, 7
    %v1769 = vsub.s32 %v1766, %v1768
    %v1770 = vrot.slane %v1762, %v1769
    %v1772 = vunpack.c.l.s4 1966171168
    %v1773 = vunpack.c.0.s8 %v1772
    %v1774 = vlaneseq
    %v1775 = vshrl.u32 %v1774, 7
    %v1776 = vsub.s32 %v1773, %v1775
    %v1777 = vrot.slane %v1763, %v1776
    %v1778 = vlaneseq
    %v1779 = vshrl.u32 %v1778, 7
    %v1780 = vsub.s32 0, %v1779
    %v1781 = vrot.slane %v1770, %v1780
    %v1782 = vlaneseq
    %v1783 = vshrl.u32 %v1782, 7
    %v1784 = vsub.s32 0, %v1783
    %v1785 = vrot.slane %v1777, %v1784
    %v1788 = vadd.f32 %v312, %v1781
    %v1789 = vadd.f32 %v313, %v1785
    %v1790 = vtanh.pop %v1788
    %v1791 = vtanh.pop %v1789
    %v1793 = vlaneseq
    %v1794 = vshrl.u32 %v1793, 7
    %v1795 = vsub.s32 0, %v1794
    %v1796 = vrot.slane %v332, %v1795
    %v1798 = vmul.f32 %v1790, %v1796
    %v1799 = vmul.f32 %v1791, %v1796
    %v1800 = vsel %vm370, %v1798, 0.0
    %1801 = vadd.xlane.f32.xlu0 %v1800
    %v1802 = vpop.xlane.xlu0 %1801
    %v1803 = vsel %vm370, %v1799, 0.0
    %1804 = vadd.xlane.f32.xlu0 %v1803
    %v1805 = vpop.xlane.xlu0 %1804
    %v1808 = vlaneseq
    %v1809 = vshrl.u32 %v1808, 7
    %v1810 = vsub.s32 %v368, %v1809
    %v1811 = vrot.slane %v1802, %v1810
    %v1812 = vlaneseq
    %v1813 = vshrl.u32 %v1812, 7
    %v1814 = vsub.s32 %v368, %v1813
    %v1815 = vrot.slane %v1805, %v1814
    %v1816 = vsel %vm1369, %v1815, %v1811
    %v1818 = vsel %vm1372, %v1816, -inf
    %1819 = vmax.xlane.f32.xlu0 %v1818
    %v1820 = vpop.xlane.xlu0 %1819
    %v1822 = vlaneseq
    %v1823 = vshrl.u32 %v1822, 7
    %v1824 = vsub.s32 0, %v1823
    %v1825 = vrot.slane %v1820, %v1824
    %v1826 = vlaneseq
    %v1827 = vshrl.u32 %v1826, 7
    %v1828 = vsub.s32 1, %v1827
    %v1829 = vrot.slane %v1820, %v1828
    %v1832 = vsub.f32 %v1802, %v1825
    %v1833 = vsub.f32 %v1805, %v1829
    %v1834 = vmul.f32 %v1832, 1.442695
    %v1835 = vpow.pop %v1834
    %v1836 = vmul.f32 %v1833, 1.442695
    %v1837 = vpow.pop %v1836
    %1840 = vset.pattern.permute.xlu0 0
    %1841 = vperm.xlu0 %1840, %v1835
    %v1842 = vpop.permute.xlu0 %1841
    %1843 = vset.pattern.permute.xlu0 0
    %1844 = vperm.xlu0 %1843, %v1837
    %v1845 = vpop.permute.xlu0 %1844
    %v1846 = vlaneseq
    %v1847 = vshrl.u32 %v1846, 7
    %v1848 = vsub.s32 %v368, %v1847
    %v1849 = vrot.slane %v1842, %v1848
    %v1850 = vlaneseq
    %v1851 = vshrl.u32 %v1850, 7
    %v1852 = vsub.s32 %v368, %v1851
    %v1853 = vrot.slane %v1845, %v1852
    %v1854 = vsel %vm1369, %v1853, %v1849
    %v1856 = vsel %vm1372, %v1854, 0.0
    %1857 = vadd.xlane.f32.xlu0 %v1856
    %v1858 = vpop.xlane.xlu0 %1857
    %v1860 = vlaneseq
    %v1861 = vshrl.u32 %v1860, 7
    %v1862 = vsub.s32 0, %v1861
    %v1863 = vrot.slane %v1858, %v1862
    %v1864 = vlaneseq
    %v1865 = vshrl.u32 %v1864, 7
    %v1866 = vsub.s32 1, %v1865
    %v1867 = vrot.slane %v1858, %v1866
    %v1870 = vrcp.pop %v1863
    %v1871 = vmul.f32 %v1835, %v1870
    %v1872 = vrcp.pop %v1867
    %v1873 = vmul.f32 %v1837, %v1872
    %1875 = vset.pattern.permute.xlu0 0
    %1876 = vperm.xlu0 %1875, %v1871
    %v1877 = vpop.permute.xlu0 %1876
    %1880 = vset.pattern.permute.xlu0 0
    %1881 = vperm.xlu0 %1880, %v1873
    %v1882 = vpop.permute.xlu0 %1881
    %v1884 = vmul.f32 %v1877, %v162
    %v1885 = vmul.f32 %v1882, %v163
    %v1886 = vsel %vm1441, %v1884, 0.0
    %v1887 = vrot.slane %v1886, 4
    %v1888 = vadd.f32 %v1886, %v1887
    %v1889 = vrot.slane %v1888, 2
    %v1890 = vadd.f32 %v1888, %v1889
    %v1891 = vrot.slane %v1890, 1
    %v1892 = vadd.f32 %v1890, %v1891
    %v1893 = vsel %vm1441, %v1885, 0.0
    %v1894 = vrot.slane %v1893, 4
    %v1895 = vadd.f32 %v1893, %v1894
    %v1896 = vrot.slane %v1895, 2
    %v1897 = vadd.f32 %v1895, %v1896
    %v1898 = vrot.slane %v1897, 1
    %v1899 = vadd.f32 %v1897, %v1898
    %v1900 = vadd.f32 %v1678, %v1892
    %v1901 = vadd.f32 %v1679, %v1899
    %v1902 = vmul.f32 %v1900, 0.33333334
    %v1903 = vmul.f32 %v1901, 0.33333334
    %v1906 = vsel %vm1369, %v1903, %v1902
    %v1907 = vsel %vm1441, %v1906, 0
    %1909 = vmatprep.subr.mxu0 0.0
    %1910 = vmatpush1.msra.mxu0 %v337
    %1911 = vmatprep.subr.mxu0 0.0
    %1912 = vmatpush1.msra.mxu0 %v338
    %1913 = vmatprep.subr.mxu0 0.0
    %1914 = vmatpush1.msra.mxu0 %v339
    %1915 = vmatprep.subr.mxu0 0.0
    %1916 = vmatpush1.msra.mxu0 %v340
    %1917 = vmatprep.subr.mxu0 0.0
    %1918 = vmatpush1.msra.mxu0 %v341
    %1919 = vmatprep.subr.mxu0 0.0
    %1920 = vmatpush1.msra.mxu0 %v342
    %1921 = vmatprep.subr.mxu0 0.0
    %1922 = vmatpush1.msra.mxu0 %v343
    %1923 = vmatprep.subr.mxu0 0.0
    %1924 = vmatpush1.msra.mxu0 %v344
    %1925 = vmatprep.subr.mxu0 0.0
    %1926 = vmatpush1.msra.mxu0 0.0
    %1927 = vmatprep.subr.mxu0 0.0
    %1928 = vmatpush1.msra.mxu0 0.0
    %1929 = vmatprep.subr.mxu0 0.0
    %1930 = vmatpush1.msra.mxu0 0.0
    %1931 = vmatprep.subr.mxu0 0.0
    %1932 = vmatpush1.msra.mxu0 0.0
    %1933 = vmatprep.subr.mxu0 0.0
    %1934 = vmatpush1.msra.mxu0 0.0
    %1935 = vmatprep.subr.mxu0 0.0
    %1936 = vmatpush1.msra.mxu0 0.0
    %1937 = vmatprep.subr.mxu0 0.0
    %1938 = vmatpush1.msra.mxu0 0.0
    %1939 = vmatprep.subr.mxu0 0.0
    %1940 = vmatpush1.msra.mxu0 0.0
    %1941 = vmatprep.subr.mxu0 0.0
    %1942 = vmatpush1.msra.mxu0 0.0
    %1943 = vmatprep.subr.mxu0 0.0
    %1944 = vmatpush1.msra.mxu0 0.0
    %1945 = vmatprep.subr.mxu0 0.0
    %1946 = vmatpush1.msra.mxu0 0.0
    %1947 = vmatprep.subr.mxu0 0.0
    %1948 = vmatpush1.msra.mxu0 0.0
    %1949 = vmatprep.subr.mxu0 0.0
    %1950 = vmatpush1.msra.mxu0 0.0
    %1951 = vmatprep.subr.mxu0 0.0
    %1952 = vmatpush1.msra.mxu0 0.0
    %1953 = vmatprep.subr.mxu0 0.0
    %1954 = vmatpush1.msra.mxu0 0.0
    %1955 = vmatprep.subr.mxu0 0.0
    %1956 = vmatpush1.msra.mxu0 0.0
    %1957 = vmatprep.subr.mxu0 0.0
    %1958 = vmatpush1.msra.mxu0 0.0
    %1959 = vmatprep.subr.mxu0 0.0
    %1960 = vmatpush1.msra.mxu0 0.0
    %1961 = vmatprep.subr.mxu0 0.0
    %1962 = vmatpush1.msra.mxu0 0.0
    %1963 = vmatprep.subr.mxu0 0.0
    %1964 = vmatpush1.msra.mxu0 0.0
    %1965 = vmatprep.subr.mxu0 0.0
    %1966 = vmatpush1.msra.mxu0 0.0
    %1967 = vmatprep.subr.mxu0 0.0
    %1968 = vmatpush1.msra.mxu0 0.0
    %1969 = vmatprep.subr.mxu0 0.0
    %1970 = vmatpush1.msra.mxu0 0.0
    %1971 = vmatprep.subr.mxu0 0.0
    %1972 = vmatpush1.msra.mxu0 0.0
    %1973 = vmatprep.mubr.f32.mxu0 0.0
    %1974 = vmatmul.mubr.f32.gmra.mrb[0].mxu0 %v1907
    %v1975 = vpop.f32.mrb[0].mxu0
    %v1976 = vadd.f32 0.0, %v1975
    %v1977 = vpop.f32.mrb[0].mxu0
    %1978 = vdwg.mxu0
    %v1980 = vsel %vm370, %v166, 0
    %1982 = vmatprep.subr.mxu0 0.0
    %1983 = vmatpush1.msra.mxu0 %v333
    %1984 = vmatprep.subr.mxu0 0.0
    %1985 = vmatpush1.msra.mxu0 %v334
    %1986 = vmatprep.subr.mxu0 0.0
    %1987 = vmatpush1.msra.mxu0 %v335
    %1988 = vmatprep.subr.mxu0 0.0
    %1989 = vmatpush1.msra.mxu0 %v336
    %1990 = vmatprep.subr.mxu0 0.0
    %1991 = vmatpush1.msra.mxu0 0.0
    %1992 = vmatprep.subr.mxu0 0.0
    %1993 = vmatpush1.msra.mxu0 0.0
    %1994 = vmatprep.subr.mxu0 0.0
    %1995 = vmatpush1.msra.mxu0 0.0
    %1996 = vmatprep.subr.mxu0 0.0
    %1997 = vmatpush1.msra.mxu0 0.0
    %1998 = vmatprep.subr.mxu0 0.0
    %1999 = vmatpush1.msra.mxu0 0.0
    %2000 = vmatprep.subr.mxu0 0.0
    %2001 = vmatpush1.msra.mxu0 0.0
    %2002 = vmatprep.subr.mxu0 0.0
    %2003 = vmatpush1.msra.mxu0 0.0
    %2004 = vmatprep.subr.mxu0 0.0
    %2005 = vmatpush1.msra.mxu0 0.0
    %2006 = vmatprep.subr.mxu0 0.0
    %2007 = vmatpush1.msra.mxu0 0.0
    %2008 = vmatprep.subr.mxu0 0.0
    %2009 = vmatpush1.msra.mxu0 0.0
    %2010 = vmatprep.subr.mxu0 0.0
    %2011 = vmatpush1.msra.mxu0 0.0
    %2012 = vmatprep.subr.mxu0 0.0
    %2013 = vmatpush1.msra.mxu0 0.0
    %2014 = vmatprep.subr.mxu0 0.0
    %2015 = vmatpush1.msra.mxu0 0.0
    %2016 = vmatprep.subr.mxu0 0.0
    %2017 = vmatpush1.msra.mxu0 0.0
    %2018 = vmatprep.subr.mxu0 0.0
    %2019 = vmatpush1.msra.mxu0 0.0
    %2020 = vmatprep.subr.mxu0 0.0
    %2021 = vmatpush1.msra.mxu0 0.0
    %2022 = vmatprep.subr.mxu0 0.0
    %2023 = vmatpush1.msra.mxu0 0.0
    %2024 = vmatprep.subr.mxu0 0.0
    %2025 = vmatpush1.msra.mxu0 0.0
    %2026 = vmatprep.subr.mxu0 0.0
    %2027 = vmatpush1.msra.mxu0 0.0
    %2028 = vmatprep.subr.mxu0 0.0
    %2029 = vmatpush1.msra.mxu0 0.0
    %2030 = vmatprep.subr.mxu0 0.0
    %2031 = vmatpush1.msra.mxu0 0.0
    %2032 = vmatprep.subr.mxu0 0.0
    %2033 = vmatpush1.msra.mxu0 0.0
    %2034 = vmatprep.subr.mxu0 0.0
    %2035 = vmatpush1.msra.mxu0 0.0
    %2036 = vmatprep.subr.mxu0 0.0
    %2037 = vmatpush1.msra.mxu0 0.0
    %2038 = vmatprep.subr.mxu0 0.0
    %2039 = vmatpush1.msra.mxu0 0.0
    %2040 = vmatprep.subr.mxu0 0.0
    %2041 = vmatpush1.msra.mxu0 0.0
    %2042 = vmatprep.subr.mxu0 0.0
    %2043 = vmatpush1.msra.mxu0 0.0
    %2044 = vmatprep.subr.mxu0 0.0
    %2045 = vmatpush1.msra.mxu0 0.0
    %2046 = vmatprep.mubr.f32.mxu0 0.0
    %2047 = vmatmul.mubr.f32.gmra.mrb[0].mxu0 %v1980
    %v2048 = vpop.f32.mrb[0].mxu0
    %v2049 = vadd.f32 %v1976, %v2048
    %v2050 = vpop.f32.mrb[0].mxu0
    %2051 = vdwg.mxu0
    %v2053 = vlaneseq
    %v2054 = vshrl.u32 %v2053, 7
    %v2055 = vsub.s32 0, %v2054
    %v2056 = vrot.slane %v345, %v2055
    %v2058 = vadd.f32 %v2049, %v2056
    %v2059 = vxor.u32 %v2058, 2147483648
    %v2060 = vmul.f32 %v2059, 1.442695
    %v2061 = vpow.pop %v2060
    %v2062 = vadd.f32 %v2061, 1.0
    %v2063 = vrcp.pop %v2062
    %v2064 = vmul.f32 1.0, %v2063
    %v2066 = vmul.f32 %v2064, %v1235
    %v2067 = vsub.f32 1.0, %v2064
    %v2069 = vmul.f32 %v2067, %v1460
    %v2070 = vadd.f32 %v2066, %v2069
    %2072 = vrot.lane.b32.xlu0 %v2070, 32
    %v2073 = vpop.permute.xlu0 %2072
    %v2075 = vmul.f32 %v2064, %v2073
    %2076 = vrot.lane.b32.xlu0 %v1232, 96
    %v2077 = vpop.permute.xlu0 %2076
    %v2079 = vmul.f32 %v2067, %v2077
    %v2080 = vadd.f32 %v2075, %v2079
    %v2082 = vlaneseq
    %v2083 = vshrl.u32 %v2082, 7
    %v2084 = vsub.s32 0, %v2083
    %v2085 = vrot.slane %v350, %v2084
    %2088 = vrot.lane.b32.xlu0 %v2080, 96
    %v2089 = vpop.permute.xlu0 %2088
    %v2090 = vsel %vm370, %v2089, 0
    %2092 = vmatprep.subr.mxu0 0.0
    %2093 = vmatpush1.msra.mxu0 %v346
    %2094 = vmatprep.subr.mxu0 0.0
    %2095 = vmatpush1.msra.mxu0 %v347
    %2096 = vmatprep.subr.mxu0 0.0
    %2097 = vmatpush1.msra.mxu0 %v348
    %2098 = vmatprep.subr.mxu0 0.0
    %2099 = vmatpush1.msra.mxu0 %v349
    %2100 = vmatprep.subr.mxu0 0.0
    %2101 = vmatpush1.msra.mxu0 0.0
    %2102 = vmatprep.subr.mxu0 0.0
    %2103 = vmatpush1.msra.mxu0 0.0
    %2104 = vmatprep.subr.mxu0 0.0
    %2105 = vmatpush1.msra.mxu0 0.0
    %2106 = vmatprep.subr.mxu0 0.0
    %2107 = vmatpush1.msra.mxu0 0.0
    %2108 = vmatprep.subr.mxu0 0.0
    %2109 = vmatpush1.msra.mxu0 0.0
    %2110 = vmatprep.subr.mxu0 0.0
    %2111 = vmatpush1.msra.mxu0 0.0
    %2112 = vmatprep.subr.mxu0 0.0
    %2113 = vmatpush1.msra.mxu0 0.0
    %2114 = vmatprep.subr.mxu0 0.0
    %2115 = vmatpush1.msra.mxu0 0.0
    %2116 = vmatprep.subr.mxu0 0.0
    %2117 = vmatpush1.msra.mxu0 0.0
    %2118 = vmatprep.subr.mxu0 0.0
    %2119 = vmatpush1.msra.mxu0 0.0
    %2120 = vmatprep.subr.mxu0 0.0
    %2121 = vmatpush1.msra.mxu0 0.0
    %2122 = vmatprep.subr.mxu0 0.0
    %2123 = vmatpush1.msra.mxu0 0.0
    %2124 = vmatprep.subr.mxu0 0.0
    %2125 = vmatpush1.msra.mxu0 0.0
    %2126 = vmatprep.subr.mxu0 0.0
    %2127 = vmatpush1.msra.mxu0 0.0
    %2128 = vmatprep.subr.mxu0 0.0
    %2129 = vmatpush1.msra.mxu0 0.0
    %2130 = vmatprep.subr.mxu0 0.0
    %2131 = vmatpush1.msra.mxu0 0.0
    %2132 = vmatprep.subr.mxu0 0.0
    %2133 = vmatpush1.msra.mxu0 0.0
    %2134 = vmatprep.subr.mxu0 0.0
    %2135 = vmatpush1.msra.mxu0 0.0
    %2136 = vmatprep.subr.mxu0 0.0
    %2137 = vmatpush1.msra.mxu0 0.0
    %2138 = vmatprep.subr.mxu0 0.0
    %2139 = vmatpush1.msra.mxu0 0.0
    %2140 = vmatprep.subr.mxu0 0.0
    %2141 = vmatpush1.msra.mxu0 0.0
    %2142 = vmatprep.subr.mxu0 0.0
    %2143 = vmatpush1.msra.mxu0 0.0
    %2144 = vmatprep.subr.mxu0 0.0
    %2145 = vmatpush1.msra.mxu0 0.0
    %2146 = vmatprep.subr.mxu0 0.0
    %2147 = vmatpush1.msra.mxu0 0.0
    %2148 = vmatprep.subr.mxu0 0.0
    %2149 = vmatpush1.msra.mxu0 0.0
    %2150 = vmatprep.subr.mxu0 0.0
    %2151 = vmatpush1.msra.mxu0 0.0
    %2152 = vmatprep.subr.mxu0 0.0
    %2153 = vmatpush1.msra.mxu0 0.0
    %2154 = vmatprep.subr.mxu0 0.0
    %2155 = vmatpush1.msra.mxu0 0.0
    %2156 = vmatprep.mubr.f32.mxu0 0.0
    %2157 = vmatmul.mubr.f32.gmra.mrb[0].mxu0 %v2090
    %v2158 = vpop.f32.mrb[0].mxu0
    %v2159 = vadd.f32 %v2085, %v2158
    %v2160 = vpop.f32.mrb[0].mxu0
    %2161 = vdwg.mxu0
    %2162 = vst [vmem:[%s22] sm:$0x3] %v2159
    %vm2163 = vcmask 1041408
    %v2164 = vsel %vm2163, %v2159, -inf
    %2165 = vmax.xlane.f32.xlu0 %v2164
    %v2166 = vpop.xlane.xlu0 %2165
    %vm2167 = vcmp.eq.f32.partialorder %v2159, %v2166
    %v2168 = vsel %vm2167, %v369, 128.0
    %v2169 = vsel %vm2163, %v2168, inf
    %2170 = vmin.xlane.f32.xlu0 %v2169
    %v2171 = vpop.xlane.xlu0 %2170
    %vm2172 = vcmp.eq.f32.partialorder %v369, %v2171
    %v2173 = vsel %vm2172, 1, 0
    %v2174 = vcvt.s32.f32 %v2173
    %2175 = vmatprep.subr.mxu0 0.0
    %2176 = vmatpush1.msra.mxu0 %v351
    %2177 = vmatprep.subr.mxu0 0.0
    %2178 = vmatpush1.msra.mxu0 %v352
    %2179 = vmatprep.subr.mxu0 0.0
    %2180 = vmatpush1.msra.mxu0 %v353
    %2181 = vmatprep.subr.mxu0 0.0
    %2182 = vmatpush1.msra.mxu0 %v354
    %2183 = vmatprep.subr.mxu0 0.0
    %2184 = vmatpush1.msra.mxu0 %v355
    %2185 = vmatprep.subr.mxu0 0.0
    %2186 = vmatpush1.msra.mxu0 %v356
    %2187 = vmatprep.subr.mxu0 0.0
    %2188 = vmatpush1.msra.mxu0 %v357
    %2189 = vmatprep.subr.mxu0 0.0
    %2190 = vmatpush1.msra.mxu0 %v358
    %2191 = vmatprep.subr.mxu0 0.0
    %2192 = vmatpush1.msra.mxu0 %v359
    %2193 = vmatprep.subr.mxu0 0.0
    %2194 = vmatpush1.msra.mxu0 %v360
    %2195 = vmatprep.subr.mxu0 0.0
    %2196 = vmatpush1.msra.mxu0 %v361
    %2197 = vmatprep.subr.mxu0 0.0
    %2198 = vmatpush1.msra.mxu0 %v362
    %2199 = vmatprep.subr.mxu0 0.0
    %2200 = vmatpush1.msra.mxu0 %v363
    %2201 = vmatprep.subr.mxu0 0.0
    %2202 = vmatpush1.msra.mxu0 %v364
    %2203 = vmatprep.subr.mxu0 0.0
    %2204 = vmatpush1.msra.mxu0 %v365
    %2205 = vmatprep.subr.mxu0 0.0
    %2206 = vmatpush1.msra.mxu0 %v366
    %2207 = vmatprep.subr.mxu0 0.0
    %2208 = vmatpush1.msra.mxu0 0.0
    %2209 = vmatprep.subr.mxu0 0.0
    %2210 = vmatpush1.msra.mxu0 0.0
    %2211 = vmatprep.subr.mxu0 0.0
    %2212 = vmatpush1.msra.mxu0 0.0
    %2213 = vmatprep.subr.mxu0 0.0
    %2214 = vmatpush1.msra.mxu0 0.0
    %2215 = vmatprep.subr.mxu0 0.0
    %2216 = vmatpush1.msra.mxu0 0.0
    %2217 = vmatprep.subr.mxu0 0.0
    %2218 = vmatpush1.msra.mxu0 0.0
    %2219 = vmatprep.subr.mxu0 0.0
    %2220 = vmatpush1.msra.mxu0 0.0
    %2221 = vmatprep.subr.mxu0 0.0
    %2222 = vmatpush1.msra.mxu0 0.0
    %2223 = vmatprep.subr.mxu0 0.0
    %2224 = vmatpush1.msra.mxu0 0.0
    %2225 = vmatprep.subr.mxu0 0.0
    %2226 = vmatpush1.msra.mxu0 0.0
    %2227 = vmatprep.subr.mxu0 0.0
    %2228 = vmatpush1.msra.mxu0 0.0
    %2229 = vmatprep.subr.mxu0 0.0
    %2230 = vmatpush1.msra.mxu0 0.0
    %2231 = vmatprep.subr.mxu0 0.0
    %2232 = vmatpush1.msra.mxu0 0.0
    %2233 = vmatprep.subr.mxu0 0.0
    %2234 = vmatpush1.msra.mxu0 0.0
    %2235 = vmatprep.subr.mxu0 0.0
    %2236 = vmatpush1.msra.mxu0 0.0
    %2237 = vmatprep.subr.mxu0 0.0
    %2238 = vmatpush1.msra.mxu0 0.0
    %2239 = vmatprep.mubr.f32.mxu0 0.0
    %2240 = vmatmul.mubr.f32.gmra.mrb[0].mxu0 %v2174
    %v2241 = vpop.f32.mrb[0].mxu0
    %v2242 = vadd.f32 0.0, %v2241
    %v2243 = vpop.f32.mrb[0].mxu0
    %2244 = vdwg.mxu0
    %v2246 = vsel %vm370, %v2242, 0
    %2248 = vmatprep.subr.mxu0 %v168
    %2249 = vmatpush1.msra.mxu0 %v167
    %2250 = vmatprep.subr.mxu0 %v171
    %2251 = vmatpush1.msra.mxu0 %v170
    %2252 = vmatprep.subr.mxu0 %v174
    %2253 = vmatpush1.msra.mxu0 %v173
    %2254 = vmatprep.subr.mxu0 %v177
    %2255 = vmatpush1.msra.mxu0 %v176
    %2256 = vmatprep.subr.mxu0 0.0
    %2257 = vmatpush1.msra.mxu0 0.0
    %2258 = vmatprep.subr.mxu0 0.0
    %2259 = vmatpush1.msra.mxu0 0.0
    %2260 = vmatprep.subr.mxu0 0.0
    %2261 = vmatpush1.msra.mxu0 0.0
    %2262 = vmatprep.subr.mxu0 0.0
    %2263 = vmatpush1.msra.mxu0 0.0
    %2264 = vmatprep.subr.mxu0 0.0
    %2265 = vmatpush1.msra.mxu0 0.0
    %2266 = vmatprep.subr.mxu0 0.0
    %2267 = vmatpush1.msra.mxu0 0.0
    %2268 = vmatprep.subr.mxu0 0.0
    %2269 = vmatpush1.msra.mxu0 0.0
    %2270 = vmatprep.subr.mxu0 0.0
    %2271 = vmatpush1.msra.mxu0 0.0
    %2272 = vmatprep.subr.mxu0 0.0
    %2273 = vmatpush1.msra.mxu0 0.0
    %2274 = vmatprep.subr.mxu0 0.0
    %2275 = vmatpush1.msra.mxu0 0.0
    %2276 = vmatprep.subr.mxu0 0.0
    %2277 = vmatpush1.msra.mxu0 0.0
    %2278 = vmatprep.subr.mxu0 0.0
    %2279 = vmatpush1.msra.mxu0 0.0
    %2280 = vmatprep.subr.mxu0 0.0
    %2281 = vmatpush1.msra.mxu0 0.0
    %2282 = vmatprep.subr.mxu0 0.0
    %2283 = vmatpush1.msra.mxu0 0.0
    %2284 = vmatprep.subr.mxu0 0.0
    %2285 = vmatpush1.msra.mxu0 0.0
    %2286 = vmatprep.subr.mxu0 0.0
    %2287 = vmatpush1.msra.mxu0 0.0
    %2288 = vmatprep.subr.mxu0 0.0
    %2289 = vmatpush1.msra.mxu0 0.0
    %2290 = vmatprep.subr.mxu0 0.0
    %2291 = vmatpush1.msra.mxu0 0.0
    %2292 = vmatprep.subr.mxu0 0.0
    %2293 = vmatpush1.msra.mxu0 0.0
    %2294 = vmatprep.subr.mxu0 0.0
    %2295 = vmatpush1.msra.mxu0 0.0
    %2296 = vmatprep.subr.mxu0 0.0
    %2297 = vmatpush1.msra.mxu0 0.0
    %2298 = vmatprep.subr.mxu0 0.0
    %2299 = vmatpush1.msra.mxu0 0.0
    %2300 = vmatprep.subr.mxu0 0.0
    %2301 = vmatpush1.msra.mxu0 0.0
    %2302 = vmatprep.subr.mxu0 0.0
    %2303 = vmatpush1.msra.mxu0 0.0
    %2304 = vmatprep.subr.mxu0 0.0
    %2305 = vmatpush1.msra.mxu0 0.0
    %2306 = vmatprep.subr.mxu0 0.0
    %2307 = vmatpush1.msra.mxu0 0.0
    %2308 = vmatprep.subr.mxu0 0.0
    %2309 = vmatpush1.msra.mxu0 0.0
    %2310 = vmatprep.subr.mxu0 0.0
    %2311 = vmatpush1.msra.mxu0 0.0
    %2312 = vmatprep.mubr.f32.mxu0 0.0
    %2313 = vmatmul.mubr.f32.gmra.mrb[0].mxu0 %v2246
    %v2314 = vpop.f32.mrb[0].mxu0
    %v2315 = vadd.f32 0.0, %v2314
    %v2316 = vpop.f32.mrb[0].mxu0
    %v2317 = vadd.f32 0.0, %v2316
    %2318 = vdwg.mxu0
    %2319 = vmatprep.subr.mxu0 0.0
    %2320 = vmatpush1.msra.mxu0 %v169
    %2321 = vmatprep.subr.mxu0 0.0
    %2322 = vmatpush1.msra.mxu0 %v172
    %2323 = vmatprep.subr.mxu0 0.0
    %2324 = vmatpush1.msra.mxu0 %v175
    %2325 = vmatprep.subr.mxu0 0.0
    %2326 = vmatpush1.msra.mxu0 %v178
    %2327 = vmatprep.subr.mxu0 0.0
    %2328 = vmatpush1.msra.mxu0 0.0
    %2329 = vmatprep.subr.mxu0 0.0
    %2330 = vmatpush1.msra.mxu0 0.0
    %2331 = vmatprep.subr.mxu0 0.0
    %2332 = vmatpush1.msra.mxu0 0.0
    %2333 = vmatprep.subr.mxu0 0.0
    %2334 = vmatpush1.msra.mxu0 0.0
    %2335 = vmatprep.subr.mxu0 0.0
    %2336 = vmatpush1.msra.mxu0 0.0
    %2337 = vmatprep.subr.mxu0 0.0
    %2338 = vmatpush1.msra.mxu0 0.0
    %2339 = vmatprep.subr.mxu0 0.0
    %2340 = vmatpush1.msra.mxu0 0.0
    %2341 = vmatprep.subr.mxu0 0.0
    %2342 = vmatpush1.msra.mxu0 0.0
    %2343 = vmatprep.subr.mxu0 0.0
    %2344 = vmatpush1.msra.mxu0 0.0
    %2345 = vmatprep.subr.mxu0 0.0
    %2346 = vmatpush1.msra.mxu0 0.0
    %2347 = vmatprep.subr.mxu0 0.0
    %2348 = vmatpush1.msra.mxu0 0.0
    %2349 = vmatprep.subr.mxu0 0.0
    %2350 = vmatpush1.msra.mxu0 0.0
    %2351 = vmatprep.subr.mxu0 0.0
    %2352 = vmatpush1.msra.mxu0 0.0
    %2353 = vmatprep.subr.mxu0 0.0
    %2354 = vmatpush1.msra.mxu0 0.0
    %2355 = vmatprep.subr.mxu0 0.0
    %2356 = vmatpush1.msra.mxu0 0.0
    %2357 = vmatprep.subr.mxu0 0.0
    %2358 = vmatpush1.msra.mxu0 0.0
    %2359 = vmatprep.subr.mxu0 0.0
    %2360 = vmatpush1.msra.mxu0 0.0
    %2361 = vmatprep.subr.mxu0 0.0
    %2362 = vmatpush1.msra.mxu0 0.0
    %2363 = vmatprep.subr.mxu0 0.0
    %2364 = vmatpush1.msra.mxu0 0.0
    %2365 = vmatprep.subr.mxu0 0.0
    %2366 = vmatpush1.msra.mxu0 0.0
    %2367 = vmatprep.subr.mxu0 0.0
    %2368 = vmatpush1.msra.mxu0 0.0
    %2369 = vmatprep.subr.mxu0 0.0
    %2370 = vmatpush1.msra.mxu0 0.0
    %2371 = vmatprep.subr.mxu0 0.0
    %2372 = vmatpush1.msra.mxu0 0.0
    %2373 = vmatprep.subr.mxu0 0.0
    %2374 = vmatpush1.msra.mxu0 0.0
    %2375 = vmatprep.subr.mxu0 0.0
    %2376 = vmatpush1.msra.mxu0 0.0
    %2377 = vmatprep.subr.mxu0 0.0
    %2378 = vmatpush1.msra.mxu0 0.0
    %2379 = vmatprep.subr.mxu0 0.0
    %2380 = vmatpush1.msra.mxu0 0.0
    %2381 = vmatprep.subr.mxu0 0.0
    %2382 = vmatpush1.msra.mxu0 0.0
    %2383 = vmatprep.mubr.f32.mxu0 0.0
    %2384 = vmatmul.mubr.f32.gmra.mrb[0].mxu0 %v2246
    %v2385 = vpop.f32.mrb[0].mxu0
    %v2386 = vadd.f32 0.0, %v2385
    %v2387 = vpop.f32.mrb[0].mxu0
    %2388 = vdwg.mxu0
    %2389 = vmatprep.subr.mxu0 0.0
    %2390 = vmatpush1.msra.mxu0 %v179
    %2391 = vmatprep.subr.mxu0 0.0
    %2392 = vmatpush1.msra.mxu0 %v180
    %2393 = vmatprep.subr.mxu0 0.0
    %2394 = vmatpush1.msra.mxu0 %v181
    %2395 = vmatprep.subr.mxu0 0.0
    %2396 = vmatpush1.msra.mxu0 %v182
    %2397 = vmatprep.subr.mxu0 0.0
    %2398 = vmatpush1.msra.mxu0 0.0
    %2399 = vmatprep.subr.mxu0 0.0
    %2400 = vmatpush1.msra.mxu0 0.0
    %2401 = vmatprep.subr.mxu0 0.0
    %2402 = vmatpush1.msra.mxu0 0.0
    %2403 = vmatprep.subr.mxu0 0.0
    %2404 = vmatpush1.msra.mxu0 0.0
    %2405 = vmatprep.subr.mxu0 0.0
    %2406 = vmatpush1.msra.mxu0 0.0
    %2407 = vmatprep.subr.mxu0 0.0
    %2408 = vmatpush1.msra.mxu0 0.0
    %2409 = vmatprep.subr.mxu0 0.0
    %2410 = vmatpush1.msra.mxu0 0.0
    %2411 = vmatprep.subr.mxu0 0.0
    %2412 = vmatpush1.msra.mxu0 0.0
    %2413 = vmatprep.subr.mxu0 0.0
    %2414 = vmatpush1.msra.mxu0 0.0
    %2415 = vmatprep.subr.mxu0 0.0
    %2416 = vmatpush1.msra.mxu0 0.0
    %2417 = vmatprep.subr.mxu0 0.0
    %2418 = vmatpush1.msra.mxu0 0.0
    %2419 = vmatprep.subr.mxu0 0.0
    %2420 = vmatpush1.msra.mxu0 0.0
    %2421 = vmatprep.subr.mxu0 0.0
    %2422 = vmatpush1.msra.mxu0 0.0
    %2423 = vmatprep.subr.mxu0 0.0
    %2424 = vmatpush1.msra.mxu0 0.0
    %2425 = vmatprep.subr.mxu0 0.0
    %2426 = vmatpush1.msra.mxu0 0.0
    %2427 = vmatprep.subr.mxu0 0.0
    %2428 = vmatpush1.msra.mxu0 0.0
    %2429 = vmatprep.subr.mxu0 0.0
    %2430 = vmatpush1.msra.mxu0 0.0
    %2431 = vmatprep.subr.mxu0 0.0
    %2432 = vmatpush1.msra.mxu0 0.0
    %2433 = vmatprep.subr.mxu0 0.0
    %2434 = vmatpush1.msra.mxu0 0.0
    %2435 = vmatprep.subr.mxu0 0.0
    %2436 = vmatpush1.msra.mxu0 0.0
    %2437 = vmatprep.subr.mxu0 0.0
    %2438 = vmatpush1.msra.mxu0 0.0
    %2439 = vmatprep.subr.mxu0 0.0
    %2440 = vmatpush1.msra.mxu0 0.0
    %2441 = vmatprep.subr.mxu0 0.0
    %2442 = vmatpush1.msra.mxu0 0.0
    %2443 = vmatprep.subr.mxu0 0.0
    %2444 = vmatpush1.msra.mxu0 0.0
    %2445 = vmatprep.subr.mxu0 0.0
    %2446 = vmatpush1.msra.mxu0 0.0
    %2447 = vmatprep.subr.mxu0 0.0
    %2448 = vmatpush1.msra.mxu0 0.0
    %2449 = vmatprep.subr.mxu0 0.0
    %2450 = vmatpush1.msra.mxu0 0.0
    %2451 = vmatprep.subr.mxu0 0.0
    %2452 = vmatpush1.msra.mxu0 0.0
    %2453 = vmatprep.mubr.f32.mxu0 0.0
    %2454 = vmatmul.mubr.f32.gmra.mrb[0].mxu0 %v1236
    %v2455 = vpop.f32.mrb[0].mxu0
    %v2456 = vadd.f32 0.0, %v2455
    %v2457 = vpop.f32.mrb[0].mxu0
    %2458 = vdwg.mxu0
    %v2459 = vmul.f32 %v2315, %v293
    %v2460 = vmul.f32 %v298, %v2456
    %2461 = vmatprep.subr.mxu0 0.0
    %2462 = vmatpush1.msra.mxu0 %v243
    %2463 = vmatprep.subr.mxu0 0.0
    %2464 = vmatpush1.msra.mxu0 %v244
    %2465 = vmatprep.subr.mxu0 0.0
    %2466 = vmatpush1.msra.mxu0 %v245
    %2467 = vmatprep.subr.mxu0 0.0
    %2468 = vmatpush1.msra.mxu0 %v246
    %2469 = vmatprep.subr.mxu0 0.0
    %2470 = vmatpush1.msra.mxu0 %v247
    %2471 = vmatprep.subr.mxu0 0.0
    %2472 = vmatpush1.msra.mxu0 %v248
    %2473 = vmatprep.subr.mxu0 0.0
    %2474 = vmatpush1.msra.mxu0 %v249
    %2475 = vmatprep.subr.mxu0 0.0
    %2476 = vmatpush1.msra.mxu0 %v250
    %2477 = vmatprep.subr.mxu0 0.0
    %2478 = vmatpush1.msra.mxu0 %v251
    %2479 = vmatprep.subr.mxu0 0.0
    %2480 = vmatpush1.msra.mxu0 %v252
    %2481 = vmatprep.subr.mxu0 0.0
    %2482 = vmatpush1.msra.mxu0 %v253
    %2483 = vmatprep.subr.mxu0 0.0
    %2484 = vmatpush1.msra.mxu0 %v254
    %2485 = vmatprep.subr.mxu0 0.0
    %2486 = vmatpush1.msra.mxu0 %v255
    %2487 = vmatprep.subr.mxu0 0.0
    %2488 = vmatpush1.msra.mxu0 %v256
    %2489 = vmatprep.subr.mxu0 0.0
    %2490 = vmatpush1.msra.mxu0 %v257
    %2491 = vmatprep.subr.mxu0 0.0
    %2492 = vmatpush1.msra.mxu0 %v258
    %2493 = vmatprep.subr.mxu0 0.0
    %2494 = vmatpush1.msra.mxu0 0.0
    %2495 = vmatprep.subr.mxu0 0.0
    %2496 = vmatpush1.msra.mxu0 0.0
    %2497 = vmatprep.subr.mxu0 0.0
    %2498 = vmatpush1.msra.mxu0 0.0
    %2499 = vmatprep.subr.mxu0 0.0
    %2500 = vmatpush1.msra.mxu0 0.0
    %2501 = vmatprep.subr.mxu0 0.0
    %2502 = vmatpush1.msra.mxu0 0.0
    %2503 = vmatprep.subr.mxu0 0.0
    %2504 = vmatpush1.msra.mxu0 0.0
    %2505 = vmatprep.subr.mxu0 0.0
    %2506 = vmatpush1.msra.mxu0 0.0
    %2507 = vmatprep.subr.mxu0 0.0
    %2508 = vmatpush1.msra.mxu0 0.0
    %2509 = vmatprep.subr.mxu0 0.0
    %2510 = vmatpush1.msra.mxu0 0.0
    %2511 = vmatprep.subr.mxu0 0.0
    %2512 = vmatpush1.msra.mxu0 0.0
    %2513 = vmatprep.subr.mxu0 0.0
    %2514 = vmatpush1.msra.mxu0 0.0
    %2515 = vmatprep.subr.mxu0 0.0
    %2516 = vmatpush1.msra.mxu0 0.0
    %2517 = vmatprep.subr.mxu0 0.0
    %2518 = vmatpush1.msra.mxu0 0.0
    %2519 = vmatprep.subr.mxu0 0.0
    %2520 = vmatpush1.msra.mxu0 0.0
    %2521 = vmatprep.subr.mxu0 0.0
    %2522 = vmatpush1.msra.mxu0 0.0
    %2523 = vmatprep.subr.mxu0 0.0
    %2524 = vmatpush1.msra.mxu0 0.0
    %2525 = vmatprep.mubr.f32.mxu0 0.0
    %2526 = vmatmul.mubr.f32.gmra.mrb[0].mxu0 %v2460
    %v2527 = vpop.f32.mrb[0].mxu0
    %v2528 = vadd.f32 0.0, %v2527
    %v2529 = vpop.f32.mrb[0].mxu0
    %2530 = vdwg.mxu0
    %2531 = vmatprep.subr.mxu0 0.0
    %2532 = vmatpush1.msra.mxu0 %v193
    %2533 = vmatprep.subr.mxu0 0.0
    %2534 = vmatpush1.msra.mxu0 %v194
    %2535 = vmatprep.subr.mxu0 0.0
    %2536 = vmatpush1.msra.mxu0 %v195
    %2537 = vmatprep.subr.mxu0 0.0
    %2538 = vmatpush1.msra.mxu0 %v196
    %2539 = vmatprep.subr.mxu0 0.0
    %2540 = vmatpush1.msra.mxu0 %v197
    %2541 = vmatprep.subr.mxu0 0.0
    %2542 = vmatpush1.msra.mxu0 %v198
    %2543 = vmatprep.subr.mxu0 0.0
    %2544 = vmatpush1.msra.mxu0 %v199
    %2545 = vmatprep.subr.mxu0 0.0
    %2546 = vmatpush1.msra.mxu0 %v200
    %2547 = vmatprep.subr.mxu0 0.0
    %2548 = vmatpush1.msra.mxu0 %v201
    %2549 = vmatprep.subr.mxu0 0.0
    %2550 = vmatpush1.msra.mxu0 %v202
    %2551 = vmatprep.subr.mxu0 0.0
    %2552 = vmatpush1.msra.mxu0 %v203
    %2553 = vmatprep.subr.mxu0 0.0
    %2554 = vmatpush1.msra.mxu0 %v204
    %2555 = vmatprep.subr.mxu0 0.0
    %2556 = vmatpush1.msra.mxu0 %v205
    %2557 = vmatprep.subr.mxu0 0.0
    %2558 = vmatpush1.msra.mxu0 %v206
    %2559 = vmatprep.subr.mxu0 0.0
    %2560 = vmatpush1.msra.mxu0 %v207
    %2561 = vmatprep.subr.mxu0 0.0
    %2562 = vmatpush1.msra.mxu0 %v208
    %2563 = vmatprep.subr.mxu0 0.0
    %2564 = vmatpush1.msra.mxu0 0.0
    %2565 = vmatprep.subr.mxu0 0.0
    %2566 = vmatpush1.msra.mxu0 0.0
    %2567 = vmatprep.subr.mxu0 0.0
    %2568 = vmatpush1.msra.mxu0 0.0
    %2569 = vmatprep.subr.mxu0 0.0
    %2570 = vmatpush1.msra.mxu0 0.0
    %2571 = vmatprep.subr.mxu0 0.0
    %2572 = vmatpush1.msra.mxu0 0.0
    %2573 = vmatprep.subr.mxu0 0.0
    %2574 = vmatpush1.msra.mxu0 0.0
    %2575 = vmatprep.subr.mxu0 0.0
    %2576 = vmatpush1.msra.mxu0 0.0
    %2577 = vmatprep.subr.mxu0 0.0
    %2578 = vmatpush1.msra.mxu0 0.0
    %2579 = vmatprep.subr.mxu0 0.0
    %2580 = vmatpush1.msra.mxu0 0.0
    %2581 = vmatprep.subr.mxu0 0.0
    %2582 = vmatpush1.msra.mxu0 0.0
    %2583 = vmatprep.subr.mxu0 0.0
    %2584 = vmatpush1.msra.mxu0 0.0
    %2585 = vmatprep.subr.mxu0 0.0
    %2586 = vmatpush1.msra.mxu0 0.0
    %2587 = vmatprep.subr.mxu0 0.0
    %2588 = vmatpush1.msra.mxu0 0.0
    %2589 = vmatprep.subr.mxu0 0.0
    %2590 = vmatpush1.msra.mxu0 0.0
    %2591 = vmatprep.subr.mxu0 0.0
    %2592 = vmatpush1.msra.mxu0 0.0
    %2593 = vmatprep.subr.mxu0 0.0
    %2594 = vmatpush1.msra.mxu0 0.0
    %2595 = vmatprep.mubr.f32.mxu0 0.0
    %2596 = vmatmul.mubr.f32.gmra.mrb[0].mxu0 %v2459
    %v2597 = vpop.f32.mrb[0].mxu0
    %v2598 = vadd.f32 %v2528, %v2597
    %v2599 = vpop.f32.mrb[0].mxu0
    %2600 = vdwg.mxu0
    %v2601 = vadd.f32 %v2598, %v303
    %v2602 = vxor.u32 %v2601, 2147483648
    %v2603 = vmul.f32 %v2602, 1.442695
    %v2604 = vpow.pop %v2603
    %v2605 = vadd.f32 %v2604, 1.0
    %v2606 = vrcp.pop %v2605
    %v2607 = vmul.f32 1.0, %v2606
    %v2608 = vtanh.pop %v2601
    %v2609 = vmul.f32 %v2607, %v752
    %2611 = vrot.lane.b32.xlu0 %v2608, 32
    %v2612 = vpop.permute.xlu0 %2611
    %v2614 = vmul.f32 %v2607, %v2612
    %2616 = vrot.lane.b32.xlu0 %v2614, 32
    %v2617 = vpop.permute.xlu0 %2616
    %v2619 = vadd.f32 %v2609, %v2617
    %v2620 = vtanh.pop %v2619
    %2622 = vrot.lane.b32.xlu0 %v2620, 32
    %v2623 = vpop.permute.xlu0 %2622
    %v2625 = vmul.f32 %v2607, %v2623
    %2626 = vmatprep.subr.mxu0 0.0
    %2627 = vmatpush1.msra.mxu0 %v184
    %2628 = vmatprep.subr.mxu0 0.0
    %2629 = vmatpush1.msra.mxu0 %v185
    %2630 = vmatprep.subr.mxu0 0.0
    %2631 = vmatpush1.msra.mxu0 %v186
    %2632 = vmatprep.subr.mxu0 0.0
    %2633 = vmatpush1.msra.mxu0 %v187
    %2634 = vmatprep.subr.mxu0 0.0
    %2635 = vmatpush1.msra.mxu0 0.0
    %2636 = vmatprep.subr.mxu0 0.0
    %2637 = vmatpush1.msra.mxu0 0.0
    %2638 = vmatprep.subr.mxu0 0.0
    %2639 = vmatpush1.msra.mxu0 0.0
    %2640 = vmatprep.subr.mxu0 0.0
    %2641 = vmatpush1.msra.mxu0 0.0
    %2642 = vmatprep.subr.mxu0 0.0
    %2643 = vmatpush1.msra.mxu0 0.0
    %2644 = vmatprep.subr.mxu0 0.0
    %2645 = vmatpush1.msra.mxu0 0.0
    %2646 = vmatprep.subr.mxu0 0.0
    %2647 = vmatpush1.msra.mxu0 0.0
    %2648 = vmatprep.subr.mxu0 0.0
    %2649 = vmatpush1.msra.mxu0 0.0
    %2650 = vmatprep.subr.mxu0 0.0
    %2651 = vmatpush1.msra.mxu0 0.0
    %2652 = vmatprep.subr.mxu0 0.0
    %2653 = vmatpush1.msra.mxu0 0.0
    %2654 = vmatprep.subr.mxu0 0.0
    %2655 = vmatpush1.msra.mxu0 0.0
    %2656 = vmatprep.subr.mxu0 0.0
    %2657 = vmatpush1.msra.mxu0 0.0
    %2658 = vmatprep.subr.mxu0 0.0
    %2659 = vmatpush1.msra.mxu0 0.0
    %2660 = vmatprep.subr.mxu0 0.0
    %2661 = vmatpush1.msra.mxu0 0.0
    %2662 = vmatprep.subr.mxu0 0.0
    %2663 = vmatpush1.msra.mxu0 0.0
    %2664 = vmatprep.subr.mxu0 0.0
    %2665 = vmatpush1.msra.mxu0 0.0
    %2666 = vmatprep.subr.mxu0 0.0
    %2667 = vmatpush1.msra.mxu0 0.0
    %2668 = vmatprep.subr.mxu0 0.0
    %2669 = vmatpush1.msra.mxu0 0.0
    %2670 = vmatprep.subr.mxu0 0.0
    %2671 = vmatpush1.msra.mxu0 0.0
    %2672 = vmatprep.subr.mxu0 0.0
    %2673 = vmatpush1.msra.mxu0 0.0
    %2674 = vmatprep.subr.mxu0 0.0
    %2675 = vmatpush1.msra.mxu0 0.0
    %2676 = vmatprep.subr.mxu0 0.0
    %2677 = vmatpush1.msra.mxu0 0.0
    %2678 = vmatprep.subr.mxu0 0.0
    %2679 = vmatpush1.msra.mxu0 0.0
    %2680 = vmatprep.subr.mxu0 0.0
    %2681 = vmatpush1.msra.mxu0 0.0
    %2682 = vmatprep.subr.mxu0 0.0
    %2683 = vmatpush1.msra.mxu0 0.0
    %2684 = vmatprep.subr.mxu0 0.0
    %2685 = vmatpush1.msra.mxu0 0.0
    %2686 = vmatprep.subr.mxu0 0.0
    %2687 = vmatpush1.msra.mxu0 0.0
    %2688 = vmatprep.subr.mxu0 0.0
    %2689 = vmatpush1.msra.mxu0 0.0
    %2690 = vmatprep.mubr.f32.mxu0 0.0
    %2691 = vmatmul.mubr.f32.gmra.mrb[0].mxu0 %v1461
    %v2692 = vpop.f32.mrb[0].mxu0
    %v2693 = vadd.f32 0.0, %v2692
    %v2694 = vpop.f32.mrb[0].mxu0
    %2695 = vdwg.mxu0
    %v2696 = vmul.f32 %v2317, %v295
    %v2697 = vmul.f32 %v300, %v2693
    %2698 = vmatprep.subr.mxu0 0.0
    %2699 = vmatpush1.msra.mxu0 %v260
    %2700 = vmatprep.subr.mxu0 0.0
    %2701 = vmatpush1.msra.mxu0 %v261
    %2702 = vmatprep.subr.mxu0 0.0
    %2703 = vmatpush1.msra.mxu0 %v262
    %2704 = vmatprep.subr.mxu0 0.0
    %2705 = vmatpush1.msra.mxu0 %v263
    %2706 = vmatprep.subr.mxu0 0.0
    %2707 = vmatpush1.msra.mxu0 %v264
    %2708 = vmatprep.subr.mxu0 0.0
    %2709 = vmatpush1.msra.mxu0 %v265
    %2710 = vmatprep.subr.mxu0 0.0
    %2711 = vmatpush1.msra.mxu0 %v266
    %2712 = vmatprep.subr.mxu0 0.0
    %2713 = vmatpush1.msra.mxu0 %v267
    %2714 = vmatprep.subr.mxu0 0.0
    %2715 = vmatpush1.msra.mxu0 %v268
    %2716 = vmatprep.subr.mxu0 0.0
    %2717 = vmatpush1.msra.mxu0 %v269
    %2718 = vmatprep.subr.mxu0 0.0
    %2719 = vmatpush1.msra.mxu0 %v270
    %2720 = vmatprep.subr.mxu0 0.0
    %2721 = vmatpush1.msra.mxu0 %v271
    %2722 = vmatprep.subr.mxu0 0.0
    %2723 = vmatpush1.msra.mxu0 %v272
    %2724 = vmatprep.subr.mxu0 0.0
    %2725 = vmatpush1.msra.mxu0 %v273
    %2726 = vmatprep.subr.mxu0 0.0
    %2727 = vmatpush1.msra.mxu0 %v274
    %2728 = vmatprep.subr.mxu0 0.0
    %2729 = vmatpush1.msra.mxu0 %v275
    %2730 = vmatprep.subr.mxu0 0.0
    %2731 = vmatpush1.msra.mxu0 0.0
    %2732 = vmatprep.subr.mxu0 0.0
    %2733 = vmatpush1.msra.mxu0 0.0
    %2734 = vmatprep.subr.mxu0 0.0
    %2735 = vmatpush1.msra.mxu0 0.0
    %2736 = vmatprep.subr.mxu0 0.0
    %2737 = vmatpush1.msra.mxu0 0.0
    %2738 = vmatprep.subr.mxu0 0.0
    %2739 = vmatpush1.msra.mxu0 0.0
    %2740 = vmatprep.subr.mxu0 0.0
    %2741 = vmatpush1.msra.mxu0 0.0
    %2742 = vmatprep.subr.mxu0 0.0
    %2743 = vmatpush1.msra.mxu0 0.0
    %2744 = vmatprep.subr.mxu0 0.0
    %2745 = vmatpush1.msra.mxu0 0.0
    %2746 = vmatprep.subr.mxu0 0.0
    %2747 = vmatpush1.msra.mxu0 0.0
    %2748 = vmatprep.subr.mxu0 0.0
    %2749 = vmatpush1.msra.mxu0 0.0
    %2750 = vmatprep.subr.mxu0 0.0
    %2751 = vmatpush1.msra.mxu0 0.0
    %2752 = vmatprep.subr.mxu0 0.0
    %2753 = vmatpush1.msra.mxu0 0.0
    %2754 = vmatprep.subr.mxu0 0.0
    %2755 = vmatpush1.msra.mxu0 0.0
    %2756 = vmatprep.subr.mxu0 0.0
    %2757 = vmatpush1.msra.mxu0 0.0
    %2758 = vmatprep.subr.mxu0 0.0
    %2759 = vmatpush1.msra.mxu0 0.0
    %2760 = vmatprep.subr.mxu0 0.0
    %2761 = vmatpush1.msra.mxu0 0.0
    %2762 = vmatprep.mubr.f32.mxu0 0.0
    %2763 = vmatmul.mubr.f32.gmra.mrb[0].mxu0 %v2697
    %v2764 = vpop.f32.mrb[0].mxu0
    %v2765 = vadd.f32 0.0, %v2764
    %v2766 = vpop.f32.mrb[0].mxu0
    %2767 = vdwg.mxu0
    %2768 = vmatprep.subr.mxu0 0.0
    %2769 = vmatpush1.msra.mxu0 %v210
    %2770 = vmatprep.subr.mxu0 0.0
    %2771 = vmatpush1.msra.mxu0 %v211
    %2772 = vmatprep.subr.mxu0 0.0
    %2773 = vmatpush1.msra.mxu0 %v212
    %2774 = vmatprep.subr.mxu0 0.0
    %2775 = vmatpush1.msra.mxu0 %v213
    %2776 = vmatprep.subr.mxu0 0.0
    %2777 = vmatpush1.msra.mxu0 %v214
    %2778 = vmatprep.subr.mxu0 0.0
    %2779 = vmatpush1.msra.mxu0 %v215
    %2780 = vmatprep.subr.mxu0 0.0
    %2781 = vmatpush1.msra.mxu0 %v216
    %2782 = vmatprep.subr.mxu0 0.0
    %2783 = vmatpush1.msra.mxu0 %v217
    %2784 = vmatprep.subr.mxu0 0.0
    %2785 = vmatpush1.msra.mxu0 %v218
    %2786 = vmatprep.subr.mxu0 0.0
    %2787 = vmatpush1.msra.mxu0 %v219
    %2788 = vmatprep.subr.mxu0 0.0
    %2789 = vmatpush1.msra.mxu0 %v220
    %2790 = vmatprep.subr.mxu0 0.0
    %2791 = vmatpush1.msra.mxu0 %v221
    %2792 = vmatprep.subr.mxu0 0.0
    %2793 = vmatpush1.msra.mxu0 %v222
    %2794 = vmatprep.subr.mxu0 0.0
    %2795 = vmatpush1.msra.mxu0 %v223
    %2796 = vmatprep.subr.mxu0 0.0
    %2797 = vmatpush1.msra.mxu0 %v224
    %2798 = vmatprep.subr.mxu0 0.0
    %2799 = vmatpush1.msra.mxu0 %v225
    %2800 = vmatprep.subr.mxu0 0.0
    %2801 = vmatpush1.msra.mxu0 0.0
    %2802 = vmatprep.subr.mxu0 0.0
    %2803 = vmatpush1.msra.mxu0 0.0
    %2804 = vmatprep.subr.mxu0 0.0
    %2805 = vmatpush1.msra.mxu0 0.0
    %2806 = vmatprep.subr.mxu0 0.0
    %2807 = vmatpush1.msra.mxu0 0.0
    %2808 = vmatprep.subr.mxu0 0.0
    %2809 = vmatpush1.msra.mxu0 0.0
    %2810 = vmatprep.subr.mxu0 0.0
    %2811 = vmatpush1.msra.mxu0 0.0
    %2812 = vmatprep.subr.mxu0 0.0
    %2813 = vmatpush1.msra.mxu0 0.0
    %2814 = vmatprep.subr.mxu0 0.0
    %2815 = vmatpush1.msra.mxu0 0.0
    %2816 = vmatprep.subr.mxu0 0.0
    %2817 = vmatpush1.msra.mxu0 0.0
    %2818 = vmatprep.subr.mxu0 0.0
    %2819 = vmatpush1.msra.mxu0 0.0
    %2820 = vmatprep.subr.mxu0 0.0
    %2821 = vmatpush1.msra.mxu0 0.0
    %2822 = vmatprep.subr.mxu0 0.0
    %2823 = vmatpush1.msra.mxu0 0.0
    %2824 = vmatprep.subr.mxu0 0.0
    %2825 = vmatpush1.msra.mxu0 0.0
    %2826 = vmatprep.subr.mxu0 0.0
    %2827 = vmatpush1.msra.mxu0 0.0
    %2828 = vmatprep.subr.mxu0 0.0
    %2829 = vmatpush1.msra.mxu0 0.0
    %2830 = vmatprep.subr.mxu0 0.0
    %2831 = vmatpush1.msra.mxu0 0.0
    %2832 = vmatprep.mubr.f32.mxu0 0.0
    %2833 = vmatmul.mubr.f32.gmra.mrb[0].mxu0 %v2696
    %v2834 = vpop.f32.mrb[0].mxu0
    %v2835 = vadd.f32 %v2765, %v2834
    %v2836 = vpop.f32.mrb[0].mxu0
    %2837 = vdwg.mxu0
    %v2838 = vadd.f32 %v2835, %v305
    %v2839 = vxor.u32 %v2838, 2147483648
    %v2840 = vmul.f32 %v2839, 1.442695
    %v2841 = vpow.pop %v2840
    %v2842 = vadd.f32 %v2841, 1.0
    %v2843 = vrcp.pop %v2842
    %v2844 = vmul.f32 1.0, %v2843
    %v2845 = vtanh.pop %v2838
    %v2846 = vmul.f32 %v2844, %v989
    %2848 = vrot.lane.b32.xlu0 %v2845, 32
    %v2849 = vpop.permute.xlu0 %2848
    %v2851 = vmul.f32 %v2844, %v2849
    %2853 = vrot.lane.b32.xlu0 %v2851, 32
    %v2854 = vpop.permute.xlu0 %2853
    %v2856 = vadd.f32 %v2846, %v2854
    %v2857 = vtanh.pop %v2856
    %2859 = vrot.lane.b32.xlu0 %v2857, 32
    %v2860 = vpop.permute.xlu0 %2859
    %v2862 = vmul.f32 %v2844, %v2860
    %2863 = vmatprep.subr.mxu0 0.0
    %2864 = vmatpush1.msra.mxu0 %v189
    %2865 = vmatprep.subr.mxu0 0.0
    %2866 = vmatpush1.msra.mxu0 %v190
    %2867 = vmatprep.subr.mxu0 0.0
    %2868 = vmatpush1.msra.mxu0 %v191
    %2869 = vmatprep.subr.mxu0 0.0
    %2870 = vmatpush1.msra.mxu0 %v192
    %2871 = vmatprep.subr.mxu0 0.0
    %2872 = vmatpush1.msra.mxu0 0.0
    %2873 = vmatprep.subr.mxu0 0.0
    %2874 = vmatpush1.msra.mxu0 0.0
    %2875 = vmatprep.subr.mxu0 0.0
    %2876 = vmatpush1.msra.mxu0 0.0
    %2877 = vmatprep.subr.mxu0 0.0
    %2878 = vmatpush1.msra.mxu0 0.0
    %2879 = vmatprep.subr.mxu0 0.0
    %2880 = vmatpush1.msra.mxu0 0.0
    %2881 = vmatprep.subr.mxu0 0.0
    %2882 = vmatpush1.msra.mxu0 0.0
    %2883 = vmatprep.subr.mxu0 0.0
    %2884 = vmatpush1.msra.mxu0 0.0
    %2885 = vmatprep.subr.mxu0 0.0
    %2886 = vmatpush1.msra.mxu0 0.0
    %2887 = vmatprep.subr.mxu0 0.0
    %2888 = vmatpush1.msra.mxu0 0.0
    %2889 = vmatprep.subr.mxu0 0.0
    %2890 = vmatpush1.msra.mxu0 0.0
    %2891 = vmatprep.subr.mxu0 0.0
    %2892 = vmatpush1.msra.mxu0 0.0
    %2893 = vmatprep.subr.mxu0 0.0
    %2894 = vmatpush1.msra.mxu0 0.0
    %2895 = vmatprep.subr.mxu0 0.0
    %2896 = vmatpush1.msra.mxu0 0.0
    %2897 = vmatprep.subr.mxu0 0.0
    %2898 = vmatpush1.msra.mxu0 0.0
    %2899 = vmatprep.subr.mxu0 0.0
    %2900 = vmatpush1.msra.mxu0 0.0
    %2901 = vmatprep.subr.mxu0 0.0
    %2902 = vmatpush1.msra.mxu0 0.0
    %2903 = vmatprep.subr.mxu0 0.0
    %2904 = vmatpush1.msra.mxu0 0.0
    %2905 = vmatprep.subr.mxu0 0.0
    %2906 = vmatpush1.msra.mxu0 0.0
    %2907 = vmatprep.subr.mxu0 0.0
    %2908 = vmatpush1.msra.mxu0 0.0
    %2909 = vmatprep.subr.mxu0 0.0
    %2910 = vmatpush1.msra.mxu0 0.0
    %2911 = vmatprep.subr.mxu0 0.0
    %2912 = vmatpush1.msra.mxu0 0.0
    %2913 = vmatprep.subr.mxu0 0.0
    %2914 = vmatpush1.msra.mxu0 0.0
    %2915 = vmatprep.subr.mxu0 0.0
    %2916 = vmatpush1.msra.mxu0 0.0
    %2917 = vmatprep.subr.mxu0 0.0
    %2918 = vmatpush1.msra.mxu0 0.0
    %2919 = vmatprep.subr.mxu0 0.0
    %2920 = vmatpush1.msra.mxu0 0.0
    %2921 = vmatprep.subr.mxu0 0.0
    %2922 = vmatpush1.msra.mxu0 0.0
    %2923 = vmatprep.subr.mxu0 0.0
    %2924 = vmatpush1.msra.mxu0 0.0
    %2925 = vmatprep.subr.mxu0 0.0
    %2926 = vmatpush1.msra.mxu0 0.0
    %2927 = vmatprep.mubr.f32.mxu0 0.0
    %2928 = vmatmul.mubr.f32.gmra.mrb[0].mxu0 %v1683
    %v2929 = vpop.f32.mrb[0].mxu0
    %v2930 = vadd.f32 0.0, %v2929
    %v2931 = vpop.f32.mrb[0].mxu0
    %2932 = vdwg.mxu0
    %v2933 = vmul.f32 %v2386, %v297
    %v2934 = vmul.f32 %v302, %v2930
    %2935 = vmatprep.subr.mxu0 0.0
    %2936 = vmatpush1.msra.mxu0 %v277
    %2937 = vmatprep.subr.mxu0 0.0
    %2938 = vmatpush1.msra.mxu0 %v278
    %2939 = vmatprep.subr.mxu0 0.0
    %2940 = vmatpush1.msra.mxu0 %v279
    %2941 = vmatprep.subr.mxu0 0.0
    %2942 = vmatpush1.msra.mxu0 %v280
    %2943 = vmatprep.subr.mxu0 0.0
    %2944 = vmatpush1.msra.mxu0 %v281
    %2945 = vmatprep.subr.mxu0 0.0
    %2946 = vmatpush1.msra.mxu0 %v282
    %2947 = vmatprep.subr.mxu0 0.0
    %2948 = vmatpush1.msra.mxu0 %v283
    %2949 = vmatprep.subr.mxu0 0.0
    %2950 = vmatpush1.msra.mxu0 %v284
    %2951 = vmatprep.subr.mxu0 0.0
    %2952 = vmatpush1.msra.mxu0 %v285
    %2953 = vmatprep.subr.mxu0 0.0
    %2954 = vmatpush1.msra.mxu0 %v286
    %2955 = vmatprep.subr.mxu0 0.0
    %2956 = vmatpush1.msra.mxu0 %v287
    %2957 = vmatprep.subr.mxu0 0.0
    %2958 = vmatpush1.msra.mxu0 %v288
    %2959 = vmatprep.subr.mxu0 0.0
    %2960 = vmatpush1.msra.mxu0 %v289
    %2961 = vmatprep.subr.mxu0 0.0
    %2962 = vmatpush1.msra.mxu0 %v290
    %2963 = vmatprep.subr.mxu0 0.0
    %2964 = vmatpush1.msra.mxu0 %v291
    %2965 = vmatprep.subr.mxu0 0.0
    %2966 = vmatpush1.msra.mxu0 %v292
    %2967 = vmatprep.subr.mxu0 0.0
    %2968 = vmatpush1.msra.mxu0 0.0
    %2969 = vmatprep.subr.mxu0 0.0
    %2970 = vmatpush1.msra.mxu0 0.0
    %2971 = vmatprep.subr.mxu0 0.0
    %2972 = vmatpush1.msra.mxu0 0.0
    %2973 = vmatprep.subr.mxu0 0.0
    %2974 = vmatpush1.msra.mxu0 0.0
    %2975 = vmatprep.subr.mxu0 0.0
    %2976 = vmatpush1.msra.mxu0 0.0
    %2977 = vmatprep.subr.mxu0 0.0
    %2978 = vmatpush1.msra.mxu0 0.0
    %2979 = vmatprep.subr.mxu0 0.0
    %2980 = vmatpush1.msra.mxu0 0.0
    %2981 = vmatprep.subr.mxu0 0.0
    %2982 = vmatpush1.msra.mxu0 0.0
    %2983 = vmatprep.subr.mxu0 0.0
    %2984 = vmatpush1.msra.mxu0 0.0
    %2985 = vmatprep.subr.mxu0 0.0
    %2986 = vmatpush1.msra.mxu0 0.0
    %2987 = vmatprep.subr.mxu0 0.0
    %2988 = vmatpush1.msra.mxu0 0.0
    %2989 = vmatprep.subr.mxu0 0.0
    %2990 = vmatpush1.msra.mxu0 0.0
    %2991 = vmatprep.subr.mxu0 0.0
    %2992 = vmatpush1.msra.mxu0 0.0
    %2993 = vmatprep.subr.mxu0 0.0
    %2994 = vmatpush1.msra.mxu0 0.0
    %2995 = vmatprep.subr.mxu0 0.0
    %2996 = vmatpush1.msra.mxu0 0.0
    %2997 = vmatprep.subr.mxu0 0.0
    %2998 = vmatpush1.msra.mxu0 0.0
    %2999 = vmatprep.mubr.f32.mxu0 0.0
    %3000 = vmatmul.mubr.f32.gmra.mrb[0].mxu0 %v2934
    %v3001 = vpop.f32.mrb[0].mxu0
    %v3002 = vadd.f32 0.0, %v3001
    %v3003 = vpop.f32.mrb[0].mxu0
    %3004 = vdwg.mxu0
    %3005 = vmatprep.subr.mxu0 0.0
    %3006 = vmatpush1.msra.mxu0 %v227
    %3007 = vmatprep.subr.mxu0 0.0
    %3008 = vmatpush1.msra.mxu0 %v228
    %3009 = vmatprep.subr.mxu0 0.0
    %3010 = vmatpush1.msra.mxu0 %v229
    %3011 = vmatprep.subr.mxu0 0.0
    %3012 = vmatpush1.msra.mxu0 %v230
    %3013 = vmatprep.subr.mxu0 0.0
    %3014 = vmatpush1.msra.mxu0 %v231
    %3015 = vmatprep.subr.mxu0 0.0
    %3016 = vmatpush1.msra.mxu0 %v232
    %3017 = vmatprep.subr.mxu0 0.0
    %3018 = vmatpush1.msra.mxu0 %v233
    %3019 = vmatprep.subr.mxu0 0.0
    %3020 = vmatpush1.msra.mxu0 %v234
    %3021 = vmatprep.subr.mxu0 0.0
    %3022 = vmatpush1.msra.mxu0 %v235
    %3023 = vmatprep.subr.mxu0 0.0
    %3024 = vmatpush1.msra.mxu0 %v236
    %3025 = vmatprep.subr.mxu0 0.0
    %3026 = vmatpush1.msra.mxu0 %v237
    %3027 = vmatprep.subr.mxu0 0.0
    %3028 = vmatpush1.msra.mxu0 %v238
    %3029 = vmatprep.subr.mxu0 0.0
    %3030 = vmatpush1.msra.mxu0 %v239
    %3031 = vmatprep.subr.mxu0 0.0
    %3032 = vmatpush1.msra.mxu0 %v240
    %3033 = vmatprep.subr.mxu0 0.0
    %3034 = vmatpush1.msra.mxu0 %v241
    %3035 = vmatprep.subr.mxu0 0.0
    %3036 = vmatpush1.msra.mxu0 %v242
    %3037 = vmatprep.subr.mxu0 0.0
    %3038 = vmatpush1.msra.mxu0 0.0
    %3039 = vmatprep.subr.mxu0 0.0
    %3040 = vmatpush1.msra.mxu0 0.0
    %3041 = vmatprep.subr.mxu0 0.0
    %3042 = vmatpush1.msra.mxu0 0.0
    %3043 = vmatprep.subr.mxu0 0.0
    %3044 = vmatpush1.msra.mxu0 0.0
    %3045 = vmatprep.subr.mxu0 0.0
    %3046 = vmatpush1.msra.mxu0 0.0
    %3047 = vmatprep.subr.mxu0 0.0
    %3048 = vmatpush1.msra.mxu0 0.0
    %3049 = vmatprep.subr.mxu0 0.0
    %3050 = vmatpush1.msra.mxu0 0.0
    %3051 = vmatprep.subr.mxu0 0.0
    %3052 = vmatpush1.msra.mxu0 0.0
    %3053 = vmatprep.subr.mxu0 0.0
    %3054 = vmatpush1.msra.mxu0 0.0
    %3055 = vmatprep.subr.mxu0 0.0
    %3056 = vmatpush1.msra.mxu0 0.0
    %3057 = vmatprep.subr.mxu0 0.0
    %3058 = vmatpush1.msra.mxu0 0.0
    %3059 = vmatprep.subr.mxu0 0.0
    %3060 = vmatpush1.msra.mxu0 0.0
    %3061 = vmatprep.subr.mxu0 0.0
    %3062 = vmatpush1.msra.mxu0 0.0
    %3063 = vmatprep.subr.mxu0 0.0
    %3064 = vmatpush1.msra.mxu0 0.0
    %3065 = vmatprep.subr.mxu0 0.0
    %3066 = vmatpush1.msra.mxu0 0.0
    %3067 = vmatprep.subr.mxu0 0.0
    %3068 = vmatpush1.msra.mxu0 0.0
    %3069 = vmatprep.mubr.f32.mxu0 0.0
    %3070 = vmatmul.mubr.f32.gmra.mrb[0].mxu0 %v2933
    %v3071 = vpop.f32.mrb[0].mxu0
    %v3072 = vadd.f32 %v3002, %v3071
    %v3073 = vpop.f32.mrb[0].mxu0
    %3074 = vdwg.mxu0
    %v3075 = vadd.f32 %v3072, %v307
    %v3076 = vxor.u32 %v3075, 2147483648
    %v3077 = vmul.f32 %v3076, 1.442695
    %v3078 = vpow.pop %v3077
    %v3079 = vadd.f32 %v3078, 1.0
    %v3080 = vrcp.pop %v3079
    %v3081 = vmul.f32 1.0, %v3080
    %v3082 = vtanh.pop %v3075
    %v3083 = vmul.f32 %v3081, %v1226
    %3085 = vrot.lane.b32.xlu0 %v3082, 32
    %v3086 = vpop.permute.xlu0 %3085
    %v3088 = vmul.f32 %v3081, %v3086
    %3090 = vrot.lane.b32.xlu0 %v3088, 32
    %v3091 = vpop.permute.xlu0 %3090
    %v3093 = vadd.f32 %v3083, %v3091
    %v3094 = vtanh.pop %v3093
    %3096 = vrot.lane.b32.xlu0 %v3094, 32
    %v3097 = vpop.permute.xlu0 %3096
    %v3099 = vmul.f32 %v3081, %v3097
    %3101 = vrot.lane.b32.xlu0 %v2625, 64
    %v3102 = vpop.permute.xlu0 %3101
    %v3103 = vsel %vm370, %v3102, 0
    %3105 = vmatprep.subr.mxu0 0.0
    %3106 = vmatpush1.msra.mxu0 %v314
    %3107 = vmatprep.subr.mxu0 0.0
    %3108 = vmatpush1.msra.mxu0 %v315
    %3109 = vmatprep.subr.mxu0 0.0
    %3110 = vmatpush1.msra.mxu0 %v316
    %3111 = vmatprep.subr.mxu0 0.0
    %3112 = vmatpush1.msra.mxu0 %v317
    %3113 = vmatprep.subr.mxu0 0.0
    %3114 = vmatpush1.msra.mxu0 0.0
    %3115 = vmatprep.subr.mxu0 0.0
    %3116 = vmatpush1.msra.mxu0 0.0
    %3117 = vmatprep.subr.mxu0 0.0
    %3118 = vmatpush1.msra.mxu0 0.0
    %3119 = vmatprep.subr.mxu0 0.0
    %3120 = vmatpush1.msra.mxu0 0.0
    %3121 = vmatprep.subr.mxu0 0.0
    %3122 = vmatpush1.msra.mxu0 0.0
    %3123 = vmatprep.subr.mxu0 0.0
    %3124 = vmatpush1.msra.mxu0 0.0
    %3125 = vmatprep.subr.mxu0 0.0
    %3126 = vmatpush1.msra.mxu0 0.0
    %3127 = vmatprep.subr.mxu0 0.0
    %3128 = vmatpush1.msra.mxu0 0.0
    %3129 = vmatprep.subr.mxu0 0.0
    %3130 = vmatpush1.msra.mxu0 0.0
    %3131 = vmatprep.subr.mxu0 0.0
    %3132 = vmatpush1.msra.mxu0 0.0
    %3133 = vmatprep.subr.mxu0 0.0
    %3134 = vmatpush1.msra.mxu0 0.0
    %3135 = vmatprep.subr.mxu0 0.0
    %3136 = vmatpush1.msra.mxu0 0.0
    %3137 = vmatprep.subr.mxu0 0.0
    %3138 = vmatpush1.msra.mxu0 0.0
    %3139 = vmatprep.subr.mxu0 0.0
    %3140 = vmatpush1.msra.mxu0 0.0
    %3141 = vmatprep.subr.mxu0 0.0
    %3142 = vmatpush1.msra.mxu0 0.0
    %3143 = vmatprep.subr.mxu0 0.0
    %3144 = vmatpush1.msra.mxu0 0.0
    %3145 = vmatprep.subr.mxu0 0.0
    %3146 = vmatpush1.msra.mxu0 0.0
    %3147 = vmatprep.subr.mxu0 0.0
    %3148 = vmatpush1.msra.mxu0 0.0
    %3149 = vmatprep.subr.mxu0 0.0
    %3150 = vmatpush1.msra.mxu0 0.0
    %3151 = vmatprep.subr.mxu0 0.0
    %3152 = vmatpush1.msra.mxu0 0.0
    %3153 = vmatprep.subr.mxu0 0.0
    %3154 = vmatpush1.msra.mxu0 0.0
    %3155 = vmatprep.subr.mxu0 0.0
    %3156 = vmatpush1.msra.mxu0 0.0
    %3157 = vmatprep.subr.mxu0 0.0
    %3158 = vmatpush1.msra.mxu0 0.0
    %3159 = vmatprep.subr.mxu0 0.0
    %3160 = vmatpush1.msra.mxu0 0.0
    %3161 = vmatprep.subr.mxu0 0.0
    %3162 = vmatpush1.msra.mxu0 0.0
    %3163 = vmatprep.subr.mxu0 0.0
    %3164 = vmatpush1.msra.mxu0 0.0
    %3165 = vmatprep.subr.mxu0 0.0
    %3166 = vmatpush1.msra.mxu0 0.0
    %3167 = vmatprep.subr.mxu0 0.0
    %3168 = vmatpush1.msra.mxu0 0.0
    %3169 = vmatprep.mubr.f32.mxu0 0.0
    %3170 = vmatmul.mubr.f32.gmra.mrb[0].mxu0 %v3103
    %v3171 = vpop.f32.mrb[0].mxu0
    %v3172 = vadd.f32 0.0, %v3171
    %v3173 = vpop.f32.mrb[0].mxu0
    %3174 = vdwg.mxu0
    %v3177 = vunpack.c.l.s4 1966171168
    %v3178 = vunpack.c.0.s8 %v3177
    %v3179 = vlaneseq
    %v3180 = vshrl.u32 %v3179, 7
    %v3181 = vsub.s32 %v3178, %v3180
    %v3182 = vrot.slane %v3172, %v3181
    %v3183 = vcombine.high %v3182, %v3182
    %v3185 = vunpack.c.l.s4 1966171168
    %v3186 = vunpack.c.0.s8 %v3185
    %v3187 = vlaneseq
    %v3188 = vshrl.u32 %v3187, 7
    %v3189 = vsub.s32 %v3186, %v3188
    %v3190 = vrot.slane %v3182, %v3189
    %v3192 = vunpack.c.l.s4 1966171168
    %v3193 = vunpack.c.0.s8 %v3192
    %v3194 = vlaneseq
    %v3195 = vshrl.u32 %v3194, 7
    %v3196 = vsub.s32 %v3193, %v3195
    %v3197 = vrot.slane %v3183, %v3196
    %v3198 = vlaneseq
    %v3199 = vshrl.u32 %v3198, 7
    %v3200 = vsub.s32 0, %v3199
    %v3201 = vrot.slane %v3190, %v3200
    %v3202 = vlaneseq
    %v3203 = vshrl.u32 %v3202, 7
    %v3204 = vsub.s32 0, %v3203
    %v3205 = vrot.slane %v3197, %v3204
    %v3208 = vadd.f32 %v308, %v3201
    %v3209 = vadd.f32 %v309, %v3205
    %v3210 = vtanh.pop %v3208
    %v3211 = vtanh.pop %v3209
    %v3212 = vmul.f32 %v3210, %v1349
    %v3213 = vmul.f32 %v3211, %v1349
    %v3214 = vsel %vm370, %v3212, 0.0
    %3215 = vadd.xlane.f32.xlu0 %v3214
    %v3216 = vpop.xlane.xlu0 %3215
    %v3217 = vsel %vm370, %v3213, 0.0
    %3218 = vadd.xlane.f32.xlu0 %v3217
    %v3219 = vpop.xlane.xlu0 %3218
    %v3222 = vlaneseq
    %v3223 = vshrl.u32 %v3222, 7
    %v3224 = vsub.s32 %v368, %v3223
    %v3225 = vrot.slane %v3216, %v3224
    %v3226 = vlaneseq
    %v3227 = vshrl.u32 %v3226, 7
    %v3228 = vsub.s32 %v368, %v3227
    %v3229 = vrot.slane %v3219, %v3228
    %v3230 = vsel %vm1369, %v3229, %v3225
    %v3232 = vsel %vm1372, %v3230, -inf
    %3233 = vmax.xlane.f32.xlu0 %v3232
    %v3234 = vpop.xlane.xlu0 %3233
    %v3236 = vlaneseq
    %v3237 = vshrl.u32 %v3236, 7
    %v3238 = vsub.s32 0, %v3237
    %v3239 = vrot.slane %v3234, %v3238
    %v3240 = vlaneseq
    %v3241 = vshrl.u32 %v3240, 7
    %v3242 = vsub.s32 1, %v3241
    %v3243 = vrot.slane %v3234, %v3242
    %v3246 = vsub.f32 %v3216, %v3239
    %v3247 = vsub.f32 %v3219, %v3243
    %v3248 = vmul.f32 %v3246, 1.442695
    %v3249 = vpow.pop %v3248
    %v3250 = vmul.f32 %v3247, 1.442695
    %v3251 = vpow.pop %v3250
    %3254 = vset.pattern.permute.xlu0 0
    %3255 = vperm.xlu0 %3254, %v3249
    %v3256 = vpop.permute.xlu0 %3255
    %3257 = vset.pattern.permute.xlu0 0
    %3258 = vperm.xlu0 %3257, %v3251
    %v3259 = vpop.permute.xlu0 %3258
    %v3260 = vlaneseq
    %v3261 = vshrl.u32 %v3260, 7
    %v3262 = vsub.s32 %v368, %v3261
    %v3263 = vrot.slane %v3256, %v3262
    %v3264 = vlaneseq
    %v3265 = vshrl.u32 %v3264, 7
    %v3266 = vsub.s32 %v368, %v3265
    %v3267 = vrot.slane %v3259, %v3266
    %v3268 = vsel %vm1369, %v3267, %v3263
    %v3270 = vsel %vm1372, %v3268, 0.0
    %3271 = vadd.xlane.f32.xlu0 %v3270
    %v3272 = vpop.xlane.xlu0 %3271
    %v3274 = vlaneseq
    %v3275 = vshrl.u32 %v3274, 7
    %v3276 = vsub.s32 0, %v3275
    %v3277 = vrot.slane %v3272, %v3276
    %v3278 = vlaneseq
    %v3279 = vshrl.u32 %v3278, 7
    %v3280 = vsub.s32 1, %v3279
    %v3281 = vrot.slane %v3272, %v3280
    %v3284 = vrcp.pop %v3277
    %v3285 = vmul.f32 %v3249, %v3284
    %v3286 = vrcp.pop %v3281
    %v3287 = vmul.f32 %v3251, %v3286
    %3289 = vset.pattern.permute.xlu0 0
    %3290 = vperm.xlu0 %3289, %v3285
    %v3291 = vpop.permute.xlu0 %3290
    %3294 = vset.pattern.permute.xlu0 0
    %3295 = vperm.xlu0 %3294, %v3287
    %v3296 = vpop.permute.xlu0 %3295
    %v3298 = vmul.f32 %v3291, %v162
    %v3299 = vmul.f32 %v3296, %v163
    %v3300 = vsel %vm1441, %v3298, 0.0
    %v3301 = vrot.slane %v3300, 4
    %v3302 = vadd.f32 %v3300, %v3301
    %v3303 = vrot.slane %v3302, 2
    %v3304 = vadd.f32 %v3302, %v3303
    %v3305 = vrot.slane %v3304, 1
    %v3306 = vadd.f32 %v3304, %v3305
    %v3307 = vsel %vm1441, %v3299, 0.0
    %v3308 = vrot.slane %v3307, 4
    %v3309 = vadd.f32 %v3307, %v3308
    %v3310 = vrot.slane %v3309, 2
    %v3311 = vadd.f32 %v3309, %v3310
    %v3312 = vrot.slane %v3311, 1
    %v3313 = vadd.f32 %v3311, %v3312
    %v3314 = vadd.f32 %v3306, 0.0
    %v3315 = vadd.f32 %v3313, 0.0
    %3317 = vrot.lane.b32.xlu0 %v2862, 64
    %v3318 = vpop.permute.xlu0 %3317
    %v3319 = vsel %vm370, %v3318, 0
    %3321 = vmatprep.subr.mxu0 0.0
    %3322 = vmatpush1.msra.mxu0 %v319
    %3323 = vmatprep.subr.mxu0 0.0
    %3324 = vmatpush1.msra.mxu0 %v320
    %3325 = vmatprep.subr.mxu0 0.0
    %3326 = vmatpush1.msra.mxu0 %v321
    %3327 = vmatprep.subr.mxu0 0.0
    %3328 = vmatpush1.msra.mxu0 %v322
    %3329 = vmatprep.subr.mxu0 0.0
    %3330 = vmatpush1.msra.mxu0 0.0
    %3331 = vmatprep.subr.mxu0 0.0
    %3332 = vmatpush1.msra.mxu0 0.0
    %3333 = vmatprep.subr.mxu0 0.0
    %3334 = vmatpush1.msra.mxu0 0.0
    %3335 = vmatprep.subr.mxu0 0.0
    %3336 = vmatpush1.msra.mxu0 0.0
    %3337 = vmatprep.subr.mxu0 0.0
    %3338 = vmatpush1.msra.mxu0 0.0
    %3339 = vmatprep.subr.mxu0 0.0
    %3340 = vmatpush1.msra.mxu0 0.0
    %3341 = vmatprep.subr.mxu0 0.0
    %3342 = vmatpush1.msra.mxu0 0.0
    %3343 = vmatprep.subr.mxu0 0.0
    %3344 = vmatpush1.msra.mxu0 0.0
    %3345 = vmatprep.subr.mxu0 0.0
    %3346 = vmatpush1.msra.mxu0 0.0
    %3347 = vmatprep.subr.mxu0 0.0
    %3348 = vmatpush1.msra.mxu0 0.0
    %3349 = vmatprep.subr.mxu0 0.0
    %3350 = vmatpush1.msra.mxu0 0.0
    %3351 = vmatprep.subr.mxu0 0.0
    %3352 = vmatpush1.msra.mxu0 0.0
    %3353 = vmatprep.subr.mxu0 0.0
    %3354 = vmatpush1.msra.mxu0 0.0
    %3355 = vmatprep.subr.mxu0 0.0
    %3356 = vmatpush1.msra.mxu0 0.0
    %3357 = vmatprep.subr.mxu0 0.0
    %3358 = vmatpush1.msra.mxu0 0.0
    %3359 = vmatprep.subr.mxu0 0.0
    %3360 = vmatpush1.msra.mxu0 0.0
    %3361 = vmatprep.subr.mxu0 0.0
    %3362 = vmatpush1.msra.mxu0 0.0
    %3363 = vmatprep.subr.mxu0 0.0
    %3364 = vmatpush1.msra.mxu0 0.0
    %3365 = vmatprep.subr.mxu0 0.0
    %3366 = vmatpush1.msra.mxu0 0.0
    %3367 = vmatprep.subr.mxu0 0.0
    %3368 = vmatpush1.msra.mxu0 0.0
    %3369 = vmatprep.subr.mxu0 0.0
    %3370 = vmatpush1.msra.mxu0 0.0
    %3371 = vmatprep.subr.mxu0 0.0
    %3372 = vmatpush1.msra.mxu0 0.0
    %3373 = vmatprep.subr.mxu0 0.0
    %3374 = vmatpush1.msra.mxu0 0.0
    %3375 = vmatprep.subr.mxu0 0.0
    %3376 = vmatpush1.msra.mxu0 0.0
    %3377 = vmatprep.subr.mxu0 0.0
    %3378 = vmatpush1.msra.mxu0 0.0
    %3379 = vmatprep.subr.mxu0 0.0
    %3380 = vmatpush1.msra.mxu0 0.0
    %3381 = vmatprep.subr.mxu0 0.0
    %3382 = vmatpush1.msra.mxu0 0.0
    %3383 = vmatprep.subr.mxu0 0.0
    %3384 = vmatpush1.msra.mxu0 0.0
    %3385 = vmatprep.mubr.f32.mxu0 0.0
    %3386 = vmatmul.mubr.f32.gmra.mrb[0].mxu0 %v3319
    %v3387 = vpop.f32.mrb[0].mxu0
    %v3388 = vadd.f32 0.0, %v3387
    %v3389 = vpop.f32.mrb[0].mxu0
    %3390 = vdwg.mxu0
    %v3393 = vunpack.c.l.s4 1966171168
    %v3394 = vunpack.c.0.s8 %v3393
    %v3395 = vlaneseq
    %v3396 = vshrl.u32 %v3395, 7
    %v3397 = vsub.s32 %v3394, %v3396
    %v3398 = vrot.slane %v3388, %v3397
    %v3399 = vcombine.high %v3398, %v3398
    %v3401 = vunpack.c.l.s4 1966171168
    %v3402 = vunpack.c.0.s8 %v3401
    %v3403 = vlaneseq
    %v3404 = vshrl.u32 %v3403, 7
    %v3405 = vsub.s32 %v3402, %v3404
    %v3406 = vrot.slane %v3398, %v3405
    %v3408 = vunpack.c.l.s4 1966171168
    %v3409 = vunpack.c.0.s8 %v3408
    %v3410 = vlaneseq
    %v3411 = vshrl.u32 %v3410, 7
    %v3412 = vsub.s32 %v3409, %v3411
    %v3413 = vrot.slane %v3399, %v3412
    %v3414 = vlaneseq
    %v3415 = vshrl.u32 %v3414, 7
    %v3416 = vsub.s32 0, %v3415
    %v3417 = vrot.slane %v3406, %v3416
    %v3418 = vlaneseq
    %v3419 = vshrl.u32 %v3418, 7
    %v3420 = vsub.s32 0, %v3419
    %v3421 = vrot.slane %v3413, %v3420
    %v3424 = vadd.f32 %v310, %v3417
    %v3425 = vadd.f32 %v311, %v3421
    %v3426 = vtanh.pop %v3424
    %v3427 = vtanh.pop %v3425
    %v3428 = vmul.f32 %v3426, %v1574
    %v3429 = vmul.f32 %v3427, %v1574
    %v3430 = vsel %vm370, %v3428, 0.0
    %3431 = vadd.xlane.f32.xlu0 %v3430
    %v3432 = vpop.xlane.xlu0 %3431
    %v3433 = vsel %vm370, %v3429, 0.0
    %3434 = vadd.xlane.f32.xlu0 %v3433
    %v3435 = vpop.xlane.xlu0 %3434
    %v3438 = vlaneseq
    %v3439 = vshrl.u32 %v3438, 7
    %v3440 = vsub.s32 %v368, %v3439
    %v3441 = vrot.slane %v3432, %v3440
    %v3442 = vlaneseq
    %v3443 = vshrl.u32 %v3442, 7
    %v3444 = vsub.s32 %v368, %v3443
    %v3445 = vrot.slane %v3435, %v3444
    %v3446 = vsel %vm1369, %v3445, %v3441
    %v3448 = vsel %vm1372, %v3446, -inf
    %3449 = vmax.xlane.f32.xlu0 %v3448
    %v3450 = vpop.xlane.xlu0 %3449
    %v3452 = vlaneseq
    %v3453 = vshrl.u32 %v3452, 7
    %v3454 = vsub.s32 0, %v3453
    %v3455 = vrot.slane %v3450, %v3454
    %v3456 = vlaneseq
    %v3457 = vshrl.u32 %v3456, 7
    %v3458 = vsub.s32 1, %v3457
    %v3459 = vrot.slane %v3450, %v3458
    %v3462 = vsub.f32 %v3432, %v3455
    %v3463 = vsub.f32 %v3435, %v3459
    %v3464 = vmul.f32 %v3462, 1.442695
    %v3465 = vpow.pop %v3464
    %v3466 = vmul.f32 %v3463, 1.442695
    %v3467 = vpow.pop %v3466
    %3470 = vset.pattern.permute.xlu0 0
    %3471 = vperm.xlu0 %3470, %v3465
    %v3472 = vpop.permute.xlu0 %3471
    %3473 = vset.pattern.permute.xlu0 0
    %3474 = vperm.xlu0 %3473, %v3467
    %v3475 = vpop.permute.xlu0 %3474
    %v3476 = vlaneseq
    %v3477 = vshrl.u32 %v3476, 7
    %v3478 = vsub.s32 %v368, %v3477
    %v3479 = vrot.slane %v3472, %v3478
    %v3480 = vlaneseq
    %v3481 = vshrl.u32 %v3480, 7
    %v3482 = vsub.s32 %v368, %v3481
    %v3483 = vrot.slane %v3475, %v3482
    %v3484 = vsel %vm1369, %v3483, %v3479
    %v3486 = vsel %vm1372, %v3484, 0.0
    %3487 = vadd.xlane.f32.xlu0 %v3486
    %v3488 = vpop.xlane.xlu0 %3487
    %v3490 = vlaneseq
    %v3491 = vshrl.u32 %v3490, 7
    %v3492 = vsub.s32 0, %v3491
    %v3493 = vrot.slane %v3488, %v3492
    %v3494 = vlaneseq
    %v3495 = vshrl.u32 %v3494, 7
    %v3496 = vsub.s32 1, %v3495
    %v3497 = vrot.slane %v3488, %v3496
    %v3500 = vrcp.pop %v3493
    %v3501 = vmul.f32 %v3465, %v3500
    %v3502 = vrcp.pop %v3497
    %v3503 = vmul.f32 %v3467, %v3502
    %3505 = vset.pattern.permute.xlu0 0
    %3506 = vperm.xlu0 %3505, %v3501
    %v3507 = vpop.permute.xlu0 %3506
    %3510 = vset.pattern.permute.xlu0 0
    %3511 = vperm.xlu0 %3510, %v3503
    %v3512 = vpop.permute.xlu0 %3511
    %v3514 = vmul.f32 %v3507, %v162
    %v3515 = vmul.f32 %v3512, %v163
    %v3516 = vsel %vm1441, %v3514, 0.0
    %v3517 = vrot.slane %v3516, 4
    %v3518 = vadd.f32 %v3516, %v3517
    %v3519 = vrot.slane %v3518, 2
    %v3520 = vadd.f32 %v3518, %v3519
    %v3521 = vrot.slane %v3520, 1
    %v3522 = vadd.f32 %v3520, %v3521
    %v3523 = vsel %vm1441, %v3515, 0.0
    %v3524 = vrot.slane %v3523, 4
    %v3525 = vadd.f32 %v3523, %v3524
    %v3526 = vrot.slane %v3525, 2
    %v3527 = vadd.f32 %v3525, %v3526
    %v3528 = vrot.slane %v3527, 1
    %v3529 = vadd.f32 %v3527, %v3528
    %v3530 = vadd.f32 %v3314, %v3522
    %v3531 = vadd.f32 %v3315, %v3529
    %3533 = vrot.lane.b32.xlu0 %v3099, 64
    %v3534 = vpop.permute.xlu0 %3533
    %v3535 = vsel %vm370, %v3534, 0
    %3537 = vmatprep.subr.mxu0 0.0
    %3538 = vmatpush1.msra.mxu0 %v324
    %3539 = vmatprep.subr.mxu0 0.0
    %3540 = vmatpush1.msra.mxu0 %v325
    %3541 = vmatprep.subr.mxu0 0.0
    %3542 = vmatpush1.msra.mxu0 %v326
    %3543 = vmatprep.subr.mxu0 0.0
    %3544 = vmatpush1.msra.mxu0 %v327
    %3545 = vmatprep.subr.mxu0 0.0
    %3546 = vmatpush1.msra.mxu0 0.0
    %3547 = vmatprep.subr.mxu0 0.0
    %3548 = vmatpush1.msra.mxu0 0.0
    %3549 = vmatprep.subr.mxu0 0.0
    %3550 = vmatpush1.msra.mxu0 0.0
    %3551 = vmatprep.subr.mxu0 0.0
    %3552 = vmatpush1.msra.mxu0 0.0
    %3553 = vmatprep.subr.mxu0 0.0
    %3554 = vmatpush1.msra.mxu0 0.0
    %3555 = vmatprep.subr.mxu0 0.0
    %3556 = vmatpush1.msra.mxu0 0.0
    %3557 = vmatprep.subr.mxu0 0.0
    %3558 = vmatpush1.msra.mxu0 0.0
    %3559 = vmatprep.subr.mxu0 0.0
    %3560 = vmatpush1.msra.mxu0 0.0
    %3561 = vmatprep.subr.mxu0 0.0
    %3562 = vmatpush1.msra.mxu0 0.0
    %3563 = vmatprep.subr.mxu0 0.0
    %3564 = vmatpush1.msra.mxu0 0.0
    %3565 = vmatprep.subr.mxu0 0.0
    %3566 = vmatpush1.msra.mxu0 0.0
    %3567 = vmatprep.subr.mxu0 0.0
    %3568 = vmatpush1.msra.mxu0 0.0
    %3569 = vmatprep.subr.mxu0 0.0
    %3570 = vmatpush1.msra.mxu0 0.0
    %3571 = vmatprep.subr.mxu0 0.0
    %3572 = vmatpush1.msra.mxu0 0.0
    %3573 = vmatprep.subr.mxu0 0.0
    %3574 = vmatpush1.msra.mxu0 0.0
    %3575 = vmatprep.subr.mxu0 0.0
    %3576 = vmatpush1.msra.mxu0 0.0
    %3577 = vmatprep.subr.mxu0 0.0
    %3578 = vmatpush1.msra.mxu0 0.0
    %3579 = vmatprep.subr.mxu0 0.0
    %3580 = vmatpush1.msra.mxu0 0.0
    %3581 = vmatprep.subr.mxu0 0.0
    %3582 = vmatpush1.msra.mxu0 0.0
    %3583 = vmatprep.subr.mxu0 0.0
    %3584 = vmatpush1.msra.mxu0 0.0
    %3585 = vmatprep.subr.mxu0 0.0
    %3586 = vmatpush1.msra.mxu0 0.0
    %3587 = vmatprep.subr.mxu0 0.0
    %3588 = vmatpush1.msra.mxu0 0.0
    %3589 = vmatprep.subr.mxu0 0.0
    %3590 = vmatpush1.msra.mxu0 0.0
    %3591 = vmatprep.subr.mxu0 0.0
    %3592 = vmatpush1.msra.mxu0 0.0
    %3593 = vmatprep.subr.mxu0 0.0
    %3594 = vmatpush1.msra.mxu0 0.0
    %3595 = vmatprep.subr.mxu0 0.0
    %3596 = vmatpush1.msra.mxu0 0.0
    %3597 = vmatprep.subr.mxu0 0.0
    %3598 = vmatpush1.msra.mxu0 0.0
    %3599 = vmatprep.subr.mxu0 0.0
    %3600 = vmatpush1.msra.mxu0 0.0
    %3601 = vmatprep.mubr.f32.mxu0 0.0
    %3602 = vmatmul.mubr.f32.gmra.mrb[0].mxu0 %v3535
    %v3603 = vpop.f32.mrb[0].mxu0
    %v3604 = vadd.f32 0.0, %v3603
    %v3605 = vpop.f32.mrb[0].mxu0
    %3606 = vdwg.mxu0
    %v3609 = vunpack.c.l.s4 1966171168
    %v3610 = vunpack.c.0.s8 %v3609
    %v3611 = vlaneseq
    %v3612 = vshrl.u32 %v3611, 7
    %v3613 = vsub.s32 %v3610, %v3612
    %v3614 = vrot.slane %v3604, %v3613
    %v3615 = vcombine.high %v3614, %v3614
    %v3617 = vunpack.c.l.s4 1966171168
    %v3618 = vunpack.c.0.s8 %v3617
    %v3619 = vlaneseq
    %v3620 = vshrl.u32 %v3619, 7
    %v3621 = vsub.s32 %v3618, %v3620
    %v3622 = vrot.slane %v3614, %v3621
    %v3624 = vunpack.c.l.s4 1966171168
    %v3625 = vunpack.c.0.s8 %v3624
    %v3626 = vlaneseq
    %v3627 = vshrl.u32 %v3626, 7
    %v3628 = vsub.s32 %v3625, %v3627
    %v3629 = vrot.slane %v3615, %v3628
    %v3630 = vlaneseq
    %v3631 = vshrl.u32 %v3630, 7
    %v3632 = vsub.s32 0, %v3631
    %v3633 = vrot.slane %v3622, %v3632
    %v3634 = vlaneseq
    %v3635 = vshrl.u32 %v3634, 7
    %v3636 = vsub.s32 0, %v3635
    %v3637 = vrot.slane %v3629, %v3636
    %v3640 = vadd.f32 %v312, %v3633
    %v3641 = vadd.f32 %v313, %v3637
    %v3642 = vtanh.pop %v3640
    %v3643 = vtanh.pop %v3641
    %v3644 = vmul.f32 %v3642, %v1796
    %v3645 = vmul.f32 %v3643, %v1796
    %v3646 = vsel %vm370, %v3644, 0.0
    %3647 = vadd.xlane.f32.xlu0 %v3646
    %v3648 = vpop.xlane.xlu0 %3647
    %v3649 = vsel %vm370, %v3645, 0.0
    %3650 = vadd.xlane.f32.xlu0 %v3649
    %v3651 = vpop.xlane.xlu0 %3650
    %v3654 = vlaneseq
    %v3655 = vshrl.u32 %v3654, 7
    %v3656 = vsub.s32 %v368, %v3655
    %v3657 = vrot.slane %v3648, %v3656
    %v3658 = vlaneseq
    %v3659 = vshrl.u32 %v3658, 7
    %v3660 = vsub.s32 %v368, %v3659
    %v3661 = vrot.slane %v3651, %v3660
    %v3662 = vsel %vm1369, %v3661, %v3657
    %v3664 = vsel %vm1372, %v3662, -inf
    %3665 = vmax.xlane.f32.xlu0 %v3664
    %v3666 = vpop.xlane.xlu0 %3665
    %v3668 = vlaneseq
    %v3669 = vshrl.u32 %v3668, 7
    %v3670 = vsub.s32 0, %v3669
    %v3671 = vrot.slane %v3666, %v3670
    %v3672 = vlaneseq
    %v3673 = vshrl.u32 %v3672, 7
    %v3674 = vsub.s32 1, %v3673
    %v3675 = vrot.slane %v3666, %v3674
    %v3678 = vsub.f32 %v3648, %v3671
    %v3679 = vsub.f32 %v3651, %v3675
    %v3680 = vmul.f32 %v3678, 1.442695
    %v3681 = vpow.pop %v3680
    %v3682 = vmul.f32 %v3679, 1.442695
    %v3683 = vpow.pop %v3682
    %3686 = vset.pattern.permute.xlu0 0
    %3687 = vperm.xlu0 %3686, %v3681
    %v3688 = vpop.permute.xlu0 %3687
    %3689 = vset.pattern.permute.xlu0 0
    %3690 = vperm.xlu0 %3689, %v3683
    %v3691 = vpop.permute.xlu0 %3690
    %v3692 = vlaneseq
    %v3693 = vshrl.u32 %v3692, 7
    %v3694 = vsub.s32 %v368, %v3693
    %v3695 = vrot.slane %v3688, %v3694
    %v3696 = vlaneseq
    %v3697 = vshrl.u32 %v3696, 7
    %v3698 = vsub.s32 %v368, %v3697
    %v3699 = vrot.slane %v3691, %v3698
    %v3700 = vsel %vm1369, %v3699, %v3695
    %v3702 = vsel %vm1372, %v3700, 0.0
    %3703 = vadd.xlane.f32.xlu0 %v3702
    %v3704 = vpop.xlane.xlu0 %3703
    %v3706 = vlaneseq
    %v3707 = vshrl.u32 %v3706, 7
    %v3708 = vsub.s32 0, %v3707
    %v3709 = vrot.slane %v3704, %v3708
    %v3710 = vlaneseq
    %v3711 = vshrl.u32 %v3710, 7
    %v3712 = vsub.s32 1, %v3711
    %v3713 = vrot.slane %v3704, %v3712
    %v3716 = vrcp.pop %v3709
    %v3717 = vmul.f32 %v3681, %v3716
    %v3718 = vrcp.pop %v3713
    %v3719 = vmul.f32 %v3683, %v3718
    %3721 = vset.pattern.permute.xlu0 0
    %3722 = vperm.xlu0 %3721, %v3717
    %v3723 = vpop.permute.xlu0 %3722
    %3726 = vset.pattern.permute.xlu0 0
    %3727 = vperm.xlu0 %3726, %v3719
    %v3728 = vpop.permute.xlu0 %3727
    %v3730 = vmul.f32 %v3723, %v162
    %v3731 = vmul.f32 %v3728, %v163
    %v3732 = vsel %vm1441, %v3730, 0.0
    %v3733 = vrot.slane %v3732, 4
    %v3734 = vadd.f32 %v3732, %v3733
    %v3735 = vrot.slane %v3734, 2
    %v3736 = vadd.f32 %v3734, %v3735
    %v3737 = vrot.slane %v3736, 1
    %v3738 = vadd.f32 %v3736, %v3737
    %v3739 = vsel %vm1441, %v3731, 0.0
    %v3740 = vrot.slane %v3739, 4
    %v3741 = vadd.f32 %v3739, %v3740
    %v3742 = vrot.slane %v3741, 2
    %v3743 = vadd.f32 %v3741, %v3742
    %v3744 = vrot.slane %v3743, 1
    %v3745 = vadd.f32 %v3743, %v3744
    %v3746 = vadd.f32 %v3530, %v3738
    %v3747 = vadd.f32 %v3531, %v3745
    %v3748 = vmul.f32 %v3746, 0.33333334
    %v3749 = vmul.f32 %v3747, 0.33333334
    %v3752 = vsel %vm1369, %v3749, %v3748
    %v3753 = vsel %vm1441, %v3752, 0
    %3755 = vmatprep.subr.mxu0 0.0
    %3756 = vmatpush1.msra.mxu0 %v337
    %3757 = vmatprep.subr.mxu0 0.0
    %3758 = vmatpush1.msra.mxu0 %v338
    %3759 = vmatprep.subr.mxu0 0.0
    %3760 = vmatpush1.msra.mxu0 %v339
    %3761 = vmatprep.subr.mxu0 0.0
    %3762 = vmatpush1.msra.mxu0 %v340
    %3763 = vmatprep.subr.mxu0 0.0
    %3764 = vmatpush1.msra.mxu0 %v341
    %3765 = vmatprep.subr.mxu0 0.0
    %3766 = vmatpush1.msra.mxu0 %v342
    %3767 = vmatprep.subr.mxu0 0.0
    %3768 = vmatpush1.msra.mxu0 %v343
    %3769 = vmatprep.subr.mxu0 0.0
    %3770 = vmatpush1.msra.mxu0 %v344
    %3771 = vmatprep.subr.mxu0 0.0
    %3772 = vmatpush1.msra.mxu0 0.0
    %3773 = vmatprep.subr.mxu0 0.0
    %3774 = vmatpush1.msra.mxu0 0.0
    %3775 = vmatprep.subr.mxu0 0.0
    %3776 = vmatpush1.msra.mxu0 0.0
    %3777 = vmatprep.subr.mxu0 0.0
    %3778 = vmatpush1.msra.mxu0 0.0
    %3779 = vmatprep.subr.mxu0 0.0
    %3780 = vmatpush1.msra.mxu0 0.0
    %3781 = vmatprep.subr.mxu0 0.0
    %3782 = vmatpush1.msra.mxu0 0.0
    %3783 = vmatprep.subr.mxu0 0.0
    %3784 = vmatpush1.msra.mxu0 0.0
    %3785 = vmatprep.subr.mxu0 0.0
    %3786 = vmatpush1.msra.mxu0 0.0
    %3787 = vmatprep.subr.mxu0 0.0
    %3788 = vmatpush1.msra.mxu0 0.0
    %3789 = vmatprep.subr.mxu0 0.0
    %3790 = vmatpush1.msra.mxu0 0.0
    %3791 = vmatprep.subr.mxu0 0.0
    %3792 = vmatpush1.msra.mxu0 0.0
    %3793 = vmatprep.subr.mxu0 0.0
    %3794 = vmatpush1.msra.mxu0 0.0
    %3795 = vmatprep.subr.mxu0 0.0
    %3796 = vmatpush1.msra.mxu0 0.0
    %3797 = vmatprep.subr.mxu0 0.0
    %3798 = vmatpush1.msra.mxu0 0.0
    %3799 = vmatprep.subr.mxu0 0.0
    %3800 = vmatpush1.msra.mxu0 0.0
    %3801 = vmatprep.subr.mxu0 0.0
    %3802 = vmatpush1.msra.mxu0 0.0
    %3803 = vmatprep.subr.mxu0 0.0
    %3804 = vmatpush1.msra.mxu0 0.0
    %3805 = vmatprep.subr.mxu0 0.0
    %3806 = vmatpush1.msra.mxu0 0.0
    %3807 = vmatprep.subr.mxu0 0.0
    %3808 = vmatpush1.msra.mxu0 0.0
    %3809 = vmatprep.subr.mxu0 0.0
    %3810 = vmatpush1.msra.mxu0 0.0
    %3811 = vmatprep.subr.mxu0 0.0
    %3812 = vmatpush1.msra.mxu0 0.0
    %3813 = vmatprep.subr.mxu0 0.0
    %3814 = vmatpush1.msra.mxu0 0.0
    %3815 = vmatprep.subr.mxu0 0.0
    %3816 = vmatpush1.msra.mxu0 0.0
    %3817 = vmatprep.subr.mxu0 0.0
    %3818 = vmatpush1.msra.mxu0 0.0
    %3819 = vmatprep.mubr.f32.mxu0 0.0
    %3820 = vmatmul.mubr.f32.gmra.mrb[0].mxu0 %v3753
    %v3821 = vpop.f32.mrb[0].mxu0
    %v3822 = vadd.f32 0.0, %v3821
    %v3823 = vpop.f32.mrb[0].mxu0
    %3824 = vdwg.mxu0
    %3825 = vmatprep.subr.mxu0 0.0
    %3826 = vmatpush1.msra.mxu0 %v333
    %3827 = vmatprep.subr.mxu0 0.0
    %3828 = vmatpush1.msra.mxu0 %v334
    %3829 = vmatprep.subr.mxu0 0.0
    %3830 = vmatpush1.msra.mxu0 %v335
    %3831 = vmatprep.subr.mxu0 0.0
    %3832 = vmatpush1.msra.mxu0 %v336
    %3833 = vmatprep.subr.mxu0 0.0
    %3834 = vmatpush1.msra.mxu0 0.0
    %3835 = vmatprep.subr.mxu0 0.0
    %3836 = vmatpush1.msra.mxu0 0.0
    %3837 = vmatprep.subr.mxu0 0.0
    %3838 = vmatpush1.msra.mxu0 0.0
    %3839 = vmatprep.subr.mxu0 0.0
    %3840 = vmatpush1.msra.mxu0 0.0
    %3841 = vmatprep.subr.mxu0 0.0
    %3842 = vmatpush1.msra.mxu0 0.0
    %3843 = vmatprep.subr.mxu0 0.0
    %3844 = vmatpush1.msra.mxu0 0.0
    %3845 = vmatprep.subr.mxu0 0.0
    %3846 = vmatpush1.msra.mxu0 0.0
    %3847 = vmatprep.subr.mxu0 0.0
    %3848 = vmatpush1.msra.mxu0 0.0
    %3849 = vmatprep.subr.mxu0 0.0
    %3850 = vmatpush1.msra.mxu0 0.0
    %3851 = vmatprep.subr.mxu0 0.0
    %3852 = vmatpush1.msra.mxu0 0.0
    %3853 = vmatprep.subr.mxu0 0.0
    %3854 = vmatpush1.msra.mxu0 0.0
    %3855 = vmatprep.subr.mxu0 0.0
    %3856 = vmatpush1.msra.mxu0 0.0
    %3857 = vmatprep.subr.mxu0 0.0
    %3858 = vmatpush1.msra.mxu0 0.0
    %3859 = vmatprep.subr.mxu0 0.0
    %3860 = vmatpush1.msra.mxu0 0.0
    %3861 = vmatprep.subr.mxu0 0.0
    %3862 = vmatpush1.msra.mxu0 0.0
    %3863 = vmatprep.subr.mxu0 0.0
    %3864 = vmatpush1.msra.mxu0 0.0
    %3865 = vmatprep.subr.mxu0 0.0
    %3866 = vmatpush1.msra.mxu0 0.0
    %3867 = vmatprep.subr.mxu0 0.0
    %3868 = vmatpush1.msra.mxu0 0.0
    %3869 = vmatprep.subr.mxu0 0.0
    %3870 = vmatpush1.msra.mxu0 0.0
    %3871 = vmatprep.subr.mxu0 0.0
    %3872 = vmatpush1.msra.mxu0 0.0
    %3873 = vmatprep.subr.mxu0 0.0
    %3874 = vmatpush1.msra.mxu0 0.0
    %3875 = vmatprep.subr.mxu0 0.0
    %3876 = vmatpush1.msra.mxu0 0.0
    %3877 = vmatprep.subr.mxu0 0.0
    %3878 = vmatpush1.msra.mxu0 0.0
    %3879 = vmatprep.subr.mxu0 0.0
    %3880 = vmatpush1.msra.mxu0 0.0
    %3881 = vmatprep.subr.mxu0 0.0
    %3882 = vmatpush1.msra.mxu0 0.0
    %3883 = vmatprep.subr.mxu0 0.0
    %3884 = vmatpush1.msra.mxu0 0.0
    %3885 = vmatprep.subr.mxu0 0.0
    %3886 = vmatpush1.msra.mxu0 0.0
    %3887 = vmatprep.subr.mxu0 0.0
    %3888 = vmatpush1.msra.mxu0 0.0
    %3889 = vmatprep.mubr.f32.mxu0 0.0
    %3890 = vmatmul.mubr.f32.gmra.mrb[0].mxu0 %v2090
    %v3891 = vpop.f32.mrb[0].mxu0
    %v3892 = vadd.f32 %v3822, %v3891
    %v3893 = vpop.f32.mrb[0].mxu0
    %3894 = vdwg.mxu0
    %v3895 = vadd.f32 %v3892, %v2056
    %v3896 = vxor.u32 %v3895, 2147483648
    %v3897 = vmul.f32 %v3896, 1.442695
    %v3898 = vpow.pop %v3897
    %v3899 = vadd.f32 %v3898, 1.0
    %v3900 = vrcp.pop %v3899
    %v3901 = vmul.f32 1.0, %v3900
    %v3903 = vmul.f32 %v3901, %v3102
    %v3904 = vsub.f32 1.0, %v3901
    %v3906 = vmul.f32 %v3904, %v3318
    %v3907 = vadd.f32 %v3903, %v3906
    %3909 = vrot.lane.b32.xlu0 %v3907, 32
    %v3910 = vpop.permute.xlu0 %3909
    %v3912 = vmul.f32 %v3901, %v3910
    %3913 = vrot.lane.b32.xlu0 %v3099, 96
    %v3914 = vpop.permute.xlu0 %3913
    %v3916 = vmul.f32 %v3904, %v3914
    %v3917 = vadd.f32 %v3912, %v3916
    %3919 = vrot.lane.b32.xlu0 %v3917, 96
    %v3920 = vpop.permute.xlu0 %3919
    %v3921 = vsel %vm370, %v3920, 0
    %3923 = vmatprep.subr.mxu0 0.0
    %3924 = vmatpush1.msra.mxu0 %v346
    %3925 = vmatprep.subr.mxu0 0.0
    %3926 = vmatpush1.msra.mxu0 %v347
    %3927 = vmatprep.subr.mxu0 0.0
    %3928 = vmatpush1.msra.mxu0 %v348
    %3929 = vmatprep.subr.mxu0 0.0
    %3930 = vmatpush1.msra.mxu0 %v349
    %3931 = vmatprep.subr.mxu0 0.0
    %3932 = vmatpush1.msra.mxu0 0.0
    %3933 = vmatprep.subr.mxu0 0.0
    %3934 = vmatpush1.msra.mxu0 0.0
    %3935 = vmatprep.subr.mxu0 0.0
    %3936 = vmatpush1.msra.mxu0 0.0
    %3937 = vmatprep.subr.mxu0 0.0
    %3938 = vmatpush1.msra.mxu0 0.0
    %3939 = vmatprep.subr.mxu0 0.0
    %3940 = vmatpush1.msra.mxu0 0.0
    %3941 = vmatprep.subr.mxu0 0.0
    %3942 = vmatpush1.msra.mxu0 0.0
    %3943 = vmatprep.subr.mxu0 0.0
    %3944 = vmatpush1.msra.mxu0 0.0
    %3945 = vmatprep.subr.mxu0 0.0
    %3946 = vmatpush1.msra.mxu0 0.0
    %3947 = vmatprep.subr.mxu0 0.0
    %3948 = vmatpush1.msra.mxu0 0.0
    %3949 = vmatprep.subr.mxu0 0.0
    %3950 = vmatpush1.msra.mxu0 0.0
    %3951 = vmatprep.subr.mxu0 0.0
    %3952 = vmatpush1.msra.mxu0 0.0
    %3953 = vmatprep.subr.mxu0 0.0
    %3954 = vmatpush1.msra.mxu0 0.0
    %3955 = vmatprep.subr.mxu0 0.0
    %3956 = vmatpush1.msra.mxu0 0.0
    %3957 = vmatprep.subr.mxu0 0.0
    %3958 = vmatpush1.msra.mxu0 0.0
    %3959 = vmatprep.subr.mxu0 0.0
    %3960 = vmatpush1.msra.mxu0 0.0
    %3961 = vmatprep.subr.mxu0 0.0
    %3962 = vmatpush1.msra.mxu0 0.0
    %3963 = vmatprep.subr.mxu0 0.0
    %3964 = vmatpush1.msra.mxu0 0.0
    %3965 = vmatprep.subr.mxu0 0.0
    %3966 = vmatpush1.msra.mxu0 0.0
    %3967 = vmatprep.subr.mxu0 0.0
    %3968 = vmatpush1.msra.mxu0 0.0
    %3969 = vmatprep.subr.mxu0 0.0
    %3970 = vmatpush1.msra.mxu0 0.0
    %3971 = vmatprep.subr.mxu0 0.0
    %3972 = vmatpush1.msra.mxu0 0.0
    %3973 = vmatprep.subr.mxu0 0.0
    %3974 = vmatpush1.msra.mxu0 0.0
    %3975 = vmatprep.subr.mxu0 0.0
    %3976 = vmatpush1.msra.mxu0 0.0
    %3977 = vmatprep.subr.mxu0 0.0
    %3978 = vmatpush1.msra.mxu0 0.0
    %3979 = vmatprep.subr.mxu0 0.0
    %3980 = vmatpush1.msra.mxu0 0.0
    %3981 = vmatprep.subr.mxu0 0.0
    %3982 = vmatpush1.msra.mxu0 0.0
    %3983 = vmatprep.subr.mxu0 0.0
    %3984 = vmatpush1.msra.mxu0 0.0
    %3985 = vmatprep.subr.mxu0 0.0
    %3986 = vmatpush1.msra.mxu0 0.0
    %3987 = vmatprep.mubr.f32.mxu0 0.0
    %3988 = vmatmul.mubr.f32.gmra.mrb[0].mxu0 %v3921
    %v3989 = vpop.f32.mrb[0].mxu0
    %v3990 = vadd.f32 %v2085, %v3989
    %v3991 = vpop.f32.mrb[0].mxu0
    %3992 = vdwg.mxu0
    %s3993 = scalar_lea.vmem %s22, 2
    %3994 = vst [vmem:[%s3993] sm:$0x3] %v3990
    %v3995 = vsel %vm2163, %v3990, -inf
    %3996 = vmax.xlane.f32.xlu0 %v3995
    %v3997 = vpop.xlane.xlu0 %3996
    %vm3998 = vcmp.eq.f32.partialorder %v3990, %v3997
    %v3999 = vsel %vm3998, %v369, 128.0
    %v4000 = vsel %vm2163, %v3999, inf
    %4001 = vmin.xlane.f32.xlu0 %v4000
    %v4002 = vpop.xlane.xlu0 %4001
    %vm4003 = vcmp.eq.f32.partialorder %v369, %v4002
    %v4004 = vsel %vm4003, 1, 0
    %v4005 = vcvt.s32.f32 %v4004
    %4006 = vmatprep.subr.mxu0 0.0
    %4007 = vmatpush1.msra.mxu0 %v351
    %4008 = vmatprep.subr.mxu0 0.0
    %4009 = vmatpush1.msra.mxu0 %v352
    %4010 = vmatprep.subr.mxu0 0.0
    %4011 = vmatpush1.msra.mxu0 %v353
    %4012 = vmatprep.subr.mxu0 0.0
    %4013 = vmatpush1.msra.mxu0 %v354
    %4014 = vmatprep.subr.mxu0 0.0
    %4015 = vmatpush1.msra.mxu0 %v355
    %4016 = vmatprep.subr.mxu0 0.0
    %4017 = vmatpush1.msra.mxu0 %v356
    %4018 = vmatprep.subr.mxu0 0.0
    %4019 = vmatpush1.msra.mxu0 %v357
    %4020 = vmatprep.subr.mxu0 0.0
    %4021 = vmatpush1.msra.mxu0 %v358
    %4022 = vmatprep.subr.mxu0 0.0
    %4023 = vmatpush1.msra.mxu0 %v359
    %4024 = vmatprep.subr.mxu0 0.0
    %4025 = vmatpush1.msra.mxu0 %v360
    %4026 = vmatprep.subr.mxu0 0.0
    %4027 = vmatpush1.msra.mxu0 %v361
    %4028 = vmatprep.subr.mxu0 0.0
    %4029 = vmatpush1.msra.mxu0 %v362
    %4030 = vmatprep.subr.mxu0 0.0
    %4031 = vmatpush1.msra.mxu0 %v363
    %4032 = vmatprep.subr.mxu0 0.0
    %4033 = vmatpush1.msra.mxu0 %v364
    %4034 = vmatprep.subr.mxu0 0.0
    %4035 = vmatpush1.msra.mxu0 %v365
    %4036 = vmatprep.subr.mxu0 0.0
    %4037 = vmatpush1.msra.mxu0 %v366
    %4038 = vmatprep.subr.mxu0 0.0
    %4039 = vmatpush1.msra.mxu0 0.0
    %4040 = vmatprep.subr.mxu0 0.0
    %4041 = vmatpush1.msra.mxu0 0.0
    %4042 = vmatprep.subr.mxu0 0.0
    %4043 = vmatpush1.msra.mxu0 0.0
    %4044 = vmatprep.subr.mxu0 0.0
    %4045 = vmatpush1.msra.mxu0 0.0
    %4046 = vmatprep.subr.mxu0 0.0
    %4047 = vmatpush1.msra.mxu0 0.0
    %4048 = vmatprep.subr.mxu0 0.0
    %4049 = vmatpush1.msra.mxu0 0.0
    %4050 = vmatprep.subr.mxu0 0.0
    %4051 = vmatpush1.msra.mxu0 0.0
    %4052 = vmatprep.subr.mxu0 0.0
    %4053 = vmatpush1.msra.mxu0 0.0
    %4054 = vmatprep.subr.mxu0 0.0
    %4055 = vmatpush1.msra.mxu0 0.0
    %4056 = vmatprep.subr.mxu0 0.0
    %4057 = vmatpush1.msra.mxu0 0.0
    %4058 = vmatprep.subr.mxu0 0.0
    %4059 = vmatpush1.msra.mxu0 0.0
    %4060 = vmatprep.subr.mxu0 0.0
    %4061 = vmatpush1.msra.mxu0 0.0
    %4062 = vmatprep.subr.mxu0 0.0
    %4063 = vmatpush1.msra.mxu0 0.0
    %4064 = vmatprep.subr.mxu0 0.0
    %4065 = vmatpush1.msra.mxu0 0.0
    %4066 = vmatprep.subr.mxu0 0.0
    %4067 = vmatpush1.msra.mxu0 0.0
    %4068 = vmatprep.subr.mxu0 0.0
    %4069 = vmatpush1.msra.mxu0 0.0
    %4070 = vmatprep.mubr.f32.mxu0 0.0
    %4071 = vmatmul.mubr.f32.gmra.mrb[0].mxu0 %v4005
    %v4072 = vpop.f32.mrb[0].mxu0
    %v4073 = vadd.f32 0.0, %v4072
    %v4074 = vpop.f32.mrb[0].mxu0
    %4075 = vdwg.mxu0
    %v4077 = vsel %vm370, %v4073, 0
    %4079 = vmatprep.subr.mxu0 %v168
    %4080 = vmatpush1.msra.mxu0 %v167
    %4081 = vmatprep.subr.mxu0 %v171
    %4082 = vmatpush1.msra.mxu0 %v170
    %4083 = vmatprep.subr.mxu0 %v174
    %4084 = vmatpush1.msra.mxu0 %v173
    %4085 = vmatprep.subr.mxu0 %v177
    %4086 = vmatpush1.msra.mxu0 %v176
    %4087 = vmatprep.subr.mxu0 0.0
    %4088 = vmatpush1.msra.mxu0 0.0
    %4089 = vmatprep.subr.mxu0 0.0
    %4090 = vmatpush1.msra.mxu0 0.0
    %4091 = vmatprep.subr.mxu0 0.0
    %4092 = vmatpush1.msra.mxu0 0.0
    %4093 = vmatprep.subr.mxu0 0.0
    %4094 = vmatpush1.msra.mxu0 0.0
    %4095 = vmatprep.subr.mxu0 0.0
    %4096 = vmatpush1.msra.mxu0 0.0
    %4097 = vmatprep.subr.mxu0 0.0
    %4098 = vmatpush1.msra.mxu0 0.0
    %4099 = vmatprep.subr.mxu0 0.0
    %4100 = vmatpush1.msra.mxu0 0.0
    %4101 = vmatprep.subr.mxu0 0.0
    %4102 = vmatpush1.msra.mxu0 0.0
    %4103 = vmatprep.subr.mxu0 0.0
    %4104 = vmatpush1.msra.mxu0 0.0
    %4105 = vmatprep.subr.mxu0 0.0
    %4106 = vmatpush1.msra.mxu0 0.0
    %4107 = vmatprep.subr.mxu0 0.0
    %4108 = vmatpush1.msra.mxu0 0.0
    %4109 = vmatprep.subr.mxu0 0.0
    %4110 = vmatpush1.msra.mxu0 0.0
    %4111 = vmatprep.subr.mxu0 0.0
    %4112 = vmatpush1.msra.mxu0 0.0
    %4113 = vmatprep.subr.mxu0 0.0
    %4114 = vmatpush1.msra.mxu0 0.0
    %4115 = vmatprep.subr.mxu0 0.0
    %4116 = vmatpush1.msra.mxu0 0.0
    %4117 = vmatprep.subr.mxu0 0.0
    %4118 = vmatpush1.msra.mxu0 0.0
    %4119 = vmatprep.subr.mxu0 0.0
    %4120 = vmatpush1.msra.mxu0 0.0
    %4121 = vmatprep.subr.mxu0 0.0
    %4122 = vmatpush1.msra.mxu0 0.0
    %4123 = vmatprep.subr.mxu0 0.0
    %4124 = vmatpush1.msra.mxu0 0.0
    %4125 = vmatprep.subr.mxu0 0.0
    %4126 = vmatpush1.msra.mxu0 0.0
    %4127 = vmatprep.subr.mxu0 0.0
    %4128 = vmatpush1.msra.mxu0 0.0
    %4129 = vmatprep.subr.mxu0 0.0
    %4130 = vmatpush1.msra.mxu0 0.0
    %4131 = vmatprep.subr.mxu0 0.0
    %4132 = vmatpush1.msra.mxu0 0.0
    %4133 = vmatprep.subr.mxu0 0.0
    %4134 = vmatpush1.msra.mxu0 0.0
    %4135 = vmatprep.subr.mxu0 0.0
    %4136 = vmatpush1.msra.mxu0 0.0
    %4137 = vmatprep.subr.mxu0 0.0
    %4138 = vmatpush1.msra.mxu0 0.0
    %4139 = vmatprep.subr.mxu0 0.0
    %4140 = vmatpush1.msra.mxu0 0.0
    %4141 = vmatprep.subr.mxu0 0.0
    %4142 = vmatpush1.msra.mxu0 0.0
    %4143 = vmatprep.mubr.f32.mxu0 0.0
    %4144 = vmatmul.mubr.f32.gmra.mrb[0].mxu0 %v4077
    %v4145 = vpop.f32.mrb[0].mxu0
    %v4146 = vadd.f32 0.0, %v4145
    %v4147 = vpop.f32.mrb[0].mxu0
    %v4148 = vadd.f32 0.0, %v4147
    %4149 = vdwg.mxu0
    %4150 = vmatprep.subr.mxu0 0.0
    %4151 = vmatpush1.msra.mxu0 %v169
    %4152 = vmatprep.subr.mxu0 0.0
    %4153 = vmatpush1.msra.mxu0 %v172
    %4154 = vmatprep.subr.mxu0 0.0
    %4155 = vmatpush1.msra.mxu0 %v175
    %4156 = vmatprep.subr.mxu0 0.0
    %4157 = vmatpush1.msra.mxu0 %v178
    %4158 = vmatprep.subr.mxu0 0.0
    %4159 = vmatpush1.msra.mxu0 0.0
    %4160 = vmatprep.subr.mxu0 0.0
    %4161 = vmatpush1.msra.mxu0 0.0
    %4162 = vmatprep.subr.mxu0 0.0
    %4163 = vmatpush1.msra.mxu0 0.0
    %4164 = vmatprep.subr.mxu0 0.0
    %4165 = vmatpush1.msra.mxu0 0.0
    %4166 = vmatprep.subr.mxu0 0.0
    %4167 = vmatpush1.msra.mxu0 0.0
    %4168 = vmatprep.subr.mxu0 0.0
    %4169 = vmatpush1.msra.mxu0 0.0
    %4170 = vmatprep.subr.mxu0 0.0
    %4171 = vmatpush1.msra.mxu0 0.0
    %4172 = vmatprep.subr.mxu0 0.0
    %4173 = vmatpush1.msra.mxu0 0.0
    %4174 = vmatprep.subr.mxu0 0.0
    %4175 = vmatpush1.msra.mxu0 0.0
    %4176 = vmatprep.subr.mxu0 0.0
    %4177 = vmatpush1.msra.mxu0 0.0
    %4178 = vmatprep.subr.mxu0 0.0
    %4179 = vmatpush1.msra.mxu0 0.0
    %4180 = vmatprep.subr.mxu0 0.0
    %4181 = vmatpush1.msra.mxu0 0.0
    %4182 = vmatprep.subr.mxu0 0.0
    %4183 = vmatpush1.msra.mxu0 0.0
    %4184 = vmatprep.subr.mxu0 0.0
    %4185 = vmatpush1.msra.mxu0 0.0
    %4186 = vmatprep.subr.mxu0 0.0
    %4187 = vmatpush1.msra.mxu0 0.0
    %4188 = vmatprep.subr.mxu0 0.0
    %4189 = vmatpush1.msra.mxu0 0.0
    %4190 = vmatprep.subr.mxu0 0.0
    %4191 = vmatpush1.msra.mxu0 0.0
    %4192 = vmatprep.subr.mxu0 0.0
    %4193 = vmatpush1.msra.mxu0 0.0
    %4194 = vmatprep.subr.mxu0 0.0
    %4195 = vmatpush1.msra.mxu0 0.0
    %4196 = vmatprep.subr.mxu0 0.0
    %4197 = vmatpush1.msra.mxu0 0.0
    %4198 = vmatprep.subr.mxu0 0.0
    %4199 = vmatpush1.msra.mxu0 0.0
    %4200 = vmatprep.subr.mxu0 0.0
    %4201 = vmatpush1.msra.mxu0 0.0
    %4202 = vmatprep.subr.mxu0 0.0
    %4203 = vmatpush1.msra.mxu0 0.0
    %4204 = vmatprep.subr.mxu0 0.0
    %4205 = vmatpush1.msra.mxu0 0.0
    %4206 = vmatprep.subr.mxu0 0.0
    %4207 = vmatpush1.msra.mxu0 0.0
    %4208 = vmatprep.subr.mxu0 0.0
    %4209 = vmatpush1.msra.mxu0 0.0
    %4210 = vmatprep.subr.mxu0 0.0
    %4211 = vmatpush1.msra.mxu0 0.0
    %4212 = vmatprep.subr.mxu0 0.0
    %4213 = vmatpush1.msra.mxu0 0.0
    %4214 = vmatprep.mubr.f32.mxu0 0.0
    %4215 = vmatmul.mubr.f32.gmra.mrb[0].mxu0 %v4077
    %v4216 = vpop.f32.mrb[0].mxu0
    %v4217 = vadd.f32 0.0, %v4216
    %v4218 = vpop.f32.mrb[0].mxu0
    %4219 = vdwg.mxu0
    %4220 = vmatprep.subr.mxu0 0.0
    %4221 = vmatpush1.msra.mxu0 %v179
    %4222 = vmatprep.subr.mxu0 0.0
    %4223 = vmatpush1.msra.mxu0 %v180
    %4224 = vmatprep.subr.mxu0 0.0
    %4225 = vmatpush1.msra.mxu0 %v181
    %4226 = vmatprep.subr.mxu0 0.0
    %4227 = vmatpush1.msra.mxu0 %v182
    %4228 = vmatprep.subr.mxu0 0.0
    %4229 = vmatpush1.msra.mxu0 0.0
    %4230 = vmatprep.subr.mxu0 0.0
    %4231 = vmatpush1.msra.mxu0 0.0
    %4232 = vmatprep.subr.mxu0 0.0
    %4233 = vmatpush1.msra.mxu0 0.0
    %4234 = vmatprep.subr.mxu0 0.0
    %4235 = vmatpush1.msra.mxu0 0.0
    %4236 = vmatprep.subr.mxu0 0.0
    %4237 = vmatpush1.msra.mxu0 0.0
    %4238 = vmatprep.subr.mxu0 0.0
    %4239 = vmatpush1.msra.mxu0 0.0
    %4240 = vmatprep.subr.mxu0 0.0
    %4241 = vmatpush1.msra.mxu0 0.0
    %4242 = vmatprep.subr.mxu0 0.0
    %4243 = vmatpush1.msra.mxu0 0.0
    %4244 = vmatprep.subr.mxu0 0.0
    %4245 = vmatpush1.msra.mxu0 0.0
    %4246 = vmatprep.subr.mxu0 0.0
    %4247 = vmatpush1.msra.mxu0 0.0
    %4248 = vmatprep.subr.mxu0 0.0
    %4249 = vmatpush1.msra.mxu0 0.0
    %4250 = vmatprep.subr.mxu0 0.0
    %4251 = vmatpush1.msra.mxu0 0.0
    %4252 = vmatprep.subr.mxu0 0.0
    %4253 = vmatpush1.msra.mxu0 0.0
    %4254 = vmatprep.subr.mxu0 0.0
    %4255 = vmatpush1.msra.mxu0 0.0
    %4256 = vmatprep.subr.mxu0 0.0
    %4257 = vmatpush1.msra.mxu0 0.0
    %4258 = vmatprep.subr.mxu0 0.0
    %4259 = vmatpush1.msra.mxu0 0.0
    %4260 = vmatprep.subr.mxu0 0.0
    %4261 = vmatpush1.msra.mxu0 0.0
    %4262 = vmatprep.subr.mxu0 0.0
    %4263 = vmatpush1.msra.mxu0 0.0
    %4264 = vmatprep.subr.mxu0 0.0
    %4265 = vmatpush1.msra.mxu0 0.0
    %4266 = vmatprep.subr.mxu0 0.0
    %4267 = vmatpush1.msra.mxu0 0.0
    %4268 = vmatprep.subr.mxu0 0.0
    %4269 = vmatpush1.msra.mxu0 0.0
    %4270 = vmatprep.subr.mxu0 0.0
    %4271 = vmatpush1.msra.mxu0 0.0
    %4272 = vmatprep.subr.mxu0 0.0
    %4273 = vmatpush1.msra.mxu0 0.0
    %4274 = vmatprep.subr.mxu0 0.0
    %4275 = vmatpush1.msra.mxu0 0.0
    %4276 = vmatprep.subr.mxu0 0.0
    %4277 = vmatpush1.msra.mxu0 0.0
    %4278 = vmatprep.subr.mxu0 0.0
    %4279 = vmatpush1.msra.mxu0 0.0
    %4280 = vmatprep.subr.mxu0 0.0
    %4281 = vmatpush1.msra.mxu0 0.0
    %4282 = vmatprep.subr.mxu0 0.0
    %4283 = vmatpush1.msra.mxu0 0.0
    %4284 = vmatprep.mubr.f32.mxu0 0.0
    %4285 = vmatmul.mubr.f32.gmra.mrb[0].mxu0 %v3103
    %v4286 = vpop.f32.mrb[0].mxu0
    %v4287 = vadd.f32 0.0, %v4286
    %v4288 = vpop.f32.mrb[0].mxu0
    %4289 = vdwg.mxu0
    %v4290 = vmul.f32 %v4146, %v293
    %v4291 = vmul.f32 %v298, %v4287
    %4292 = vmatprep.subr.mxu0 0.0
    %4293 = vmatpush1.msra.mxu0 %v243
    %4294 = vmatprep.subr.mxu0 0.0
    %4295 = vmatpush1.msra.mxu0 %v244
    %4296 = vmatprep.subr.mxu0 0.0
    %4297 = vmatpush1.msra.mxu0 %v245
    %4298 = vmatprep.subr.mxu0 0.0
    %4299 = vmatpush1.msra.mxu0 %v246
    %4300 = vmatprep.subr.mxu0 0.0
    %4301 = vmatpush1.msra.mxu0 %v247
    %4302 = vmatprep.subr.mxu0 0.0
    %4303 = vmatpush1.msra.mxu0 %v248
    %4304 = vmatprep.subr.mxu0 0.0
    %4305 = vmatpush1.msra.mxu0 %v249
    %4306 = vmatprep.subr.mxu0 0.0
    %4307 = vmatpush1.msra.mxu0 %v250
    %4308 = vmatprep.subr.mxu0 0.0
    %4309 = vmatpush1.msra.mxu0 %v251
    %4310 = vmatprep.subr.mxu0 0.0
    %4311 = vmatpush1.msra.mxu0 %v252
    %4312 = vmatprep.subr.mxu0 0.0
    %4313 = vmatpush1.msra.mxu0 %v253
    %4314 = vmatprep.subr.mxu0 0.0
    %4315 = vmatpush1.msra.mxu0 %v254
    %4316 = vmatprep.subr.mxu0 0.0
    %4317 = vmatpush1.msra.mxu0 %v255
    %4318 = vmatprep.subr.mxu0 0.0
    %4319 = vmatpush1.msra.mxu0 %v256
    %4320 = vmatprep.subr.mxu0 0.0
    %4321 = vmatpush1.msra.mxu0 %v257
    %4322 = vmatprep.subr.mxu0 0.0
    %4323 = vmatpush1.msra.mxu0 %v258
    %4324 = vmatprep.subr.mxu0 0.0
    %4325 = vmatpush1.msra.mxu0 0.0
    %4326 = vmatprep.subr.mxu0 0.0
    %4327 = vmatpush1.msra.mxu0 0.0
    %4328 = vmatprep.subr.mxu0 0.0
    %4329 = vmatpush1.msra.mxu0 0.0
    %4330 = vmatprep.subr.mxu0 0.0
    %4331 = vmatpush1.msra.mxu0 0.0
    %4332 = vmatprep.subr.mxu0 0.0
    %4333 = vmatpush1.msra.mxu0 0.0
    %4334 = vmatprep.subr.mxu0 0.0
    %4335 = vmatpush1.msra.mxu0 0.0
    %4336 = vmatprep.subr.mxu0 0.0
    %4337 = vmatpush1.msra.mxu0 0.0
    %4338 = vmatprep.subr.mxu0 0.0
    %4339 = vmatpush1.msra.mxu0 0.0
    %4340 = vmatprep.subr.mxu0 0.0
    %4341 = vmatpush1.msra.mxu0 0.0
    %4342 = vmatprep.subr.mxu0 0.0
    %4343 = vmatpush1.msra.mxu0 0.0
    %4344 = vmatprep.subr.mxu0 0.0
    %4345 = vmatpush1.msra.mxu0 0.0
    %4346 = vmatprep.subr.mxu0 0.0
    %4347 = vmatpush1.msra.mxu0 0.0
    %4348 = vmatprep.subr.mxu0 0.0
    %4349 = vmatpush1.msra.mxu0 0.0
    %4350 = vmatprep.subr.mxu0 0.0
    %4351 = vmatpush1.msra.mxu0 0.0
    %4352 = vmatprep.subr.mxu0 0.0
    %4353 = vmatpush1.msra.mxu0 0.0
    %4354 = vmatprep.subr.mxu0 0.0
    %4355 = vmatpush1.msra.mxu0 0.0
    %4356 = vmatprep.mubr.f32.mxu0 0.0
    %4357 = vmatmul.mubr.f32.gmra.mrb[0].mxu0 %v4291
    %v4358 = vpop.f32.mrb[0].mxu0
    %v4359 = vadd.f32 0.0, %v4358
    %v4360 = vpop.f32.mrb[0].mxu0
    %4361 = vdwg.mxu0
    %4362 = vmatprep.subr.mxu0 0.0
    %4363 = vmatpush1.msra.mxu0 %v193
    %4364 = vmatprep.subr.mxu0 0.0
    %4365 = vmatpush1.msra.mxu0 %v194
    %4366 = vmatprep.subr.mxu0 0.0
    %4367 = vmatpush1.msra.mxu0 %v195
    %4368 = vmatprep.subr.mxu0 0.0
    %4369 = vmatpush1.msra.mxu0 %v196
    %4370 = vmatprep.subr.mxu0 0.0
    %4371 = vmatpush1.msra.mxu0 %v197
    %4372 = vmatprep.subr.mxu0 0.0
    %4373 = vmatpush1.msra.mxu0 %v198
    %4374 = vmatprep.subr.mxu0 0.0
    %4375 = vmatpush1.msra.mxu0 %v199
    %4376 = vmatprep.subr.mxu0 0.0
    %4377 = vmatpush1.msra.mxu0 %v200
    %4378 = vmatprep.subr.mxu0 0.0
    %4379 = vmatpush1.msra.mxu0 %v201
    %4380 = vmatprep.subr.mxu0 0.0
    %4381 = vmatpush1.msra.mxu0 %v202
    %4382 = vmatprep.subr.mxu0 0.0
    %4383 = vmatpush1.msra.mxu0 %v203
    %4384 = vmatprep.subr.mxu0 0.0
    %4385 = vmatpush1.msra.mxu0 %v204
    %4386 = vmatprep.subr.mxu0 0.0
    %4387 = vmatpush1.msra.mxu0 %v205
    %4388 = vmatprep.subr.mxu0 0.0
    %4389 = vmatpush1.msra.mxu0 %v206
    %4390 = vmatprep.subr.mxu0 0.0
    %4391 = vmatpush1.msra.mxu0 %v207
    %4392 = vmatprep.subr.mxu0 0.0
    %4393 = vmatpush1.msra.mxu0 %v208
    %4394 = vmatprep.subr.mxu0 0.0
    %4395 = vmatpush1.msra.mxu0 0.0
    %4396 = vmatprep.subr.mxu0 0.0
    %4397 = vmatpush1.msra.mxu0 0.0
    %4398 = vmatprep.subr.mxu0 0.0
    %4399 = vmatpush1.msra.mxu0 0.0
    %4400 = vmatprep.subr.mxu0 0.0
    %4401 = vmatpush1.msra.mxu0 0.0
    %4402 = vmatprep.subr.mxu0 0.0
    %4403 = vmatpush1.msra.mxu0 0.0
    %4404 = vmatprep.subr.mxu0 0.0
    %4405 = vmatpush1.msra.mxu0 0.0
    %4406 = vmatprep.subr.mxu0 0.0
    %4407 = vmatpush1.msra.mxu0 0.0
    %4408 = vmatprep.subr.mxu0 0.0
    %4409 = vmatpush1.msra.mxu0 0.0
    %4410 = vmatprep.subr.mxu0 0.0
    %4411 = vmatpush1.msra.mxu0 0.0
    %4412 = vmatprep.subr.mxu0 0.0
    %4413 = vmatpush1.msra.mxu0 0.0
    %4414 = vmatprep.subr.mxu0 0.0
    %4415 = vmatpush1.msra.mxu0 0.0
    %4416 = vmatprep.subr.mxu0 0.0
    %4417 = vmatpush1.msra.mxu0 0.0
    %4418 = vmatprep.subr.mxu0 0.0
    %4419 = vmatpush1.msra.mxu0 0.0
    %4420 = vmatprep.subr.mxu0 0.0
    %4421 = vmatpush1.msra.mxu0 0.0
    %4422 = vmatprep.subr.mxu0 0.0
    %4423 = vmatpush1.msra.mxu0 0.0
    %4424 = vmatprep.subr.mxu0 0.0
    %4425 = vmatpush1.msra.mxu0 0.0
    %4426 = vmatprep.mubr.f32.mxu0 0.0
    %4427 = vmatmul.mubr.f32.gmra.mrb[0].mxu0 %v4290
    %v4428 = vpop.f32.mrb[0].mxu0
    %v4429 = vadd.f32 %v4359, %v4428
    %v4430 = vpop.f32.mrb[0].mxu0
    %4431 = vdwg.mxu0
    %v4432 = vadd.f32 %v4429, %v303
    %v4433 = vxor.u32 %v4432, 2147483648
    %v4434 = vmul.f32 %v4433, 1.442695
    %v4435 = vpow.pop %v4434
    %v4436 = vadd.f32 %v4435, 1.0
    %v4437 = vrcp.pop %v4436
    %v4438 = vmul.f32 1.0, %v4437
    %v4439 = vtanh.pop %v4432
    %v4440 = vmul.f32 %v4438, %v2619
    %4442 = vrot.lane.b32.xlu0 %v4439, 32
    %v4443 = vpop.permute.xlu0 %4442
    %v4445 = vmul.f32 %v4438, %v4443
    %4447 = vrot.lane.b32.xlu0 %v4445, 32
    %v4448 = vpop.permute.xlu0 %4447
    %v4450 = vadd.f32 %v4440, %v4448
    %v4451 = vtanh.pop %v4450
    %4453 = vrot.lane.b32.xlu0 %v4451, 32
    %v4454 = vpop.permute.xlu0 %4453
    %v4456 = vmul.f32 %v4438, %v4454
    %4457 = vmatprep.subr.mxu0 0.0
    %4458 = vmatpush1.msra.mxu0 %v184
    %4459 = vmatprep.subr.mxu0 0.0
    %4460 = vmatpush1.msra.mxu0 %v185
    %4461 = vmatprep.subr.mxu0 0.0
    %4462 = vmatpush1.msra.mxu0 %v186
    %4463 = vmatprep.subr.mxu0 0.0
    %4464 = vmatpush1.msra.mxu0 %v187
    %4465 = vmatprep.subr.mxu0 0.0
    %4466 = vmatpush1.msra.mxu0 0.0
    %4467 = vmatprep.subr.mxu0 0.0
    %4468 = vmatpush1.msra.mxu0 0.0
    %4469 = vmatprep.subr.mxu0 0.0
    %4470 = vmatpush1.msra.mxu0 0.0
    %4471 = vmatprep.subr.mxu0 0.0
    %4472 = vmatpush1.msra.mxu0 0.0
    %4473 = vmatprep.subr.mxu0 0.0
    %4474 = vmatpush1.msra.mxu0 0.0
    %4475 = vmatprep.subr.mxu0 0.0
    %4476 = vmatpush1.msra.mxu0 0.0
    %4477 = vmatprep.subr.mxu0 0.0
    %4478 = vmatpush1.msra.mxu0 0.0
    %4479 = vmatprep.subr.mxu0 0.0
    %4480 = vmatpush1.msra.mxu0 0.0
    %4481 = vmatprep.subr.mxu0 0.0
    %4482 = vmatpush1.msra.mxu0 0.0
    %4483 = vmatprep.subr.mxu0 0.0
    %4484 = vmatpush1.msra.mxu0 0.0
    %4485 = vmatprep.subr.mxu0 0.0
    %4486 = vmatpush1.msra.mxu0 0.0
    %4487 = vmatprep.subr.mxu0 0.0
    %4488 = vmatpush1.msra.mxu0 0.0
    %4489 = vmatprep.subr.mxu0 0.0
    %4490 = vmatpush1.msra.mxu0 0.0
    %4491 = vmatprep.subr.mxu0 0.0
    %4492 = vmatpush1.msra.mxu0 0.0
    %4493 = vmatprep.subr.mxu0 0.0
    %4494 = vmatpush1.msra.mxu0 0.0
    %4495 = vmatprep.subr.mxu0 0.0
    %4496 = vmatpush1.msra.mxu0 0.0
    %4497 = vmatprep.subr.mxu0 0.0
    %4498 = vmatpush1.msra.mxu0 0.0
    %4499 = vmatprep.subr.mxu0 0.0
    %4500 = vmatpush1.msra.mxu0 0.0
    %4501 = vmatprep.subr.mxu0 0.0
    %4502 = vmatpush1.msra.mxu0 0.0
    %4503 = vmatprep.subr.mxu0 0.0
    %4504 = vmatpush1.msra.mxu0 0.0
    %4505 = vmatprep.subr.mxu0 0.0
    %4506 = vmatpush1.msra.mxu0 0.0
    %4507 = vmatprep.subr.mxu0 0.0
    %4508 = vmatpush1.msra.mxu0 0.0
    %4509 = vmatprep.subr.mxu0 0.0
    %4510 = vmatpush1.msra.mxu0 0.0
    %4511 = vmatprep.subr.mxu0 0.0
    %4512 = vmatpush1.msra.mxu0 0.0
    %4513 = vmatprep.subr.mxu0 0.0
    %4514 = vmatpush1.msra.mxu0 0.0
    %4515 = vmatprep.subr.mxu0 0.0
    %4516 = vmatpush1.msra.mxu0 0.0
    %4517 = vmatprep.subr.mxu0 0.0
    %4518 = vmatpush1.msra.mxu0 0.0
    %4519 = vmatprep.subr.mxu0 0.0
    %4520 = vmatpush1.msra.mxu0 0.0
    %4521 = vmatprep.mubr.f32.mxu0 0.0
    %4522 = vmatmul.mubr.f32.gmra.mrb[0].mxu0 %v3319
    %v4523 = vpop.f32.mrb[0].mxu0
    %v4524 = vadd.f32 0.0, %v4523
    %v4525 = vpop.f32.mrb[0].mxu0
    %4526 = vdwg.mxu0
    %v4527 = vmul.f32 %v4148, %v295
    %v4528 = vmul.f32 %v300, %v4524
    %4529 = vmatprep.subr.mxu0 0.0
    %4530 = vmatpush1.msra.mxu0 %v260
    %4531 = vmatprep.subr.mxu0 0.0
    %4532 = vmatpush1.msra.mxu0 %v261
    %4533 = vmatprep.subr.mxu0 0.0
    %4534 = vmatpush1.msra.mxu0 %v262
    %4535 = vmatprep.subr.mxu0 0.0
    %4536 = vmatpush1.msra.mxu0 %v263
    %4537 = vmatprep.subr.mxu0 0.0
    %4538 = vmatpush1.msra.mxu0 %v264
    %4539 = vmatprep.subr.mxu0 0.0
    %4540 = vmatpush1.msra.mxu0 %v265
    %4541 = vmatprep.subr.mxu0 0.0
    %4542 = vmatpush1.msra.mxu0 %v266
    %4543 = vmatprep.subr.mxu0 0.0
    %4544 = vmatpush1.msra.mxu0 %v267
    %4545 = vmatprep.subr.mxu0 0.0
    %4546 = vmatpush1.msra.mxu0 %v268
    %4547 = vmatprep.subr.mxu0 0.0
    %4548 = vmatpush1.msra.mxu0 %v269
    %4549 = vmatprep.subr.mxu0 0.0
    %4550 = vmatpush1.msra.mxu0 %v270
    %4551 = vmatprep.subr.mxu0 0.0
    %4552 = vmatpush1.msra.mxu0 %v271
    %4553 = vmatprep.subr.mxu0 0.0
    %4554 = vmatpush1.msra.mxu0 %v272
    %4555 = vmatprep.subr.mxu0 0.0
    %4556 = vmatpush1.msra.mxu0 %v273
    %4557 = vmatprep.subr.mxu0 0.0
    %4558 = vmatpush1.msra.mxu0 %v274
    %4559 = vmatprep.subr.mxu0 0.0
    %4560 = vmatpush1.msra.mxu0 %v275
    %4561 = vmatprep.subr.mxu0 0.0
    %4562 = vmatpush1.msra.mxu0 0.0
    %4563 = vmatprep.subr.mxu0 0.0
    %4564 = vmatpush1.msra.mxu0 0.0
    %4565 = vmatprep.subr.mxu0 0.0
    %4566 = vmatpush1.msra.mxu0 0.0
    %4567 = vmatprep.subr.mxu0 0.0
    %4568 = vmatpush1.msra.mxu0 0.0
    %4569 = vmatprep.subr.mxu0 0.0
    %4570 = vmatpush1.msra.mxu0 0.0
    %4571 = vmatprep.subr.mxu0 0.0
    %4572 = vmatpush1.msra.mxu0 0.0
    %4573 = vmatprep.subr.mxu0 0.0
    %4574 = vmatpush1.msra.mxu0 0.0
    %4575 = vmatprep.subr.mxu0 0.0
    %4576 = vmatpush1.msra.mxu0 0.0
    %4577 = vmatprep.subr.mxu0 0.0
    %4578 = vmatpush1.msra.mxu0 0.0
    %4579 = vmatprep.subr.mxu0 0.0
    %4580 = vmatpush1.msra.mxu0 0.0
    %4581 = vmatprep.subr.mxu0 0.0
    %4582 = vmatpush1.msra.mxu0 0.0
    %4583 = vmatprep.subr.mxu0 0.0
    %4584 = vmatpush1.msra.mxu0 0.0
    %4585 = vmatprep.subr.mxu0 0.0
    %4586 = vmatpush1.msra.mxu0 0.0
    %4587 = vmatprep.subr.mxu0 0.0
    %4588 = vmatpush1.msra.mxu0 0.0
    %4589 = vmatprep.subr.mxu0 0.0
    %4590 = vmatpush1.msra.mxu0 0.0
    %4591 = vmatprep.subr.mxu0 0.0
    %4592 = vmatpush1.msra.mxu0 0.0
    %4593 = vmatprep.mubr.f32.mxu0 0.0
    %4594 = vmatmul.mubr.f32.gmra.mrb[0].mxu0 %v4528
    %v4595 = vpop.f32.mrb[0].mxu0
    %v4596 = vadd.f32 0.0, %v4595
    %v4597 = vpop.f32.mrb[0].mxu0
    %4598 = vdwg.mxu0
    %4599 = vmatprep.subr.mxu0 0.0
    %4600 = vmatpush1.msra.mxu0 %v210
    %4601 = vmatprep.subr.mxu0 0.0
    %4602 = vmatpush1.msra.mxu0 %v211
    %4603 = vmatprep.subr.mxu0 0.0
    %4604 = vmatpush1.msra.mxu0 %v212
    %4605 = vmatprep.subr.mxu0 0.0
    %4606 = vmatpush1.msra.mxu0 %v213
    %4607 = vmatprep.subr.mxu0 0.0
    %4608 = vmatpush1.msra.mxu0 %v214
    %4609 = vmatprep.subr.mxu0 0.0
    %4610 = vmatpush1.msra.mxu0 %v215
    %4611 = vmatprep.subr.mxu0 0.0
    %4612 = vmatpush1.msra.mxu0 %v216
    %4613 = vmatprep.subr.mxu0 0.0
    %4614 = vmatpush1.msra.mxu0 %v217
    %4615 = vmatprep.subr.mxu0 0.0
    %4616 = vmatpush1.msra.mxu0 %v218
    %4617 = vmatprep.subr.mxu0 0.0
    %4618 = vmatpush1.msra.mxu0 %v219
    %4619 = vmatprep.subr.mxu0 0.0
    %4620 = vmatpush1.msra.mxu0 %v220
    %4621 = vmatprep.subr.mxu0 0.0
    %4622 = vmatpush1.msra.mxu0 %v221
    %4623 = vmatprep.subr.mxu0 0.0
    %4624 = vmatpush1.msra.mxu0 %v222
    %4625 = vmatprep.subr.mxu0 0.0
    %4626 = vmatpush1.msra.mxu0 %v223
    %4627 = vmatprep.subr.mxu0 0.0
    %4628 = vmatpush1.msra.mxu0 %v224
    %4629 = vmatprep.subr.mxu0 0.0
    %4630 = vmatpush1.msra.mxu0 %v225
    %4631 = vmatprep.subr.mxu0 0.0
    %4632 = vmatpush1.msra.mxu0 0.0
    %4633 = vmatprep.subr.mxu0 0.0
    %4634 = vmatpush1.msra.mxu0 0.0
    %4635 = vmatprep.subr.mxu0 0.0
    %4636 = vmatpush1.msra.mxu0 0.0
    %4637 = vmatprep.subr.mxu0 0.0
    %4638 = vmatpush1.msra.mxu0 0.0
    %4639 = vmatprep.subr.mxu0 0.0
    %4640 = vmatpush1.msra.mxu0 0.0
    %4641 = vmatprep.subr.mxu0 0.0
    %4642 = vmatpush1.msra.mxu0 0.0
    %4643 = vmatprep.subr.mxu0 0.0
    %4644 = vmatpush1.msra.mxu0 0.0
    %4645 = vmatprep.subr.mxu0 0.0
    %4646 = vmatpush1.msra.mxu0 0.0
    %4647 = vmatprep.subr.mxu0 0.0
    %4648 = vmatpush1.msra.mxu0 0.0
    %4649 = vmatprep.subr.mxu0 0.0
    %4650 = vmatpush1.msra.mxu0 0.0
    %4651 = vmatprep.subr.mxu0 0.0
    %4652 = vmatpush1.msra.mxu0 0.0
    %4653 = vmatprep.subr.mxu0 0.0
    %4654 = vmatpush1.msra.mxu0 0.0
    %4655 = vmatprep.subr.mxu0 0.0
    %4656 = vmatpush1.msra.mxu0 0.0
    %4657 = vmatprep.subr.mxu0 0.0
    %4658 = vmatpush1.msra.mxu0 0.0
    %4659 = vmatprep.subr.mxu0 0.0
    %4660 = vmatpush1.msra.mxu0 0.0
    %4661 = vmatprep.subr.mxu0 0.0
    %4662 = vmatpush1.msra.mxu0 0.0
    %4663 = vmatprep.mubr.f32.mxu0 0.0
    %4664 = vmatmul.mubr.f32.gmra.mrb[0].mxu0 %v4527
    %v4665 = vpop.f32.mrb[0].mxu0
    %v4666 = vadd.f32 %v4596, %v4665
    %v4667 = vpop.f32.mrb[0].mxu0
    %4668 = vdwg.mxu0
    %v4669 = vadd.f32 %v4666, %v305
    %v4670 = vxor.u32 %v4669, 2147483648
    %v4671 = vmul.f32 %v4670, 1.442695
    %v4672 = vpow.pop %v4671
    %v4673 = vadd.f32 %v4672, 1.0
    %v4674 = vrcp.pop %v4673
    %v4675 = vmul.f32 1.0, %v4674
    %v4676 = vtanh.pop %v4669
    %v4677 = vmul.f32 %v4675, %v2856
    %4679 = vrot.lane.b32.xlu0 %v4676, 32
    %v4680 = vpop.permute.xlu0 %4679
    %v4682 = vmul.f32 %v4675, %v4680
    %4684 = vrot.lane.b32.xlu0 %v4682, 32
    %v4685 = vpop.permute.xlu0 %4684
    %v4687 = vadd.f32 %v4677, %v4685
    %v4688 = vtanh.pop %v4687
    %4690 = vrot.lane.b32.xlu0 %v4688, 32
    %v4691 = vpop.permute.xlu0 %4690
    %v4693 = vmul.f32 %v4675, %v4691
    %4694 = vmatprep.subr.mxu0 0.0
    %4695 = vmatpush1.msra.mxu0 %v189
    %4696 = vmatprep.subr.mxu0 0.0
    %4697 = vmatpush1.msra.mxu0 %v190
    %4698 = vmatprep.subr.mxu0 0.0
    %4699 = vmatpush1.msra.mxu0 %v191
    %4700 = vmatprep.subr.mxu0 0.0
    %4701 = vmatpush1.msra.mxu0 %v192
    %4702 = vmatprep.subr.mxu0 0.0
    %4703 = vmatpush1.msra.mxu0 0.0
    %4704 = vmatprep.subr.mxu0 0.0
    %4705 = vmatpush1.msra.mxu0 0.0
    %4706 = vmatprep.subr.mxu0 0.0
    %4707 = vmatpush1.msra.mxu0 0.0
    %4708 = vmatprep.subr.mxu0 0.0
    %4709 = vmatpush1.msra.mxu0 0.0
    %4710 = vmatprep.subr.mxu0 0.0
    %4711 = vmatpush1.msra.mxu0 0.0
    %4712 = vmatprep.subr.mxu0 0.0
    %4713 = vmatpush1.msra.mxu0 0.0
    %4714 = vmatprep.subr.mxu0 0.0
    %4715 = vmatpush1.msra.mxu0 0.0
    %4716 = vmatprep.subr.mxu0 0.0
    %4717 = vmatpush1.msra.mxu0 0.0
    %4718 = vmatprep.subr.mxu0 0.0
    %4719 = vmatpush1.msra.mxu0 0.0
    %4720 = vmatprep.subr.mxu0 0.0
    %4721 = vmatpush1.msra.mxu0 0.0
    %4722 = vmatprep.subr.mxu0 0.0
    %4723 = vmatpush1.msra.mxu0 0.0
    %4724 = vmatprep.subr.mxu0 0.0
    %4725 = vmatpush1.msra.mxu0 0.0
    %4726 = vmatprep.subr.mxu0 0.0
    %4727 = vmatpush1.msra.mxu0 0.0
    %4728 = vmatprep.subr.mxu0 0.0
    %4729 = vmatpush1.msra.mxu0 0.0
    %4730 = vmatprep.subr.mxu0 0.0
    %4731 = vmatpush1.msra.mxu0 0.0
    %4732 = vmatprep.subr.mxu0 0.0
    %4733 = vmatpush1.msra.mxu0 0.0
    %4734 = vmatprep.subr.mxu0 0.0
    %4735 = vmatpush1.msra.mxu0 0.0
    %4736 = vmatprep.subr.mxu0 0.0
    %4737 = vmatpush1.msra.mxu0 0.0
    %4738 = vmatprep.subr.mxu0 0.0
    %4739 = vmatpush1.msra.mxu0 0.0
    %4740 = vmatprep.subr.mxu0 0.0
    %4741 = vmatpush1.msra.mxu0 0.0
    %4742 = vmatprep.subr.mxu0 0.0
    %4743 = vmatpush1.msra.mxu0 0.0
    %4744 = vmatprep.subr.mxu0 0.0
    %4745 = vmatpush1.msra.mxu0 0.0
    %4746 = vmatprep.subr.mxu0 0.0
    %4747 = vmatpush1.msra.mxu0 0.0
    %4748 = vmatprep.subr.mxu0 0.0
    %4749 = vmatpush1.msra.mxu0 0.0
    %4750 = vmatprep.subr.mxu0 0.0
    %4751 = vmatpush1.msra.mxu0 0.0
    %4752 = vmatprep.subr.mxu0 0.0
    %4753 = vmatpush1.msra.mxu0 0.0
    %4754 = vmatprep.subr.mxu0 0.0
    %4755 = vmatpush1.msra.mxu0 0.0
    %4756 = vmatprep.subr.mxu0 0.0
    %4757 = vmatpush1.msra.mxu0 0.0
    %4758 = vmatprep.mubr.f32.mxu0 0.0
    %4759 = vmatmul.mubr.f32.gmra.mrb[0].mxu0 %v3535
    %v4760 = vpop.f32.mrb[0].mxu0
    %v4761 = vadd.f32 0.0, %v4760
    %v4762 = vpop.f32.mrb[0].mxu0
    %4763 = vdwg.mxu0
    %v4764 = vmul.f32 %v4217, %v297
    %v4765 = vmul.f32 %v302, %v4761
    %4766 = vmatprep.subr.mxu0 0.0
    %4767 = vmatpush1.msra.mxu0 %v277
    %4768 = vmatprep.subr.mxu0 0.0
    %4769 = vmatpush1.msra.mxu0 %v278
    %4770 = vmatprep.subr.mxu0 0.0
    %4771 = vmatpush1.msra.mxu0 %v279
    %4772 = vmatprep.subr.mxu0 0.0
    %4773 = vmatpush1.msra.mxu0 %v280
    %4774 = vmatprep.subr.mxu0 0.0
    %4775 = vmatpush1.msra.mxu0 %v281
    %4776 = vmatprep.subr.mxu0 0.0
    %4777 = vmatpush1.msra.mxu0 %v282
    %4778 = vmatprep.subr.mxu0 0.0
    %4779 = vmatpush1.msra.mxu0 %v283
    %4780 = vmatprep.subr.mxu0 0.0
    %4781 = vmatpush1.msra.mxu0 %v284
    %4782 = vmatprep.subr.mxu0 0.0
    %4783 = vmatpush1.msra.mxu0 %v285
    %4784 = vmatprep.subr.mxu0 0.0
    %4785 = vmatpush1.msra.mxu0 %v286
    %4786 = vmatprep.subr.mxu0 0.0
    %4787 = vmatpush1.msra.mxu0 %v287
    %4788 = vmatprep.subr.mxu0 0.0
    %4789 = vmatpush1.msra.mxu0 %v288
    %4790 = vmatprep.subr.mxu0 0.0
    %4791 = vmatpush1.msra.mxu0 %v289
    %4792 = vmatprep.subr.mxu0 0.0
    %4793 = vmatpush1.msra.mxu0 %v290
    %4794 = vmatprep.subr.mxu0 0.0
    %4795 = vmatpush1.msra.mxu0 %v291
    %4796 = vmatprep.subr.mxu0 0.0
    %4797 = vmatpush1.msra.mxu0 %v292
    %4798 = vmatprep.subr.mxu0 0.0
    %4799 = vmatpush1.msra.mxu0 0.0
    %4800 = vmatprep.subr.mxu0 0.0
    %4801 = vmatpush1.msra.mxu0 0.0
    %4802 = vmatprep.subr.mxu0 0.0
    %4803 = vmatpush1.msra.mxu0 0.0
    %4804 = vmatprep.subr.mxu0 0.0
    %4805 = vmatpush1.msra.mxu0 0.0
    %4806 = vmatprep.subr.mxu0 0.0
    %4807 = vmatpush1.msra.mxu0 0.0
    %4808 = vmatprep.subr.mxu0 0.0
    %4809 = vmatpush1.msra.mxu0 0.0
    %4810 = vmatprep.subr.mxu0 0.0
    %4811 = vmatpush1.msra.mxu0 0.0
    %4812 = vmatprep.subr.mxu0 0.0
    %4813 = vmatpush1.msra.mxu0 0.0
    %4814 = vmatprep.subr.mxu0 0.0
    %4815 = vmatpush1.msra.mxu0 0.0
    %4816 = vmatprep.subr.mxu0 0.0
    %4817 = vmatpush1.msra.mxu0 0.0
    %4818 = vmatprep.subr.mxu0 0.0
    %4819 = vmatpush1.msra.mxu0 0.0
    %4820 = vmatprep.subr.mxu0 0.0
    %4821 = vmatpush1.msra.mxu0 0.0
    %4822 = vmatprep.subr.mxu0 0.0
    %4823 = vmatpush1.msra.mxu0 0.0
    %4824 = vmatprep.subr.mxu0 0.0
    %4825 = vmatpush1.msra.mxu0 0.0
    %4826 = vmatprep.subr.mxu0 0.0
    %4827 = vmatpush1.msra.mxu0 0.0
    %4828 = vmatprep.subr.mxu0 0.0
    %4829 = vmatpush1.msra.mxu0 0.0
    %4830 = vmatprep.mubr.f32.mxu0 0.0
    %4831 = vmatmul.mubr.f32.gmra.mrb[0].mxu0 %v4765
    %v4832 = vpop.f32.mrb[0].mxu0
    %v4833 = vadd.f32 0.0, %v4832
    %v4834 = vpop.f32.mrb[0].mxu0
    %4835 = vdwg.mxu0
    %4836 = vmatprep.subr.mxu0 0.0
    %4837 = vmatpush1.msra.mxu0 %v227
    %4838 = vmatprep.subr.mxu0 0.0
    %4839 = vmatpush1.msra.mxu0 %v228
    %4840 = vmatprep.subr.mxu0 0.0
    %4841 = vmatpush1.msra.mxu0 %v229
    %4842 = vmatprep.subr.mxu0 0.0
    %4843 = vmatpush1.msra.mxu0 %v230
    %4844 = vmatprep.subr.mxu0 0.0
    %4845 = vmatpush1.msra.mxu0 %v231
    %4846 = vmatprep.subr.mxu0 0.0
    %4847 = vmatpush1.msra.mxu0 %v232
    %4848 = vmatprep.subr.mxu0 0.0
    %4849 = vmatpush1.msra.mxu0 %v233
    %4850 = vmatprep.subr.mxu0 0.0
    %4851 = vmatpush1.msra.mxu0 %v234
    %4852 = vmatprep.subr.mxu0 0.0
    %4853 = vmatpush1.msra.mxu0 %v235
    %4854 = vmatprep.subr.mxu0 0.0
    %4855 = vmatpush1.msra.mxu0 %v236
    %4856 = vmatprep.subr.mxu0 0.0
    %4857 = vmatpush1.msra.mxu0 %v237
    %4858 = vmatprep.subr.mxu0 0.0
    %4859 = vmatpush1.msra.mxu0 %v238
    %4860 = vmatprep.subr.mxu0 0.0
    %4861 = vmatpush1.msra.mxu0 %v239
    %4862 = vmatprep.subr.mxu0 0.0
    %4863 = vmatpush1.msra.mxu0 %v240
    %4864 = vmatprep.subr.mxu0 0.0
    %4865 = vmatpush1.msra.mxu0 %v241
    %4866 = vmatprep.subr.mxu0 0.0
    %4867 = vmatpush1.msra.mxu0 %v242
    %4868 = vmatprep.subr.mxu0 0.0
    %4869 = vmatpush1.msra.mxu0 0.0
    %4870 = vmatprep.subr.mxu0 0.0
    %4871 = vmatpush1.msra.mxu0 0.0
    %4872 = vmatprep.subr.mxu0 0.0
    %4873 = vmatpush1.msra.mxu0 0.0
    %4874 = vmatprep.subr.mxu0 0.0
    %4875 = vmatpush1.msra.mxu0 0.0
    %4876 = vmatprep.subr.mxu0 0.0
    %4877 = vmatpush1.msra.mxu0 0.0
    %4878 = vmatprep.subr.mxu0 0.0
    %4879 = vmatpush1.msra.mxu0 0.0
    %4880 = vmatprep.subr.mxu0 0.0
    %4881 = vmatpush1.msra.mxu0 0.0
    %4882 = vmatprep.subr.mxu0 0.0
    %4883 = vmatpush1.msra.mxu0 0.0
    %4884 = vmatprep.subr.mxu0 0.0
    %4885 = vmatpush1.msra.mxu0 0.0
    %4886 = vmatprep.subr.mxu0 0.0
    %4887 = vmatpush1.msra.mxu0 0.0
    %4888 = vmatprep.subr.mxu0 0.0
    %4889 = vmatpush1.msra.mxu0 0.0
    %4890 = vmatprep.subr.mxu0 0.0
    %4891 = vmatpush1.msra.mxu0 0.0
    %4892 = vmatprep.subr.mxu0 0.0
    %4893 = vmatpush1.msra.mxu0 0.0
    %4894 = vmatprep.subr.mxu0 0.0
    %4895 = vmatpush1.msra.mxu0 0.0
    %4896 = vmatprep.subr.mxu0 0.0
    %4897 = vmatpush1.msra.mxu0 0.0
    %4898 = vmatprep.subr.mxu0 0.0
    %4899 = vmatpush1.msra.mxu0 0.0
    %4900 = vmatprep.mubr.f32.mxu0 0.0
    %4901 = vmatmul.mubr.f32.gmra.mrb[0].mxu0 %v4764
    %v4902 = vpop.f32.mrb[0].mxu0
    %v4903 = vadd.f32 %v4833, %v4902
    %v4904 = vpop.f32.mrb[0].mxu0
    %4905 = vdwg.mxu0
    %v4906 = vadd.f32 %v4903, %v307
    %v4907 = vxor.u32 %v4906, 2147483648
    %v4908 = vmul.f32 %v4907, 1.442695
    %v4909 = vpow.pop %v4908
    %v4910 = vadd.f32 %v4909, 1.0
    %v4911 = vrcp.pop %v4910
    %v4912 = vmul.f32 1.0, %v4911
    %v4913 = vtanh.pop %v4906
    %v4914 = vmul.f32 %v4912, %v3093
    %4916 = vrot.lane.b32.xlu0 %v4913, 32
    %v4917 = vpop.permute.xlu0 %4916
    %v4919 = vmul.f32 %v4912, %v4917
    %4921 = vrot.lane.b32.xlu0 %v4919, 32
    %v4922 = vpop.permute.xlu0 %4921
    %v4924 = vadd.f32 %v4914, %v4922
    %v4925 = vtanh.pop %v4924
    %4927 = vrot.lane.b32.xlu0 %v4925, 32
    %v4928 = vpop.permute.xlu0 %4927
    %v4930 = vmul.f32 %v4912, %v4928
    %4932 = vrot.lane.b32.xlu0 %v4456, 64
    %v4933 = vpop.permute.xlu0 %4932
    %v4934 = vsel %vm370, %v4933, 0
    %4936 = vmatprep.subr.mxu0 0.0
    %4937 = vmatpush1.msra.mxu0 %v314
    %4938 = vmatprep.subr.mxu0 0.0
    %4939 = vmatpush1.msra.mxu0 %v315
    %4940 = vmatprep.subr.mxu0 0.0
    %4941 = vmatpush1.msra.mxu0 %v316
    %4942 = vmatprep.subr.mxu0 0.0
    %4943 = vmatpush1.msra.mxu0 %v317
    %4944 = vmatprep.subr.mxu0 0.0
    %4945 = vmatpush1.msra.mxu0 0.0
    %4946 = vmatprep.subr.mxu0 0.0
    %4947 = vmatpush1.msra.mxu0 0.0
    %4948 = vmatprep.subr.mxu0 0.0
    %4949 = vmatpush1.msra.mxu0 0.0
    %4950 = vmatprep.subr.mxu0 0.0
    %4951 = vmatpush1.msra.mxu0 0.0
    %4952 = vmatprep.subr.mxu0 0.0
    %4953 = vmatpush1.msra.mxu0 0.0
    %4954 = vmatprep.subr.mxu0 0.0
    %4955 = vmatpush1.msra.mxu0 0.0
    %4956 = vmatprep.subr.mxu0 0.0
    %4957 = vmatpush1.msra.mxu0 0.0
    %4958 = vmatprep.subr.mxu0 0.0
    %4959 = vmatpush1.msra.mxu0 0.0
    %4960 = vmatprep.subr.mxu0 0.0
    %4961 = vmatpush1.msra.mxu0 0.0
    %4962 = vmatprep.subr.mxu0 0.0
    %4963 = vmatpush1.msra.mxu0 0.0
    %4964 = vmatprep.subr.mxu0 0.0
    %4965 = vmatpush1.msra.mxu0 0.0
    %4966 = vmatprep.subr.mxu0 0.0
    %4967 = vmatpush1.msra.mxu0 0.0
    %4968 = vmatprep.subr.mxu0 0.0
    %4969 = vmatpush1.msra.mxu0 0.0
    %4970 = vmatprep.subr.mxu0 0.0
    %4971 = vmatpush1.msra.mxu0 0.0
    %4972 = vmatprep.subr.mxu0 0.0
    %4973 = vmatpush1.msra.mxu0 0.0
    %4974 = vmatprep.subr.mxu0 0.0
    %4975 = vmatpush1.msra.mxu0 0.0
    %4976 = vmatprep.subr.mxu0 0.0
    %4977 = vmatpush1.msra.mxu0 0.0
    %4978 = vmatprep.subr.mxu0 0.0
    %4979 = vmatpush1.msra.mxu0 0.0
    %4980 = vmatprep.subr.mxu0 0.0
    %4981 = vmatpush1.msra.mxu0 0.0
    %4982 = vmatprep.subr.mxu0 0.0
    %4983 = vmatpush1.msra.mxu0 0.0
    %4984 = vmatprep.subr.mxu0 0.0
    %4985 = vmatpush1.msra.mxu0 0.0
    %4986 = vmatprep.subr.mxu0 0.0
    %4987 = vmatpush1.msra.mxu0 0.0
    %4988 = vmatprep.subr.mxu0 0.0
    %4989 = vmatpush1.msra.mxu0 0.0
    %4990 = vmatprep.subr.mxu0 0.0
    %4991 = vmatpush1.msra.mxu0 0.0
    %4992 = vmatprep.subr.mxu0 0.0
    %4993 = vmatpush1.msra.mxu0 0.0
    %4994 = vmatprep.subr.mxu0 0.0
    %4995 = vmatpush1.msra.mxu0 0.0
    %4996 = vmatprep.subr.mxu0 0.0
    %4997 = vmatpush1.msra.mxu0 0.0
    %4998 = vmatprep.subr.mxu0 0.0
    %4999 = vmatpush1.msra.mxu0 0.0
    %5000 = vmatprep.mubr.f32.mxu0 0.0
    %5001 = vmatmul.mubr.f32.gmra.mrb[0].mxu0 %v4934
    %v5002 = vpop.f32.mrb[0].mxu0
    %v5003 = vadd.f32 0.0, %v5002
    %v5004 = vpop.f32.mrb[0].mxu0
    %5005 = vdwg.mxu0
    %v5008 = vunpack.c.l.s4 1966171168
    %v5009 = vunpack.c.0.s8 %v5008
    %v5010 = vlaneseq
    %v5011 = vshrl.u32 %v5010, 7
    %v5012 = vsub.s32 %v5009, %v5011
    %v5013 = vrot.slane %v5003, %v5012
    %v5014 = vcombine.high %v5013, %v5013
    %v5016 = vunpack.c.l.s4 1966171168
    %v5017 = vunpack.c.0.s8 %v5016
    %v5018 = vlaneseq
    %v5019 = vshrl.u32 %v5018, 7
    %v5020 = vsub.s32 %v5017, %v5019
    %v5021 = vrot.slane %v5013, %v5020
    %v5023 = vunpack.c.l.s4 1966171168
    %v5024 = vunpack.c.0.s8 %v5023
    %v5025 = vlaneseq
    %v5026 = vshrl.u32 %v5025, 7
    %v5027 = vsub.s32 %v5024, %v5026
    %v5028 = vrot.slane %v5014, %v5027
    %v5029 = vlaneseq
    %v5030 = vshrl.u32 %v5029, 7
    %v5031 = vsub.s32 0, %v5030
    %v5032 = vrot.slane %v5021, %v5031
    %v5033 = vlaneseq
    %v5034 = vshrl.u32 %v5033, 7
    %v5035 = vsub.s32 0, %v5034
    %v5036 = vrot.slane %v5028, %v5035
    %v5039 = vadd.f32 %v308, %v5032
    %v5040 = vadd.f32 %v309, %v5036
    %v5041 = vtanh.pop %v5039
    %v5042 = vtanh.pop %v5040
    %v5043 = vmul.f32 %v5041, %v1349
    %v5044 = vmul.f32 %v5042, %v1349
    %v5045 = vsel %vm370, %v5043, 0.0
    %5046 = vadd.xlane.f32.xlu0 %v5045
    %v5047 = vpop.xlane.xlu0 %5046
    %v5048 = vsel %vm370, %v5044, 0.0
    %5049 = vadd.xlane.f32.xlu0 %v5048
    %v5050 = vpop.xlane.xlu0 %5049
    %v5053 = vlaneseq
    %v5054 = vshrl.u32 %v5053, 7
    %v5055 = vsub.s32 %v368, %v5054
    %v5056 = vrot.slane %v5047, %v5055
    %v5057 = vlaneseq
    %v5058 = vshrl.u32 %v5057, 7
    %v5059 = vsub.s32 %v368, %v5058
    %v5060 = vrot.slane %v5050, %v5059
    %v5061 = vsel %vm1369, %v5060, %v5056
    %v5063 = vsel %vm1372, %v5061, -inf
    %5064 = vmax.xlane.f32.xlu0 %v5063
    %v5065 = vpop.xlane.xlu0 %5064
    %v5067 = vlaneseq
    %v5068 = vshrl.u32 %v5067, 7
    %v5069 = vsub.s32 0, %v5068
    %v5070 = vrot.slane %v5065, %v5069
    %v5071 = vlaneseq
    %v5072 = vshrl.u32 %v5071, 7
    %v5073 = vsub.s32 1, %v5072
    %v5074 = vrot.slane %v5065, %v5073
    %v5077 = vsub.f32 %v5047, %v5070
    %v5078 = vsub.f32 %v5050, %v5074
    %v5079 = vmul.f32 %v5077, 1.442695
    %v5080 = vpow.pop %v5079
    %v5081 = vmul.f32 %v5078, 1.442695
    %v5082 = vpow.pop %v5081
    %5085 = vset.pattern.permute.xlu0 0
    %5086 = vperm.xlu0 %5085, %v5080
    %v5087 = vpop.permute.xlu0 %5086
    %5088 = vset.pattern.permute.xlu0 0
    %5089 = vperm.xlu0 %5088, %v5082
    %v5090 = vpop.permute.xlu0 %5089
    %v5091 = vlaneseq
    %v5092 = vshrl.u32 %v5091, 7
    %v5093 = vsub.s32 %v368, %v5092
    %v5094 = vrot.slane %v5087, %v5093
    %v5095 = vlaneseq
    %v5096 = vshrl.u32 %v5095, 7
    %v5097 = vsub.s32 %v368, %v5096
    %v5098 = vrot.slane %v5090, %v5097
    %v5099 = vsel %vm1369, %v5098, %v5094
    %v5101 = vsel %vm1372, %v5099, 0.0
    %5102 = vadd.xlane.f32.xlu0 %v5101
    %v5103 = vpop.xlane.xlu0 %5102
    %v5105 = vlaneseq
    %v5106 = vshrl.u32 %v5105, 7
    %v5107 = vsub.s32 0, %v5106
    %v5108 = vrot.slane %v5103, %v5107
    %v5109 = vlaneseq
    %v5110 = vshrl.u32 %v5109, 7
    %v5111 = vsub.s32 1, %v5110
    %v5112 = vrot.slane %v5103, %v5111
    %v5115 = vrcp.pop %v5108
    %v5116 = vmul.f32 %v5080, %v5115
    %v5117 = vrcp.pop %v5112
    %v5118 = vmul.f32 %v5082, %v5117
    %5120 = vset.pattern.permute.xlu0 0
    %5121 = vperm.xlu0 %5120, %v5116
    %v5122 = vpop.permute.xlu0 %5121
    %5125 = vset.pattern.permute.xlu0 0
    %5126 = vperm.xlu0 %5125, %v5118
    %v5127 = vpop.permute.xlu0 %5126
    %v5129 = vmul.f32 %v5122, %v162
    %v5130 = vmul.f32 %v5127, %v163
    %v5131 = vsel %vm1441, %v5129, 0.0
    %v5132 = vrot.slane %v5131, 4
    %v5133 = vadd.f32 %v5131, %v5132
    %v5134 = vrot.slane %v5133, 2
    %v5135 = vadd.f32 %v5133, %v5134
    %v5136 = vrot.slane %v5135, 1
    %v5137 = vadd.f32 %v5135, %v5136
    %v5138 = vsel %vm1441, %v5130, 0.0
    %v5139 = vrot.slane %v5138, 4
    %v5140 = vadd.f32 %v5138, %v5139
    %v5141 = vrot.slane %v5140, 2
    %v5142 = vadd.f32 %v5140, %v5141
    %v5143 = vrot.slane %v5142, 1
    %v5144 = vadd.f32 %v5142, %v5143
    %v5145 = vadd.f32 %v5137, 0.0
    %v5146 = vadd.f32 %v5144, 0.0
    %5148 = vrot.lane.b32.xlu0 %v4693, 64
    %v5149 = vpop.permute.xlu0 %5148
    %v5150 = vsel %vm370, %v5149, 0
    %5152 = vmatprep.subr.mxu0 0.0
    %5153 = vmatpush1.msra.mxu0 %v319
    %5154 = vmatprep.subr.mxu0 0.0
    %5155 = vmatpush1.msra.mxu0 %v320
    %5156 = vmatprep.subr.mxu0 0.0
    %5157 = vmatpush1.msra.mxu0 %v321
    %5158 = vmatprep.subr.mxu0 0.0
    %5159 = vmatpush1.msra.mxu0 %v322
    %5160 = vmatprep.subr.mxu0 0.0
    %5161 = vmatpush1.msra.mxu0 0.0
    %5162 = vmatprep.subr.mxu0 0.0
    %5163 = vmatpush1.msra.mxu0 0.0
    %5164 = vmatprep.subr.mxu0 0.0
    %5165 = vmatpush1.msra.mxu0 0.0
    %5166 = vmatprep.subr.mxu0 0.0
    %5167 = vmatpush1.msra.mxu0 0.0
    %5168 = vmatprep.subr.mxu0 0.0
    %5169 = vmatpush1.msra.mxu0 0.0
    %5170 = vmatprep.subr.mxu0 0.0
    %5171 = vmatpush1.msra.mxu0 0.0
    %5172 = vmatprep.subr.mxu0 0.0
    %5173 = vmatpush1.msra.mxu0 0.0
    %5174 = vmatprep.subr.mxu0 0.0
    %5175 = vmatpush1.msra.mxu0 0.0
    %5176 = vmatprep.subr.mxu0 0.0
    %5177 = vmatpush1.msra.mxu0 0.0
    %5178 = vmatprep.subr.mxu0 0.0
    %5179 = vmatpush1.msra.mxu0 0.0
    %5180 = vmatprep.subr.mxu0 0.0
    %5181 = vmatpush1.msra.mxu0 0.0
    %5182 = vmatprep.subr.mxu0 0.0
    %5183 = vmatpush1.msra.mxu0 0.0
    %5184 = vmatprep.subr.mxu0 0.0
    %5185 = vmatpush1.msra.mxu0 0.0
    %5186 = vmatprep.subr.mxu0 0.0
    %5187 = vmatpush1.msra.mxu0 0.0
    %5188 = vmatprep.subr.mxu0 0.0
    %5189 = vmatpush1.msra.mxu0 0.0
    %5190 = vmatprep.subr.mxu0 0.0
    %5191 = vmatpush1.msra.mxu0 0.0
    %5192 = vmatprep.subr.mxu0 0.0
    %5193 = vmatpush1.msra.mxu0 0.0
    %5194 = vmatprep.subr.mxu0 0.0
    %5195 = vmatpush1.msra.mxu0 0.0
    %5196 = vmatprep.subr.mxu0 0.0
    %5197 = vmatpush1.msra.mxu0 0.0
    %5198 = vmatprep.subr.mxu0 0.0
    %5199 = vmatpush1.msra.mxu0 0.0
    %5200 = vmatprep.subr.mxu0 0.0
    %5201 = vmatpush1.msra.mxu0 0.0
    %5202 = vmatprep.subr.mxu0 0.0
    %5203 = vmatpush1.msra.mxu0 0.0
    %5204 = vmatprep.subr.mxu0 0.0
    %5205 = vmatpush1.msra.mxu0 0.0
    %5206 = vmatprep.subr.mxu0 0.0
    %5207 = vmatpush1.msra.mxu0 0.0
    %5208 = vmatprep.subr.mxu0 0.0
    %5209 = vmatpush1.msra.mxu0 0.0
    %5210 = vmatprep.subr.mxu0 0.0
    %5211 = vmatpush1.msra.mxu0 0.0
    %5212 = vmatprep.subr.mxu0 0.0
    %5213 = vmatpush1.msra.mxu0 0.0
    %5214 = vmatprep.subr.mxu0 0.0
    %5215 = vmatpush1.msra.mxu0 0.0
    %5216 = vmatprep.mubr.f32.mxu0 0.0
    %5217 = vmatmul.mubr.f32.gmra.mrb[0].mxu0 %v5150
    %v5218 = vpop.f32.mrb[0].mxu0
    %v5219 = vadd.f32 0.0, %v5218
    %v5220 = vpop.f32.mrb[0].mxu0
    %5221 = vdwg.mxu0
    %v5224 = vunpack.c.l.s4 1966171168
    %v5225 = vunpack.c.0.s8 %v5224
    %v5226 = vlaneseq
    %v5227 = vshrl.u32 %v5226, 7
    %v5228 = vsub.s32 %v5225, %v5227
    %v5229 = vrot.slane %v5219, %v5228
    %v5230 = vcombine.high %v5229, %v5229
    %v5232 = vunpack.c.l.s4 1966171168
    %v5233 = vunpack.c.0.s8 %v5232
    %v5234 = vlaneseq
    %v5235 = vshrl.u32 %v5234, 7
    %v5236 = vsub.s32 %v5233, %v5235
    %v5237 = vrot.slane %v5229, %v5236
    %v5239 = vunpack.c.l.s4 1966171168
    %v5240 = vunpack.c.0.s8 %v5239
    %v5241 = vlaneseq
    %v5242 = vshrl.u32 %v5241, 7
    %v5243 = vsub.s32 %v5240, %v5242
    %v5244 = vrot.slane %v5230, %v5243
    %v5245 = vlaneseq
    %v5246 = vshrl.u32 %v5245, 7
    %v5247 = vsub.s32 0, %v5246
    %v5248 = vrot.slane %v5237, %v5247
    %v5249 = vlaneseq
    %v5250 = vshrl.u32 %v5249, 7
    %v5251 = vsub.s32 0, %v5250
    %v5252 = vrot.slane %v5244, %v5251
    %v5255 = vadd.f32 %v310, %v5248
    %v5256 = vadd.f32 %v311, %v5252
    %v5257 = vtanh.pop %v5255
    %v5258 = vtanh.pop %v5256
    %v5259 = vmul.f32 %v5257, %v1574
    %v5260 = vmul.f32 %v5258, %v1574
    %v5261 = vsel %vm370, %v5259, 0.0
    %5262 = vadd.xlane.f32.xlu0 %v5261
    %v5263 = vpop.xlane.xlu0 %5262
    %v5264 = vsel %vm370, %v5260, 0.0
    %5265 = vadd.xlane.f32.xlu0 %v5264
    %v5266 = vpop.xlane.xlu0 %5265
    %v5269 = vlaneseq
    %v5270 = vshrl.u32 %v5269, 7
    %v5271 = vsub.s32 %v368, %v5270
    %v5272 = vrot.slane %v5263, %v5271
    %v5273 = vlaneseq
    %v5274 = vshrl.u32 %v5273, 7
    %v5275 = vsub.s32 %v368, %v5274
    %v5276 = vrot.slane %v5266, %v5275
    %v5277 = vsel %vm1369, %v5276, %v5272
    %v5279 = vsel %vm1372, %v5277, -inf
    %5280 = vmax.xlane.f32.xlu0 %v5279
    %v5281 = vpop.xlane.xlu0 %5280
    %v5283 = vlaneseq
    %v5284 = vshrl.u32 %v5283, 7
    %v5285 = vsub.s32 0, %v5284
    %v5286 = vrot.slane %v5281, %v5285
    %v5287 = vlaneseq
    %v5288 = vshrl.u32 %v5287, 7
    %v5289 = vsub.s32 1, %v5288
    %v5290 = vrot.slane %v5281, %v5289
    %v5293 = vsub.f32 %v5263, %v5286
    %v5294 = vsub.f32 %v5266, %v5290
    %v5295 = vmul.f32 %v5293, 1.442695
    %v5296 = vpow.pop %v5295
    %v5297 = vmul.f32 %v5294, 1.442695
    %v5298 = vpow.pop %v5297
    %5301 = vset.pattern.permute.xlu0 0
    %5302 = vperm.xlu0 %5301, %v5296
    %v5303 = vpop.permute.xlu0 %5302
    %5304 = vset.pattern.permute.xlu0 0
    %5305 = vperm.xlu0 %5304, %v5298
    %v5306 = vpop.permute.xlu0 %5305
    %v5307 = vlaneseq
    %v5308 = vshrl.u32 %v5307, 7
    %v5309 = vsub.s32 %v368, %v5308
    %v5310 = vrot.slane %v5303, %v5309
    %v5311 = vlaneseq
    %v5312 = vshrl.u32 %v5311, 7
    %v5313 = vsub.s32 %v368, %v5312
    %v5314 = vrot.slane %v5306, %v5313
    %v5315 = vsel %vm1369, %v5314, %v5310
    %v5317 = vsel %vm1372, %v5315, 0.0
    %5318 = vadd.xlane.f32.xlu0 %v5317
    %v5319 = vpop.xlane.xlu0 %5318
    %v5321 = vlaneseq
    %v5322 = vshrl.u32 %v5321, 7
    %v5323 = vsub.s32 0, %v5322
    %v5324 = vrot.slane %v5319, %v5323
    %v5325 = vlaneseq
    %v5326 = vshrl.u32 %v5325, 7
    %v5327 = vsub.s32 1, %v5326
    %v5328 = vrot.slane %v5319, %v5327
    %v5331 = vrcp.pop %v5324
    %v5332 = vmul.f32 %v5296, %v5331
    %v5333 = vrcp.pop %v5328
    %v5334 = vmul.f32 %v5298, %v5333
    %5336 = vset.pattern.permute.xlu0 0
    %5337 = vperm.xlu0 %5336, %v5332
    %v5338 = vpop.permute.xlu0 %5337
    %5341 = vset.pattern.permute.xlu0 0
    %5342 = vperm.xlu0 %5341, %v5334
    %v5343 = vpop.permute.xlu0 %5342
    %v5345 = vmul.f32 %v5338, %v162
    %v5346 = vmul.f32 %v5343, %v163
    %v5347 = vsel %vm1441, %v5345, 0.0
    %v5348 = vrot.slane %v5347, 4
    %v5349 = vadd.f32 %v5347, %v5348
    %v5350 = vrot.slane %v5349, 2
    %v5351 = vadd.f32 %v5349, %v5350
    %v5352 = vrot.slane %v5351, 1
    %v5353 = vadd.f32 %v5351, %v5352
    %v5354 = vsel %vm1441, %v5346, 0.0
    %v5355 = vrot.slane %v5354, 4
    %v5356 = vadd.f32 %v5354, %v5355
    %v5357 = vrot.slane %v5356, 2
    %v5358 = vadd.f32 %v5356, %v5357
    %v5359 = vrot.slane %v5358, 1
    %v5360 = vadd.f32 %v5358, %v5359
    %v5361 = vadd.f32 %v5145, %v5353
    %v5362 = vadd.f32 %v5146, %v5360
    %5364 = vrot.lane.b32.xlu0 %v4930, 64
    %v5365 = vpop.permute.xlu0 %5364
    %v5366 = vsel %vm370, %v5365, 0
    %5368 = vmatprep.subr.mxu0 0.0
    %5369 = vmatpush1.msra.mxu0 %v324
    %5370 = vmatprep.subr.mxu0 0.0
    %5371 = vmatpush1.msra.mxu0 %v325
    %5372 = vmatprep.subr.mxu0 0.0
    %5373 = vmatpush1.msra.mxu0 %v326
    %5374 = vmatprep.subr.mxu0 0.0
    %5375 = vmatpush1.msra.mxu0 %v327
    %5376 = vmatprep.subr.mxu0 0.0
    %5377 = vmatpush1.msra.mxu0 0.0
    %5378 = vmatprep.subr.mxu0 0.0
    %5379 = vmatpush1.msra.mxu0 0.0
    %5380 = vmatprep.subr.mxu0 0.0
    %5381 = vmatpush1.msra.mxu0 0.0
    %5382 = vmatprep.subr.mxu0 0.0
    %5383 = vmatpush1.msra.mxu0 0.0
    %5384 = vmatprep.subr.mxu0 0.0
    %5385 = vmatpush1.msra.mxu0 0.0
    %5386 = vmatprep.subr.mxu0 0.0
    %5387 = vmatpush1.msra.mxu0 0.0
    %5388 = vmatprep.subr.mxu0 0.0
    %5389 = vmatpush1.msra.mxu0 0.0
    %5390 = vmatprep.subr.mxu0 0.0
    %5391 = vmatpush1.msra.mxu0 0.0
    %5392 = vmatprep.subr.mxu0 0.0
    %5393 = vmatpush1.msra.mxu0 0.0
    %5394 = vmatprep.subr.mxu0 0.0
    %5395 = vmatpush1.msra.mxu0 0.0
    %5396 = vmatprep.subr.mxu0 0.0
    %5397 = vmatpush1.msra.mxu0 0.0
    %5398 = vmatprep.subr.mxu0 0.0
    %5399 = vmatpush1.msra.mxu0 0.0
    %5400 = vmatprep.subr.mxu0 0.0
    %5401 = vmatpush1.msra.mxu0 0.0
    %5402 = vmatprep.subr.mxu0 0.0
    %5403 = vmatpush1.msra.mxu0 0.0
    %5404 = vmatprep.subr.mxu0 0.0
    %5405 = vmatpush1.msra.mxu0 0.0
    %5406 = vmatprep.subr.mxu0 0.0
    %5407 = vmatpush1.msra.mxu0 0.0
    %5408 = vmatprep.subr.mxu0 0.0
    %5409 = vmatpush1.msra.mxu0 0.0
    %5410 = vmatprep.subr.mxu0 0.0
    %5411 = vmatpush1.msra.mxu0 0.0
    %5412 = vmatprep.subr.mxu0 0.0
    %5413 = vmatpush1.msra.mxu0 0.0
    %5414 = vmatprep.subr.mxu0 0.0
    %5415 = vmatpush1.msra.mxu0 0.0
    %5416 = vmatprep.subr.mxu0 0.0
    %5417 = vmatpush1.msra.mxu0 0.0
    %5418 = vmatprep.subr.mxu0 0.0
    %5419 = vmatpush1.msra.mxu0 0.0
    %5420 = vmatprep.subr.mxu0 0.0
    %5421 = vmatpush1.msra.mxu0 0.0
    %5422 = vmatprep.subr.mxu0 0.0
    %5423 = vmatpush1.msra.mxu0 0.0
    %5424 = vmatprep.subr.mxu0 0.0
    %5425 = vmatpush1.msra.mxu0 0.0
    %5426 = vmatprep.subr.mxu0 0.0
    %5427 = vmatpush1.msra.mxu0 0.0
    %5428 = vmatprep.subr.mxu0 0.0
    %5429 = vmatpush1.msra.mxu0 0.0
    %5430 = vmatprep.subr.mxu0 0.0
    %5431 = vmatpush1.msra.mxu0 0.0
    %5432 = vmatprep.mubr.f32.mxu0 0.0
    %5433 = vmatmul.mubr.f32.gmra.mrb[0].mxu0 %v5366
    %v5434 = vpop.f32.mrb[0].mxu0
    %v5435 = vadd.f32 0.0, %v5434
    %v5436 = vpop.f32.mrb[0].mxu0
    %5437 = vdwg.mxu0
    %v5440 = vunpack.c.l.s4 1966171168
    %v5441 = vunpack.c.0.s8 %v5440
    %v5442 = vlaneseq
    %v5443 = vshrl.u32 %v5442, 7
    %v5444 = vsub.s32 %v5441, %v5443
    %v5445 = vrot.slane %v5435, %v5444
    %v5446 = vcombine.high %v5445, %v5445
    %v5448 = vunpack.c.l.s4 1966171168
    %v5449 = vunpack.c.0.s8 %v5448
    %v5450 = vlaneseq
    %v5451 = vshrl.u32 %v5450, 7
    %v5452 = vsub.s32 %v5449, %v5451
    %v5453 = vrot.slane %v5445, %v5452
    %v5455 = vunpack.c.l.s4 1966171168
    %v5456 = vunpack.c.0.s8 %v5455
    %v5457 = vlaneseq
    %v5458 = vshrl.u32 %v5457, 7
    %v5459 = vsub.s32 %v5456, %v5458
    %v5460 = vrot.slane %v5446, %v5459
    %v5461 = vlaneseq
    %v5462 = vshrl.u32 %v5461, 7
    %v5463 = vsub.s32 0, %v5462
    %v5464 = vrot.slane %v5453, %v5463
    %v5465 = vlaneseq
    %v5466 = vshrl.u32 %v5465, 7
    %v5467 = vsub.s32 0, %v5466
    %v5468 = vrot.slane %v5460, %v5467
    %v5471 = vadd.f32 %v312, %v5464
    %v5472 = vadd.f32 %v313, %v5468
    %v5473 = vtanh.pop %v5471
    %v5474 = vtanh.pop %v5472
    %v5475 = vmul.f32 %v5473, %v1796
    %v5476 = vmul.f32 %v5474, %v1796
    %v5477 = vsel %vm370, %v5475, 0.0
    %5478 = vadd.xlane.f32.xlu0 %v5477
    %v5479 = vpop.xlane.xlu0 %5478
    %v5480 = vsel %vm370, %v5476, 0.0
    %5481 = vadd.xlane.f32.xlu0 %v5480
    %v5482 = vpop.xlane.xlu0 %5481
    %v5485 = vlaneseq
    %v5486 = vshrl.u32 %v5485, 7
    %v5487 = vsub.s32 %v368, %v5486
    %v5488 = vrot.slane %v5479, %v5487
    %v5489 = vlaneseq
    %v5490 = vshrl.u32 %v5489, 7
    %v5491 = vsub.s32 %v368, %v5490
    %v5492 = vrot.slane %v5482, %v5491
    %v5493 = vsel %vm1369, %v5492, %v5488
    %v5495 = vsel %vm1372, %v5493, -inf
    %5496 = vmax.xlane.f32.xlu0 %v5495
    %v5497 = vpop.xlane.xlu0 %5496
    %v5499 = vlaneseq
    %v5500 = vshrl.u32 %v5499, 7
    %v5501 = vsub.s32 0, %v5500
    %v5502 = vrot.slane %v5497, %v5501
    %v5503 = vlaneseq
    %v5504 = vshrl.u32 %v5503, 7
    %v5505 = vsub.s32 1, %v5504
    %v5506 = vrot.slane %v5497, %v5505
    %v5509 = vsub.f32 %v5479, %v5502
    %v5510 = vsub.f32 %v5482, %v5506
    %v5511 = vmul.f32 %v5509, 1.442695
    %v5512 = vpow.pop %v5511
    %v5513 = vmul.f32 %v5510, 1.442695
    %v5514 = vpow.pop %v5513
    %5517 = vset.pattern.permute.xlu0 0
    %5518 = vperm.xlu0 %5517, %v5512
    %v5519 = vpop.permute.xlu0 %5518
    %5520 = vset.pattern.permute.xlu0 0
    %5521 = vperm.xlu0 %5520, %v5514
    %v5522 = vpop.permute.xlu0 %5521
    %v5523 = vlaneseq
    %v5524 = vshrl.u32 %v5523, 7
    %v5525 = vsub.s32 %v368, %v5524
    %v5526 = vrot.slane %v5519, %v5525
    %v5527 = vlaneseq
    %v5528 = vshrl.u32 %v5527, 7
    %v5529 = vsub.s32 %v368, %v5528
    %v5530 = vrot.slane %v5522, %v5529
    %v5531 = vsel %vm1369, %v5530, %v5526
    %v5533 = vsel %vm1372, %v5531, 0.0
    %5534 = vadd.xlane.f32.xlu0 %v5533
    %v5535 = vpop.xlane.xlu0 %5534
    %v5537 = vlaneseq
    %v5538 = vshrl.u32 %v5537, 7
    %v5539 = vsub.s32 0, %v5538
    %v5540 = vrot.slane %v5535, %v5539
    %v5541 = vlaneseq
    %v5542 = vshrl.u32 %v5541, 7
    %v5543 = vsub.s32 1, %v5542
    %v5544 = vrot.slane %v5535, %v5543
    %v5547 = vrcp.pop %v5540
    %v5548 = vmul.f32 %v5512, %v5547
    %v5549 = vrcp.pop %v5544
    %v5550 = vmul.f32 %v5514, %v5549
    %5552 = vset.pattern.permute.xlu0 0
    %5553 = vperm.xlu0 %5552, %v5548
    %v5554 = vpop.permute.xlu0 %5553
    %5557 = vset.pattern.permute.xlu0 0
    %5558 = vperm.xlu0 %5557, %v5550
    %v5559 = vpop.permute.xlu0 %5558
    %v5561 = vmul.f32 %v5554, %v162
    %v5562 = vmul.f32 %v5559, %v163
    %v5563 = vsel %vm1441, %v5561, 0.0
    %v5564 = vrot.slane %v5563, 4
    %v5565 = vadd.f32 %v5563, %v5564
    %v5566 = vrot.slane %v5565, 2
    %v5567 = vadd.f32 %v5565, %v5566
    %v5568 = vrot.slane %v5567, 1
    %v5569 = vadd.f32 %v5567, %v5568
    %v5570 = vsel %vm1441, %v5562, 0.0
    %v5571 = vrot.slane %v5570, 4
    %v5572 = vadd.f32 %v5570, %v5571
    %v5573 = vrot.slane %v5572, 2
    %v5574 = vadd.f32 %v5572, %v5573
    %v5575 = vrot.slane %v5574, 1
    %v5576 = vadd.f32 %v5574, %v5575
    %v5577 = vadd.f32 %v5361, %v5569
    %v5578 = vadd.f32 %v5362, %v5576
    %v5579 = vmul.f32 %v5577, 0.33333334
    %v5580 = vmul.f32 %v5578, 0.33333334
    %v5583 = vsel %vm1369, %v5580, %v5579
    %v5584 = vsel %vm1441, %v5583, 0
    %5586 = vmatprep.subr.mxu0 0.0
    %5587 = vmatpush1.msra.mxu0 %v337
    %5588 = vmatprep.subr.mxu0 0.0
    %5589 = vmatpush1.msra.mxu0 %v338
    %5590 = vmatprep.subr.mxu0 0.0
    %5591 = vmatpush1.msra.mxu0 %v339
    %5592 = vmatprep.subr.mxu0 0.0
    %5593 = vmatpush1.msra.mxu0 %v340
    %5594 = vmatprep.subr.mxu0 0.0
    %5595 = vmatpush1.msra.mxu0 %v341
    %5596 = vmatprep.subr.mxu0 0.0
    %5597 = vmatpush1.msra.mxu0 %v342
    %5598 = vmatprep.subr.mxu0 0.0
    %5599 = vmatpush1.msra.mxu0 %v343
    %5600 = vmatprep.subr.mxu0 0.0
    %5601 = vmatpush1.msra.mxu0 %v344
    %5602 = vmatprep.subr.mxu0 0.0
    %5603 = vmatpush1.msra.mxu0 0.0
    %5604 = vmatprep.subr.mxu0 0.0
    %5605 = vmatpush1.msra.mxu0 0.0
    %5606 = vmatprep.subr.mxu0 0.0
    %5607 = vmatpush1.msra.mxu0 0.0
    %5608 = vmatprep.subr.mxu0 0.0
    %5609 = vmatpush1.msra.mxu0 0.0
    %5610 = vmatprep.subr.mxu0 0.0
    %5611 = vmatpush1.msra.mxu0 0.0
    %5612 = vmatprep.subr.mxu0 0.0
    %5613 = vmatpush1.msra.mxu0 0.0
    %5614 = vmatprep.subr.mxu0 0.0
    %5615 = vmatpush1.msra.mxu0 0.0
    %5616 = vmatprep.subr.mxu0 0.0
    %5617 = vmatpush1.msra.mxu0 0.0
    %5618 = vmatprep.subr.mxu0 0.0
    %5619 = vmatpush1.msra.mxu0 0.0
    %5620 = vmatprep.subr.mxu0 0.0
    %5621 = vmatpush1.msra.mxu0 0.0
    %5622 = vmatprep.subr.mxu0 0.0
    %5623 = vmatpush1.msra.mxu0 0.0
    %5624 = vmatprep.subr.mxu0 0.0
    %5625 = vmatpush1.msra.mxu0 0.0
    %5626 = vmatprep.subr.mxu0 0.0
    %5627 = vmatpush1.msra.mxu0 0.0
    %5628 = vmatprep.subr.mxu0 0.0
    %5629 = vmatpush1.msra.mxu0 0.0
    %5630 = vmatprep.subr.mxu0 0.0
    %5631 = vmatpush1.msra.mxu0 0.0
    %5632 = vmatprep.subr.mxu0 0.0
    %5633 = vmatpush1.msra.mxu0 0.0
    %5634 = vmatprep.subr.mxu0 0.0
    %5635 = vmatpush1.msra.mxu0 0.0
    %5636 = vmatprep.subr.mxu0 0.0
    %5637 = vmatpush1.msra.mxu0 0.0
    %5638 = vmatprep.subr.mxu0 0.0
    %5639 = vmatpush1.msra.mxu0 0.0
    %5640 = vmatprep.subr.mxu0 0.0
    %5641 = vmatpush1.msra.mxu0 0.0
    %5642 = vmatprep.subr.mxu0 0.0
    %5643 = vmatpush1.msra.mxu0 0.0
    %5644 = vmatprep.subr.mxu0 0.0
    %5645 = vmatpush1.msra.mxu0 0.0
    %5646 = vmatprep.subr.mxu0 0.0
    %5647 = vmatpush1.msra.mxu0 0.0
    %5648 = vmatprep.subr.mxu0 0.0
    %5649 = vmatpush1.msra.mxu0 0.0
    %5650 = vmatprep.mubr.f32.mxu0 0.0
    %5651 = vmatmul.mubr.f32.gmra.mrb[0].mxu0 %v5584
    %v5652 = vpop.f32.mrb[0].mxu0
    %v5653 = vadd.f32 0.0, %v5652
    %v5654 = vpop.f32.mrb[0].mxu0
    %5655 = vdwg.mxu0
    %5656 = vmatprep.subr.mxu0 0.0
    %5657 = vmatpush1.msra.mxu0 %v333
    %5658 = vmatprep.subr.mxu0 0.0
    %5659 = vmatpush1.msra.mxu0 %v334
    %5660 = vmatprep.subr.mxu0 0.0
    %5661 = vmatpush1.msra.mxu0 %v335
    %5662 = vmatprep.subr.mxu0 0.0
    %5663 = vmatpush1.msra.mxu0 %v336
    %5664 = vmatprep.subr.mxu0 0.0
    %5665 = vmatpush1.msra.mxu0 0.0
    %5666 = vmatprep.subr.mxu0 0.0
    %5667 = vmatpush1.msra.mxu0 0.0
    %5668 = vmatprep.subr.mxu0 0.0
    %5669 = vmatpush1.msra.mxu0 0.0
    %5670 = vmatprep.subr.mxu0 0.0
    %5671 = vmatpush1.msra.mxu0 0.0
    %5672 = vmatprep.subr.mxu0 0.0
    %5673 = vmatpush1.msra.mxu0 0.0
    %5674 = vmatprep.subr.mxu0 0.0
    %5675 = vmatpush1.msra.mxu0 0.0
    %5676 = vmatprep.subr.mxu0 0.0
    %5677 = vmatpush1.msra.mxu0 0.0
    %5678 = vmatprep.subr.mxu0 0.0
    %5679 = vmatpush1.msra.mxu0 0.0
    %5680 = vmatprep.subr.mxu0 0.0
    %5681 = vmatpush1.msra.mxu0 0.0
    %5682 = vmatprep.subr.mxu0 0.0
    %5683 = vmatpush1.msra.mxu0 0.0
    %5684 = vmatprep.subr.mxu0 0.0
    %5685 = vmatpush1.msra.mxu0 0.0
    %5686 = vmatprep.subr.mxu0 0.0
    %5687 = vmatpush1.msra.mxu0 0.0
    %5688 = vmatprep.subr.mxu0 0.0
    %5689 = vmatpush1.msra.mxu0 0.0
    %5690 = vmatprep.subr.mxu0 0.0
    %5691 = vmatpush1.msra.mxu0 0.0
    %5692 = vmatprep.subr.mxu0 0.0
    %5693 = vmatpush1.msra.mxu0 0.0
    %5694 = vmatprep.subr.mxu0 0.0
    %5695 = vmatpush1.msra.mxu0 0.0
    %5696 = vmatprep.subr.mxu0 0.0
    %5697 = vmatpush1.msra.mxu0 0.0
    %5698 = vmatprep.subr.mxu0 0.0
    %5699 = vmatpush1.msra.mxu0 0.0
    %5700 = vmatprep.subr.mxu0 0.0
    %5701 = vmatpush1.msra.mxu0 0.0
    %5702 = vmatprep.subr.mxu0 0.0
    %5703 = vmatpush1.msra.mxu0 0.0
    %5704 = vmatprep.subr.mxu0 0.0
    %5705 = vmatpush1.msra.mxu0 0.0
    %5706 = vmatprep.subr.mxu0 0.0
    %5707 = vmatpush1.msra.mxu0 0.0
    %5708 = vmatprep.subr.mxu0 0.0
    %5709 = vmatpush1.msra.mxu0 0.0
    %5710 = vmatprep.subr.mxu0 0.0
    %5711 = vmatpush1.msra.mxu0 0.0
    %5712 = vmatprep.subr.mxu0 0.0
    %5713 = vmatpush1.msra.mxu0 0.0
    %5714 = vmatprep.subr.mxu0 0.0
    %5715 = vmatpush1.msra.mxu0 0.0
    %5716 = vmatprep.subr.mxu0 0.0
    %5717 = vmatpush1.msra.mxu0 0.0
    %5718 = vmatprep.subr.mxu0 0.0
    %5719 = vmatpush1.msra.mxu0 0.0
    %5720 = vmatprep.mubr.f32.mxu0 0.0
    %5721 = vmatmul.mubr.f32.gmra.mrb[0].mxu0 %v3921
    %v5722 = vpop.f32.mrb[0].mxu0
    %v5723 = vadd.f32 %v5653, %v5722
    %v5724 = vpop.f32.mrb[0].mxu0
    %5725 = vdwg.mxu0
    %v5726 = vadd.f32 %v5723, %v2056
    %v5727 = vxor.u32 %v5726, 2147483648
    %v5728 = vmul.f32 %v5727, 1.442695
    %v5729 = vpow.pop %v5728
    %v5730 = vadd.f32 %v5729, 1.0
    %v5731 = vrcp.pop %v5730
    %v5732 = vmul.f32 1.0, %v5731
    %v5734 = vmul.f32 %v5732, %v4933
    %v5735 = vsub.f32 1.0, %v5732
    %v5737 = vmul.f32 %v5735, %v5149
    %v5738 = vadd.f32 %v5734, %v5737
    %5740 = vrot.lane.b32.xlu0 %v5738, 32
    %v5741 = vpop.permute.xlu0 %5740
    %v5743 = vmul.f32 %v5732, %v5741
    %5744 = vrot.lane.b32.xlu0 %v4930, 96
    %v5745 = vpop.permute.xlu0 %5744
    %v5747 = vmul.f32 %v5735, %v5745
    %v5748 = vadd.f32 %v5743, %v5747
    %5750 = vrot.lane.b32.xlu0 %v5748, 96
    %v5751 = vpop.permute.xlu0 %5750
    %v5752 = vsel %vm370, %v5751, 0
    %5754 = vmatprep.subr.mxu0 0.0
    %5755 = vmatpush1.msra.mxu0 %v346
    %5756 = vmatprep.subr.mxu0 0.0
    %5757 = vmatpush1.msra.mxu0 %v347
    %5758 = vmatprep.subr.mxu0 0.0
    %5759 = vmatpush1.msra.mxu0 %v348
    %5760 = vmatprep.subr.mxu0 0.0
    %5761 = vmatpush1.msra.mxu0 %v349
    %5762 = vmatprep.subr.mxu0 0.0
    %5763 = vmatpush1.msra.mxu0 0.0
    %5764 = vmatprep.subr.mxu0 0.0
    %5765 = vmatpush1.msra.mxu0 0.0
    %5766 = vmatprep.subr.mxu0 0.0
    %5767 = vmatpush1.msra.mxu0 0.0
    %5768 = vmatprep.subr.mxu0 0.0
    %5769 = vmatpush1.msra.mxu0 0.0
    %5770 = vmatprep.subr.mxu0 0.0
    %5771 = vmatpush1.msra.mxu0 0.0
    %5772 = vmatprep.subr.mxu0 0.0
    %5773 = vmatpush1.msra.mxu0 0.0
    %5774 = vmatprep.subr.mxu0 0.0
    %5775 = vmatpush1.msra.mxu0 0.0
    %5776 = vmatprep.subr.mxu0 0.0
    %5777 = vmatpush1.msra.mxu0 0.0
    %5778 = vmatprep.subr.mxu0 0.0
    %5779 = vmatpush1.msra.mxu0 0.0
    %5780 = vmatprep.subr.mxu0 0.0
    %5781 = vmatpush1.msra.mxu0 0.0
    %5782 = vmatprep.subr.mxu0 0.0
    %5783 = vmatpush1.msra.mxu0 0.0
    %5784 = vmatprep.subr.mxu0 0.0
    %5785 = vmatpush1.msra.mxu0 0.0
    %5786 = vmatprep.subr.mxu0 0.0
    %5787 = vmatpush1.msra.mxu0 0.0
    %5788 = vmatprep.subr.mxu0 0.0
    %5789 = vmatpush1.msra.mxu0 0.0
    %5790 = vmatprep.subr.mxu0 0.0
    %5791 = vmatpush1.msra.mxu0 0.0
    %5792 = vmatprep.subr.mxu0 0.0
    %5793 = vmatpush1.msra.mxu0 0.0
    %5794 = vmatprep.subr.mxu0 0.0
    %5795 = vmatpush1.msra.mxu0 0.0
    %5796 = vmatprep.subr.mxu0 0.0
    %5797 = vmatpush1.msra.mxu0 0.0
    %5798 = vmatprep.subr.mxu0 0.0
    %5799 = vmatpush1.msra.mxu0 0.0
    %5800 = vmatprep.subr.mxu0 0.0
    %5801 = vmatpush1.msra.mxu0 0.0
    %5802 = vmatprep.subr.mxu0 0.0
    %5803 = vmatpush1.msra.mxu0 0.0
    %5804 = vmatprep.subr.mxu0 0.0
    %5805 = vmatpush1.msra.mxu0 0.0
    %5806 = vmatprep.subr.mxu0 0.0
    %5807 = vmatpush1.msra.mxu0 0.0
    %5808 = vmatprep.subr.mxu0 0.0
    %5809 = vmatpush1.msra.mxu0 0.0
    %5810 = vmatprep.subr.mxu0 0.0
    %5811 = vmatpush1.msra.mxu0 0.0
    %5812 = vmatprep.subr.mxu0 0.0
    %5813 = vmatpush1.msra.mxu0 0.0
    %5814 = vmatprep.subr.mxu0 0.0
    %5815 = vmatpush1.msra.mxu0 0.0
    %5816 = vmatprep.subr.mxu0 0.0
    %5817 = vmatpush1.msra.mxu0 0.0
    %5818 = vmatprep.mubr.f32.mxu0 0.0
    %5819 = vmatmul.mubr.f32.gmra.mrb[0].mxu0 %v5752
    %v5820 = vpop.f32.mrb[0].mxu0
    %v5821 = vadd.f32 %v2085, %v5820
    %v5822 = vpop.f32.mrb[0].mxu0
    %5823 = vdwg.mxu0
    %s5824 = scalar_lea.vmem %s22, 4
    %5825 = vst [vmem:[%s5824] sm:$0x3] %v5821
    %v5826 = vsel %vm2163, %v5821, -inf
    %5827 = vmax.xlane.f32.xlu0 %v5826
    %v5828 = vpop.xlane.xlu0 %5827
    %vm5829 = vcmp.eq.f32.partialorder %v5821, %v5828
    %v5830 = vsel %vm5829, %v369, 128.0
    %v5831 = vsel %vm2163, %v5830, inf
    %5832 = vmin.xlane.f32.xlu0 %v5831
    %v5833 = vpop.xlane.xlu0 %5832
    %vm5834 = vcmp.eq.f32.partialorder %v369, %v5833
    %v5835 = vsel %vm5834, 1, 0
    %v5836 = vcvt.s32.f32 %v5835
    %5837 = vmatprep.subr.mxu0 0.0
    %5838 = vmatpush1.msra.mxu0 %v351
    %5839 = vmatprep.subr.mxu0 0.0
    %5840 = vmatpush1.msra.mxu0 %v352
    %5841 = vmatprep.subr.mxu0 0.0
    %5842 = vmatpush1.msra.mxu0 %v353
    %5843 = vmatprep.subr.mxu0 0.0
    %5844 = vmatpush1.msra.mxu0 %v354
    %5845 = vmatprep.subr.mxu0 0.0
    %5846 = vmatpush1.msra.mxu0 %v355
    %5847 = vmatprep.subr.mxu0 0.0
    %5848 = vmatpush1.msra.mxu0 %v356
    %5849 = vmatprep.subr.mxu0 0.0
    %5850 = vmatpush1.msra.mxu0 %v357
    %5851 = vmatprep.subr.mxu0 0.0
    %5852 = vmatpush1.msra.mxu0 %v358
    %5853 = vmatprep.subr.mxu0 0.0
    %5854 = vmatpush1.msra.mxu0 %v359
    %5855 = vmatprep.subr.mxu0 0.0
    %5856 = vmatpush1.msra.mxu0 %v360
    %5857 = vmatprep.subr.mxu0 0.0
    %5858 = vmatpush1.msra.mxu0 %v361
    %5859 = vmatprep.subr.mxu0 0.0
    %5860 = vmatpush1.msra.mxu0 %v362
    %5861 = vmatprep.subr.mxu0 0.0
    %5862 = vmatpush1.msra.mxu0 %v363
    %5863 = vmatprep.subr.mxu0 0.0
    %5864 = vmatpush1.msra.mxu0 %v364
    %5865 = vmatprep.subr.mxu0 0.0
    %5866 = vmatpush1.msra.mxu0 %v365
    %5867 = vmatprep.subr.mxu0 0.0
    %5868 = vmatpush1.msra.mxu0 %v366
    %5869 = vmatprep.subr.mxu0 0.0
    %5870 = vmatpush1.msra.mxu0 0.0
    %5871 = vmatprep.subr.mxu0 0.0
    %5872 = vmatpush1.msra.mxu0 0.0
    %5873 = vmatprep.subr.mxu0 0.0
    %5874 = vmatpush1.msra.mxu0 0.0
    %5875 = vmatprep.subr.mxu0 0.0
    %5876 = vmatpush1.msra.mxu0 0.0
    %5877 = vmatprep.subr.mxu0 0.0
    %5878 = vmatpush1.msra.mxu0 0.0
    %5879 = vmatprep.subr.mxu0 0.0
    %5880 = vmatpush1.msra.mxu0 0.0
    %5881 = vmatprep.subr.mxu0 0.0
    %5882 = vmatpush1.msra.mxu0 0.0
    %5883 = vmatprep.subr.mxu0 0.0
    %5884 = vmatpush1.msra.mxu0 0.0
    %5885 = vmatprep.subr.mxu0 0.0
    %5886 = vmatpush1.msra.mxu0 0.0
    %5887 = vmatprep.subr.mxu0 0.0
    %5888 = vmatpush1.msra.mxu0 0.0
    %5889 = vmatprep.subr.mxu0 0.0
    %5890 = vmatpush1.msra.mxu0 0.0
    %5891 = vmatprep.subr.mxu0 0.0
    %5892 = vmatpush1.msra.mxu0 0.0
    %5893 = vmatprep.subr.mxu0 0.0
    %5894 = vmatpush1.msra.mxu0 0.0
    %5895 = vmatprep.subr.mxu0 0.0
    %5896 = vmatpush1.msra.mxu0 0.0
    %5897 = vmatprep.subr.mxu0 0.0
    %5898 = vmatpush1.msra.mxu0 0.0
    %5899 = vmatprep.subr.mxu0 0.0
    %5900 = vmatpush1.msra.mxu0 0.0
    %5901 = vmatprep.mubr.f32.mxu0 0.0
    %5902 = vmatmul.mubr.f32.gmra.mrb[0].mxu0 %v5836
    %v5903 = vpop.f32.mrb[0].mxu0
    %v5904 = vadd.f32 0.0, %v5903
    %v5905 = vpop.f32.mrb[0].mxu0
    %5906 = vdwg.mxu0
    %v5908 = vsel %vm370, %v5904, 0
    %5910 = vmatprep.subr.mxu0 %v168
    %5911 = vmatpush1.msra.mxu0 %v167
    %5912 = vmatprep.subr.mxu0 %v171
    %5913 = vmatpush1.msra.mxu0 %v170
    %5914 = vmatprep.subr.mxu0 %v174
    %5915 = vmatpush1.msra.mxu0 %v173
    %5916 = vmatprep.subr.mxu0 %v177
    %5917 = vmatpush1.msra.mxu0 %v176
    %5918 = vmatprep.subr.mxu0 0.0
    %5919 = vmatpush1.msra.mxu0 0.0
    %5920 = vmatprep.subr.mxu0 0.0
    %5921 = vmatpush1.msra.mxu0 0.0
    %5922 = vmatprep.subr.mxu0 0.0
    %5923 = vmatpush1.msra.mxu0 0.0
    %5924 = vmatprep.subr.mxu0 0.0
    %5925 = vmatpush1.msra.mxu0 0.0
    %5926 = vmatprep.subr.mxu0 0.0
    %5927 = vmatpush1.msra.mxu0 0.0
    %5928 = vmatprep.subr.mxu0 0.0
    %5929 = vmatpush1.msra.mxu0 0.0
    %5930 = vmatprep.subr.mxu0 0.0
    %5931 = vmatpush1.msra.mxu0 0.0
    %5932 = vmatprep.subr.mxu0 0.0
    %5933 = vmatpush1.msra.mxu0 0.0
    %5934 = vmatprep.subr.mxu0 0.0
    %5935 = vmatpush1.msra.mxu0 0.0
    %5936 = vmatprep.subr.mxu0 0.0
    %5937 = vmatpush1.msra.mxu0 0.0
    %5938 = vmatprep.subr.mxu0 0.0
    %5939 = vmatpush1.msra.mxu0 0.0
    %5940 = vmatprep.subr.mxu0 0.0
    %5941 = vmatpush1.msra.mxu0 0.0
    %5942 = vmatprep.subr.mxu0 0.0
    %5943 = vmatpush1.msra.mxu0 0.0
    %5944 = vmatprep.subr.mxu0 0.0
    %5945 = vmatpush1.msra.mxu0 0.0
    %5946 = vmatprep.subr.mxu0 0.0
    %5947 = vmatpush1.msra.mxu0 0.0
    %5948 = vmatprep.subr.mxu0 0.0
    %5949 = vmatpush1.msra.mxu0 0.0
    %5950 = vmatprep.subr.mxu0 0.0
    %5951 = vmatpush1.msra.mxu0 0.0
    %5952 = vmatprep.subr.mxu0 0.0
    %5953 = vmatpush1.msra.mxu0 0.0
    %5954 = vmatprep.subr.mxu0 0.0
    %5955 = vmatpush1.msra.mxu0 0.0
    %5956 = vmatprep.subr.mxu0 0.0
    %5957 = vmatpush1.msra.mxu0 0.0
    %5958 = vmatprep.subr.mxu0 0.0
    %5959 = vmatpush1.msra.mxu0 0.0
    %5960 = vmatprep.subr.mxu0 0.0
    %5961 = vmatpush1.msra.mxu0 0.0
    %5962 = vmatprep.subr.mxu0 0.0
    %5963 = vmatpush1.msra.mxu0 0.0
    %5964 = vmatprep.subr.mxu0 0.0
    %5965 = vmatpush1.msra.mxu0 0.0
    %5966 = vmatprep.subr.mxu0 0.0
    %5967 = vmatpush1.msra.mxu0 0.0
    %5968 = vmatprep.subr.mxu0 0.0
    %5969 = vmatpush1.msra.mxu0 0.0
    %5970 = vmatprep.subr.mxu0 0.0
    %5971 = vmatpush1.msra.mxu0 0.0
    %5972 = vmatprep.subr.mxu0 0.0
    %5973 = vmatpush1.msra.mxu0 0.0
    %5974 = vmatprep.mubr.f32.mxu0 0.0
    %5975 = vmatmul.mubr.f32.gmra.mrb[0].mxu0 %v5908
    %v5976 = vpop.f32.mrb[0].mxu0
    %v5977 = vadd.f32 0.0, %v5976
    %v5978 = vpop.f32.mrb[0].mxu0
    %v5979 = vadd.f32 0.0, %v5978
    %5980 = vdwg.mxu0
    %5981 = vmatprep.subr.mxu0 0.0
    %5982 = vmatpush1.msra.mxu0 %v169
    %5983 = vmatprep.subr.mxu0 0.0
    %5984 = vmatpush1.msra.mxu0 %v172
    %5985 = vmatprep.subr.mxu0 0.0
    %5986 = vmatpush1.msra.mxu0 %v175
    %5987 = vmatprep.subr.mxu0 0.0
    %5988 = vmatpush1.msra.mxu0 %v178
    %5989 = vmatprep.subr.mxu0 0.0
    %5990 = vmatpush1.msra.mxu0 0.0
    %5991 = vmatprep.subr.mxu0 0.0
    %5992 = vmatpush1.msra.mxu0 0.0
    %5993 = vmatprep.subr.mxu0 0.0
    %5994 = vmatpush1.msra.mxu0 0.0
    %5995 = vmatprep.subr.mxu0 0.0
    %5996 = vmatpush1.msra.mxu0 0.0
    %5997 = vmatprep.subr.mxu0 0.0
    %5998 = vmatpush1.msra.mxu0 0.0
    %5999 = vmatprep.subr.mxu0 0.0
    %6000 = vmatpush1.msra.mxu0 0.0
    %6001 = vmatprep.subr.mxu0 0.0
    %6002 = vmatpush1.msra.mxu0 0.0
    %6003 = vmatprep.subr.mxu0 0.0
    %6004 = vmatpush1.msra.mxu0 0.0
    %6005 = vmatprep.subr.mxu0 0.0
    %6006 = vmatpush1.msra.mxu0 0.0
    %6007 = vmatprep.subr.mxu0 0.0
    %6008 = vmatpush1.msra.mxu0 0.0
    %6009 = vmatprep.subr.mxu0 0.0
    %6010 = vmatpush1.msra.mxu0 0.0
    %6011 = vmatprep.subr.mxu0 0.0
    %6012 = vmatpush1.msra.mxu0 0.0
    %6013 = vmatprep.subr.mxu0 0.0
    %6014 = vmatpush1.msra.mxu0 0.0
    %6015 = vmatprep.subr.mxu0 0.0
    %6016 = vmatpush1.msra.mxu0 0.0
    %6017 = vmatprep.subr.mxu0 0.0
    %6018 = vmatpush1.msra.mxu0 0.0
    %6019 = vmatprep.subr.mxu0 0.0
    %6020 = vmatpush1.msra.mxu0 0.0
    %6021 = vmatprep.subr.mxu0 0.0
    %6022 = vmatpush1.msra.mxu0 0.0
    %6023 = vmatprep.subr.mxu0 0.0
    %6024 = vmatpush1.msra.mxu0 0.0
    %6025 = vmatprep.subr.mxu0 0.0
    %6026 = vmatpush1.msra.mxu0 0.0
    %6027 = vmatprep.subr.mxu0 0.0
    %6028 = vmatpush1.msra.mxu0 0.0
    %6029 = vmatprep.subr.mxu0 0.0
    %6030 = vmatpush1.msra.mxu0 0.0
    %6031 = vmatprep.subr.mxu0 0.0
    %6032 = vmatpush1.msra.mxu0 0.0
    %6033 = vmatprep.subr.mxu0 0.0
    %6034 = vmatpush1.msra.mxu0 0.0
    %6035 = vmatprep.subr.mxu0 0.0
    %6036 = vmatpush1.msra.mxu0 0.0
    %6037 = vmatprep.subr.mxu0 0.0
    %6038 = vmatpush1.msra.mxu0 0.0
    %6039 = vmatprep.subr.mxu0 0.0
    %6040 = vmatpush1.msra.mxu0 0.0
    %6041 = vmatprep.subr.mxu0 0.0
    %6042 = vmatpush1.msra.mxu0 0.0
    %6043 = vmatprep.subr.mxu0 0.0
    %6044 = vmatpush1.msra.mxu0 0.0
    %6045 = vmatprep.mubr.f32.mxu0 0.0
    %6046 = vmatmul.mubr.f32.gmra.mrb[0].mxu0 %v5908
    %v6047 = vpop.f32.mrb[0].mxu0
    %v6048 = vadd.f32 0.0, %v6047
    %v6049 = vpop.f32.mrb[0].mxu0
    %6050 = vdwg.mxu0
    %6051 = vmatprep.subr.mxu0 0.0
    %6052 = vmatpush1.msra.mxu0 %v179
    %6053 = vmatprep.subr.mxu0 0.0
    %6054 = vmatpush1.msra.mxu0 %v180
    %6055 = vmatprep.subr.mxu0 0.0
    %6056 = vmatpush1.msra.mxu0 %v181
    %6057 = vmatprep.subr.mxu0 0.0
    %6058 = vmatpush1.msra.mxu0 %v182
    %6059 = vmatprep.subr.mxu0 0.0
    %6060 = vmatpush1.msra.mxu0 0.0
    %6061 = vmatprep.subr.mxu0 0.0
    %6062 = vmatpush1.msra.mxu0 0.0
    %6063 = vmatprep.subr.mxu0 0.0
    %6064 = vmatpush1.msra.mxu0 0.0
    %6065 = vmatprep.subr.mxu0 0.0
    %6066 = vmatpush1.msra.mxu0 0.0
    %6067 = vmatprep.subr.mxu0 0.0
    %6068 = vmatpush1.msra.mxu0 0.0
    %6069 = vmatprep.subr.mxu0 0.0
    %6070 = vmatpush1.msra.mxu0 0.0
    %6071 = vmatprep.subr.mxu0 0.0
    %6072 = vmatpush1.msra.mxu0 0.0
    %6073 = vmatprep.subr.mxu0 0.0
    %6074 = vmatpush1.msra.mxu0 0.0
    %6075 = vmatprep.subr.mxu0 0.0
    %6076 = vmatpush1.msra.mxu0 0.0
    %6077 = vmatprep.subr.mxu0 0.0
    %6078 = vmatpush1.msra.mxu0 0.0
    %6079 = vmatprep.subr.mxu0 0.0
    %6080 = vmatpush1.msra.mxu0 0.0
    %6081 = vmatprep.subr.mxu0 0.0
    %6082 = vmatpush1.msra.mxu0 0.0
    %6083 = vmatprep.subr.mxu0 0.0
    %6084 = vmatpush1.msra.mxu0 0.0
    %6085 = vmatprep.subr.mxu0 0.0
    %6086 = vmatpush1.msra.mxu0 0.0
    %6087 = vmatprep.subr.mxu0 0.0
    %6088 = vmatpush1.msra.mxu0 0.0
    %6089 = vmatprep.subr.mxu0 0.0
    %6090 = vmatpush1.msra.mxu0 0.0
    %6091 = vmatprep.subr.mxu0 0.0
    %6092 = vmatpush1.msra.mxu0 0.0
    %6093 = vmatprep.subr.mxu0 0.0
    %6094 = vmatpush1.msra.mxu0 0.0
    %6095 = vmatprep.subr.mxu0 0.0
    %6096 = vmatpush1.msra.mxu0 0.0
    %6097 = vmatprep.subr.mxu0 0.0
    %6098 = vmatpush1.msra.mxu0 0.0
    %6099 = vmatprep.subr.mxu0 0.0
    %6100 = vmatpush1.msra.mxu0 0.0
    %6101 = vmatprep.subr.mxu0 0.0
    %6102 = vmatpush1.msra.mxu0 0.0
    %6103 = vmatprep.subr.mxu0 0.0
    %6104 = vmatpush1.msra.mxu0 0.0
    %6105 = vmatprep.subr.mxu0 0.0
    %6106 = vmatpush1.msra.mxu0 0.0
    %6107 = vmatprep.subr.mxu0 0.0
    %6108 = vmatpush1.msra.mxu0 0.0
    %6109 = vmatprep.subr.mxu0 0.0
    %6110 = vmatpush1.msra.mxu0 0.0
    %6111 = vmatprep.subr.mxu0 0.0
    %6112 = vmatpush1.msra.mxu0 0.0
    %6113 = vmatprep.subr.mxu0 0.0
    %6114 = vmatpush1.msra.mxu0 0.0
    %6115 = vmatprep.mubr.f32.mxu0 0.0
    %6116 = vmatmul.mubr.f32.gmra.mrb[0].mxu0 %v4934
    %v6117 = vpop.f32.mrb[0].mxu0
    %v6118 = vadd.f32 0.0, %v6117
    %v6119 = vpop.f32.mrb[0].mxu0
    %6120 = vdwg.mxu0
    %v6121 = vmul.f32 %v5977, %v293
    %v6122 = vmul.f32 %v298, %v6118
    %6123 = vmatprep.subr.mxu0 0.0
    %6124 = vmatpush1.msra.mxu0 %v243
    %6125 = vmatprep.subr.mxu0 0.0
    %6126 = vmatpush1.msra.mxu0 %v244
    %6127 = vmatprep.subr.mxu0 0.0
    %6128 = vmatpush1.msra.mxu0 %v245
    %6129 = vmatprep.subr.mxu0 0.0
    %6130 = vmatpush1.msra.mxu0 %v246
    %6131 = vmatprep.subr.mxu0 0.0
    %6132 = vmatpush1.msra.mxu0 %v247
    %6133 = vmatprep.subr.mxu0 0.0
    %6134 = vmatpush1.msra.mxu0 %v248
    %6135 = vmatprep.subr.mxu0 0.0
    %6136 = vmatpush1.msra.mxu0 %v249
    %6137 = vmatprep.subr.mxu0 0.0
    %6138 = vmatpush1.msra.mxu0 %v250
    %6139 = vmatprep.subr.mxu0 0.0
    %6140 = vmatpush1.msra.mxu0 %v251
    %6141 = vmatprep.subr.mxu0 0.0
    %6142 = vmatpush1.msra.mxu0 %v252
    %6143 = vmatprep.subr.mxu0 0.0
    %6144 = vmatpush1.msra.mxu0 %v253
    %6145 = vmatprep.subr.mxu0 0.0
    %6146 = vmatpush1.msra.mxu0 %v254
    %6147 = vmatprep.subr.mxu0 0.0
    %6148 = vmatpush1.msra.mxu0 %v255
    %6149 = vmatprep.subr.mxu0 0.0
    %6150 = vmatpush1.msra.mxu0 %v256
    %6151 = vmatprep.subr.mxu0 0.0
    %6152 = vmatpush1.msra.mxu0 %v257
    %6153 = vmatprep.subr.mxu0 0.0
    %6154 = vmatpush1.msra.mxu0 %v258
    %6155 = vmatprep.subr.mxu0 0.0
    %6156 = vmatpush1.msra.mxu0 0.0
    %6157 = vmatprep.subr.mxu0 0.0
    %6158 = vmatpush1.msra.mxu0 0.0
    %6159 = vmatprep.subr.mxu0 0.0
    %6160 = vmatpush1.msra.mxu0 0.0
    %6161 = vmatprep.subr.mxu0 0.0
    %6162 = vmatpush1.msra.mxu0 0.0
    %6163 = vmatprep.subr.mxu0 0.0
    %6164 = vmatpush1.msra.mxu0 0.0
    %6165 = vmatprep.subr.mxu0 0.0
    %6166 = vmatpush1.msra.mxu0 0.0
    %6167 = vmatprep.subr.mxu0 0.0
    %6168 = vmatpush1.msra.mxu0 0.0
    %6169 = vmatprep.subr.mxu0 0.0
    %6170 = vmatpush1.msra.mxu0 0.0
    %6171 = vmatprep.subr.mxu0 0.0
    %6172 = vmatpush1.msra.mxu0 0.0
    %6173 = vmatprep.subr.mxu0 0.0
    %6174 = vmatpush1.msra.mxu0 0.0
    %6175 = vmatprep.subr.mxu0 0.0
    %6176 = vmatpush1.msra.mxu0 0.0
    %6177 = vmatprep.subr.mxu0 0.0
    %6178 = vmatpush1.msra.mxu0 0.0
    %6179 = vmatprep.subr.mxu0 0.0
    %6180 = vmatpush1.msra.mxu0 0.0
    %6181 = vmatprep.subr.mxu0 0.0
    %6182 = vmatpush1.msra.mxu0 0.0
    %6183 = vmatprep.subr.mxu0 0.0
    %6184 = vmatpush1.msra.mxu0 0.0
    %6185 = vmatprep.subr.mxu0 0.0
    %6186 = vmatpush1.msra.mxu0 0.0
    %6187 = vmatprep.mubr.f32.mxu0 0.0
    %6188 = vmatmul.mubr.f32.gmra.mrb[0].mxu0 %v6122
    %v6189 = vpop.f32.mrb[0].mxu0
    %v6190 = vadd.f32 0.0, %v6189
    %v6191 = vpop.f32.mrb[0].mxu0
    %6192 = vdwg.mxu0
    %6193 = vmatprep.subr.mxu0 0.0
    %6194 = vmatpush1.msra.mxu0 %v193
    %6195 = vmatprep.subr.mxu0 0.0
    %6196 = vmatpush1.msra.mxu0 %v194
    %6197 = vmatprep.subr.mxu0 0.0
    %6198 = vmatpush1.msra.mxu0 %v195
    %6199 = vmatprep.subr.mxu0 0.0
    %6200 = vmatpush1.msra.mxu0 %v196
    %6201 = vmatprep.subr.mxu0 0.0
    %6202 = vmatpush1.msra.mxu0 %v197
    %6203 = vmatprep.subr.mxu0 0.0
    %6204 = vmatpush1.msra.mxu0 %v198
    %6205 = vmatprep.subr.mxu0 0.0
    %6206 = vmatpush1.msra.mxu0 %v199
    %6207 = vmatprep.subr.mxu0 0.0
    %6208 = vmatpush1.msra.mxu0 %v200
    %6209 = vmatprep.subr.mxu0 0.0
    %6210 = vmatpush1.msra.mxu0 %v201
    %6211 = vmatprep.subr.mxu0 0.0
    %6212 = vmatpush1.msra.mxu0 %v202
    %6213 = vmatprep.subr.mxu0 0.0
    %6214 = vmatpush1.msra.mxu0 %v203
    %6215 = vmatprep.subr.mxu0 0.0
    %6216 = vmatpush1.msra.mxu0 %v204
    %6217 = vmatprep.subr.mxu0 0.0
    %6218 = vmatpush1.msra.mxu0 %v205
    %6219 = vmatprep.subr.mxu0 0.0
    %6220 = vmatpush1.msra.mxu0 %v206
    %6221 = vmatprep.subr.mxu0 0.0
    %6222 = vmatpush1.msra.mxu0 %v207
    %6223 = vmatprep.subr.mxu0 0.0
    %6224 = vmatpush1.msra.mxu0 %v208
    %6225 = vmatprep.subr.mxu0 0.0
    %6226 = vmatpush1.msra.mxu0 0.0
    %6227 = vmatprep.subr.mxu0 0.0
    %6228 = vmatpush1.msra.mxu0 0.0
    %6229 = vmatprep.subr.mxu0 0.0
    %6230 = vmatpush1.msra.mxu0 0.0
    %6231 = vmatprep.subr.mxu0 0.0
    %6232 = vmatpush1.msra.mxu0 0.0
    %6233 = vmatprep.subr.mxu0 0.0
    %6234 = vmatpush1.msra.mxu0 0.0
    %6235 = vmatprep.subr.mxu0 0.0
    %6236 = vmatpush1.msra.mxu0 0.0
    %6237 = vmatprep.subr.mxu0 0.0
    %6238 = vmatpush1.msra.mxu0 0.0
    %6239 = vmatprep.subr.mxu0 0.0
    %6240 = vmatpush1.msra.mxu0 0.0
    %6241 = vmatprep.subr.mxu0 0.0
    %6242 = vmatpush1.msra.mxu0 0.0
    %6243 = vmatprep.subr.mxu0 0.0
    %6244 = vmatpush1.msra.mxu0 0.0
    %6245 = vmatprep.subr.mxu0 0.0
    %6246 = vmatpush1.msra.mxu0 0.0
    %6247 = vmatprep.subr.mxu0 0.0
    %6248 = vmatpush1.msra.mxu0 0.0
    %6249 = vmatprep.subr.mxu0 0.0
    %6250 = vmatpush1.msra.mxu0 0.0
    %6251 = vmatprep.subr.mxu0 0.0
    %6252 = vmatpush1.msra.mxu0 0.0
    %6253 = vmatprep.subr.mxu0 0.0
    %6254 = vmatpush1.msra.mxu0 0.0
    %6255 = vmatprep.subr.mxu0 0.0
    %6256 = vmatpush1.msra.mxu0 0.0
    %6257 = vmatprep.mubr.f32.mxu0 0.0
    %6258 = vmatmul.mubr.f32.gmra.mrb[0].mxu0 %v6121
    %v6259 = vpop.f32.mrb[0].mxu0
    %v6260 = vadd.f32 %v6190, %v6259
    %v6261 = vpop.f32.mrb[0].mxu0
    %6262 = vdwg.mxu0
    %v6263 = vadd.f32 %v6260, %v303
    %v6264 = vxor.u32 %v6263, 2147483648
    %v6265 = vmul.f32 %v6264, 1.442695
    %v6266 = vpow.pop %v6265
    %v6267 = vadd.f32 %v6266, 1.0
    %v6268 = vrcp.pop %v6267
    %v6269 = vmul.f32 1.0, %v6268
    %v6270 = vtanh.pop %v6263
    %v6271 = vmul.f32 %v6269, %v4450
    %6273 = vrot.lane.b32.xlu0 %v6270, 32
    %v6274 = vpop.permute.xlu0 %6273
    %v6276 = vmul.f32 %v6269, %v6274
    %6278 = vrot.lane.b32.xlu0 %v6276, 32
    %v6279 = vpop.permute.xlu0 %6278
    %v6281 = vadd.f32 %v6271, %v6279
    %v6282 = vtanh.pop %v6281
    %6284 = vrot.lane.b32.xlu0 %v6282, 32
    %v6285 = vpop.permute.xlu0 %6284
    %v6287 = vmul.f32 %v6269, %v6285
    %6288 = vmatprep.subr.mxu0 0.0
    %6289 = vmatpush1.msra.mxu0 %v184
    %6290 = vmatprep.subr.mxu0 0.0
    %6291 = vmatpush1.msra.mxu0 %v185
    %6292 = vmatprep.subr.mxu0 0.0
    %6293 = vmatpush1.msra.mxu0 %v186
    %6294 = vmatprep.subr.mxu0 0.0
    %6295 = vmatpush1.msra.mxu0 %v187
    %6296 = vmatprep.subr.mxu0 0.0
    %6297 = vmatpush1.msra.mxu0 0.0
    %6298 = vmatprep.subr.mxu0 0.0
    %6299 = vmatpush1.msra.mxu0 0.0
    %6300 = vmatprep.subr.mxu0 0.0
    %6301 = vmatpush1.msra.mxu0 0.0
    %6302 = vmatprep.subr.mxu0 0.0
    %6303 = vmatpush1.msra.mxu0 0.0
    %6304 = vmatprep.subr.mxu0 0.0
    %6305 = vmatpush1.msra.mxu0 0.0
    %6306 = vmatprep.subr.mxu0 0.0
    %6307 = vmatpush1.msra.mxu0 0.0
    %6308 = vmatprep.subr.mxu0 0.0
    %6309 = vmatpush1.msra.mxu0 0.0
    %6310 = vmatprep.subr.mxu0 0.0
    %6311 = vmatpush1.msra.mxu0 0.0
    %6312 = vmatprep.subr.mxu0 0.0
    %6313 = vmatpush1.msra.mxu0 0.0
    %6314 = vmatprep.subr.mxu0 0.0
    %6315 = vmatpush1.msra.mxu0 0.0
    %6316 = vmatprep.subr.mxu0 0.0
    %6317 = vmatpush1.msra.mxu0 0.0
    %6318 = vmatprep.subr.mxu0 0.0
    %6319 = vmatpush1.msra.mxu0 0.0
    %6320 = vmatprep.subr.mxu0 0.0
    %6321 = vmatpush1.msra.mxu0 0.0
    %6322 = vmatprep.subr.mxu0 0.0
    %6323 = vmatpush1.msra.mxu0 0.0
    %6324 = vmatprep.subr.mxu0 0.0
    %6325 = vmatpush1.msra.mxu0 0.0
    %6326 = vmatprep.subr.mxu0 0.0
    %6327 = vmatpush1.msra.mxu0 0.0
    %6328 = vmatprep.subr.mxu0 0.0
    %6329 = vmatpush1.msra.mxu0 0.0
    %6330 = vmatprep.subr.mxu0 0.0
    %6331 = vmatpush1.msra.mxu0 0.0
    %6332 = vmatprep.subr.mxu0 0.0
    %6333 = vmatpush1.msra.mxu0 0.0
    %6334 = vmatprep.subr.mxu0 0.0
    %6335 = vmatpush1.msra.mxu0 0.0
    %6336 = vmatprep.subr.mxu0 0.0
    %6337 = vmatpush1.msra.mxu0 0.0
    %6338 = vmatprep.subr.mxu0 0.0
    %6339 = vmatpush1.msra.mxu0 0.0
    %6340 = vmatprep.subr.mxu0 0.0
    %6341 = vmatpush1.msra.mxu0 0.0
    %6342 = vmatprep.subr.mxu0 0.0
    %6343 = vmatpush1.msra.mxu0 0.0
    %6344 = vmatprep.subr.mxu0 0.0
    %6345 = vmatpush1.msra.mxu0 0.0
    %6346 = vmatprep.subr.mxu0 0.0
    %6347 = vmatpush1.msra.mxu0 0.0
    %6348 = vmatprep.subr.mxu0 0.0
    %6349 = vmatpush1.msra.mxu0 0.0
    %6350 = vmatprep.subr.mxu0 0.0
    %6351 = vmatpush1.msra.mxu0 0.0
    %6352 = vmatprep.mubr.f32.mxu0 0.0
    %6353 = vmatmul.mubr.f32.gmra.mrb[0].mxu0 %v5150
    %v6354 = vpop.f32.mrb[0].mxu0
    %v6355 = vadd.f32 0.0, %v6354
    %v6356 = vpop.f32.mrb[0].mxu0
    %6357 = vdwg.mxu0
    %v6358 = vmul.f32 %v5979, %v295
    %v6359 = vmul.f32 %v300, %v6355
    %6360 = vmatprep.subr.mxu0 0.0
    %6361 = vmatpush1.msra.mxu0 %v260
    %6362 = vmatprep.subr.mxu0 0.0
    %6363 = vmatpush1.msra.mxu0 %v261
    %6364 = vmatprep.subr.mxu0 0.0
    %6365 = vmatpush1.msra.mxu0 %v262
    %6366 = vmatprep.subr.mxu0 0.0
    %6367 = vmatpush1.msra.mxu0 %v263
    %6368 = vmatprep.subr.mxu0 0.0
    %6369 = vmatpush1.msra.mxu0 %v264
    %6370 = vmatprep.subr.mxu0 0.0
    %6371 = vmatpush1.msra.mxu0 %v265
    %6372 = vmatprep.subr.mxu0 0.0
    %6373 = vmatpush1.msra.mxu0 %v266
    %6374 = vmatprep.subr.mxu0 0.0
    %6375 = vmatpush1.msra.mxu0 %v267
    %6376 = vmatprep.subr.mxu0 0.0
    %6377 = vmatpush1.msra.mxu0 %v268
    %6378 = vmatprep.subr.mxu0 0.0
    %6379 = vmatpush1.msra.mxu0 %v269
    %6380 = vmatprep.subr.mxu0 0.0
    %6381 = vmatpush1.msra.mxu0 %v270
    %6382 = vmatprep.subr.mxu0 0.0
    %6383 = vmatpush1.msra.mxu0 %v271
    %6384 = vmatprep.subr.mxu0 0.0
    %6385 = vmatpush1.msra.mxu0 %v272
    %6386 = vmatprep.subr.mxu0 0.0
    %6387 = vmatpush1.msra.mxu0 %v273
    %6388 = vmatprep.subr.mxu0 0.0
    %6389 = vmatpush1.msra.mxu0 %v274
    %6390 = vmatprep.subr.mxu0 0.0
    %6391 = vmatpush1.msra.mxu0 %v275
    %6392 = vmatprep.subr.mxu0 0.0
    %6393 = vmatpush1.msra.mxu0 0.0
    %6394 = vmatprep.subr.mxu0 0.0
    %6395 = vmatpush1.msra.mxu0 0.0
    %6396 = vmatprep.subr.mxu0 0.0
    %6397 = vmatpush1.msra.mxu0 0.0
    %6398 = vmatprep.subr.mxu0 0.0
    %6399 = vmatpush1.msra.mxu0 0.0
    %6400 = vmatprep.subr.mxu0 0.0
    %6401 = vmatpush1.msra.mxu0 0.0
    %6402 = vmatprep.subr.mxu0 0.0
    %6403 = vmatpush1.msra.mxu0 0.0
    %6404 = vmatprep.subr.mxu0 0.0
    %6405 = vmatpush1.msra.mxu0 0.0
    %6406 = vmatprep.subr.mxu0 0.0
    %6407 = vmatpush1.msra.mxu0 0.0
    %6408 = vmatprep.subr.mxu0 0.0
    %6409 = vmatpush1.msra.mxu0 0.0
    %6410 = vmatprep.subr.mxu0 0.0
    %6411 = vmatpush1.msra.mxu0 0.0
    %6412 = vmatprep.subr.mxu0 0.0
    %6413 = vmatpush1.msra.mxu0 0.0
    %6414 = vmatprep.subr.mxu0 0.0
    %6415 = vmatpush1.msra.mxu0 0.0
    %6416 = vmatprep.subr.mxu0 0.0
    %6417 = vmatpush1.msra.mxu0 0.0
    %6418 = vmatprep.subr.mxu0 0.0
    %6419 = vmatpush1.msra.mxu0 0.0
    %6420 = vmatprep.subr.mxu0 0.0
    %6421 = vmatpush1.msra.mxu0 0.0
    %6422 = vmatprep.subr.mxu0 0.0
    %6423 = vmatpush1.msra.mxu0 0.0
    %6424 = vmatprep.mubr.f32.mxu0 0.0
    %6425 = vmatmul.mubr.f32.gmra.mrb[0].mxu0 %v6359
    %v6426 = vpop.f32.mrb[0].mxu0
    %v6427 = vadd.f32 0.0, %v6426
    %v6428 = vpop.f32.mrb[0].mxu0
    %6429 = vdwg.mxu0
    %6430 = vmatprep.subr.mxu0 0.0
    %6431 = vmatpush1.msra.mxu0 %v210
    %6432 = vmatprep.subr.mxu0 0.0
    %6433 = vmatpush1.msra.mxu0 %v211
    %6434 = vmatprep.subr.mxu0 0.0
    %6435 = vmatpush1.msra.mxu0 %v212
    %6436 = vmatprep.subr.mxu0 0.0
    %6437 = vmatpush1.msra.mxu0 %v213
    %6438 = vmatprep.subr.mxu0 0.0
    %6439 = vmatpush1.msra.mxu0 %v214
    %6440 = vmatprep.subr.mxu0 0.0
    %6441 = vmatpush1.msra.mxu0 %v215
    %6442 = vmatprep.subr.mxu0 0.0
    %6443 = vmatpush1.msra.mxu0 %v216
    %6444 = vmatprep.subr.mxu0 0.0
    %6445 = vmatpush1.msra.mxu0 %v217
    %6446 = vmatprep.subr.mxu0 0.0
    %6447 = vmatpush1.msra.mxu0 %v218
    %6448 = vmatprep.subr.mxu0 0.0
    %6449 = vmatpush1.msra.mxu0 %v219
    %6450 = vmatprep.subr.mxu0 0.0
    %6451 = vmatpush1.msra.mxu0 %v220
    %6452 = vmatprep.subr.mxu0 0.0
    %6453 = vmatpush1.msra.mxu0 %v221
    %6454 = vmatprep.subr.mxu0 0.0
    %6455 = vmatpush1.msra.mxu0 %v222
    %6456 = vmatprep.subr.mxu0 0.0
    %6457 = vmatpush1.msra.mxu0 %v223
    %6458 = vmatprep.subr.mxu0 0.0
    %6459 = vmatpush1.msra.mxu0 %v224
    %6460 = vmatprep.subr.mxu0 0.0
    %6461 = vmatpush1.msra.mxu0 %v225
    %6462 = vmatprep.subr.mxu0 0.0
    %6463 = vmatpush1.msra.mxu0 0.0
    %6464 = vmatprep.subr.mxu0 0.0
    %6465 = vmatpush1.msra.mxu0 0.0
    %6466 = vmatprep.subr.mxu0 0.0
    %6467 = vmatpush1.msra.mxu0 0.0
    %6468 = vmatprep.subr.mxu0 0.0
    %6469 = vmatpush1.msra.mxu0 0.0
    %6470 = vmatprep.subr.mxu0 0.0
    %6471 = vmatpush1.msra.mxu0 0.0
    %6472 = vmatprep.subr.mxu0 0.0
    %6473 = vmatpush1.msra.mxu0 0.0
    %6474 = vmatprep.subr.mxu0 0.0
    %6475 = vmatpush1.msra.mxu0 0.0
    %6476 = vmatprep.subr.mxu0 0.0
    %6477 = vmatpush1.msra.mxu0 0.0
    %6478 = vmatprep.subr.mxu0 0.0
    %6479 = vmatpush1.msra.mxu0 0.0
    %6480 = vmatprep.subr.mxu0 0.0
    %6481 = vmatpush1.msra.mxu0 0.0
    %6482 = vmatprep.subr.mxu0 0.0
    %6483 = vmatpush1.msra.mxu0 0.0
    %6484 = vmatprep.subr.mxu0 0.0
    %6485 = vmatpush1.msra.mxu0 0.0
    %6486 = vmatprep.subr.mxu0 0.0
    %6487 = vmatpush1.msra.mxu0 0.0
    %6488 = vmatprep.subr.mxu0 0.0
    %6489 = vmatpush1.msra.mxu0 0.0
    %6490 = vmatprep.subr.mxu0 0.0
    %6491 = vmatpush1.msra.mxu0 0.0
    %6492 = vmatprep.subr.mxu0 0.0
    %6493 = vmatpush1.msra.mxu0 0.0
    %6494 = vmatprep.mubr.f32.mxu0 0.0
    %6495 = vmatmul.mubr.f32.gmra.mrb[0].mxu0 %v6358
    %v6496 = vpop.f32.mrb[0].mxu0
    %v6497 = vadd.f32 %v6427, %v6496
    %v6498 = vpop.f32.mrb[0].mxu0
    %6499 = vdwg.mxu0
    %v6500 = vadd.f32 %v6497, %v305
    %v6501 = vxor.u32 %v6500, 2147483648
    %v6502 = vmul.f32 %v6501, 1.442695
    %v6503 = vpow.pop %v6502
    %v6504 = vadd.f32 %v6503, 1.0
    %v6505 = vrcp.pop %v6504
    %v6506 = vmul.f32 1.0, %v6505
    %v6507 = vtanh.pop %v6500
    %v6508 = vmul.f32 %v6506, %v4687
    %6510 = vrot.lane.b32.xlu0 %v6507, 32
    %v6511 = vpop.permute.xlu0 %6510
    %v6513 = vmul.f32 %v6506, %v6511
    %6515 = vrot.lane.b32.xlu0 %v6513, 32
    %v6516 = vpop.permute.xlu0 %6515
    %v6518 = vadd.f32 %v6508, %v6516
    %v6519 = vtanh.pop %v6518
    %6521 = vrot.lane.b32.xlu0 %v6519, 32
    %v6522 = vpop.permute.xlu0 %6521
    %v6524 = vmul.f32 %v6506, %v6522
    %6525 = vmatprep.subr.mxu0 0.0
    %6526 = vmatpush1.msra.mxu0 %v189
    %6527 = vmatprep.subr.mxu0 0.0
    %6528 = vmatpush1.msra.mxu0 %v190
    %6529 = vmatprep.subr.mxu0 0.0
    %6530 = vmatpush1.msra.mxu0 %v191
    %6531 = vmatprep.subr.mxu0 0.0
    %6532 = vmatpush1.msra.mxu0 %v192
    %6533 = vmatprep.subr.mxu0 0.0
    %6534 = vmatpush1.msra.mxu0 0.0
    %6535 = vmatprep.subr.mxu0 0.0
    %6536 = vmatpush1.msra.mxu0 0.0
    %6537 = vmatprep.subr.mxu0 0.0
    %6538 = vmatpush1.msra.mxu0 0.0
    %6539 = vmatprep.subr.mxu0 0.0
    %6540 = vmatpush1.msra.mxu0 0.0
    %6541 = vmatprep.subr.mxu0 0.0
    %6542 = vmatpush1.msra.mxu0 0.0
    %6543 = vmatprep.subr.mxu0 0.0
    %6544 = vmatpush1.msra.mxu0 0.0
    %6545 = vmatprep.subr.mxu0 0.0
    %6546 = vmatpush1.msra.mxu0 0.0
    %6547 = vmatprep.subr.mxu0 0.0
    %6548 = vmatpush1.msra.mxu0 0.0
    %6549 = vmatprep.subr.mxu0 0.0
    %6550 = vmatpush1.msra.mxu0 0.0
    %6551 = vmatprep.subr.mxu0 0.0
    %6552 = vmatpush1.msra.mxu0 0.0
    %6553 = vmatprep.subr.mxu0 0.0
    %6554 = vmatpush1.msra.mxu0 0.0
    %6555 = vmatprep.subr.mxu0 0.0
    %6556 = vmatpush1.msra.mxu0 0.0
    %6557 = vmatprep.subr.mxu0 0.0
    %6558 = vmatpush1.msra.mxu0 0.0
    %6559 = vmatprep.subr.mxu0 0.0
    %6560 = vmatpush1.msra.mxu0 0.0
    %6561 = vmatprep.subr.mxu0 0.0
    %6562 = vmatpush1.msra.mxu0 0.0
    %6563 = vmatprep.subr.mxu0 0.0
    %6564 = vmatpush1.msra.mxu0 0.0
    %6565 = vmatprep.subr.mxu0 0.0
    %6566 = vmatpush1.msra.mxu0 0.0
    %6567 = vmatprep.subr.mxu0 0.0
    %6568 = vmatpush1.msra.mxu0 0.0
    %6569 = vmatprep.subr.mxu0 0.0
    %6570 = vmatpush1.msra.mxu0 0.0
    %6571 = vmatprep.subr.mxu0 0.0
    %6572 = vmatpush1.msra.mxu0 0.0
    %6573 = vmatprep.subr.mxu0 0.0
    %6574 = vmatpush1.msra.mxu0 0.0
    %6575 = vmatprep.subr.mxu0 0.0
    %6576 = vmatpush1.msra.mxu0 0.0
    %6577 = vmatprep.subr.mxu0 0.0
    %6578 = vmatpush1.msra.mxu0 0.0
    %6579 = vmatprep.subr.mxu0 0.0
    %6580 = vmatpush1.msra.mxu0 0.0
    %6581 = vmatprep.subr.mxu0 0.0
    %6582 = vmatpush1.msra.mxu0 0.0
    %6583 = vmatprep.subr.mxu0 0.0
    %6584 = vmatpush1.msra.mxu0 0.0
    %6585 = vmatprep.subr.mxu0 0.0
    %6586 = vmatpush1.msra.mxu0 0.0
    %6587 = vmatprep.subr.mxu0 0.0
    %6588 = vmatpush1.msra.mxu0 0.0
    %6589 = vmatprep.mubr.f32.mxu0 0.0
    %6590 = vmatmul.mubr.f32.gmra.mrb[0].mxu0 %v5366
    %v6591 = vpop.f32.mrb[0].mxu0
    %v6592 = vadd.f32 0.0, %v6591
    %v6593 = vpop.f32.mrb[0].mxu0
    %6594 = vdwg.mxu0
    %v6595 = vmul.f32 %v6048, %v297
    %v6596 = vmul.f32 %v302, %v6592
    %6597 = vmatprep.subr.mxu0 0.0
    %6598 = vmatpush1.msra.mxu0 %v277
    %6599 = vmatprep.subr.mxu0 0.0
    %6600 = vmatpush1.msra.mxu0 %v278
    %6601 = vmatprep.subr.mxu0 0.0
    %6602 = vmatpush1.msra.mxu0 %v279
    %6603 = vmatprep.subr.mxu0 0.0
    %6604 = vmatpush1.msra.mxu0 %v280
    %6605 = vmatprep.subr.mxu0 0.0
    %6606 = vmatpush1.msra.mxu0 %v281
    %6607 = vmatprep.subr.mxu0 0.0
    %6608 = vmatpush1.msra.mxu0 %v282
    %6609 = vmatprep.subr.mxu0 0.0
    %6610 = vmatpush1.msra.mxu0 %v283
    %6611 = vmatprep.subr.mxu0 0.0
    %6612 = vmatpush1.msra.mxu0 %v284
    %6613 = vmatprep.subr.mxu0 0.0
    %6614 = vmatpush1.msra.mxu0 %v285
    %6615 = vmatprep.subr.mxu0 0.0
    %6616 = vmatpush1.msra.mxu0 %v286
    %6617 = vmatprep.subr.mxu0 0.0
    %6618 = vmatpush1.msra.mxu0 %v287
    %6619 = vmatprep.subr.mxu0 0.0
    %6620 = vmatpush1.msra.mxu0 %v288
    %6621 = vmatprep.subr.mxu0 0.0
    %6622 = vmatpush1.msra.mxu0 %v289
    %6623 = vmatprep.subr.mxu0 0.0
    %6624 = vmatpush1.msra.mxu0 %v290
    %6625 = vmatprep.subr.mxu0 0.0
    %6626 = vmatpush1.msra.mxu0 %v291
    %6627 = vmatprep.subr.mxu0 0.0
    %6628 = vmatpush1.msra.mxu0 %v292
    %6629 = vmatprep.subr.mxu0 0.0
    %6630 = vmatpush1.msra.mxu0 0.0
    %6631 = vmatprep.subr.mxu0 0.0
    %6632 = vmatpush1.msra.mxu0 0.0
    %6633 = vmatprep.subr.mxu0 0.0
    %6634 = vmatpush1.msra.mxu0 0.0
    %6635 = vmatprep.subr.mxu0 0.0
    %6636 = vmatpush1.msra.mxu0 0.0
    %6637 = vmatprep.subr.mxu0 0.0
    %6638 = vmatpush1.msra.mxu0 0.0
    %6639 = vmatprep.subr.mxu0 0.0
    %6640 = vmatpush1.msra.mxu0 0.0
    %6641 = vmatprep.subr.mxu0 0.0
    %6642 = vmatpush1.msra.mxu0 0.0
    %6643 = vmatprep.subr.mxu0 0.0
    %6644 = vmatpush1.msra.mxu0 0.0
    %6645 = vmatprep.subr.mxu0 0.0
    %6646 = vmatpush1.msra.mxu0 0.0
    %6647 = vmatprep.subr.mxu0 0.0
    %6648 = vmatpush1.msra.mxu0 0.0
    %6649 = vmatprep.subr.mxu0 0.0
    %6650 = vmatpush1.msra.mxu0 0.0
    %6651 = vmatprep.subr.mxu0 0.0
    %6652 = vmatpush1.msra.mxu0 0.0
    %6653 = vmatprep.subr.mxu0 0.0
    %6654 = vmatpush1.msra.mxu0 0.0
    %6655 = vmatprep.subr.mxu0 0.0
    %6656 = vmatpush1.msra.mxu0 0.0
    %6657 = vmatprep.subr.mxu0 0.0
    %6658 = vmatpush1.msra.mxu0 0.0
    %6659 = vmatprep.subr.mxu0 0.0
    %6660 = vmatpush1.msra.mxu0 0.0
    %6661 = vmatprep.mubr.f32.mxu0 0.0
    %6662 = vmatmul.mubr.f32.gmra.mrb[0].mxu0 %v6596
    %v6663 = vpop.f32.mrb[0].mxu0
    %v6664 = vadd.f32 0.0, %v6663
    %v6665 = vpop.f32.mrb[0].mxu0
    %6666 = vdwg.mxu0
    %6667 = vmatprep.subr.mxu0 0.0
    %6668 = vmatpush1.msra.mxu0 %v227
    %6669 = vmatprep.subr.mxu0 0.0
    %6670 = vmatpush1.msra.mxu0 %v228
    %6671 = vmatprep.subr.mxu0 0.0
    %6672 = vmatpush1.msra.mxu0 %v229
    %6673 = vmatprep.subr.mxu0 0.0
    %6674 = vmatpush1.msra.mxu0 %v230
    %6675 = vmatprep.subr.mxu0 0.0
    %6676 = vmatpush1.msra.mxu0 %v231
    %6677 = vmatprep.subr.mxu0 0.0
    %6678 = vmatpush1.msra.mxu0 %v232
    %6679 = vmatprep.subr.mxu0 0.0
    %6680 = vmatpush1.msra.mxu0 %v233
    %6681 = vmatprep.subr.mxu0 0.0
    %6682 = vmatpush1.msra.mxu0 %v234
    %6683 = vmatprep.subr.mxu0 0.0
    %6684 = vmatpush1.msra.mxu0 %v235
    %6685 = vmatprep.subr.mxu0 0.0
    %6686 = vmatpush1.msra.mxu0 %v236
    %6687 = vmatprep.subr.mxu0 0.0
    %6688 = vmatpush1.msra.mxu0 %v237
    %6689 = vmatprep.subr.mxu0 0.0
    %6690 = vmatpush1.msra.mxu0 %v238
    %6691 = vmatprep.subr.mxu0 0.0
    %6692 = vmatpush1.msra.mxu0 %v239
    %6693 = vmatprep.subr.mxu0 0.0
    %6694 = vmatpush1.msra.mxu0 %v240
    %6695 = vmatprep.subr.mxu0 0.0
    %6696 = vmatpush1.msra.mxu0 %v241
    %6697 = vmatprep.subr.mxu0 0.0
    %6698 = vmatpush1.msra.mxu0 %v242
    %6699 = vmatprep.subr.mxu0 0.0
    %6700 = vmatpush1.msra.mxu0 0.0
    %6701 = vmatprep.subr.mxu0 0.0
    %6702 = vmatpush1.msra.mxu0 0.0
    %6703 = vmatprep.subr.mxu0 0.0
    %6704 = vmatpush1.msra.mxu0 0.0
    %6705 = vmatprep.subr.mxu0 0.0
    %6706 = vmatpush1.msra.mxu0 0.0
    %6707 = vmatprep.subr.mxu0 0.0
    %6708 = vmatpush1.msra.mxu0 0.0
    %6709 = vmatprep.subr.mxu0 0.0
    %6710 = vmatpush1.msra.mxu0 0.0
    %6711 = vmatprep.subr.mxu0 0.0
    %6712 = vmatpush1.msra.mxu0 0.0
    %6713 = vmatprep.subr.mxu0 0.0
    %6714 = vmatpush1.msra.mxu0 0.0
    %6715 = vmatprep.subr.mxu0 0.0
    %6716 = vmatpush1.msra.mxu0 0.0
    %6717 = vmatprep.subr.mxu0 0.0
    %6718 = vmatpush1.msra.mxu0 0.0
    %6719 = vmatprep.subr.mxu0 0.0
    %6720 = vmatpush1.msra.mxu0 0.0
    %6721 = vmatprep.subr.mxu0 0.0
    %6722 = vmatpush1.msra.mxu0 0.0
    %6723 = vmatprep.subr.mxu0 0.0
    %6724 = vmatpush1.msra.mxu0 0.0
    %6725 = vmatprep.subr.mxu0 0.0
    %6726 = vmatpush1.msra.mxu0 0.0
    %6727 = vmatprep.subr.mxu0 0.0
    %6728 = vmatpush1.msra.mxu0 0.0
    %6729 = vmatprep.subr.mxu0 0.0
    %6730 = vmatpush1.msra.mxu0 0.0
    %6731 = vmatprep.mubr.f32.mxu0 0.0
    %6732 = vmatmul.mubr.f32.gmra.mrb[0].mxu0 %v6595
    %v6733 = vpop.f32.mrb[0].mxu0
    %v6734 = vadd.f32 %v6664, %v6733
    %v6735 = vpop.f32.mrb[0].mxu0
    %6736 = vdwg.mxu0
    %v6737 = vadd.f32 %v6734, %v307
    %v6738 = vxor.u32 %v6737, 2147483648
    %v6739 = vmul.f32 %v6738, 1.442695
    %v6740 = vpow.pop %v6739
    %v6741 = vadd.f32 %v6740, 1.0
    %v6742 = vrcp.pop %v6741
    %v6743 = vmul.f32 1.0, %v6742
    %v6744 = vtanh.pop %v6737
    %v6745 = vmul.f32 %v6743, %v4924
    %6747 = vrot.lane.b32.xlu0 %v6744, 32
    %v6748 = vpop.permute.xlu0 %6747
    %v6750 = vmul.f32 %v6743, %v6748
    %6752 = vrot.lane.b32.xlu0 %v6750, 32
    %v6753 = vpop.permute.xlu0 %6752
    %v6755 = vadd.f32 %v6745, %v6753
    %v6756 = vtanh.pop %v6755
    %6758 = vrot.lane.b32.xlu0 %v6756, 32
    %v6759 = vpop.permute.xlu0 %6758
    %v6761 = vmul.f32 %v6743, %v6759
    %6763 = vrot.lane.b32.xlu0 %v6287, 64
    %v6764 = vpop.permute.xlu0 %6763
    %v6765 = vsel %vm370, %v6764, 0
    %6767 = vmatprep.subr.mxu0 0.0
    %6768 = vmatpush1.msra.mxu0 %v314
    %6769 = vmatprep.subr.mxu0 0.0
    %6770 = vmatpush1.msra.mxu0 %v315
    %6771 = vmatprep.subr.mxu0 0.0
    %6772 = vmatpush1.msra.mxu0 %v316
    %6773 = vmatprep.subr.mxu0 0.0
    %6774 = vmatpush1.msra.mxu0 %v317
    %6775 = vmatprep.subr.mxu0 0.0
    %6776 = vmatpush1.msra.mxu0 0.0
    %6777 = vmatprep.subr.mxu0 0.0
    %6778 = vmatpush1.msra.mxu0 0.0
    %6779 = vmatprep.subr.mxu0 0.0
    %6780 = vmatpush1.msra.mxu0 0.0
    %6781 = vmatprep.subr.mxu0 0.0
    %6782 = vmatpush1.msra.mxu0 0.0
    %6783 = vmatprep.subr.mxu0 0.0
    %6784 = vmatpush1.msra.mxu0 0.0
    %6785 = vmatprep.subr.mxu0 0.0
    %6786 = vmatpush1.msra.mxu0 0.0
    %6787 = vmatprep.subr.mxu0 0.0
    %6788 = vmatpush1.msra.mxu0 0.0
    %6789 = vmatprep.subr.mxu0 0.0
    %6790 = vmatpush1.msra.mxu0 0.0
    %6791 = vmatprep.subr.mxu0 0.0
    %6792 = vmatpush1.msra.mxu0 0.0
    %6793 = vmatprep.subr.mxu0 0.0
    %6794 = vmatpush1.msra.mxu0 0.0
    %6795 = vmatprep.subr.mxu0 0.0
    %6796 = vmatpush1.msra.mxu0 0.0
    %6797 = vmatprep.subr.mxu0 0.0
    %6798 = vmatpush1.msra.mxu0 0.0
    %6799 = vmatprep.subr.mxu0 0.0
    %6800 = vmatpush1.msra.mxu0 0.0
    %6801 = vmatprep.subr.mxu0 0.0
    %6802 = vmatpush1.msra.mxu0 0.0
    %6803 = vmatprep.subr.mxu0 0.0
    %6804 = vmatpush1.msra.mxu0 0.0
    %6805 = vmatprep.subr.mxu0 0.0
    %6806 = vmatpush1.msra.mxu0 0.0
    %6807 = vmatprep.subr.mxu0 0.0
    %6808 = vmatpush1.msra.mxu0 0.0
    %6809 = vmatprep.subr.mxu0 0.0
    %6810 = vmatpush1.msra.mxu0 0.0
    %6811 = vmatprep.subr.mxu0 0.0
    %6812 = vmatpush1.msra.mxu0 0.0
    %6813 = vmatprep.subr.mxu0 0.0
    %6814 = vmatpush1.msra.mxu0 0.0
    %6815 = vmatprep.subr.mxu0 0.0
    %6816 = vmatpush1.msra.mxu0 0.0
    %6817 = vmatprep.subr.mxu0 0.0
    %6818 = vmatpush1.msra.mxu0 0.0
    %6819 = vmatprep.subr.mxu0 0.0
    %6820 = vmatpush1.msra.mxu0 0.0
    %6821 = vmatprep.subr.mxu0 0.0
    %6822 = vmatpush1.msra.mxu0 0.0
    %6823 = vmatprep.subr.mxu0 0.0
    %6824 = vmatpush1.msra.mxu0 0.0
    %6825 = vmatprep.subr.mxu0 0.0
    %6826 = vmatpush1.msra.mxu0 0.0
    %6827 = vmatprep.subr.mxu0 0.0
    %6828 = vmatpush1.msra.mxu0 0.0
    %6829 = vmatprep.subr.mxu0 0.0
    %6830 = vmatpush1.msra.mxu0 0.0
    %6831 = vmatprep.mubr.f32.mxu0 0.0
    %6832 = vmatmul.mubr.f32.gmra.mrb[0].mxu0 %v6765
    %v6833 = vpop.f32.mrb[0].mxu0
    %v6834 = vadd.f32 0.0, %v6833
    %v6835 = vpop.f32.mrb[0].mxu0
    %6836 = vdwg.mxu0
    %v6839 = vunpack.c.l.s4 1966171168
    %v6840 = vunpack.c.0.s8 %v6839
    %v6841 = vlaneseq
    %v6842 = vshrl.u32 %v6841, 7
    %v6843 = vsub.s32 %v6840, %v6842
    %v6844 = vrot.slane %v6834, %v6843
    %v6845 = vcombine.high %v6844, %v6844
    %v6847 = vunpack.c.l.s4 1966171168
    %v6848 = vunpack.c.0.s8 %v6847
    %v6849 = vlaneseq
    %v6850 = vshrl.u32 %v6849, 7
    %v6851 = vsub.s32 %v6848, %v6850
    %v6852 = vrot.slane %v6844, %v6851
    %v6854 = vunpack.c.l.s4 1966171168
    %v6855 = vunpack.c.0.s8 %v6854
    %v6856 = vlaneseq
    %v6857 = vshrl.u32 %v6856, 7
    %v6858 = vsub.s32 %v6855, %v6857
    %v6859 = vrot.slane %v6845, %v6858
    %v6860 = vlaneseq
    %v6861 = vshrl.u32 %v6860, 7
    %v6862 = vsub.s32 0, %v6861
    %v6863 = vrot.slane %v6852, %v6862
    %v6864 = vlaneseq
    %v6865 = vshrl.u32 %v6864, 7
    %v6866 = vsub.s32 0, %v6865
    %v6867 = vrot.slane %v6859, %v6866
    %v6870 = vadd.f32 %v308, %v6863
    %v6871 = vadd.f32 %v309, %v6867
    %v6872 = vtanh.pop %v6870
    %v6873 = vtanh.pop %v6871
    %v6874 = vmul.f32 %v6872, %v1349
    %v6875 = vmul.f32 %v6873, %v1349
    %v6876 = vsel %vm370, %v6874, 0.0
    %6877 = vadd.xlane.f32.xlu0 %v6876
    %v6878 = vpop.xlane.xlu0 %6877
    %v6879 = vsel %vm370, %v6875, 0.0
    %6880 = vadd.xlane.f32.xlu0 %v6879
    %v6881 = vpop.xlane.xlu0 %6880
    %v6884 = vlaneseq
    %v6885 = vshrl.u32 %v6884, 7
    %v6886 = vsub.s32 %v368, %v6885
    %v6887 = vrot.slane %v6878, %v6886
    %v6888 = vlaneseq
    %v6889 = vshrl.u32 %v6888, 7
    %v6890 = vsub.s32 %v368, %v6889
    %v6891 = vrot.slane %v6881, %v6890
    %v6892 = vsel %vm1369, %v6891, %v6887
    %v6894 = vsel %vm1372, %v6892, -inf
    %6895 = vmax.xlane.f32.xlu0 %v6894
    %v6896 = vpop.xlane.xlu0 %6895
    %v6898 = vlaneseq
    %v6899 = vshrl.u32 %v6898, 7
    %v6900 = vsub.s32 0, %v6899
    %v6901 = vrot.slane %v6896, %v6900
    %v6902 = vlaneseq
    %v6903 = vshrl.u32 %v6902, 7
    %v6904 = vsub.s32 1, %v6903
    %v6905 = vrot.slane %v6896, %v6904
    %v6908 = vsub.f32 %v6878, %v6901
    %v6909 = vsub.f32 %v6881, %v6905
    %v6910 = vmul.f32 %v6908, 1.442695
    %v6911 = vpow.pop %v6910
    %v6912 = vmul.f32 %v6909, 1.442695
    %v6913 = vpow.pop %v6912
    %6916 = vset.pattern.permute.xlu0 0
    %6917 = vperm.xlu0 %6916, %v6911
    %v6918 = vpop.permute.xlu0 %6917
    %6919 = vset.pattern.permute.xlu0 0
    %6920 = vperm.xlu0 %6919, %v6913
    %v6921 = vpop.permute.xlu0 %6920
    %v6922 = vlaneseq
    %v6923 = vshrl.u32 %v6922, 7
    %v6924 = vsub.s32 %v368, %v6923
    %v6925 = vrot.slane %v6918, %v6924
    %v6926 = vlaneseq
    %v6927 = vshrl.u32 %v6926, 7
    %v6928 = vsub.s32 %v368, %v6927
    %v6929 = vrot.slane %v6921, %v6928
    %v6930 = vsel %vm1369, %v6929, %v6925
    %v6932 = vsel %vm1372, %v6930, 0.0
    %6933 = vadd.xlane.f32.xlu0 %v6932
    %v6934 = vpop.xlane.xlu0 %6933
    %v6936 = vlaneseq
    %v6937 = vshrl.u32 %v6936, 7
    %v6938 = vsub.s32 0, %v6937
    %v6939 = vrot.slane %v6934, %v6938
    %v6940 = vlaneseq
    %v6941 = vshrl.u32 %v6940, 7
    %v6942 = vsub.s32 1, %v6941
    %v6943 = vrot.slane %v6934, %v6942
    %v6946 = vrcp.pop %v6939
    %v6947 = vmul.f32 %v6911, %v6946
    %v6948 = vrcp.pop %v6943
    %v6949 = vmul.f32 %v6913, %v6948
    %6951 = vset.pattern.permute.xlu0 0
    %6952 = vperm.xlu0 %6951, %v6947
    %v6953 = vpop.permute.xlu0 %6952
    %6956 = vset.pattern.permute.xlu0 0
    %6957 = vperm.xlu0 %6956, %v6949
    %v6958 = vpop.permute.xlu0 %6957
    %v6960 = vmul.f32 %v6953, %v162
    %v6961 = vmul.f32 %v6958, %v163
    %v6962 = vsel %vm1441, %v6960, 0.0
    %v6963 = vrot.slane %v6962, 4
    %v6964 = vadd.f32 %v6962, %v6963
    %v6965 = vrot.slane %v6964, 2
    %v6966 = vadd.f32 %v6964, %v6965
    %v6967 = vrot.slane %v6966, 1
    %v6968 = vadd.f32 %v6966, %v6967
    %v6969 = vsel %vm1441, %v6961, 0.0
    %v6970 = vrot.slane %v6969, 4
    %v6971 = vadd.f32 %v6969, %v6970
    %v6972 = vrot.slane %v6971, 2
    %v6973 = vadd.f32 %v6971, %v6972
    %v6974 = vrot.slane %v6973, 1
    %v6975 = vadd.f32 %v6973, %v6974
    %v6976 = vadd.f32 %v6968, 0.0
    %v6977 = vadd.f32 %v6975, 0.0
    %6979 = vrot.lane.b32.xlu0 %v6524, 64
    %v6980 = vpop.permute.xlu0 %6979
    %v6981 = vsel %vm370, %v6980, 0
    %6983 = vmatprep.subr.mxu0 0.0
    %6984 = vmatpush1.msra.mxu0 %v319
    %6985 = vmatprep.subr.mxu0 0.0
    %6986 = vmatpush1.msra.mxu0 %v320
    %6987 = vmatprep.subr.mxu0 0.0
    %6988 = vmatpush1.msra.mxu0 %v321
    %6989 = vmatprep.subr.mxu0 0.0
    %6990 = vmatpush1.msra.mxu0 %v322
    %6991 = vmatprep.subr.mxu0 0.0
    %6992 = vmatpush1.msra.mxu0 0.0
    %6993 = vmatprep.subr.mxu0 0.0
    %6994 = vmatpush1.msra.mxu0 0.0
    %6995 = vmatprep.subr.mxu0 0.0
    %6996 = vmatpush1.msra.mxu0 0.0
    %6997 = vmatprep.subr.mxu0 0.0
    %6998 = vmatpush1.msra.mxu0 0.0
    %6999 = vmatprep.subr.mxu0 0.0
    %7000 = vmatpush1.msra.mxu0 0.0
    %7001 = vmatprep.subr.mxu0 0.0
    %7002 = vmatpush1.msra.mxu0 0.0
    %7003 = vmatprep.subr.mxu0 0.0
    %7004 = vmatpush1.msra.mxu0 0.0
    %7005 = vmatprep.subr.mxu0 0.0
    %7006 = vmatpush1.msra.mxu0 0.0
    %7007 = vmatprep.subr.mxu0 0.0
    %7008 = vmatpush1.msra.mxu0 0.0
    %7009 = vmatprep.subr.mxu0 0.0
    %7010 = vmatpush1.msra.mxu0 0.0
    %7011 = vmatprep.subr.mxu0 0.0
    %7012 = vmatpush1.msra.mxu0 0.0
    %7013 = vmatprep.subr.mxu0 0.0
    %7014 = vmatpush1.msra.mxu0 0.0
    %7015 = vmatprep.subr.mxu0 0.0
    %7016 = vmatpush1.msra.mxu0 0.0
    %7017 = vmatprep.subr.mxu0 0.0
    %7018 = vmatpush1.msra.mxu0 0.0
    %7019 = vmatprep.subr.mxu0 0.0
    %7020 = vmatpush1.msra.mxu0 0.0
    %7021 = vmatprep.subr.mxu0 0.0
    %7022 = vmatpush1.msra.mxu0 0.0
    %7023 = vmatprep.subr.mxu0 0.0
    %7024 = vmatpush1.msra.mxu0 0.0
    %7025 = vmatprep.subr.mxu0 0.0
    %7026 = vmatpush1.msra.mxu0 0.0
    %7027 = vmatprep.subr.mxu0 0.0
    %7028 = vmatpush1.msra.mxu0 0.0
    %7029 = vmatprep.subr.mxu0 0.0
    %7030 = vmatpush1.msra.mxu0 0.0
    %7031 = vmatprep.subr.mxu0 0.0
    %7032 = vmatpush1.msra.mxu0 0.0
    %7033 = vmatprep.subr.mxu0 0.0
    %7034 = vmatpush1.msra.mxu0 0.0
    %7035 = vmatprep.subr.mxu0 0.0
    %7036 = vmatpush1.msra.mxu0 0.0
    %7037 = vmatprep.subr.mxu0 0.0
    %7038 = vmatpush1.msra.mxu0 0.0
    %7039 = vmatprep.subr.mxu0 0.0
    %7040 = vmatpush1.msra.mxu0 0.0
    %7041 = vmatprep.subr.mxu0 0.0
    %7042 = vmatpush1.msra.mxu0 0.0
    %7043 = vmatprep.subr.mxu0 0.0
    %7044 = vmatpush1.msra.mxu0 0.0
    %7045 = vmatprep.subr.mxu0 0.0
    %7046 = vmatpush1.msra.mxu0 0.0
    %7047 = vmatprep.mubr.f32.mxu0 0.0
    %7048 = vmatmul.mubr.f32.gmra.mrb[0].mxu0 %v6981
    %v7049 = vpop.f32.mrb[0].mxu0
    %v7050 = vadd.f32 0.0, %v7049
    %v7051 = vpop.f32.mrb[0].mxu0
    %7052 = vdwg.mxu0
    %v7055 = vunpack.c.l.s4 1966171168
    %v7056 = vunpack.c.0.s8 %v7055
    %v7057 = vlaneseq
    %v7058 = vshrl.u32 %v7057, 7
    %v7059 = vsub.s32 %v7056, %v7058
    %v7060 = vrot.slane %v7050, %v7059
    %v7061 = vcombine.high %v7060, %v7060
    %v7063 = vunpack.c.l.s4 1966171168
    %v7064 = vunpack.c.0.s8 %v7063
    %v7065 = vlaneseq
    %v7066 = vshrl.u32 %v7065, 7
    %v7067 = vsub.s32 %v7064, %v7066
    %v7068 = vrot.slane %v7060, %v7067
    %v7070 = vunpack.c.l.s4 1966171168
    %v7071 = vunpack.c.0.s8 %v7070
    %v7072 = vlaneseq
    %v7073 = vshrl.u32 %v7072, 7
    %v7074 = vsub.s32 %v7071, %v7073
    %v7075 = vrot.slane %v7061, %v7074
    %v7076 = vlaneseq
    %v7077 = vshrl.u32 %v7076, 7
    %v7078 = vsub.s32 0, %v7077
    %v7079 = vrot.slane %v7068, %v7078
    %v7080 = vlaneseq
    %v7081 = vshrl.u32 %v7080, 7
    %v7082 = vsub.s32 0, %v7081
    %v7083 = vrot.slane %v7075, %v7082
    %v7086 = vadd.f32 %v310, %v7079
    %v7087 = vadd.f32 %v311, %v7083
    %v7088 = vtanh.pop %v7086
    %v7089 = vtanh.pop %v7087
    %v7090 = vmul.f32 %v7088, %v1574
    %v7091 = vmul.f32 %v7089, %v1574
    %v7092 = vsel %vm370, %v7090, 0.0
    %7093 = vadd.xlane.f32.xlu0 %v7092
    %v7094 = vpop.xlane.xlu0 %7093
    %v7095 = vsel %vm370, %v7091, 0.0
    %7096 = vadd.xlane.f32.xlu0 %v7095
    %v7097 = vpop.xlane.xlu0 %7096
    %v7100 = vlaneseq
    %v7101 = vshrl.u32 %v7100, 7
    %v7102 = vsub.s32 %v368, %v7101
    %v7103 = vrot.slane %v7094, %v7102
    %v7104 = vlaneseq
    %v7105 = vshrl.u32 %v7104, 7
    %v7106 = vsub.s32 %v368, %v7105
    %v7107 = vrot.slane %v7097, %v7106
    %v7108 = vsel %vm1369, %v7107, %v7103
    %v7110 = vsel %vm1372, %v7108, -inf
    %7111 = vmax.xlane.f32.xlu0 %v7110
    %v7112 = vpop.xlane.xlu0 %7111
    %v7114 = vlaneseq
    %v7115 = vshrl.u32 %v7114, 7
    %v7116 = vsub.s32 0, %v7115
    %v7117 = vrot.slane %v7112, %v7116
    %v7118 = vlaneseq
    %v7119 = vshrl.u32 %v7118, 7
    %v7120 = vsub.s32 1, %v7119
    %v7121 = vrot.slane %v7112, %v7120
    %v7124 = vsub.f32 %v7094, %v7117
    %v7125 = vsub.f32 %v7097, %v7121
    %v7126 = vmul.f32 %v7124, 1.442695
    %v7127 = vpow.pop %v7126
    %v7128 = vmul.f32 %v7125, 1.442695
    %v7129 = vpow.pop %v7128
    %7132 = vset.pattern.permute.xlu0 0
    %7133 = vperm.xlu0 %7132, %v7127
    %v7134 = vpop.permute.xlu0 %7133
    %7135 = vset.pattern.permute.xlu0 0
    %7136 = vperm.xlu0 %7135, %v7129
    %v7137 = vpop.permute.xlu0 %7136
    %v7138 = vlaneseq
    %v7139 = vshrl.u32 %v7138, 7
    %v7140 = vsub.s32 %v368, %v7139
    %v7141 = vrot.slane %v7134, %v7140
    %v7142 = vlaneseq
    %v7143 = vshrl.u32 %v7142, 7
    %v7144 = vsub.s32 %v368, %v7143
    %v7145 = vrot.slane %v7137, %v7144
    %v7146 = vsel %vm1369, %v7145, %v7141
    %v7148 = vsel %vm1372, %v7146, 0.0
    %7149 = vadd.xlane.f32.xlu0 %v7148
    %v7150 = vpop.xlane.xlu0 %7149
    %v7152 = vlaneseq
    %v7153 = vshrl.u32 %v7152, 7
    %v7154 = vsub.s32 0, %v7153
    %v7155 = vrot.slane %v7150, %v7154
    %v7156 = vlaneseq
    %v7157 = vshrl.u32 %v7156, 7
    %v7158 = vsub.s32 1, %v7157
    %v7159 = vrot.slane %v7150, %v7158
    %v7162 = vrcp.pop %v7155
    %v7163 = vmul.f32 %v7127, %v7162
    %v7164 = vrcp.pop %v7159
    %v7165 = vmul.f32 %v7129, %v7164
    %7167 = vset.pattern.permute.xlu0 0
    %7168 = vperm.xlu0 %7167, %v7163
    %v7169 = vpop.permute.xlu0 %7168
    %7172 = vset.pattern.permute.xlu0 0
    %7173 = vperm.xlu0 %7172, %v7165
    %v7174 = vpop.permute.xlu0 %7173
    %v7176 = vmul.f32 %v7169, %v162
    %v7177 = vmul.f32 %v7174, %v163
    %v7178 = vsel %vm1441, %v7176, 0.0
    %v7179 = vrot.slane %v7178, 4
    %v7180 = vadd.f32 %v7178, %v7179
    %v7181 = vrot.slane %v7180, 2
    %v7182 = vadd.f32 %v7180, %v7181
    %v7183 = vrot.slane %v7182, 1
    %v7184 = vadd.f32 %v7182, %v7183
    %v7185 = vsel %vm1441, %v7177, 0.0
    %v7186 = vrot.slane %v7185, 4
    %v7187 = vadd.f32 %v7185, %v7186
    %v7188 = vrot.slane %v7187, 2
    %v7189 = vadd.f32 %v7187, %v7188
    %v7190 = vrot.slane %v7189, 1
    %v7191 = vadd.f32 %v7189, %v7190
    %v7192 = vadd.f32 %v6976, %v7184
    %v7193 = vadd.f32 %v6977, %v7191
    %7195 = vrot.lane.b32.xlu0 %v6761, 64
    %v7196 = vpop.permute.xlu0 %7195
    %v7197 = vsel %vm370, %v7196, 0
    %7199 = vmatprep.subr.mxu0 0.0
    %7200 = vmatpush1.msra.mxu0 %v324
    %7201 = vmatprep.subr.mxu0 0.0
    %7202 = vmatpush1.msra.mxu0 %v325
    %7203 = vmatprep.subr.mxu0 0.0
    %7204 = vmatpush1.msra.mxu0 %v326
    %7205 = vmatprep.subr.mxu0 0.0
    %7206 = vmatpush1.msra.mxu0 %v327
    %7207 = vmatprep.subr.mxu0 0.0
    %7208 = vmatpush1.msra.mxu0 0.0
    %7209 = vmatprep.subr.mxu0 0.0
    %7210 = vmatpush1.msra.mxu0 0.0
    %7211 = vmatprep.subr.mxu0 0.0
    %7212 = vmatpush1.msra.mxu0 0.0
    %7213 = vmatprep.subr.mxu0 0.0
    %7214 = vmatpush1.msra.mxu0 0.0
    %7215 = vmatprep.subr.mxu0 0.0
    %7216 = vmatpush1.msra.mxu0 0.0
    %7217 = vmatprep.subr.mxu0 0.0
    %7218 = vmatpush1.msra.mxu0 0.0
    %7219 = vmatprep.subr.mxu0 0.0
    %7220 = vmatpush1.msra.mxu0 0.0
    %7221 = vmatprep.subr.mxu0 0.0
    %7222 = vmatpush1.msra.mxu0 0.0
    %7223 = vmatprep.subr.mxu0 0.0
    %7224 = vmatpush1.msra.mxu0 0.0
    %7225 = vmatprep.subr.mxu0 0.0
    %7226 = vmatpush1.msra.mxu0 0.0
    %7227 = vmatprep.subr.mxu0 0.0
    %7228 = vmatpush1.msra.mxu0 0.0
    %7229 = vmatprep.subr.mxu0 0.0
    %7230 = vmatpush1.msra.mxu0 0.0
    %7231 = vmatprep.subr.mxu0 0.0
    %7232 = vmatpush1.msra.mxu0 0.0
    %7233 = vmatprep.subr.mxu0 0.0
    %7234 = vmatpush1.msra.mxu0 0.0
    %7235 = vmatprep.subr.mxu0 0.0
    %7236 = vmatpush1.msra.mxu0 0.0
    %7237 = vmatprep.subr.mxu0 0.0
    %7238 = vmatpush1.msra.mxu0 0.0
    %7239 = vmatprep.subr.mxu0 0.0
    %7240 = vmatpush1.msra.mxu0 0.0
    %7241 = vmatprep.subr.mxu0 0.0
    %7242 = vmatpush1.msra.mxu0 0.0
    %7243 = vmatprep.subr.mxu0 0.0
    %7244 = vmatpush1.msra.mxu0 0.0
    %7245 = vmatprep.subr.mxu0 0.0
    %7246 = vmatpush1.msra.mxu0 0.0
    %7247 = vmatprep.subr.mxu0 0.0
    %7248 = vmatpush1.msra.mxu0 0.0
    %7249 = vmatprep.subr.mxu0 0.0
    %7250 = vmatpush1.msra.mxu0 0.0
    %7251 = vmatprep.subr.mxu0 0.0
    %7252 = vmatpush1.msra.mxu0 0.0
    %7253 = vmatprep.subr.mxu0 0.0
    %7254 = vmatpush1.msra.mxu0 0.0
    %7255 = vmatprep.subr.mxu0 0.0
    %7256 = vmatpush1.msra.mxu0 0.0
    %7257 = vmatprep.subr.mxu0 0.0
    %7258 = vmatpush1.msra.mxu0 0.0
    %7259 = vmatprep.subr.mxu0 0.0
    %7260 = vmatpush1.msra.mxu0 0.0
    %7261 = vmatprep.subr.mxu0 0.0
    %7262 = vmatpush1.msra.mxu0 0.0
    %7263 = vmatprep.mubr.f32.mxu0 0.0
    %7264 = vmatmul.mubr.f32.gmra.mrb[0].mxu0 %v7197
    %v7265 = vpop.f32.mrb[0].mxu0
    %v7266 = vadd.f32 0.0, %v7265
    %v7267 = vpop.f32.mrb[0].mxu0
    %7268 = vdwg.mxu0
    %v7271 = vunpack.c.l.s4 1966171168
    %v7272 = vunpack.c.0.s8 %v7271
    %v7273 = vlaneseq
    %v7274 = vshrl.u32 %v7273, 7
    %v7275 = vsub.s32 %v7272, %v7274
    %v7276 = vrot.slane %v7266, %v7275
    %v7277 = vcombine.high %v7276, %v7276
    %v7279 = vunpack.c.l.s4 1966171168
    %v7280 = vunpack.c.0.s8 %v7279
    %v7281 = vlaneseq
    %v7282 = vshrl.u32 %v7281, 7
    %v7283 = vsub.s32 %v7280, %v7282
    %v7284 = vrot.slane %v7276, %v7283
    %v7286 = vunpack.c.l.s4 1966171168
    %v7287 = vunpack.c.0.s8 %v7286
    %v7288 = vlaneseq
    %v7289 = vshrl.u32 %v7288, 7
    %v7290 = vsub.s32 %v7287, %v7289
    %v7291 = vrot.slane %v7277, %v7290
    %v7292 = vlaneseq
    %v7293 = vshrl.u32 %v7292, 7
    %v7294 = vsub.s32 0, %v7293
    %v7295 = vrot.slane %v7284, %v7294
    %v7296 = vlaneseq
    %v7297 = vshrl.u32 %v7296, 7
    %v7298 = vsub.s32 0, %v7297
    %v7299 = vrot.slane %v7291, %v7298
    %v7302 = vadd.f32 %v312, %v7295
    %v7303 = vadd.f32 %v313, %v7299
    %v7304 = vtanh.pop %v7302
    %v7305 = vtanh.pop %v7303
    %v7306 = vmul.f32 %v7304, %v1796
    %v7307 = vmul.f32 %v7305, %v1796
    %v7308 = vsel %vm370, %v7306, 0.0
    %7309 = vadd.xlane.f32.xlu0 %v7308
    %v7310 = vpop.xlane.xlu0 %7309
    %v7311 = vsel %vm370, %v7307, 0.0
    %7312 = vadd.xlane.f32.xlu0 %v7311
    %v7313 = vpop.xlane.xlu0 %7312
    %v7316 = vlaneseq
    %v7317 = vshrl.u32 %v7316, 7
    %v7318 = vsub.s32 %v368, %v7317
    %v7319 = vrot.slane %v7310, %v7318
    %v7320 = vlaneseq
    %v7321 = vshrl.u32 %v7320, 7
    %v7322 = vsub.s32 %v368, %v7321
    %v7323 = vrot.slane %v7313, %v7322
    %v7324 = vsel %vm1369, %v7323, %v7319
    %v7326 = vsel %vm1372, %v7324, -inf
    %7327 = vmax.xlane.f32.xlu0 %v7326
    %v7328 = vpop.xlane.xlu0 %7327
    %v7330 = vlaneseq
    %v7331 = vshrl.u32 %v7330, 7
    %v7332 = vsub.s32 0, %v7331
    %v7333 = vrot.slane %v7328, %v7332
    %v7334 = vlaneseq
    %v7335 = vshrl.u32 %v7334, 7
    %v7336 = vsub.s32 1, %v7335
    %v7337 = vrot.slane %v7328, %v7336
    %v7340 = vsub.f32 %v7310, %v7333
    %v7341 = vsub.f32 %v7313, %v7337
    %v7342 = vmul.f32 %v7340, 1.442695
    %v7343 = vpow.pop %v7342
    %v7344 = vmul.f32 %v7341, 1.442695
    %v7345 = vpow.pop %v7344
    %7348 = vset.pattern.permute.xlu0 0
    %7349 = vperm.xlu0 %7348, %v7343
    %v7350 = vpop.permute.xlu0 %7349
    %7351 = vset.pattern.permute.xlu0 0
    %7352 = vperm.xlu0 %7351, %v7345
    %v7353 = vpop.permute.xlu0 %7352
    %v7354 = vlaneseq
    %v7355 = vshrl.u32 %v7354, 7
    %v7356 = vsub.s32 %v368, %v7355
    %v7357 = vrot.slane %v7350, %v7356
    %v7358 = vlaneseq
    %v7359 = vshrl.u32 %v7358, 7
    %v7360 = vsub.s32 %v368, %v7359
    %v7361 = vrot.slane %v7353, %v7360
    %v7362 = vsel %vm1369, %v7361, %v7357
    %v7364 = vsel %vm1372, %v7362, 0.0
    %7365 = vadd.xlane.f32.xlu0 %v7364
    %v7366 = vpop.xlane.xlu0 %7365
    %v7368 = vlaneseq
    %v7369 = vshrl.u32 %v7368, 7
    %v7370 = vsub.s32 0, %v7369
    %v7371 = vrot.slane %v7366, %v7370
    %v7372 = vlaneseq
    %v7373 = vshrl.u32 %v7372, 7
    %v7374 = vsub.s32 1, %v7373
    %v7375 = vrot.slane %v7366, %v7374
    %v7378 = vrcp.pop %v7371
    %v7379 = vmul.f32 %v7343, %v7378
    %v7380 = vrcp.pop %v7375
    %v7381 = vmul.f32 %v7345, %v7380
    %7383 = vset.pattern.permute.xlu0 0
    %7384 = vperm.xlu0 %7383, %v7379
    %v7385 = vpop.permute.xlu0 %7384
    %7388 = vset.pattern.permute.xlu0 0
    %7389 = vperm.xlu0 %7388, %v7381
    %v7390 = vpop.permute.xlu0 %7389
    %v7392 = vmul.f32 %v7385, %v162
    %v7393 = vmul.f32 %v7390, %v163
    %v7394 = vsel %vm1441, %v7392, 0.0
    %v7395 = vrot.slane %v7394, 4
    %v7396 = vadd.f32 %v7394, %v7395
    %v7397 = vrot.slane %v7396, 2
    %v7398 = vadd.f32 %v7396, %v7397
    %v7399 = vrot.slane %v7398, 1
    %v7400 = vadd.f32 %v7398, %v7399
    %v7401 = vsel %vm1441, %v7393, 0.0
    %v7402 = vrot.slane %v7401, 4
    %v7403 = vadd.f32 %v7401, %v7402
    %v7404 = vrot.slane %v7403, 2
    %v7405 = vadd.f32 %v7403, %v7404
    %v7406 = vrot.slane %v7405, 1
    %v7407 = vadd.f32 %v7405, %v7406
    %v7408 = vadd.f32 %v7192, %v7400
    %v7409 = vadd.f32 %v7193, %v7407
    %v7410 = vmul.f32 %v7408, 0.33333334
    %v7411 = vmul.f32 %v7409, 0.33333334
    %v7414 = vsel %vm1369, %v7411, %v7410
    %v7415 = vsel %vm1441, %v7414, 0
    %7417 = vmatprep.subr.mxu0 0.0
    %7418 = vmatpush1.msra.mxu0 %v337
    %7419 = vmatprep.subr.mxu0 0.0
    %7420 = vmatpush1.msra.mxu0 %v338
    %7421 = vmatprep.subr.mxu0 0.0
    %7422 = vmatpush1.msra.mxu0 %v339
    %7423 = vmatprep.subr.mxu0 0.0
    %7424 = vmatpush1.msra.mxu0 %v340
    %7425 = vmatprep.subr.mxu0 0.0
    %7426 = vmatpush1.msra.mxu0 %v341
    %7427 = vmatprep.subr.mxu0 0.0
    %7428 = vmatpush1.msra.mxu0 %v342
    %7429 = vmatprep.subr.mxu0 0.0
    %7430 = vmatpush1.msra.mxu0 %v343
    %7431 = vmatprep.subr.mxu0 0.0
    %7432 = vmatpush1.msra.mxu0 %v344
    %7433 = vmatprep.subr.mxu0 0.0
    %7434 = vmatpush1.msra.mxu0 0.0
    %7435 = vmatprep.subr.mxu0 0.0
    %7436 = vmatpush1.msra.mxu0 0.0
    %7437 = vmatprep.subr.mxu0 0.0
    %7438 = vmatpush1.msra.mxu0 0.0
    %7439 = vmatprep.subr.mxu0 0.0
    %7440 = vmatpush1.msra.mxu0 0.0
    %7441 = vmatprep.subr.mxu0 0.0
    %7442 = vmatpush1.msra.mxu0 0.0
    %7443 = vmatprep.subr.mxu0 0.0
    %7444 = vmatpush1.msra.mxu0 0.0
    %7445 = vmatprep.subr.mxu0 0.0
    %7446 = vmatpush1.msra.mxu0 0.0
    %7447 = vmatprep.subr.mxu0 0.0
    %7448 = vmatpush1.msra.mxu0 0.0
    %7449 = vmatprep.subr.mxu0 0.0
    %7450 = vmatpush1.msra.mxu0 0.0
    %7451 = vmatprep.subr.mxu0 0.0
    %7452 = vmatpush1.msra.mxu0 0.0
    %7453 = vmatprep.subr.mxu0 0.0
    %7454 = vmatpush1.msra.mxu0 0.0
    %7455 = vmatprep.subr.mxu0 0.0
    %7456 = vmatpush1.msra.mxu0 0.0
    %7457 = vmatprep.subr.mxu0 0.0
    %7458 = vmatpush1.msra.mxu0 0.0
    %7459 = vmatprep.subr.mxu0 0.0
    %7460 = vmatpush1.msra.mxu0 0.0
    %7461 = vmatprep.subr.mxu0 0.0
    %7462 = vmatpush1.msra.mxu0 0.0
    %7463 = vmatprep.subr.mxu0 0.0
    %7464 = vmatpush1.msra.mxu0 0.0
    %7465 = vmatprep.subr.mxu0 0.0
    %7466 = vmatpush1.msra.mxu0 0.0
    %7467 = vmatprep.subr.mxu0 0.0
    %7468 = vmatpush1.msra.mxu0 0.0
    %7469 = vmatprep.subr.mxu0 0.0
    %7470 = vmatpush1.msra.mxu0 0.0
    %7471 = vmatprep.subr.mxu0 0.0
    %7472 = vmatpush1.msra.mxu0 0.0
    %7473 = vmatprep.subr.mxu0 0.0
    %7474 = vmatpush1.msra.mxu0 0.0
    %7475 = vmatprep.subr.mxu0 0.0
    %7476 = vmatpush1.msra.mxu0 0.0
    %7477 = vmatprep.subr.mxu0 0.0
    %7478 = vmatpush1.msra.mxu0 0.0
    %7479 = vmatprep.subr.mxu0 0.0
    %7480 = vmatpush1.msra.mxu0 0.0
    %7481 = vmatprep.mubr.f32.mxu0 0.0
    %7482 = vmatmul.mubr.f32.gmra.mrb[0].mxu0 %v7415
    %v7483 = vpop.f32.mrb[0].mxu0
    %v7484 = vadd.f32 0.0, %v7483
    %v7485 = vpop.f32.mrb[0].mxu0
    %7486 = vdwg.mxu0
    %7487 = vmatprep.subr.mxu0 0.0
    %7488 = vmatpush1.msra.mxu0 %v333
    %7489 = vmatprep.subr.mxu0 0.0
    %7490 = vmatpush1.msra.mxu0 %v334
    %7491 = vmatprep.subr.mxu0 0.0
    %7492 = vmatpush1.msra.mxu0 %v335
    %7493 = vmatprep.subr.mxu0 0.0
    %7494 = vmatpush1.msra.mxu0 %v336
    %7495 = vmatprep.subr.mxu0 0.0
    %7496 = vmatpush1.msra.mxu0 0.0
    %7497 = vmatprep.subr.mxu0 0.0
    %7498 = vmatpush1.msra.mxu0 0.0
    %7499 = vmatprep.subr.mxu0 0.0
    %7500 = vmatpush1.msra.mxu0 0.0
    %7501 = vmatprep.subr.mxu0 0.0
    %7502 = vmatpush1.msra.mxu0 0.0
    %7503 = vmatprep.subr.mxu0 0.0
    %7504 = vmatpush1.msra.mxu0 0.0
    %7505 = vmatprep.subr.mxu0 0.0
    %7506 = vmatpush1.msra.mxu0 0.0
    %7507 = vmatprep.subr.mxu0 0.0
    %7508 = vmatpush1.msra.mxu0 0.0
    %7509 = vmatprep.subr.mxu0 0.0
    %7510 = vmatpush1.msra.mxu0 0.0
    %7511 = vmatprep.subr.mxu0 0.0
    %7512 = vmatpush1.msra.mxu0 0.0
    %7513 = vmatprep.subr.mxu0 0.0
    %7514 = vmatpush1.msra.mxu0 0.0
    %7515 = vmatprep.subr.mxu0 0.0
    %7516 = vmatpush1.msra.mxu0 0.0
    %7517 = vmatprep.subr.mxu0 0.0
    %7518 = vmatpush1.msra.mxu0 0.0
    %7519 = vmatprep.subr.mxu0 0.0
    %7520 = vmatpush1.msra.mxu0 0.0
    %7521 = vmatprep.subr.mxu0 0.0
    %7522 = vmatpush1.msra.mxu0 0.0
    %7523 = vmatprep.subr.mxu0 0.0
    %7524 = vmatpush1.msra.mxu0 0.0
    %7525 = vmatprep.subr.mxu0 0.0
    %7526 = vmatpush1.msra.mxu0 0.0
    %7527 = vmatprep.subr.mxu0 0.0
    %7528 = vmatpush1.msra.mxu0 0.0
    %7529 = vmatprep.subr.mxu0 0.0
    %7530 = vmatpush1.msra.mxu0 0.0
    %7531 = vmatprep.subr.mxu0 0.0
    %7532 = vmatpush1.msra.mxu0 0.0
    %7533 = vmatprep.subr.mxu0 0.0
    %7534 = vmatpush1.msra.mxu0 0.0
    %7535 = vmatprep.subr.mxu0 0.0
    %7536 = vmatpush1.msra.mxu0 0.0
    %7537 = vmatprep.subr.mxu0 0.0
    %7538 = vmatpush1.msra.mxu0 0.0
    %7539 = vmatprep.subr.mxu0 0.0
    %7540 = vmatpush1.msra.mxu0 0.0
    %7541 = vmatprep.subr.mxu0 0.0
    %7542 = vmatpush1.msra.mxu0 0.0
    %7543 = vmatprep.subr.mxu0 0.0
    %7544 = vmatpush1.msra.mxu0 0.0
    %7545 = vmatprep.subr.mxu0 0.0
    %7546 = vmatpush1.msra.mxu0 0.0
    %7547 = vmatprep.subr.mxu0 0.0
    %7548 = vmatpush1.msra.mxu0 0.0
    %7549 = vmatprep.subr.mxu0 0.0
    %7550 = vmatpush1.msra.mxu0 0.0
    %7551 = vmatprep.mubr.f32.mxu0 0.0
    %7552 = vmatmul.mubr.f32.gmra.mrb[0].mxu0 %v5752
    %v7553 = vpop.f32.mrb[0].mxu0
    %v7554 = vadd.f32 %v7484, %v7553
    %v7555 = vpop.f32.mrb[0].mxu0
    %7556 = vdwg.mxu0
    %v7557 = vadd.f32 %v7554, %v2056
    %v7558 = vxor.u32 %v7557, 2147483648
    %v7559 = vmul.f32 %v7558, 1.442695
    %v7560 = vpow.pop %v7559
    %v7561 = vadd.f32 %v7560, 1.0
    %v7562 = vrcp.pop %v7561
    %v7563 = vmul.f32 1.0, %v7562
    %v7565 = vmul.f32 %v7563, %v6764
    %v7566 = vsub.f32 1.0, %v7563
    %v7568 = vmul.f32 %v7566, %v6980
    %v7569 = vadd.f32 %v7565, %v7568
    %7571 = vrot.lane.b32.xlu0 %v7569, 32
    %v7572 = vpop.permute.xlu0 %7571
    %v7574 = vmul.f32 %v7563, %v7572
    %7575 = vrot.lane.b32.xlu0 %v6761, 96
    %v7576 = vpop.permute.xlu0 %7575
    %v7578 = vmul.f32 %v7566, %v7576
    %v7579 = vadd.f32 %v7574, %v7578
    %7581 = vrot.lane.b32.xlu0 %v7579, 96
    %v7582 = vpop.permute.xlu0 %7581
    %v7583 = vsel %vm370, %v7582, 0
    %7585 = vmatprep.subr.mxu0 0.0
    %7586 = vmatpush1.msra.mxu0 %v346
    %7587 = vmatprep.subr.mxu0 0.0
    %7588 = vmatpush1.msra.mxu0 %v347
    %7589 = vmatprep.subr.mxu0 0.0
    %7590 = vmatpush1.msra.mxu0 %v348
    %7591 = vmatprep.subr.mxu0 0.0
    %7592 = vmatpush1.msra.mxu0 %v349
    %7593 = vmatprep.subr.mxu0 0.0
    %7594 = vmatpush1.msra.mxu0 0.0
    %7595 = vmatprep.subr.mxu0 0.0
    %7596 = vmatpush1.msra.mxu0 0.0
    %7597 = vmatprep.subr.mxu0 0.0
    %7598 = vmatpush1.msra.mxu0 0.0
    %7599 = vmatprep.subr.mxu0 0.0
    %7600 = vmatpush1.msra.mxu0 0.0
    %7601 = vmatprep.subr.mxu0 0.0
    %7602 = vmatpush1.msra.mxu0 0.0
    %7603 = vmatprep.subr.mxu0 0.0
    %7604 = vmatpush1.msra.mxu0 0.0
    %7605 = vmatprep.subr.mxu0 0.0
    %7606 = vmatpush1.msra.mxu0 0.0
    %7607 = vmatprep.subr.mxu0 0.0
    %7608 = vmatpush1.msra.mxu0 0.0
    %7609 = vmatprep.subr.mxu0 0.0
    %7610 = vmatpush1.msra.mxu0 0.0
    %7611 = vmatprep.subr.mxu0 0.0
    %7612 = vmatpush1.msra.mxu0 0.0
    %7613 = vmatprep.subr.mxu0 0.0
    %7614 = vmatpush1.msra.mxu0 0.0
    %7615 = vmatprep.subr.mxu0 0.0
    %7616 = vmatpush1.msra.mxu0 0.0
    %7617 = vmatprep.subr.mxu0 0.0
    %7618 = vmatpush1.msra.mxu0 0.0
    %7619 = vmatprep.subr.mxu0 0.0
    %7620 = vmatpush1.msra.mxu0 0.0
    %7621 = vmatprep.subr.mxu0 0.0
    %7622 = vmatpush1.msra.mxu0 0.0
    %7623 = vmatprep.subr.mxu0 0.0
    %7624 = vmatpush1.msra.mxu0 0.0
    %7625 = vmatprep.subr.mxu0 0.0
    %7626 = vmatpush1.msra.mxu0 0.0
    %7627 = vmatprep.subr.mxu0 0.0
    %7628 = vmatpush1.msra.mxu0 0.0
    %7629 = vmatprep.subr.mxu0 0.0
    %7630 = vmatpush1.msra.mxu0 0.0
    %7631 = vmatprep.subr.mxu0 0.0
    %7632 = vmatpush1.msra.mxu0 0.0
    %7633 = vmatprep.subr.mxu0 0.0
    %7634 = vmatpush1.msra.mxu0 0.0
    %7635 = vmatprep.subr.mxu0 0.0
    %7636 = vmatpush1.msra.mxu0 0.0
    %7637 = vmatprep.subr.mxu0 0.0
    %7638 = vmatpush1.msra.mxu0 0.0
    %7639 = vmatprep.subr.mxu0 0.0
    %7640 = vmatpush1.msra.mxu0 0.0
    %7641 = vmatprep.subr.mxu0 0.0
    %7642 = vmatpush1.msra.mxu0 0.0
    %7643 = vmatprep.subr.mxu0 0.0
    %7644 = vmatpush1.msra.mxu0 0.0
    %7645 = vmatprep.subr.mxu0 0.0
    %7646 = vmatpush1.msra.mxu0 0.0
    %7647 = vmatprep.subr.mxu0 0.0
    %7648 = vmatpush1.msra.mxu0 0.0
    %7649 = vmatprep.mubr.f32.mxu0 0.0
    %7650 = vmatmul.mubr.f32.gmra.mrb[0].mxu0 %v7583
    %v7651 = vpop.f32.mrb[0].mxu0
    %v7652 = vadd.f32 %v2085, %v7651
    %v7653 = vpop.f32.mrb[0].mxu0
    %7654 = vdwg.mxu0
    %s7655 = scalar_lea.vmem %s22, 6
    %7656 = vst [vmem:[%s7655] sm:$0x3] %v7652
    // Predicated region
    $region118: #{decoder_forward.1} parent=1 // pred_check
      _
    $region119: #{decoder_forward.1} parent=1 // pred_check_branch
      %7658 = sbr.rel (0) target = $region121
    $region120: #{decoder_forward.1} parent=1 // pred_region
      _
    $region121: #{decoder_forward.1} parent=1 // pred_fallthru
      _
    // Predicated region
    $region122: #{decoder_forward.1} parent=1 // pred_check
      _
    $region123: #{decoder_forward.1} parent=1 // pred_check_branch
      %7660 = sbr.rel (0) target = $region125
    $region124: #{decoder_forward.1} parent=1 // pred_region
      _
    $region125: #{decoder_forward.1} parent=1 // pred_fallthru
      _
    %7661 = vsyncpa [#allocation3], 1
    %7662 = vsyncpa [#allocation5], 1
    %7663 = vsyncpa [#allocation8], 1
    %7664 = vsyncpa [#allocation11], 1

</llo_original>
